<compile_context>
chip_gen: v6e
topology: v6e:2x2x1
jax: 0.10.0
libtpu: 0.0.40
codegen_flags: <defaults>
</compile_context>

<pallas_src>
import jax
import jax.numpy as jnp
from jax.experimental import pallas as pl
from jax.experimental.pallas import tpu as pltpu

EPS = 1e-5
OUT = 65
OUT_PAD = 128          # lane-dense padded fc2 width (sliced to 65 in wrapper)

# Lane-dense sizes of the band-matmul pipeline.
N1 = 30 * 32           # pool1 output: 30 positions x 32 channels = 960
N1_PAD = 1024          # padded to a multiple of 128
N2 = 14 * 64           # pool2 output: 14 positions x 64 channels = 896 (= 7*128)


def sign_cnn_kernel(x_ref, w1e_ref, w1o_ref, b1_ref, w2e_ref, w2o_ref, b2_ref,
                    wf1_ref, bf1_ref, wf2_ref, bf2_ref, out_ref):
    # x: (BT, 63) f32, batch on sublanes, landmark features on lanes.
    xb = x_ref[...].astype(jnp.bfloat16)

    # ---- conv1 (bn1 folded) as two band matmuls (even / odd output positions).
    # h1e[:, j*32+c] = conv1 output at position 2j,   h1o -> position 2j+1.
    h1e = jnp.dot(xb, w1e_ref[...], preferred_element_type=jnp.float32)
    h1o = jnp.dot(xb, w1o_ref[...], preferred_element_type=jnp.float32)
    # ---- maxpool k=2 + bias + relu: max/relu commute, bias identical per pair.
    p1 = jnp.maximum(jnp.maximum(h1e, h1o) + b1_ref[...], 0.0)   # (BT, 1024)
    p1b = p1.astype(jnp.bfloat16)

    # ---- conv2 (bn2 folded) as two band matmuls on the compact pooled tile.
    # h2e[:, v*64+d] = conv2 output at position 2v,   h2o -> position 2v+1.
    h2e = jnp.dot(p1b, w2e_ref[...], preferred_element_type=jnp.float32)
    h2o = jnp.dot(p1b, w2o_ref[...], preferred_element_type=jnp.float32)
    # ---- maxpool k=2 + bias + relu -> lane-dense (BT, 896), v*64+d order.
    p2 = jnp.maximum(jnp.maximum(h2e, h2o) + b2_ref[...], 0.0)
    p2b = p2.astype(jnp.bfloat16)

    # ---- fc1 + relu (wf1 pre-permuted to v*64+d lane order; no flatten relayout)
    f1 = jnp.dot(p2b, wf1_ref[...], preferred_element_type=jnp.float32)
    f1 = jnp.maximum(f1 + bf1_ref[...], 0.0).astype(jnp.bfloat16)

    # ---- dropout(0.4): identity in eval mode
    # ---- fc2: output zero-padded to 128 lanes for unmasked lane-dense stores
    out_ref[...] = jnp.dot(f1, wf2_ref[...],
                           preferred_element_type=jnp.float32) + bf2_ref[...]


def _round_up(n, m):
    return -(-n // m) * m


def sign_cnn_pallas(x, kparams, *, block_b=512):
    """x: (B, 63) float32. Returns (B, 65) float32."""
    B = x.shape[0]
    x = x.reshape(B, 63).astype(jnp.float32)

    bt = _round_up(min(block_b, B), 8)            # 8-row aligned batch tile
    # Megacore (v7x): keep >=2 grid steps whenever there is enough batch, so
    # the single "parallel" axis actually shards across both TensorCores.
    if B > 8 and _round_up(B, bt) // bt < 2:
        bt = _round_up(-(-B // 2), 8)
    b_pad = _round_up(B, bt)
    if b_pad != B:
        x = jnp.pad(x, ((0, b_pad - B), (0, 0)))
    grid = (b_pad // bt,)

    x_spec = pl.BlockSpec((bt, 63), lambda i: (i, 0))
    # All packed weights/biases are 2-D; full-array blocks with constant
    # index_maps keep them resident in VMEM across the batch grid.
    w_specs = [pl.BlockSpec(tuple(p.shape), lambda i: (0, 0)) for p in kparams]
    out_spec = pl.BlockSpec((bt, OUT_PAD), lambda i: (i, 0))

    flops_per_row = 2 * (63 * 2 * N1_PAD + N1_PAD * 2 * N2
                         + N2 * 256 + 256 * OUT_PAD)
    bytes_weights = sum(int(p.size) * p.dtype.itemsize for p in kparams)
    cost = pl.CostEstimate(
        flops=int(flops_per_row * b_pad),
        transcendentals=0,
        bytes_accessed=int(bytes_weights + b_pad * (63 + OUT_PAD) * 4),
    )

    out = pl.pallas_call(
        sign_cnn_kernel,
        out_shape=jax.ShapeDtypeStruct((b_pad, OUT_PAD), jnp.float32),
        grid=grid,
        in_specs=[x_spec] + w_specs,
        out_specs=out_spec,
        compiler_params=pltpu.CompilerParams(
            dimension_semantics=("parallel",),
            # Raise the scoped VMEM cap so bt=512 f32 intermediates + resident
            # (double-buffered) weights fit on every generation; ~30 MB worst
            # case, safely below v7x's 64 MiB physical VMEM.
            vmem_limit_bytes=48 * 1024 * 1024),
        cost_estimate=cost,
    )(x, *kparams)
    return out[:B, :OUT]


# ----------------------------------------------------------------------------
# Deterministic parameter construction (PyTorch shapes) + kernel-side packing.
# ----------------------------------------------------------------------------
def make_torch_params(key):
    ks = jax.random.split(key, 16)
    nrm = lambda k, s, sc: sc * jax.random.normal(k, s, dtype=jnp.float32)
    w1 = nrm(ks[0], (32, 1, 3), 0.3)
    b1 = nrm(ks[1], (32,), 0.1)
    g1 = 1.0 + nrm(ks[2], (32,), 0.1)
    be1 = nrm(ks[3], (32,), 0.1)
    m1 = nrm(ks[4], (32,), 0.05)
    v1 = 0.5 + jnp.abs(nrm(ks[5], (32,), 0.5))
    w2 = nrm(ks[6], (64, 32, 3), 0.1)
    b2 = nrm(ks[7], (64,), 0.1)
    g2 = 1.0 + nrm(ks[8], (64,), 0.1)
    be2 = nrm(ks[9], (64,), 0.1)
    m2 = nrm(ks[10], (64,), 0.05)
    v2 = 0.5 + jnp.abs(nrm(ks[11], (64,), 0.5))
    wf1 = nrm(ks[12], (256, 64 * 14), 0.03)
    bf1 = nrm(ks[13], (256,), 0.05)
    wf2 = nrm(ks[14], (OUT, 256), 0.05)
    bf2 = nrm(ks[15], (OUT,), 0.05)
    return (w1, b1, g1, be1, m1, v1, w2, b2, g2, be2, m2, v2, wf1, bf1, wf2, bf2)


def pack_for_kernel(p):
    (w1, b1, g1, be1, m1, v1, w2, b2, g2, be2, m2, v2, wf1, bf1, wf2, bf2) = p
    # Fold BN (inference, running stats) into per-channel scale/shift.
    s1 = g1 / jnp.sqrt(v1 + EPS)
    t1 = be1 - m1 * s1
    s2 = g2 / jnp.sqrt(v2 + EPS)
    t2 = be2 - m2 * s2

    # conv1 taps with BN scale folded: (K=3, Cout=32)
    w1kc = jnp.transpose(w1[:, 0, :], (1, 0)) * s1[None, :]
    b1c = b1 * s1 + t1                                            # (32,)

    def band1(parity):
        # (63 input positions, 30 pooled groups, 32 channels) band matrix.
        # Group j produces conv1 output at position 2j+parity.
        W = jnp.zeros((63, 30, 32), jnp.float32)
        j = jnp.arange(30)
        for k in range(3):
            W = W.at[2 * j + parity + k, j, :].set(
                jnp.broadcast_to(w1kc[k], (30, 32)))
        W = W.reshape(63, N1)
        return jnp.pad(W, ((0, 0), (0, N1_PAD - N1))).astype(jnp.bfloat16)

    w1e, w1o = band1(0), band1(1)                                 # (63, 1024)
    b1band = jnp.pad(jnp.tile(b1c, 30), (0, N1_PAD - N1)).reshape(1, N1_PAD)

    # conv2 taps with BN scale folded: (K=3, Cin=32, Cout=64)
    w2kcd = jnp.transpose(w2, (2, 1, 0)) * s2[None, None, :]
    b2c = b2 * s2 + t2                                            # (64,)

    def band2(parity):
        # (32 input groups, 32 cin, 14 pooled groups, 64 cout) -> (1024, 896).
        # Column (v*64+d) is conv2 output channel d at position 2v+parity.
        W = jnp.zeros((32, 32, 14, 64), jnp.float32)
        v = jnp.arange(14)
        for k in range(3):
            W = W.at[2 * v + parity + k, :, v, :].set(
                jnp.broadcast_to(w2kcd[k][None, :, :], (14, 32, 64)))
        return W.reshape(N1_PAD, N2).astype(jnp.bfloat16)

    w2e, w2o = band2(0), band2(1)                                 # (1024, 896)
    b2band = jnp.tile(b2c, 14).reshape(1, N2)

    # fc1: torch flatten is channel-major (d*14 + v); kernel lanes are (v*64 + d).
    wf1k = jnp.transpose(wf1.reshape(256, 64, 14), (2, 1, 0)) \
              .reshape(N2, 256).astype(jnp.bfloat16)
    bf1k = bf1.reshape(1, 256)
    # fc2: transpose + zero-pad output lanes 65 -> 128 (lane-dense stores).
    wf2k = jnp.pad(wf2.T, ((0, 0), (0, OUT_PAD - OUT))).astype(jnp.bfloat16)
    bf2k = jnp.pad(bf2.reshape(1, OUT), ((0, 0), (0, OUT_PAD - OUT)))
    return (w1e, w1o, b1band, w2e, w2o, b2band, wf1k, bf1k, wf2k, bf2k)


# ----------------------------------------------------------------------------
# Pure-JAX f32 reference (mirrors the PyTorch forward, NCL layout, eval mode).
# ----------------------------------------------------------------------------
def reference_forward(x, p):
    (w1, b1, g1, be1, m1, v1, w2, b2, g2, be2, m2, v2, wf1, bf1, wf2, bf2) = p
    B = x.shape[0]
    y = x.reshape(B, 1, -1)
    dn = ('NCH', 'OIH', 'NCH')
    y = jax.lax.conv_general_dilated(y, w1, (1,), 'VALID', dimension_numbers=dn)
    y = y + b1[None, :, None]
    y = (y - m1[None, :, None]) / jnp.sqrt(v1[None, :, None] + EPS) \
        * g1[None, :, None] + be1[None, :, None]
    y = jax.nn.relu(y)
    L = y.shape[-1]
    y = y[:, :, :(L // 2) * 2].reshape(B, 32, L // 2, 2).max(-1)
    y = jax.lax.conv_general_dilated(y, w2, (1,), 'VALID', dimension_numbers=dn)
    y = y + b2[None, :, None]
    y = (y - m2[None, :, None]) / jnp.sqrt(v2[None, :, None] + EPS) \
        * g2[None, :, None] + be2[None, :, None]
    y = jax.nn.relu(y)
    L = y.shape[-1]
    y = y[:, :, :(L // 2) * 2].reshape(B, 64, L // 2, 2).max(-1)
    y = y.reshape(B, -1)
    y = jax.nn.relu(y @ wf1.T + bf1)
    y = y @ wf2.T + bf2
    return y


if __name__ == "__main__":
    key = jax.random.PRNGKey(0)
    kx, kp = jax.random.split(key)
    # Input length 63 (21 landmarks x 3 coords): 63 ->conv-> 61 ->pool-> 30
    # ->conv-> 28 ->pool-> 14, matching fc1's 64*14 input.
    x = jax.random.normal(kx, (2, 63), dtype=jnp.float32)

    torch_params = make_torch_params(kp)
    kernel_params = pack_for_kernel(torch_params)

    out = jax.block_until_ready(sign_cnn_pallas(x, kernel_params))
    ref = jax.block_until_ready(reference_forward(x, torch_params))

    assert out.shape == (2, OUT), out.shape
    assert bool(jnp.all(jnp.isfinite(out)))
    # Tolerance accounts for bf16 matmul weights/activations (f32 accumulation).
    err = float(jnp.max(jnp.abs(out - ref)))
    assert bool(jnp.allclose(out, ref, rtol=5e-2, atol=1e-1)), err
    print("KERNEL_OK")
</pallas_src>

<mosaic_0001>
module attributes {stable_mosaic.version = 11 : i64} {
  func.func @sign_cnn_kernel(%arg0: i32, %arg1: memref<8x63xf32, #tpu.memory_space<vmem>>, %arg2: memref<63x1024xbf16, #tpu.memory_space<vmem>>, %arg3: memref<63x1024xbf16, #tpu.memory_space<vmem>>, %arg4: memref<1x1024xf32, #tpu.memory_space<vmem>>, %arg5: memref<1024x896xbf16, #tpu.memory_space<vmem>>, %arg6: memref<1024x896xbf16, #tpu.memory_space<vmem>>, %arg7: memref<1x896xf32, #tpu.memory_space<vmem>>, %arg8: memref<896x256xbf16, #tpu.memory_space<vmem>>, %arg9: memref<1x256xf32, #tpu.memory_space<vmem>>, %arg10: memref<256x128xbf16, #tpu.memory_space<vmem>>, %arg11: memref<1x128xf32, #tpu.memory_space<vmem>>, %arg12: memref<8x128xf32, #tpu.memory_space<vmem>>) attributes {dimension_semantics = [#tpu.dimension_semantics<parallel>], iteration_bounds = array<i64: 1>, scalar_prefetch = 0 : i64, scratch_operands = 0 : i64, tpu.core_type = #tpu.core_type<tc>, window_params = [{transform_indices = @transform_0, window_bounds = array<i64: 8, 63>}, {pipeline_mode = #tpu.pipeline_mode<synchronous>, transform_indices = @transform_1, window_bounds = array<i64: 63, 1024>}, {pipeline_mode = #tpu.pipeline_mode<synchronous>, transform_indices = @transform_2, window_bounds = array<i64: 63, 1024>}, {pipeline_mode = #tpu.pipeline_mode<synchronous>, transform_indices = @transform_3, window_bounds = array<i64: 1, 1024>}, {pipeline_mode = #tpu.pipeline_mode<synchronous>, transform_indices = @transform_4, window_bounds = array<i64: 1024, 896>}, {pipeline_mode = #tpu.pipeline_mode<synchronous>, transform_indices = @transform_5, window_bounds = array<i64: 1024, 896>}, {pipeline_mode = #tpu.pipeline_mode<synchronous>, transform_indices = @transform_6, window_bounds = array<i64: 1, 896>}, {pipeline_mode = #tpu.pipeline_mode<synchronous>, transform_indices = @transform_7, window_bounds = array<i64: 896, 256>}, {pipeline_mode = #tpu.pipeline_mode<synchronous>, transform_indices = @transform_8, window_bounds = array<i64: 1, 256>}, {pipeline_mode = #tpu.pipeline_mode<synchronous>, transform_indices = @transform_9, window_bounds = array<i64: 256, 128>}, {pipeline_mode = #tpu.pipeline_mode<synchronous>, transform_indices = @transform_10, window_bounds = array<i64: 1, 128>}, {transform_indices = @transform_11, window_bounds = array<i64: 8, 128>}]} {
    %c0 = arith.constant 0 : index
    %c0_0 = arith.constant 0 : index
    %0 = vector.load %arg1[%c0, %c0_0] : memref<8x63xf32, #tpu.memory_space<vmem>>, vector<8x63xf32>
    %1 = arith.truncf %0 : vector<8x63xf32> to vector<8x63xbf16>
    %c0_1 = arith.constant 0 : index
    %c0_2 = arith.constant 0 : index
    %2 = vector.load %arg2[%c0_1, %c0_2] : memref<63x1024xbf16, #tpu.memory_space<vmem>>, vector<63x1024xbf16>
    %cst = arith.constant dense<0.000000e+00> : vector<8x1024xf32>
    %3 = tpu.matmul %1, %2, %cst {dimension_numbers = #tpu.dot_dimension_numbers<[1], [0], [0], [1], [0, 0, 1, 1], [], []>} : vector<8x63xbf16>, vector<63x1024xbf16>, vector<8x1024xf32> -> vector<8x1024xf32>
    %c0_3 = arith.constant 0 : index
    %c0_4 = arith.constant 0 : index
    %4 = vector.load %arg3[%c0_3, %c0_4] : memref<63x1024xbf16, #tpu.memory_space<vmem>>, vector<63x1024xbf16>
    %cst_5 = arith.constant dense<0.000000e+00> : vector<8x1024xf32>
    %5 = tpu.matmul %1, %4, %cst_5 {dimension_numbers = #tpu.dot_dimension_numbers<[1], [0], [0], [1], [0, 0, 1, 1], [], []>} : vector<8x63xbf16>, vector<63x1024xbf16>, vector<8x1024xf32> -> vector<8x1024xf32>
    %6 = arith.maximumf %3, %5 : vector<8x1024xf32>
    %c0_6 = arith.constant 0 : index
    %c0_7 = arith.constant 0 : index
    %7 = vector.load %arg4[%c0_6, %c0_7] : memref<1x1024xf32, #tpu.memory_space<vmem>>, vector<1x1024xf32>
    %8 = vector.broadcast %7 : vector<1x1024xf32> to vector<8x1024xf32>
    %9 = arith.addf %6, %8 : vector<8x1024xf32>
    %cst_8 = arith.constant 0.000000e+00 : f32
    %10 = vector.broadcast %cst_8 : f32 to vector<8x1024xf32>
    %11 = arith.maximumf %9, %10 : vector<8x1024xf32>
    %12 = arith.truncf %11 : vector<8x1024xf32> to vector<8x1024xbf16>
    %c0_9 = arith.constant 0 : index
    %c0_10 = arith.constant 0 : index
    %13 = vector.load %arg5[%c0_9, %c0_10] : memref<1024x896xbf16, #tpu.memory_space<vmem>>, vector<1024x896xbf16>
    %cst_11 = arith.constant dense<0.000000e+00> : vector<8x896xf32>
    %14 = tpu.matmul %12, %13, %cst_11 {dimension_numbers = #tpu.dot_dimension_numbers<[1], [0], [0], [1], [0, 0, 1, 1], [], []>} : vector<8x1024xbf16>, vector<1024x896xbf16>, vector<8x896xf32> -> vector<8x896xf32>
    %c0_12 = arith.constant 0 : index
    %c0_13 = arith.constant 0 : index
    %15 = vector.load %arg6[%c0_12, %c0_13] : memref<1024x896xbf16, #tpu.memory_space<vmem>>, vector<1024x896xbf16>
    %cst_14 = arith.constant dense<0.000000e+00> : vector<8x896xf32>
    %16 = tpu.matmul %12, %15, %cst_14 {dimension_numbers = #tpu.dot_dimension_numbers<[1], [0], [0], [1], [0, 0, 1, 1], [], []>} : vector<8x1024xbf16>, vector<1024x896xbf16>, vector<8x896xf32> -> vector<8x896xf32>
    %17 = arith.maximumf %14, %16 : vector<8x896xf32>
    %c0_15 = arith.constant 0 : index
    %c0_16 = arith.constant 0 : index
    %18 = vector.load %arg7[%c0_15, %c0_16] : memref<1x896xf32, #tpu.memory_space<vmem>>, vector<1x896xf32>
    %19 = vector.broadcast %18 : vector<1x896xf32> to vector<8x896xf32>
    %20 = arith.addf %17, %19 : vector<8x896xf32>
    %cst_17 = arith.constant 0.000000e+00 : f32
    %21 = vector.broadcast %cst_17 : f32 to vector<8x896xf32>
    %22 = arith.maximumf %20, %21 : vector<8x896xf32>
    %23 = arith.truncf %22 : vector<8x896xf32> to vector<8x896xbf16>
    %c0_18 = arith.constant 0 : index
    %c0_19 = arith.constant 0 : index
    %24 = vector.load %arg8[%c0_18, %c0_19] : memref<896x256xbf16, #tpu.memory_space<vmem>>, vector<896x256xbf16>
    %cst_20 = arith.constant dense<0.000000e+00> : vector<8x256xf32>
    %25 = tpu.matmul %23, %24, %cst_20 {dimension_numbers = #tpu.dot_dimension_numbers<[1], [0], [0], [1], [0, 0, 1, 1], [], []>} : vector<8x896xbf16>, vector<896x256xbf16>, vector<8x256xf32> -> vector<8x256xf32>
    %c0_21 = arith.constant 0 : index
    %c0_22 = arith.constant 0 : index
    %26 = vector.load %arg9[%c0_21, %c0_22] : memref<1x256xf32, #tpu.memory_space<vmem>>, vector<1x256xf32>
    %27 = vector.broadcast %26 : vector<1x256xf32> to vector<8x256xf32>
    %28 = arith.addf %25, %27 : vector<8x256xf32>
    %cst_23 = arith.constant 0.000000e+00 : f32
    %29 = vector.broadcast %cst_23 : f32 to vector<8x256xf32>
    %30 = arith.maximumf %28, %29 : vector<8x256xf32>
    %31 = arith.truncf %30 : vector<8x256xf32> to vector<8x256xbf16>
    %c0_24 = arith.constant 0 : index
    %c0_25 = arith.constant 0 : index
    %32 = vector.load %arg10[%c0_24, %c0_25] : memref<256x128xbf16, #tpu.memory_space<vmem>>, vector<256x128xbf16>
    %cst_26 = arith.constant dense<0.000000e+00> : vector<8x128xf32>
    %33 = tpu.matmul %31, %32, %cst_26 {dimension_numbers = #tpu.dot_dimension_numbers<[1], [0], [0], [1], [0, 0, 1, 1], [], []>} : vector<8x256xbf16>, vector<256x128xbf16>, vector<8x128xf32> -> vector<8x128xf32>
    %c0_27 = arith.constant 0 : index
    %c0_28 = arith.constant 0 : index
    %34 = vector.load %arg11[%c0_27, %c0_28] : memref<1x128xf32, #tpu.memory_space<vmem>>, vector<1x128xf32>
    %35 = vector.broadcast %34 : vector<1x128xf32> to vector<8x128xf32>
    %36 = arith.addf %33, %35 : vector<8x128xf32>
    %c0_29 = arith.constant 0 : index
    %c0_30 = arith.constant 0 : index
    %37 = vector.load %arg12[%c0_29, %c0_30] : memref<8x128xf32, #tpu.memory_space<vmem>>, vector<8x128xf32>
    tpu.vector_store %arg12[%c0_29, %c0_30], %36 {strides = array<i32>} : memref<8x128xf32, #tpu.memory_space<vmem>>, vector<8x128xf32>,
    return
  }
  func.func @transform_0(%arg0: i32) -> (i32, i32) {
    %c0_i32 = arith.constant 0 : i32
    %c0_i32_0 = arith.constant 0 : i32
    return %arg0, %c0_i32 : i32, i32
  }
  func.func @transform_1(%arg0: i32) -> (i32, i32) {
    %c0_i32 = arith.constant 0 : i32
    %c0_i32_0 = arith.constant 0 : i32
    %c0_i32_1 = arith.constant 0 : i32
    return %c0_i32, %c0_i32_0 : i32, i32
  }
  func.func @transform_2(%arg0: i32) -> (i32, i32) {
    %c0_i32 = arith.constant 0 : i32
    %c0_i32_0 = arith.constant 0 : i32
    %c0_i32_1 = arith.constant 0 : i32
    return %c0_i32, %c0_i32_0 : i32, i32
  }
  func.func @transform_3(%arg0: i32) -> (i32, i32) {
    %c0_i32 = arith.constant 0 : i32
    %c0_i32_0 = arith.constant 0 : i32
    %c0_i32_1 = arith.constant 0 : i32
    return %c0_i32, %c0_i32_0 : i32, i32
  }
  func.func @transform_4(%arg0: i32) -> (i32, i32) {
    %c0_i32 = arith.constant 0 : i32
    %c0_i32_0 = arith.constant 0 : i32
    %c0_i32_1 = arith.constant 0 : i32
    return %c0_i32, %c0_i32_0 : i32, i32
  }
  func.func @transform_5(%arg0: i32) -> (i32, i32) {
    %c0_i32 = arith.constant 0 : i32
    %c0_i32_0 = arith.constant 0 : i32
    %c0_i32_1 = arith.constant 0 : i32
    return %c0_i32, %c0_i32_0 : i32, i32
  }
  func.func @transform_6(%arg0: i32) -> (i32, i32) {
    %c0_i32 = arith.constant 0 : i32
    %c0_i32_0 = arith.constant 0 : i32
    %c0_i32_1 = arith.constant 0 : i32
    return %c0_i32, %c0_i32_0 : i32, i32
  }
  func.func @transform_7(%arg0: i32) -> (i32, i32) {
    %c0_i32 = arith.constant 0 : i32
    %c0_i32_0 = arith.constant 0 : i32
    %c0_i32_1 = arith.constant 0 : i32
    return %c0_i32, %c0_i32_0 : i32, i32
  }
  func.func @transform_8(%arg0: i32) -> (i32, i32) {
    %c0_i32 = arith.constant 0 : i32
    %c0_i32_0 = arith.constant 0 : i32
    %c0_i32_1 = arith.constant 0 : i32
    return %c0_i32, %c0_i32_0 : i32, i32
  }
  func.func @transform_9(%arg0: i32) -> (i32, i32) {
    %c0_i32 = arith.constant 0 : i32
    %c0_i32_0 = arith.constant 0 : i32
    %c0_i32_1 = arith.constant 0 : i32
    return %c0_i32, %c0_i32_0 : i32, i32
  }
  func.func @transform_10(%arg0: i32) -> (i32, i32) {
    %c0_i32 = arith.constant 0 : i32
    %c0_i32_0 = arith.constant 0 : i32
    %c0_i32_1 = arith.constant 0 : i32
    return %c0_i32, %c0_i32_0 : i32, i32
  }
  func.func @transform_11(%arg0: i32) -> (i32, i32) {
    %c0_i32 = arith.constant 0 : i32
    %c0_i32_0 = arith.constant 0 : i32
    return %arg0, %c0_i32 : i32, i32
  }
}

</mosaic_0001>

<llo_original>
// kernel: tpu_custom_call.1
$region0: #{tpu_custom_call.1}
  #allocation0 [shape = 'u32[]', space=smem, size = 0x4, offset = 0x4, fixed_abs, tag = 'smem constant byte address 0x4 - core index']
  #allocation1 [shape = 'u32[144,128]{1,0:T(1,128)}', space=vmem, size = 0x12000, scoped, tag = 'internal scratch']
  %s0 = inlined_call_operand.hbm [shape: f32[8,63], index: 0, kind: input, shape index: {}]
  %s1 = inlined_call_operand.hbm [shape: bf16[63,1024], index: 1, kind: input, shape index: {}]
  %s2 = inlined_call_operand.hbm [shape: bf16[63,1024], index: 2, kind: input, shape index: {}]
  %s3 = inlined_call_operand.hbm [shape: f32[1,1024], index: 3, kind: input, shape index: {}]
  %s4 = inlined_call_operand.hbm [shape: bf16[1024,896], index: 4, kind: input, shape index: {}]
  %s5 = inlined_call_operand.hbm [shape: bf16[1024,896], index: 5, kind: input, shape index: {}]
  %s6 = inlined_call_operand.hbm [shape: f32[1,896], index: 6, kind: input, shape index: {}]
  %s7 = inlined_call_operand.hbm [shape: bf16[896,256], index: 7, kind: input, shape index: {}]
  %s8 = inlined_call_operand.hbm [shape: f32[1,256], index: 8, kind: input, shape index: {}]
  %s9 = inlined_call_operand.hbm [shape: bf16[256,128], index: 9, kind: input, shape index: {}]
  %s10 = inlined_call_operand.hbm [shape: f32[1,128], index: 10, kind: input, shape index: {}]
  %s11 = inlined_call_operand.hbm [shape: f32[8,128], index: 11, kind: output, shape index: {}]
  %s12 = sld [smem:[#allocation0]]
  $region98: #{tpu_custom_call.1} parent=0
    _
  %s14 = ssub.s32 1, %s12
  %s15 = scalar_select 0, %s14, %s12
  $region1: #{tpu_custom_call.1} parent=0
    #allocation2 [shape = 'u8[4096]{0}', space=vmem, size = 0x1000, scoped, tag = 'input window, operand 0, single buffered']
    #allocation3 [shape = 's32[1]{0}', space=sflag, size = 0x4, scoped, tag = 'scoped memory for tpu_custom_call.1']
    #allocation4 [shape = 's32[1]{0}', space=sflag, size = 0x4, scoped, tag = 'scoped memory for tpu_custom_call.1']
    #allocation5 [shape = 'u8[131072]{0}', space=vmem, size = 0x20000, scoped, tag = 'input window, operand 1, single buffered']
    #allocation6 [shape = 's32[1]{0}', space=sflag, size = 0x4, scoped, tag = 'scoped memory for tpu_custom_call.1']
    #allocation7 [shape = 'u8[131072]{0}', space=vmem, size = 0x20000, scoped, tag = 'input window, operand 2, single buffered']
    #allocation8 [shape = 'u8[4096]{0}', space=vmem, size = 0x1000, scoped, tag = 'input window, operand 3, single buffered']
    #allocation9 [shape = 's32[1]{0}', space=sflag, size = 0x4, scoped, tag = 'scoped memory for tpu_custom_call.1']
    #allocation10 [shape = 'u8[1835008]{0}', space=vmem, size = 0x1c0000, scoped, tag = 'input window, operand 4, single buffered']
    #allocation11 [shape = 'u8[1835008]{0}', space=vmem, size = 0x1c0000, scoped, tag = 'input window, operand 5, single buffered']
    #allocation12 [shape = 's32[1]{0}', space=sflag, size = 0x4, scoped, tag = 'scoped memory for tpu_custom_call.1']
    #allocation13 [shape = 'u8[3584]{0}', space=vmem, size = 0x1000, scoped, tag = 'input window, operand 6, single buffered']
    #allocation14 [shape = 'u8[458752]{0}', space=vmem, size = 0x70000, scoped, tag = 'input window, operand 7, single buffered']
    #allocation15 [shape = 's32[1]{0}', space=sflag, size = 0x4, scoped, tag = 'scoped memory for tpu_custom_call.1']
    #allocation16 [shape = 'u8[1024]{0}', space=vmem, size = 0x400, scoped, tag = 'input window, operand 8, single buffered']
    #allocation17 [shape = 'u8[65536]{0}', space=vmem, size = 0x10000, scoped, tag = 'input window, operand 9, single buffered']
    #allocation18 [shape = 's32[1]{0}', space=sflag, size = 0x4, scoped, tag = 'scoped memory for tpu_custom_call.1']
    #allocation19 [shape = 'u8[512]{0}', space=vmem, size = 0x400, scoped, tag = 'input window, operand 10, single buffered']
    #allocation20 [shape = 'u8[4096]{0}', space=vmem, size = 0x1000, scoped, tag = 'output window, operand 0, single buffered']
    %16 = vsyncpa [#allocation3], 0
    %17 = vsyncpa [#allocation6], 0
    %18 = vsyncpa [#allocation9], 0
    %19 = vsyncpa [#allocation12], 0
    %20 = vsyncpa [#allocation15], 0
    %21 = vsyncpa [#allocation18], 0
    %22 = vsyncpa [#allocation4], 0
    // Predicated region
    $region2: #{tpu_custom_call.1} parent=1 // pred_check
      _
    $region3: #{tpu_custom_call.1} parent=1 // pred_check_branch
      %24 = sbr.rel (0) target = $region5
    $region4: #{tpu_custom_call.1} parent=1 // pred_region
      %s26 = ssub.s32 128, 128
      %27 = vsyncadd [#allocation3], %s26
      %s29 = sshll.u32 [#allocation2], 4
      %s30 = int_to_ptr.vmem [resolvable:$true] %s29
      %32 = dma.hbm_to_vmem [thread:$0]  %s0, 128, %s30, [#allocation3]
    $region5: #{tpu_custom_call.1} parent=1 // pred_fallthru
      _
    // Predicated region
    $region6: #{tpu_custom_call.1} parent=1 // pred_check
      _
    $region7: #{tpu_custom_call.1} parent=1 // pred_check_branch
      %34 = sbr.rel (0) target = $region9
    $region8: #{tpu_custom_call.1} parent=1 // pred_region
      %s36 = ssub.s32 4096, 4096
      %37 = vsyncadd [#allocation6], %s36
      %s38 = sshll.u32 [#allocation5], 4
      %s39 = int_to_ptr.vmem [resolvable:$true] %s38
      %44 = dma.hbm_to_vmem [thread:$0]  %s1, 4096, %s39, [#allocation6], 512, 512, 32
    $region9: #{tpu_custom_call.1} parent=1 // pred_fallthru
      _
    // Predicated region
    $region10: #{tpu_custom_call.1} parent=1 // pred_check
      _
    $region11: #{tpu_custom_call.1} parent=1 // pred_check_branch
      %46 = sbr.rel (0) target = $region13
    $region12: #{tpu_custom_call.1} parent=1 // pred_region
      %s48 = ssub.s32 4096, 4096
      %49 = vsyncadd [#allocation6], %s48
      %s50 = sshll.u32 [#allocation7], 4
      %s51 = int_to_ptr.vmem [resolvable:$true] %s50
      %56 = dma.hbm_to_vmem [thread:$0]  %s2, 4096, %s51, [#allocation6], 512, 512, 32
    $region13: #{tpu_custom_call.1} parent=1 // pred_fallthru
      _
    // Predicated region
    $region14: #{tpu_custom_call.1} parent=1 // pred_check
      _
    $region15: #{tpu_custom_call.1} parent=1 // pred_check_branch
      %58 = sbr.rel (0) target = $region17
    $region16: #{tpu_custom_call.1} parent=1 // pred_region
      %s60 = ssub.s32 128, 128
      %61 = vsyncadd [#allocation9], %s60
      %s63 = sshll.u32 [#allocation8], 4
      %s64 = int_to_ptr.vmem [resolvable:$true] %s63
      %66 = dma.hbm_to_vmem [thread:$0]  %s3, 128, %s64, [#allocation9]
    $region17: #{tpu_custom_call.1} parent=1 // pred_fallthru
      _
    // Predicated region
    $region18: #{tpu_custom_call.1} parent=1 // pred_check
      _
    $region19: #{tpu_custom_call.1} parent=1 // pred_check_branch
      %68 = sbr.rel (0) target = $region21
    $region20: #{tpu_custom_call.1} parent=1 // pred_region
      %s70 = ssub.s32 57344, 57344
      %71 = vsyncadd [#allocation9], %s70
      %s72 = sshll.u32 [#allocation10], 4
      %s73 = int_to_ptr.vmem [resolvable:$true] %s72
      %78 = dma.hbm_to_vmem [thread:$0]  %s4, 57344, %s73, [#allocation9], 448, 448, 28
    $region21: #{tpu_custom_call.1} parent=1 // pred_fallthru
      _
    // Predicated region
    $region22: #{tpu_custom_call.1} parent=1 // pred_check
      _
    $region23: #{tpu_custom_call.1} parent=1 // pred_check_branch
      %80 = sbr.rel (0) target = $region25
    $region24: #{tpu_custom_call.1} parent=1 // pred_region
      %s82 = ssub.s32 57344, 57344
      %83 = vsyncadd [#allocation12], %s82
      %s84 = sshll.u32 [#allocation11], 4
      %s85 = int_to_ptr.vmem [resolvable:$true] %s84
      %90 = dma.hbm_to_vmem [thread:$0]  %s5, 57344, %s85, [#allocation12], 448, 448, 28
    $region25: #{tpu_custom_call.1} parent=1 // pred_fallthru
      _
    // Predicated region
    $region26: #{tpu_custom_call.1} parent=1 // pred_check
      _
    $region27: #{tpu_custom_call.1} parent=1 // pred_check_branch
      %92 = sbr.rel (0) target = $region29
    $region28: #{tpu_custom_call.1} parent=1 // pred_region
      %s94 = ssub.s32 112, 112
      %95 = vsyncadd [#allocation12], %s94
      %s97 = sshll.u32 [#allocation13], 4
      %s98 = int_to_ptr.vmem [resolvable:$true] %s97
      %100 = dma.hbm_to_vmem [thread:$0]  %s6, 112, %s98, [#allocation12]
    $region29: #{tpu_custom_call.1} parent=1 // pred_fallthru
      _
    // Predicated region
    $region30: #{tpu_custom_call.1} parent=1 // pred_check
      _
    $region31: #{tpu_custom_call.1} parent=1 // pred_check_branch
      %102 = sbr.rel (0) target = $region33
    $region32: #{tpu_custom_call.1} parent=1 // pred_region
      %s104 = ssub.s32 14336, 14336
      %105 = vsyncadd [#allocation15], %s104
      %s106 = sshll.u32 [#allocation14], 4
      %s107 = int_to_ptr.vmem [resolvable:$true] %s106
      %112 = dma.hbm_to_vmem [thread:$0]  %s7, 14336, %s107, [#allocation15], 128, 128, 8
    $region33: #{tpu_custom_call.1} parent=1 // pred_fallthru
      _
    // Predicated region
    $region34: #{tpu_custom_call.1} parent=1 // pred_check
      _
    $region35: #{tpu_custom_call.1} parent=1 // pred_check_branch
      %114 = sbr.rel (0) target = $region37
    $region36: #{tpu_custom_call.1} parent=1 // pred_region
      %s116 = ssub.s32 32, 32
      %117 = vsyncadd [#allocation15], %s116
      %s119 = sshll.u32 [#allocation16], 4
      %s120 = int_to_ptr.vmem [resolvable:$true] %s119
      %122 = dma.hbm_to_vmem [thread:$0]  %s8, 32, %s120, [#allocation15]
    $region37: #{tpu_custom_call.1} parent=1 // pred_fallthru
      _
    // Predicated region
    $region38: #{tpu_custom_call.1} parent=1 // pred_check
      _
    $region39: #{tpu_custom_call.1} parent=1 // pred_check_branch
      %124 = sbr.rel (0) target = $region41
    $region40: #{tpu_custom_call.1} parent=1 // pred_region
      %s126 = ssub.s32 2048, 2048
      %127 = vsyncadd [#allocation18], %s126
      %s128 = sshll.u32 [#allocation17], 4
      %s129 = int_to_ptr.vmem [resolvable:$true] %s128
      %134 = dma.hbm_to_vmem [thread:$0]  %s9, 2048, %s129, [#allocation18], 64, 64, 4
    $region41: #{tpu_custom_call.1} parent=1 // pred_fallthru
      _
    // Predicated region
    $region42: #{tpu_custom_call.1} parent=1 // pred_check
      _
    $region43: #{tpu_custom_call.1} parent=1 // pred_check_branch
      %136 = sbr.rel (0) target = $region45
    $region44: #{tpu_custom_call.1} parent=1 // pred_region
      %s138 = ssub.s32 16, 16
      %139 = vsyncadd [#allocation18], %s138
      %s141 = sshll.u32 [#allocation19], 4
      %s142 = int_to_ptr.vmem [resolvable:$true] %s141
      %144 = dma.hbm_to_vmem [thread:$0]  %s10, 16, %s142, [#allocation18]
    $region45: #{tpu_custom_call.1} parent=1 // pred_fallthru
      _
    // Predicated region
    $region46: #{tpu_custom_call.1} parent=1 // pred_check
      _
    $region47: #{tpu_custom_call.1} parent=1 // pred_check_branch
      %146 = sbr.rel (0) target = $region49
    $region48: #{tpu_custom_call.1} parent=1 // pred_region
      %147 = dma.done [#allocation3], 128
    $region49: #{tpu_custom_call.1} parent=1 // pred_fallthru
      _
    // Predicated region
    $region50: #{tpu_custom_call.1} parent=1 // pred_check
      _
    $region51: #{tpu_custom_call.1} parent=1 // pred_check_branch
      %149 = sbr.rel (0) target = $region53
    $region52: #{tpu_custom_call.1} parent=1 // pred_region
      %150 = dma.done [#allocation6], 4096
    $region53: #{tpu_custom_call.1} parent=1 // pred_fallthru
      _
    // Predicated region
    $region54: #{tpu_custom_call.1} parent=1 // pred_check
      _
    $region55: #{tpu_custom_call.1} parent=1 // pred_check_branch
      %152 = sbr.rel (0) target = $region57
    $region56: #{tpu_custom_call.1} parent=1 // pred_region
      %153 = dma.done [#allocation6], 4096
    $region57: #{tpu_custom_call.1} parent=1 // pred_fallthru
      _
    // Predicated region
    $region58: #{tpu_custom_call.1} parent=1 // pred_check
      _
    $region59: #{tpu_custom_call.1} parent=1 // pred_check_branch
      %155 = sbr.rel (0) target = $region61
    $region60: #{tpu_custom_call.1} parent=1 // pred_region
      %156 = dma.done [#allocation9], 128
    $region61: #{tpu_custom_call.1} parent=1 // pred_fallthru
      _
    // Predicated region
    $region62: #{tpu_custom_call.1} parent=1 // pred_check
      _
    $region63: #{tpu_custom_call.1} parent=1 // pred_check_branch
      %158 = sbr.rel (0) target = $region65
    $region64: #{tpu_custom_call.1} parent=1 // pred_region
      %159 = dma.done [#allocation9], 57344
    $region65: #{tpu_custom_call.1} parent=1 // pred_fallthru
      _
    // Predicated region
    $region66: #{tpu_custom_call.1} parent=1 // pred_check
      _
    $region67: #{tpu_custom_call.1} parent=1 // pred_check_branch
      %161 = sbr.rel (0) target = $region69
    $region68: #{tpu_custom_call.1} parent=1 // pred_region
      %162 = dma.done [#allocation12], 57344
    $region69: #{tpu_custom_call.1} parent=1 // pred_fallthru
      _
    // Predicated region
    $region70: #{tpu_custom_call.1} parent=1 // pred_check
      _
    $region71: #{tpu_custom_call.1} parent=1 // pred_check_branch
      %164 = sbr.rel (0) target = $region73
    $region72: #{tpu_custom_call.1} parent=1 // pred_region
      %165 = dma.done [#allocation12], 112
    $region73: #{tpu_custom_call.1} parent=1 // pred_fallthru
      _
    // Predicated region
    $region74: #{tpu_custom_call.1} parent=1 // pred_check
      _
    $region75: #{tpu_custom_call.1} parent=1 // pred_check_branch
      %167 = sbr.rel (0) target = $region77
    $region76: #{tpu_custom_call.1} parent=1 // pred_region
      %168 = dma.done [#allocation15], 14336
    $region77: #{tpu_custom_call.1} parent=1 // pred_fallthru
      _
    // Predicated region
    $region78: #{tpu_custom_call.1} parent=1 // pred_check
      _
    $region79: #{tpu_custom_call.1} parent=1 // pred_check_branch
      %170 = sbr.rel (0) target = $region81
    $region80: #{tpu_custom_call.1} parent=1 // pred_region
      %171 = dma.done [#allocation15], 32
    $region81: #{tpu_custom_call.1} parent=1 // pred_fallthru
      _
    // Predicated region
    $region82: #{tpu_custom_call.1} parent=1 // pred_check
      _
    $region83: #{tpu_custom_call.1} parent=1 // pred_check_branch
      %173 = sbr.rel (0) target = $region85
    $region84: #{tpu_custom_call.1} parent=1 // pred_region
      %174 = dma.done [#allocation18], 2048
    $region85: #{tpu_custom_call.1} parent=1 // pred_fallthru
      _
    // Predicated region
    $region86: #{tpu_custom_call.1} parent=1 // pred_check
      _
    $region87: #{tpu_custom_call.1} parent=1 // pred_check_branch
      %176 = sbr.rel (0) target = $region89
    $region88: #{tpu_custom_call.1} parent=1 // pred_region
      %177 = dma.done [#allocation18], 16
    $region89: #{tpu_custom_call.1} parent=1 // pred_fallthru
      _
    %v179 = vld [vmem:[#allocation2] sm:$0xff]
    %v180 = vpack.c.bf16 %v179, %v179
    %v181 = vld [vmem:[#allocation5] sm:$0xff]
    %v182 = vld [vmem:[#allocation5 + $0x8] sm:$0xff]
    %v183 = vld [vmem:[#allocation5 + $0x10] sm:$0xff]
    %v184 = vld [vmem:[#allocation5 + $0x18] sm:$0xff]
    %v185 = vld [vmem:[#allocation5 + $0x20] sm:$0xff]
    %v186 = vld [vmem:[#allocation5 + $0x28] sm:$0xff]
    %v187 = vld [vmem:[#allocation5 + $0x30] sm:$0xff]
    %v188 = vld [vmem:[#allocation5 + $0x38] sm:$0xff]
    %v189 = vld [vmem:[#allocation5 + $0x40] sm:$0xff]
    %v190 = vld [vmem:[#allocation5 + $0x48] sm:$0xff]
    %v191 = vld [vmem:[#allocation5 + $0x50] sm:$0xff]
    %v192 = vld [vmem:[#allocation5 + $0x58] sm:$0xff]
    %v193 = vld [vmem:[#allocation5 + $0x60] sm:$0xff]
    %v194 = vld [vmem:[#allocation5 + $0x68] sm:$0xff]
    %v195 = vld [vmem:[#allocation5 + $0x70] sm:$0xff]
    %v196 = vld [vmem:[#allocation5 + $0x78] sm:$0xff]
    %v197 = vld [vmem:[#allocation5 + $0x80] sm:$0xff]
    %v198 = vld [vmem:[#allocation5 + $0x88] sm:$0xff]
    %v199 = vld [vmem:[#allocation5 + $0x90] sm:$0xff]
    %v200 = vld [vmem:[#allocation5 + $0x98] sm:$0xff]
    %v201 = vld [vmem:[#allocation5 + $0xa0] sm:$0xff]
    %v202 = vld [vmem:[#allocation5 + $0xa8] sm:$0xff]
    %v203 = vld [vmem:[#allocation5 + $0xb0] sm:$0xff]
    %v204 = vld [vmem:[#allocation5 + $0xb8] sm:$0xff]
    %v205 = vld [vmem:[#allocation5 + $0xc0] sm:$0xff]
    %v206 = vld [vmem:[#allocation5 + $0xc8] sm:$0xff]
    %v207 = vld [vmem:[#allocation5 + $0xd0] sm:$0xff]
    %v208 = vld [vmem:[#allocation5 + $0xd8] sm:$0xff]
    %v209 = vld [vmem:[#allocation5 + $0xe0] sm:$0xff]
    %v210 = vld [vmem:[#allocation5 + $0xe8] sm:$0xff]
    %v211 = vld [vmem:[#allocation5 + $0xf0] sm:$0xff]
    %v212 = vld [vmem:[#allocation5 + $0xf8] sm:$0xff]
    %v245 = vunpack.c.l.b16 %v181
    %v246 = vunpack.c.h.b16 %v181
    %v247 = vunpack.c.l.b16 %v182
    %v248 = vunpack.c.h.b16 %v182
    %v249 = vunpack.c.l.b16 %v183
    %v250 = vunpack.c.h.b16 %v183
    %v251 = vunpack.c.l.b16 %v184
    %v252 = vunpack.c.h.b16 %v184
    %v253 = vunpack.c.l.b16 %v185
    %v254 = vunpack.c.h.b16 %v185
    %v255 = vunpack.c.l.b16 %v186
    %v256 = vunpack.c.h.b16 %v186
    %v257 = vunpack.c.l.b16 %v187
    %v258 = vunpack.c.h.b16 %v187
    %v259 = vunpack.c.l.b16 %v188
    %v260 = vunpack.c.h.b16 %v188
    %v261 = vunpack.c.l.b16 %v189
    %v262 = vunpack.c.h.b16 %v189
    %v263 = vunpack.c.l.b16 %v190
    %v264 = vunpack.c.h.b16 %v190
    %v265 = vunpack.c.l.b16 %v191
    %v266 = vunpack.c.h.b16 %v191
    %v267 = vunpack.c.l.b16 %v192
    %v268 = vunpack.c.h.b16 %v192
    %v269 = vunpack.c.l.b16 %v193
    %v270 = vunpack.c.h.b16 %v193
    %v271 = vunpack.c.l.b16 %v194
    %v272 = vunpack.c.h.b16 %v194
    %v273 = vunpack.c.l.b16 %v195
    %v274 = vunpack.c.h.b16 %v195
    %v275 = vunpack.c.l.b16 %v196
    %v276 = vunpack.c.h.b16 %v196
    %v277 = vunpack.c.l.b16 %v197
    %v278 = vunpack.c.h.b16 %v197
    %v279 = vunpack.c.l.b16 %v198
    %v280 = vunpack.c.h.b16 %v198
    %v281 = vunpack.c.l.b16 %v199
    %v282 = vunpack.c.h.b16 %v199
    %v283 = vunpack.c.l.b16 %v200
    %v284 = vunpack.c.h.b16 %v200
    %v285 = vunpack.c.l.b16 %v201
    %v286 = vunpack.c.h.b16 %v201
    %v287 = vunpack.c.l.b16 %v202
    %v288 = vunpack.c.h.b16 %v202
    %v289 = vunpack.c.l.b16 %v203
    %v290 = vunpack.c.h.b16 %v203
    %v291 = vunpack.c.l.b16 %v204
    %v292 = vunpack.c.h.b16 %v204
    %v293 = vunpack.c.l.b16 %v205
    %v294 = vunpack.c.h.b16 %v205
    %v295 = vunpack.c.l.b16 %v206
    %v296 = vunpack.c.h.b16 %v206
    %v297 = vunpack.c.l.b16 %v207
    %v298 = vunpack.c.h.b16 %v207
    %v299 = vunpack.c.l.b16 %v208
    %v300 = vunpack.c.h.b16 %v208
    %v301 = vunpack.c.l.b16 %v209
    %v302 = vunpack.c.h.b16 %v209
    %v303 = vunpack.c.l.b16 %v210
    %v304 = vunpack.c.h.b16 %v210
    %v305 = vunpack.c.l.b16 %v211
    %v306 = vunpack.c.h.b16 %v211
    %v307 = vunpack.c.l.b16 %v212
    %v308 = vunpack.c.h.b16 %v212
    %v309 = vpack.c.b16 %v253, %v245
    %v310 = vpack.c.b16 %v254, %v246
    %v311 = vpack.c.b16 %v255, %v247
    %v312 = vpack.c.b16 %v256, %v248
    %v313 = vpack.c.b16 %v257, %v249
    %v314 = vpack.c.b16 %v258, %v250
    %v315 = vpack.c.b16 %v259, %v251
    %v316 = vpack.c.b16 %v260, %v252
    %v317 = vpack.c.b16 %v269, %v261
    %v318 = vpack.c.b16 %v270, %v262
    %v319 = vpack.c.b16 %v271, %v263
    %v320 = vpack.c.b16 %v272, %v264
    %v321 = vpack.c.b16 %v273, %v265
    %v322 = vpack.c.b16 %v274, %v266
    %v323 = vpack.c.b16 %v275, %v267
    %v324 = vpack.c.b16 %v276, %v268
    %v325 = vpack.c.b16 %v285, %v277
    %v326 = vpack.c.b16 %v286, %v278
    %v327 = vpack.c.b16 %v287, %v279
    %v328 = vpack.c.b16 %v288, %v280
    %v329 = vpack.c.b16 %v289, %v281
    %v330 = vpack.c.b16 %v290, %v282
    %v331 = vpack.c.b16 %v291, %v283
    %v332 = vpack.c.b16 %v292, %v284
    %v333 = vpack.c.b16 %v301, %v293
    %v334 = vpack.c.b16 %v302, %v294
    %v335 = vpack.c.b16 %v303, %v295
    %v336 = vpack.c.b16 %v304, %v296
    %v337 = vpack.c.b16 %v305, %v297
    %v338 = vpack.c.b16 %v306, %v298
    %v339 = vpack.c.b16 %v307, %v299
    %v340 = vpack.c.b16 %v308, %v300
    %vm365 = vcmask 515072
    %v367 = vsel %vm365, %v180, 0
    %vm369 = vcmask 1046528
    %vm370 = vcmask 1047552
    %v371 = vsel %vm369, 4294967295, 65535
    %v372 = vsel %vm370, %v371, 0
    %v374 = vand.u32 %v333, %v372
    %v377 = vand.u32 %v334, %v372
    %v380 = vand.u32 %v335, %v372
    %v383 = vand.u32 %v336, %v372
    %v386 = vand.u32 %v337, %v372
    %v389 = vand.u32 %v338, %v372
    %v392 = vand.u32 %v339, %v372
    %v395 = vand.u32 %v340, %v372
    %397 = vmatprep.subr.bf16.mxu0 0
    %398 = vmatpush1.bf16.msra.mxu0 0
    %399 = vmatprep.subr.bf16.mxu0 0
    %400 = vmatpush1.bf16.msra.mxu0 0
    %401 = vmatprep.subr.bf16.mxu0 0
    %402 = vmatpush1.bf16.msra.mxu0 0
    %403 = vmatprep.subr.bf16.mxu0 0
    %404 = vmatpush1.bf16.msra.mxu0 0
    %405 = vmatprep.subr.bf16.mxu0 %v377
    %406 = vmatpush1.bf16.msra.mxu0 %v374
    %407 = vmatprep.subr.bf16.mxu0 %v326
    %408 = vmatpush1.bf16.msra.mxu0 %v325
    %409 = vmatprep.subr.bf16.mxu0 %v318
    %410 = vmatpush1.bf16.msra.mxu0 %v317
    %411 = vmatprep.subr.bf16.mxu0 %v310
    %412 = vmatpush1.bf16.msra.mxu0 %v309
    %413 = vmatprep.subr.bf16.mxu0 0
    %414 = vmatpush2.bf16.msra.mxu0 0
    %415 = vmatprep.subr.bf16.mxu0 0
    %416 = vmatpush2.bf16.msra.mxu0 0
    %417 = vmatprep.subr.bf16.mxu0 0
    %418 = vmatpush2.bf16.msra.mxu0 0
    %419 = vmatprep.subr.bf16.mxu0 0
    %420 = vmatpush2.bf16.msra.mxu0 0
    %421 = vmatprep.subr.bf16.mxu0 0
    %422 = vmatpush2.bf16.msra.mxu0 0
    %423 = vmatprep.subr.bf16.mxu0 0
    %424 = vmatpush2.bf16.msra.mxu0 0
    %425 = vmatprep.subr.bf16.mxu0 0
    %426 = vmatpush2.bf16.msra.mxu0 0
    %427 = vmatprep.subr.bf16.mxu0 0
    %428 = vmatpush2.bf16.msra.mxu0 0
    %429 = vmatprep.mubr.bf16.mxu0 0
    %430 = vmatmul.mubr.bf16.gmra.mxu0 %v367
    %v431 = vpop.f32.mrf.mxu0
    %v432 = vadd.f32 0.0, %v431
    %v433 = vpop.f32.mrf.mxu0
    %v434 = vadd.f32 0.0, %v433
    %v435 = vpop.f32.mrf.mxu0
    %v436 = vpop.f32.mrf.mxu0
    %437 = vdwg.mxu0
    %438 = vmatprep.subr.bf16.mxu0 0
    %439 = vmatpush1.bf16.msra.mxu0 0
    %440 = vmatprep.subr.bf16.mxu0 0
    %441 = vmatpush1.bf16.msra.mxu0 0
    %442 = vmatprep.subr.bf16.mxu0 0
    %443 = vmatpush1.bf16.msra.mxu0 0
    %444 = vmatprep.subr.bf16.mxu0 0
    %445 = vmatpush1.bf16.msra.mxu0 0
    %446 = vmatprep.subr.bf16.mxu0 %v383
    %447 = vmatpush1.bf16.msra.mxu0 %v380
    %448 = vmatprep.subr.bf16.mxu0 %v328
    %449 = vmatpush1.bf16.msra.mxu0 %v327
    %450 = vmatprep.subr.bf16.mxu0 %v320
    %451 = vmatpush1.bf16.msra.mxu0 %v319
    %452 = vmatprep.subr.bf16.mxu0 %v312
    %453 = vmatpush1.bf16.msra.mxu0 %v311
    %454 = vmatprep.subr.bf16.mxu0 0
    %455 = vmatpush2.bf16.msra.mxu0 0
    %456 = vmatprep.subr.bf16.mxu0 0
    %457 = vmatpush2.bf16.msra.mxu0 0
    %458 = vmatprep.subr.bf16.mxu0 0
    %459 = vmatpush2.bf16.msra.mxu0 0
    %460 = vmatprep.subr.bf16.mxu0 0
    %461 = vmatpush2.bf16.msra.mxu0 0
    %462 = vmatprep.subr.bf16.mxu0 0
    %463 = vmatpush2.bf16.msra.mxu0 0
    %464 = vmatprep.subr.bf16.mxu0 0
    %465 = vmatpush2.bf16.msra.mxu0 0
    %466 = vmatprep.subr.bf16.mxu0 0
    %467 = vmatpush2.bf16.msra.mxu0 0
    %468 = vmatprep.subr.bf16.mxu0 0
    %469 = vmatpush2.bf16.msra.mxu0 0
    %470 = vmatprep.mubr.bf16.mxu0 0
    %471 = vmatmul.mubr.bf16.gmra.mxu0 %v367
    %v472 = vpop.f32.mrf.mxu0
    %v473 = vadd.f32 0.0, %v472
    %v474 = vpop.f32.mrf.mxu0
    %v475 = vadd.f32 0.0, %v474
    %v476 = vpop.f32.mrf.mxu0
    %v477 = vpop.f32.mrf.mxu0
    %478 = vdwg.mxu0
    %479 = vmatprep.subr.bf16.mxu0 0
    %480 = vmatpush1.bf16.msra.mxu0 0
    %481 = vmatprep.subr.bf16.mxu0 0
    %482 = vmatpush1.bf16.msra.mxu0 0
    %483 = vmatprep.subr.bf16.mxu0 0
    %484 = vmatpush1.bf16.msra.mxu0 0
    %485 = vmatprep.subr.bf16.mxu0 0
    %486 = vmatpush1.bf16.msra.mxu0 0
    %487 = vmatprep.subr.bf16.mxu0 %v389
    %488 = vmatpush1.bf16.msra.mxu0 %v386
    %489 = vmatprep.subr.bf16.mxu0 %v330
    %490 = vmatpush1.bf16.msra.mxu0 %v329
    %491 = vmatprep.subr.bf16.mxu0 %v322
    %492 = vmatpush1.bf16.msra.mxu0 %v321
    %493 = vmatprep.subr.bf16.mxu0 %v314
    %494 = vmatpush1.bf16.msra.mxu0 %v313
    %495 = vmatprep.subr.bf16.mxu0 0
    %496 = vmatpush2.bf16.msra.mxu0 0
    %497 = vmatprep.subr.bf16.mxu0 0
    %498 = vmatpush2.bf16.msra.mxu0 0
    %499 = vmatprep.subr.bf16.mxu0 0
    %500 = vmatpush2.bf16.msra.mxu0 0
    %501 = vmatprep.subr.bf16.mxu0 0
    %502 = vmatpush2.bf16.msra.mxu0 0
    %503 = vmatprep.subr.bf16.mxu0 0
    %504 = vmatpush2.bf16.msra.mxu0 0
    %505 = vmatprep.subr.bf16.mxu0 0
    %506 = vmatpush2.bf16.msra.mxu0 0
    %507 = vmatprep.subr.bf16.mxu0 0
    %508 = vmatpush2.bf16.msra.mxu0 0
    %509 = vmatprep.subr.bf16.mxu0 0
    %510 = vmatpush2.bf16.msra.mxu0 0
    %511 = vmatprep.mubr.bf16.mxu0 0
    %512 = vmatmul.mubr.bf16.gmra.mxu0 %v367
    %v513 = vpop.f32.mrf.mxu0
    %v514 = vadd.f32 0.0, %v513
    %v515 = vpop.f32.mrf.mxu0
    %v516 = vadd.f32 0.0, %v515
    %v517 = vpop.f32.mrf.mxu0
    %v518 = vpop.f32.mrf.mxu0
    %519 = vdwg.mxu0
    %520 = vmatprep.subr.bf16.mxu0 0
    %521 = vmatpush1.bf16.msra.mxu0 0
    %522 = vmatprep.subr.bf16.mxu0 0
    %523 = vmatpush1.bf16.msra.mxu0 0
    %524 = vmatprep.subr.bf16.mxu0 0
    %525 = vmatpush1.bf16.msra.mxu0 0
    %526 = vmatprep.subr.bf16.mxu0 0
    %527 = vmatpush1.bf16.msra.mxu0 0
    %528 = vmatprep.subr.bf16.mxu0 %v395
    %529 = vmatpush1.bf16.msra.mxu0 %v392
    %530 = vmatprep.subr.bf16.mxu0 %v332
    %531 = vmatpush1.bf16.msra.mxu0 %v331
    %532 = vmatprep.subr.bf16.mxu0 %v324
    %533 = vmatpush1.bf16.msra.mxu0 %v323
    %534 = vmatprep.subr.bf16.mxu0 %v316
    %535 = vmatpush1.bf16.msra.mxu0 %v315
    %536 = vmatprep.subr.bf16.mxu0 0
    %537 = vmatpush2.bf16.msra.mxu0 0
    %538 = vmatprep.subr.bf16.mxu0 0
    %539 = vmatpush2.bf16.msra.mxu0 0
    %540 = vmatprep.subr.bf16.mxu0 0
    %541 = vmatpush2.bf16.msra.mxu0 0
    %542 = vmatprep.subr.bf16.mxu0 0
    %543 = vmatpush2.bf16.msra.mxu0 0
    %544 = vmatprep.subr.bf16.mxu0 0
    %545 = vmatpush2.bf16.msra.mxu0 0
    %546 = vmatprep.subr.bf16.mxu0 0
    %547 = vmatpush2.bf16.msra.mxu0 0
    %548 = vmatprep.subr.bf16.mxu0 0
    %549 = vmatpush2.bf16.msra.mxu0 0
    %550 = vmatprep.subr.bf16.mxu0 0
    %551 = vmatpush2.bf16.msra.mxu0 0
    %552 = vmatprep.mubr.bf16.mxu0 0
    %553 = vmatmul.mubr.bf16.gmra.mxu0 %v367
    %v554 = vpop.f32.mrf.mxu0
    %v555 = vadd.f32 0.0, %v554
    %v556 = vpop.f32.mrf.mxu0
    %v557 = vadd.f32 0.0, %v556
    %v558 = vpop.f32.mrf.mxu0
    %v559 = vpop.f32.mrf.mxu0
    %560 = vdwg.mxu0
    %v561 = vld [vmem:[#allocation7] sm:$0xff]
    %v562 = vld [vmem:[#allocation7 + $0x8] sm:$0xff]
    %v563 = vld [vmem:[#allocation7 + $0x10] sm:$0xff]
    %v564 = vld [vmem:[#allocation7 + $0x18] sm:$0xff]
    %v565 = vld [vmem:[#allocation7 + $0x20] sm:$0xff]
    %v566 = vld [vmem:[#allocation7 + $0x28] sm:$0xff]
    %v567 = vld [vmem:[#allocation7 + $0x30] sm:$0xff]
    %v568 = vld [vmem:[#allocation7 + $0x38] sm:$0xff]
    %v569 = vld [vmem:[#allocation7 + $0x40] sm:$0xff]
    %v570 = vld [vmem:[#allocation7 + $0x48] sm:$0xff]
    %v571 = vld [vmem:[#allocation7 + $0x50] sm:$0xff]
    %v572 = vld [vmem:[#allocation7 + $0x58] sm:$0xff]
    %v573 = vld [vmem:[#allocation7 + $0x60] sm:$0xff]
    %v574 = vld [vmem:[#allocation7 + $0x68] sm:$0xff]
    %v575 = vld [vmem:[#allocation7 + $0x70] sm:$0xff]
    %v576 = vld [vmem:[#allocation7 + $0x78] sm:$0xff]
    %v577 = vld [vmem:[#allocation7 + $0x80] sm:$0xff]
    %v578 = vld [vmem:[#allocation7 + $0x88] sm:$0xff]
    %v579 = vld [vmem:[#allocation7 + $0x90] sm:$0xff]
    %v580 = vld [vmem:[#allocation7 + $0x98] sm:$0xff]
    %v581 = vld [vmem:[#allocation7 + $0xa0] sm:$0xff]
    %v582 = vld [vmem:[#allocation7 + $0xa8] sm:$0xff]
    %v583 = vld [vmem:[#allocation7 + $0xb0] sm:$0xff]
    %v584 = vld [vmem:[#allocation7 + $0xb8] sm:$0xff]
    %v585 = vld [vmem:[#allocation7 + $0xc0] sm:$0xff]
    %v586 = vld [vmem:[#allocation7 + $0xc8] sm:$0xff]
    %v587 = vld [vmem:[#allocation7 + $0xd0] sm:$0xff]
    %v588 = vld [vmem:[#allocation7 + $0xd8] sm:$0xff]
    %v589 = vld [vmem:[#allocation7 + $0xe0] sm:$0xff]
    %v590 = vld [vmem:[#allocation7 + $0xe8] sm:$0xff]
    %v591 = vld [vmem:[#allocation7 + $0xf0] sm:$0xff]
    %v592 = vld [vmem:[#allocation7 + $0xf8] sm:$0xff]
    %v625 = vunpack.c.l.b16 %v561
    %v626 = vunpack.c.h.b16 %v561
    %v627 = vunpack.c.l.b16 %v562
    %v628 = vunpack.c.h.b16 %v562
    %v629 = vunpack.c.l.b16 %v563
    %v630 = vunpack.c.h.b16 %v563
    %v631 = vunpack.c.l.b16 %v564
    %v632 = vunpack.c.h.b16 %v564
    %v633 = vunpack.c.l.b16 %v565
    %v634 = vunpack.c.h.b16 %v565
    %v635 = vunpack.c.l.b16 %v566
    %v636 = vunpack.c.h.b16 %v566
    %v637 = vunpack.c.l.b16 %v567
    %v638 = vunpack.c.h.b16 %v567
    %v639 = vunpack.c.l.b16 %v568
    %v640 = vunpack.c.h.b16 %v568
    %v641 = vunpack.c.l.b16 %v569
    %v642 = vunpack.c.h.b16 %v569
    %v643 = vunpack.c.l.b16 %v570
    %v644 = vunpack.c.h.b16 %v570
    %v645 = vunpack.c.l.b16 %v571
    %v646 = vunpack.c.h.b16 %v571
    %v647 = vunpack.c.l.b16 %v572
    %v648 = vunpack.c.h.b16 %v572
    %v649 = vunpack.c.l.b16 %v573
    %v650 = vunpack.c.h.b16 %v573
    %v651 = vunpack.c.l.b16 %v574
    %v652 = vunpack.c.h.b16 %v574
    %v653 = vunpack.c.l.b16 %v575
    %v654 = vunpack.c.h.b16 %v575
    %v655 = vunpack.c.l.b16 %v576
    %v656 = vunpack.c.h.b16 %v576
    %v657 = vunpack.c.l.b16 %v577
    %v658 = vunpack.c.h.b16 %v577
    %v659 = vunpack.c.l.b16 %v578
    %v660 = vunpack.c.h.b16 %v578
    %v661 = vunpack.c.l.b16 %v579
    %v662 = vunpack.c.h.b16 %v579
    %v663 = vunpack.c.l.b16 %v580
    %v664 = vunpack.c.h.b16 %v580
    %v665 = vunpack.c.l.b16 %v581
    %v666 = vunpack.c.h.b16 %v581
    %v667 = vunpack.c.l.b16 %v582
    %v668 = vunpack.c.h.b16 %v582
    %v669 = vunpack.c.l.b16 %v583
    %v670 = vunpack.c.h.b16 %v583
    %v671 = vunpack.c.l.b16 %v584
    %v672 = vunpack.c.h.b16 %v584
    %v673 = vunpack.c.l.b16 %v585
    %v674 = vunpack.c.h.b16 %v585
    %v675 = vunpack.c.l.b16 %v586
    %v676 = vunpack.c.h.b16 %v586
    %v677 = vunpack.c.l.b16 %v587
    %v678 = vunpack.c.h.b16 %v587
    %v679 = vunpack.c.l.b16 %v588
    %v680 = vunpack.c.h.b16 %v588
    %v681 = vunpack.c.l.b16 %v589
    %v682 = vunpack.c.h.b16 %v589
    %v683 = vunpack.c.l.b16 %v590
    %v684 = vunpack.c.h.b16 %v590
    %v685 = vunpack.c.l.b16 %v591
    %v686 = vunpack.c.h.b16 %v591
    %v687 = vunpack.c.l.b16 %v592
    %v688 = vunpack.c.h.b16 %v592
    %v689 = vpack.c.b16 %v633, %v625
    %v690 = vpack.c.b16 %v634, %v626
    %v691 = vpack.c.b16 %v635, %v627
    %v692 = vpack.c.b16 %v636, %v628
    %v693 = vpack.c.b16 %v637, %v629
    %v694 = vpack.c.b16 %v638, %v630
    %v695 = vpack.c.b16 %v639, %v631
    %v696 = vpack.c.b16 %v640, %v632
    %v697 = vpack.c.b16 %v649, %v641
    %v698 = vpack.c.b16 %v650, %v642
    %v699 = vpack.c.b16 %v651, %v643
    %v700 = vpack.c.b16 %v652, %v644
    %v701 = vpack.c.b16 %v653, %v645
    %v702 = vpack.c.b16 %v654, %v646
    %v703 = vpack.c.b16 %v655, %v647
    %v704 = vpack.c.b16 %v656, %v648
    %v705 = vpack.c.b16 %v665, %v657
    %v706 = vpack.c.b16 %v666, %v658
    %v707 = vpack.c.b16 %v667, %v659
    %v708 = vpack.c.b16 %v668, %v660
    %v709 = vpack.c.b16 %v669, %v661
    %v710 = vpack.c.b16 %v670, %v662
    %v711 = vpack.c.b16 %v671, %v663
    %v712 = vpack.c.b16 %v672, %v664
    %v713 = vpack.c.b16 %v681, %v673
    %v714 = vpack.c.b16 %v682, %v674
    %v715 = vpack.c.b16 %v683, %v675
    %v716 = vpack.c.b16 %v684, %v676
    %v717 = vpack.c.b16 %v685, %v677
    %v718 = vpack.c.b16 %v686, %v678
    %v719 = vpack.c.b16 %v687, %v679
    %v720 = vpack.c.b16 %v688, %v680
    %v746 = vand.u32 %v713, %v372
    %v749 = vand.u32 %v714, %v372
    %v752 = vand.u32 %v715, %v372
    %v755 = vand.u32 %v716, %v372
    %v758 = vand.u32 %v717, %v372
    %v761 = vand.u32 %v718, %v372
    %v764 = vand.u32 %v719, %v372
    %v767 = vand.u32 %v720, %v372
    %769 = vmatprep.subr.bf16.mxu0 0
    %770 = vmatpush1.bf16.msra.mxu0 0
    %771 = vmatprep.subr.bf16.mxu0 0
    %772 = vmatpush1.bf16.msra.mxu0 0
    %773 = vmatprep.subr.bf16.mxu0 0
    %774 = vmatpush1.bf16.msra.mxu0 0
    %775 = vmatprep.subr.bf16.mxu0 0
    %776 = vmatpush1.bf16.msra.mxu0 0
    %777 = vmatprep.subr.bf16.mxu0 %v749
    %778 = vmatpush1.bf16.msra.mxu0 %v746
    %779 = vmatprep.subr.bf16.mxu0 %v706
    %780 = vmatpush1.bf16.msra.mxu0 %v705
    %781 = vmatprep.subr.bf16.mxu0 %v698
    %782 = vmatpush1.bf16.msra.mxu0 %v697
    %783 = vmatprep.subr.bf16.mxu0 %v690
    %784 = vmatpush1.bf16.msra.mxu0 %v689
    %785 = vmatprep.subr.bf16.mxu0 0
    %786 = vmatpush2.bf16.msra.mxu0 0
    %787 = vmatprep.subr.bf16.mxu0 0
    %788 = vmatpush2.bf16.msra.mxu0 0
    %789 = vmatprep.subr.bf16.mxu0 0
    %790 = vmatpush2.bf16.msra.mxu0 0
    %791 = vmatprep.subr.bf16.mxu0 0
    %792 = vmatpush2.bf16.msra.mxu0 0
    %793 = vmatprep.subr.bf16.mxu0 0
    %794 = vmatpush2.bf16.msra.mxu0 0
    %795 = vmatprep.subr.bf16.mxu0 0
    %796 = vmatpush2.bf16.msra.mxu0 0
    %797 = vmatprep.subr.bf16.mxu0 0
    %798 = vmatpush2.bf16.msra.mxu0 0
    %799 = vmatprep.subr.bf16.mxu0 0
    %800 = vmatpush2.bf16.msra.mxu0 0
    %801 = vmatprep.mubr.bf16.mxu0 0
    %802 = vmatmul.mubr.bf16.gmra.mxu0 %v367
    %v803 = vpop.f32.mrf.mxu0
    %v804 = vadd.f32 0.0, %v803
    %v805 = vpop.f32.mrf.mxu0
    %v806 = vadd.f32 0.0, %v805
    %v807 = vpop.f32.mrf.mxu0
    %v808 = vpop.f32.mrf.mxu0
    %809 = vdwg.mxu0
    %810 = vmatprep.subr.bf16.mxu0 0
    %811 = vmatpush1.bf16.msra.mxu0 0
    %812 = vmatprep.subr.bf16.mxu0 0
    %813 = vmatpush1.bf16.msra.mxu0 0
    %814 = vmatprep.subr.bf16.mxu0 0
    %815 = vmatpush1.bf16.msra.mxu0 0
    %816 = vmatprep.subr.bf16.mxu0 0
    %817 = vmatpush1.bf16.msra.mxu0 0
    %818 = vmatprep.subr.bf16.mxu0 %v755
    %819 = vmatpush1.bf16.msra.mxu0 %v752
    %820 = vmatprep.subr.bf16.mxu0 %v708
    %821 = vmatpush1.bf16.msra.mxu0 %v707
    %822 = vmatprep.subr.bf16.mxu0 %v700
    %823 = vmatpush1.bf16.msra.mxu0 %v699
    %824 = vmatprep.subr.bf16.mxu0 %v692
    %825 = vmatpush1.bf16.msra.mxu0 %v691
    %826 = vmatprep.subr.bf16.mxu0 0
    %827 = vmatpush2.bf16.msra.mxu0 0
    %828 = vmatprep.subr.bf16.mxu0 0
    %829 = vmatpush2.bf16.msra.mxu0 0
    %830 = vmatprep.subr.bf16.mxu0 0
    %831 = vmatpush2.bf16.msra.mxu0 0
    %832 = vmatprep.subr.bf16.mxu0 0
    %833 = vmatpush2.bf16.msra.mxu0 0
    %834 = vmatprep.subr.bf16.mxu0 0
    %835 = vmatpush2.bf16.msra.mxu0 0
    %836 = vmatprep.subr.bf16.mxu0 0
    %837 = vmatpush2.bf16.msra.mxu0 0
    %838 = vmatprep.subr.bf16.mxu0 0
    %839 = vmatpush2.bf16.msra.mxu0 0
    %840 = vmatprep.subr.bf16.mxu0 0
    %841 = vmatpush2.bf16.msra.mxu0 0
    %842 = vmatprep.mubr.bf16.mxu0 0
    %843 = vmatmul.mubr.bf16.gmra.mxu0 %v367
    %v844 = vpop.f32.mrf.mxu0
    %v845 = vadd.f32 0.0, %v844
    %v846 = vpop.f32.mrf.mxu0
    %v847 = vadd.f32 0.0, %v846
    %v848 = vpop.f32.mrf.mxu0
    %v849 = vpop.f32.mrf.mxu0
    %850 = vdwg.mxu0
    %851 = vmatprep.subr.bf16.mxu0 0
    %852 = vmatpush1.bf16.msra.mxu0 0
    %853 = vmatprep.subr.bf16.mxu0 0
    %854 = vmatpush1.bf16.msra.mxu0 0
    %855 = vmatprep.subr.bf16.mxu0 0
    %856 = vmatpush1.bf16.msra.mxu0 0
    %857 = vmatprep.subr.bf16.mxu0 0
    %858 = vmatpush1.bf16.msra.mxu0 0
    %859 = vmatprep.subr.bf16.mxu0 %v761
    %860 = vmatpush1.bf16.msra.mxu0 %v758
    %861 = vmatprep.subr.bf16.mxu0 %v710
    %862 = vmatpush1.bf16.msra.mxu0 %v709
    %863 = vmatprep.subr.bf16.mxu0 %v702
    %864 = vmatpush1.bf16.msra.mxu0 %v701
    %865 = vmatprep.subr.bf16.mxu0 %v694
    %866 = vmatpush1.bf16.msra.mxu0 %v693
    %867 = vmatprep.subr.bf16.mxu0 0
    %868 = vmatpush2.bf16.msra.mxu0 0
    %869 = vmatprep.subr.bf16.mxu0 0
    %870 = vmatpush2.bf16.msra.mxu0 0
    %871 = vmatprep.subr.bf16.mxu0 0
    %872 = vmatpush2.bf16.msra.mxu0 0
    %873 = vmatprep.subr.bf16.mxu0 0
    %874 = vmatpush2.bf16.msra.mxu0 0
    %875 = vmatprep.subr.bf16.mxu0 0
    %876 = vmatpush2.bf16.msra.mxu0 0
    %877 = vmatprep.subr.bf16.mxu0 0
    %878 = vmatpush2.bf16.msra.mxu0 0
    %879 = vmatprep.subr.bf16.mxu0 0
    %880 = vmatpush2.bf16.msra.mxu0 0
    %881 = vmatprep.subr.bf16.mxu0 0
    %882 = vmatpush2.bf16.msra.mxu0 0
    %883 = vmatprep.mubr.bf16.mxu0 0
    %884 = vmatmul.mubr.bf16.gmra.mxu0 %v367
    %v885 = vpop.f32.mrf.mxu0
    %v886 = vadd.f32 0.0, %v885
    %v887 = vpop.f32.mrf.mxu0
    %v888 = vadd.f32 0.0, %v887
    %v889 = vpop.f32.mrf.mxu0
    %v890 = vpop.f32.mrf.mxu0
    %891 = vdwg.mxu0
    %892 = vmatprep.subr.bf16.mxu0 0
    %893 = vmatpush1.bf16.msra.mxu0 0
    %894 = vmatprep.subr.bf16.mxu0 0
    %895 = vmatpush1.bf16.msra.mxu0 0
    %896 = vmatprep.subr.bf16.mxu0 0
    %897 = vmatpush1.bf16.msra.mxu0 0
    %898 = vmatprep.subr.bf16.mxu0 0
    %899 = vmatpush1.bf16.msra.mxu0 0
    %900 = vmatprep.subr.bf16.mxu0 %v767
    %901 = vmatpush1.bf16.msra.mxu0 %v764
    %902 = vmatprep.subr.bf16.mxu0 %v712
    %903 = vmatpush1.bf16.msra.mxu0 %v711
    %904 = vmatprep.subr.bf16.mxu0 %v704
    %905 = vmatpush1.bf16.msra.mxu0 %v703
    %906 = vmatprep.subr.bf16.mxu0 %v696
    %907 = vmatpush1.bf16.msra.mxu0 %v695
    %908 = vmatprep.subr.bf16.mxu0 0
    %909 = vmatpush2.bf16.msra.mxu0 0
    %910 = vmatprep.subr.bf16.mxu0 0
    %911 = vmatpush2.bf16.msra.mxu0 0
    %912 = vmatprep.subr.bf16.mxu0 0
    %913 = vmatpush2.bf16.msra.mxu0 0
    %914 = vmatprep.subr.bf16.mxu0 0
    %915 = vmatpush2.bf16.msra.mxu0 0
    %916 = vmatprep.subr.bf16.mxu0 0
    %917 = vmatpush2.bf16.msra.mxu0 0
    %918 = vmatprep.subr.bf16.mxu0 0
    %919 = vmatpush2.bf16.msra.mxu0 0
    %920 = vmatprep.subr.bf16.mxu0 0
    %921 = vmatpush2.bf16.msra.mxu0 0
    %922 = vmatprep.subr.bf16.mxu0 0
    %923 = vmatpush2.bf16.msra.mxu0 0
    %924 = vmatprep.mubr.bf16.mxu0 0
    %925 = vmatmul.mubr.bf16.gmra.mxu0 %v367
    %v926 = vpop.f32.mrf.mxu0
    %v927 = vadd.f32 0.0, %v926
    %v928 = vpop.f32.mrf.mxu0
    %v929 = vadd.f32 0.0, %v928
    %v930 = vpop.f32.mrf.mxu0
    %v931 = vpop.f32.mrf.mxu0
    %932 = vdwg.mxu0
    %v933 = vmax.f32 %v432, %v804
    %v934 = vmax.f32 %v434, %v806
    %v935 = vmax.f32 %v473, %v845
    %v936 = vmax.f32 %v475, %v847
    %v937 = vmax.f32 %v514, %v886
    %v938 = vmax.f32 %v516, %v888
    %v939 = vmax.f32 %v555, %v927
    %v940 = vmax.f32 %v557, %v929
    %v941 = vld [vmem:[#allocation8] sm:$0xff]
    %v943 = vlaneseq
    %v944 = vshrl.u32 %v943, 7
    %v945 = vsub.s32 0, %v944
    %v946 = vrot.slane %v941, %v945
    %v947 = vlaneseq
    %v948 = vshrl.u32 %v947, 7
    %v949 = vsub.s32 1, %v948
    %v950 = vrot.slane %v941, %v949
    %v951 = vlaneseq
    %v952 = vshrl.u32 %v951, 7
    %v953 = vsub.s32 2, %v952
    %v954 = vrot.slane %v941, %v953
    %v955 = vlaneseq
    %v956 = vshrl.u32 %v955, 7
    %v957 = vsub.s32 3, %v956
    %v958 = vrot.slane %v941, %v957
    %v959 = vlaneseq
    %v960 = vshrl.u32 %v959, 7
    %v961 = vsub.s32 4, %v960
    %v962 = vrot.slane %v941, %v961
    %v963 = vlaneseq
    %v964 = vshrl.u32 %v963, 7
    %v965 = vsub.s32 5, %v964
    %v966 = vrot.slane %v941, %v965
    %v967 = vlaneseq
    %v968 = vshrl.u32 %v967, 7
    %v969 = vsub.s32 6, %v968
    %v970 = vrot.slane %v941, %v969
    %v971 = vlaneseq
    %v972 = vshrl.u32 %v971, 7
    %v973 = vsub.s32 7, %v972
    %v974 = vrot.slane %v941, %v973
    %v983 = vadd.f32 %v933, %v946
    %v984 = vadd.f32 %v934, %v950
    %v985 = vadd.f32 %v935, %v954
    %v986 = vadd.f32 %v936, %v958
    %v987 = vadd.f32 %v937, %v962
    %v988 = vadd.f32 %v938, %v966
    %v989 = vadd.f32 %v939, %v970
    %v990 = vadd.f32 %v940, %v974
    %v991 = vmax.f32 %v983, 0.0
    %v992 = vmax.f32 %v984, 0.0
    %v993 = vmax.f32 %v985, 0.0
    %v994 = vmax.f32 %v986, 0.0
    %v995 = vmax.f32 %v987, 0.0
    %v996 = vmax.f32 %v988, 0.0
    %v997 = vmax.f32 %v989, 0.0
    %v998 = vmax.f32 %v990, 0.0
    %v999 = vpack.c.bf16 %v991, %v991
    %v1000 = vpack.c.bf16 %v992, %v992
    %v1001 = vpack.c.bf16 %v993, %v993
    %v1002 = vpack.c.bf16 %v994, %v994
    %v1003 = vpack.c.bf16 %v995, %v995
    %v1004 = vpack.c.bf16 %v996, %v996
    %v1005 = vpack.c.bf16 %v997, %v997
    %v1006 = vpack.c.bf16 %v998, %v998
    %v1007 = vld [vmem:[#allocation10] sm:$0xff]
    %v1008 = vld [vmem:[#allocation10 + $0x8] sm:$0xff]
    %v1009 = vld [vmem:[#allocation10 + $0x10] sm:$0xff]
    %v1010 = vld [vmem:[#allocation10 + $0x18] sm:$0xf]
    %v1011 = vld [vmem:[#allocation10 + $0x1c] sm:$0xff]
    %v1012 = vld [vmem:[#allocation10 + $0x24] sm:$0xff]
    %v1013 = vld [vmem:[#allocation10 + $0x2c] sm:$0xff]
    %v1014 = vld [vmem:[#allocation10 + $0x34] sm:$0xf]
    %v1015 = vld [vmem:[#allocation10 + $0x38] sm:$0xff]
    %v1016 = vld [vmem:[#allocation10 + $0x40] sm:$0xff]
    %v1017 = vld [vmem:[#allocation10 + $0x48] sm:$0xff]
    %v1018 = vld [vmem:[#allocation10 + $0x50] sm:$0xf]
    %v1019 = vld [vmem:[#allocation10 + $0x54] sm:$0xff]
    %v1020 = vld [vmem:[#allocation10 + $0x5c] sm:$0xff]
    %v1021 = vld [vmem:[#allocation10 + $0x64] sm:$0xff]
    %v1022 = vld [vmem:[#allocation10 + $0x6c] sm:$0xf]
    %v1023 = vld [vmem:[#allocation10 + $0x70] sm:$0xff]
    %v1024 = vld [vmem:[#allocation10 + $0x78] sm:$0xff]
    %v1025 = vld [vmem:[#allocation10 + $0x80] sm:$0xff]
    %v1026 = vld [vmem:[#allocation10 + $0x88] sm:$0xf]
    %v1027 = vld [vmem:[#allocation10 + $0x8c] sm:$0xff]
    %v1028 = vld [vmem:[#allocation10 + $0x94] sm:$0xff]
    %v1029 = vld [vmem:[#allocation10 + $0x9c] sm:$0xff]
    %v1030 = vld [vmem:[#allocation10 + $0xa4] sm:$0xf]
    %v1031 = vld [vmem:[#allocation10 + $0xa8] sm:$0xff]
    %v1032 = vld [vmem:[#allocation10 + $0xb0] sm:$0xff]
    %v1033 = vld [vmem:[#allocation10 + $0xb8] sm:$0xff]
    %v1034 = vld [vmem:[#allocation10 + $0xc0] sm:$0xf]
    %v1035 = vld [vmem:[#allocation10 + $0xc4] sm:$0xff]
    %v1036 = vld [vmem:[#allocation10 + $0xcc] sm:$0xff]
    %v1037 = vld [vmem:[#allocation10 + $0xd4] sm:$0xff]
    %v1038 = vld [vmem:[#allocation10 + $0xdc] sm:$0xf]
    %v1039 = vld [vmem:[#allocation10 + $0xe0] sm:$0xff]
    %v1040 = vld [vmem:[#allocation10 + $0xe8] sm:$0xff]
    %v1041 = vld [vmem:[#allocation10 + $0xf0] sm:$0xff]
    %v1042 = vld [vmem:[#allocation10 + $0xf8] sm:$0xf]
    %v1043 = vld [vmem:[#allocation10 + $0xfc] sm:$0xff]
    %v1044 = vld [vmem:[#allocation10 + $0x104] sm:$0xff]
    %v1045 = vld [vmem:[#allocation10 + $0x10c] sm:$0xff]
    %v1046 = vld [vmem:[#allocation10 + $0x114] sm:$0xf]
    %v1047 = vld [vmem:[#allocation10 + $0x118] sm:$0xff]
    %v1048 = vld [vmem:[#allocation10 + $0x120] sm:$0xff]
    %v1049 = vld [vmem:[#allocation10 + $0x128] sm:$0xff]
    %v1050 = vld [vmem:[#allocation10 + $0x130] sm:$0xf]
    %v1051 = vld [vmem:[#allocation10 + $0x134] sm:$0xff]
    %v1052 = vld [vmem:[#allocation10 + $0x13c] sm:$0xff]
    %v1053 = vld [vmem:[#allocation10 + $0x144] sm:$0xff]
    %v1054 = vld [vmem:[#allocation10 + $0x14c] sm:$0xf]
    %v1055 = vld [vmem:[#allocation10 + $0x150] sm:$0xff]
    %v1056 = vld [vmem:[#allocation10 + $0x158] sm:$0xff]
    %v1057 = vld [vmem:[#allocation10 + $0x160] sm:$0xff]
    %v1058 = vld [vmem:[#allocation10 + $0x168] sm:$0xf]
    %v1059 = vld [vmem:[#allocation10 + $0x16c] sm:$0xff]
    %v1060 = vld [vmem:[#allocation10 + $0x174] sm:$0xff]
    %v1061 = vld [vmem:[#allocation10 + $0x17c] sm:$0xff]
    %v1062 = vld [vmem:[#allocation10 + $0x184] sm:$0xf]
    %v1063 = vld [vmem:[#allocation10 + $0x188] sm:$0xff]
    %v1064 = vld [vmem:[#allocation10 + $0x190] sm:$0xff]
    %v1065 = vld [vmem:[#allocation10 + $0x198] sm:$0xff]
    %v1066 = vld [vmem:[#allocation10 + $0x1a0] sm:$0xf]
    %v1067 = vld [vmem:[#allocation10 + $0x1a4] sm:$0xff]
    %v1068 = vld [vmem:[#allocation10 + $0x1ac] sm:$0xff]
    %v1069 = vld [vmem:[#allocation10 + $0x1b4] sm:$0xff]
    %v1070 = vld [vmem:[#allocation10 + $0x1bc] sm:$0xf]
    %v1071 = vld [vmem:[#allocation10 + $0x1c0] sm:$0xff]
    %v1072 = vld [vmem:[#allocation10 + $0x1c8] sm:$0xff]
    %v1073 = vld [vmem:[#allocation10 + $0x1d0] sm:$0xff]
    %v1074 = vld [vmem:[#allocation10 + $0x1d8] sm:$0xf]
    %v1075 = vld [vmem:[#allocation10 + $0x1dc] sm:$0xff]
    %v1076 = vld [vmem:[#allocation10 + $0x1e4] sm:$0xff]
    %v1077 = vld [vmem:[#allocation10 + $0x1ec] sm:$0xff]
    %v1078 = vld [vmem:[#allocation10 + $0x1f4] sm:$0xf]
    %v1079 = vld [vmem:[#allocation10 + $0x1f8] sm:$0xff]
    %v1080 = vld [vmem:[#allocation10 + $0x200] sm:$0xff]
    %v1081 = vld [vmem:[#allocation10 + $0x208] sm:$0xff]
    %v1082 = vld [vmem:[#allocation10 + $0x210] sm:$0xf]
    %v1083 = vld [vmem:[#allocation10 + $0x214] sm:$0xff]
    %v1084 = vld [vmem:[#allocation10 + $0x21c] sm:$0xff]
    %v1085 = vld [vmem:[#allocation10 + $0x224] sm:$0xff]
    %v1086 = vld [vmem:[#allocation10 + $0x22c] sm:$0xf]
    %v1087 = vld [vmem:[#allocation10 + $0x230] sm:$0xff]
    %v1088 = vld [vmem:[#allocation10 + $0x238] sm:$0xff]
    %v1089 = vld [vmem:[#allocation10 + $0x240] sm:$0xff]
    %v1090 = vld [vmem:[#allocation10 + $0x248] sm:$0xf]
    %v1091 = vld [vmem:[#allocation10 + $0x24c] sm:$0xff]
    %v1092 = vld [vmem:[#allocation10 + $0x254] sm:$0xff]
    %v1093 = vld [vmem:[#allocation10 + $0x25c] sm:$0xff]
    %v1094 = vld [vmem:[#allocation10 + $0x264] sm:$0xf]
    %v1095 = vld [vmem:[#allocation10 + $0x268] sm:$0xff]
    %v1096 = vld [vmem:[#allocation10 + $0x270] sm:$0xff]
    %v1097 = vld [vmem:[#allocation10 + $0x278] sm:$0xff]
    %v1098 = vld [vmem:[#allocation10 + $0x280] sm:$0xf]
    %v1099 = vld [vmem:[#allocation10 + $0x284] sm:$0xff]
    %v1100 = vld [vmem:[#allocation10 + $0x28c] sm:$0xff]
    %v1101 = vld [vmem:[#allocation10 + $0x294] sm:$0xff]
    %v1102 = vld [vmem:[#allocation10 + $0x29c] sm:$0xf]
    %v1103 = vld [vmem:[#allocation10 + $0x2a0] sm:$0xff]
    %v1104 = vld [vmem:[#allocation10 + $0x2a8] sm:$0xff]
    %v1105 = vld [vmem:[#allocation10 + $0x2b0] sm:$0xff]
    %v1106 = vld [vmem:[#allocation10 + $0x2b8] sm:$0xf]
    %v1107 = vld [vmem:[#allocation10 + $0x2bc] sm:$0xff]
    %v1108 = vld [vmem:[#allocation10 + $0x2c4] sm:$0xff]
    %v1109 = vld [vmem:[#allocation10 + $0x2cc] sm:$0xff]
    %v1110 = vld [vmem:[#allocation10 + $0x2d4] sm:$0xf]
    %v1111 = vld [vmem:[#allocation10 + $0x2d8] sm:$0xff]
    %v1112 = vld [vmem:[#allocation10 + $0x2e0] sm:$0xff]
    %v1113 = vld [vmem:[#allocation10 + $0x2e8] sm:$0xff]
    %v1114 = vld [vmem:[#allocation10 + $0x2f0] sm:$0xf]
    %v1115 = vld [vmem:[#allocation10 + $0x2f4] sm:$0xff]
    %v1116 = vld [vmem:[#allocation10 + $0x2fc] sm:$0xff]
    %v1117 = vld [vmem:[#allocation10 + $0x304] sm:$0xff]
    %v1118 = vld [vmem:[#allocation10 + $0x30c] sm:$0xf]
    %v1119 = vld [vmem:[#allocation10 + $0x310] sm:$0xff]
    %v1120 = vld [vmem:[#allocation10 + $0x318] sm:$0xff]
    %v1121 = vld [vmem:[#allocation10 + $0x320] sm:$0xff]
    %v1122 = vld [vmem:[#allocation10 + $0x328] sm:$0xf]
    %v1123 = vld [vmem:[#allocation10 + $0x32c] sm:$0xff]
    %v1124 = vld [vmem:[#allocation10 + $0x334] sm:$0xff]
    %v1125 = vld [vmem:[#allocation10 + $0x33c] sm:$0xff]
    %v1126 = vld [vmem:[#allocation10 + $0x344] sm:$0xf]
    %v1127 = vld [vmem:[#allocation10 + $0x348] sm:$0xff]
    %v1128 = vld [vmem:[#allocation10 + $0x350] sm:$0xff]
    %v1129 = vld [vmem:[#allocation10 + $0x358] sm:$0xff]
    %v1130 = vld [vmem:[#allocation10 + $0x360] sm:$0xf]
    %v1131 = vld [vmem:[#allocation10 + $0x364] sm:$0xff]
    %v1132 = vld [vmem:[#allocation10 + $0x36c] sm:$0xff]
    %v1133 = vld [vmem:[#allocation10 + $0x374] sm:$0xff]
    %v1134 = vld [vmem:[#allocation10 + $0x37c] sm:$0xf]
    %v1135 = vld [vmem:[#allocation10 + $0x380] sm:$0xff]
    %v1136 = vld [vmem:[#allocation10 + $0x388] sm:$0xff]
    %v1137 = vld [vmem:[#allocation10 + $0x390] sm:$0xff]
    %v1138 = vld [vmem:[#allocation10 + $0x398] sm:$0xf]
    %v1139 = vld [vmem:[#allocation10 + $0x39c] sm:$0xff]
    %v1140 = vld [vmem:[#allocation10 + $0x3a4] sm:$0xff]
    %v1141 = vld [vmem:[#allocation10 + $0x3ac] sm:$0xff]
    %v1142 = vld [vmem:[#allocation10 + $0x3b4] sm:$0xf]
    %v1143 = vld [vmem:[#allocation10 + $0x3b8] sm:$0xff]
    %v1144 = vld [vmem:[#allocation10 + $0x3c0] sm:$0xff]
    %v1145 = vld [vmem:[#allocation10 + $0x3c8] sm:$0xff]
    %v1146 = vld [vmem:[#allocation10 + $0x3d0] sm:$0xf]
    %v1147 = vld [vmem:[#allocation10 + $0x3d4] sm:$0xff]
    %v1148 = vld [vmem:[#allocation10 + $0x3dc] sm:$0xff]
    %v1149 = vld [vmem:[#allocation10 + $0x3e4] sm:$0xff]
    %v1150 = vld [vmem:[#allocation10 + $0x3ec] sm:$0xf]
    %v1151 = vld [vmem:[#allocation10 + $0x3f0] sm:$0xff]
    %v1152 = vld [vmem:[#allocation10 + $0x3f8] sm:$0xff]
    %v1153 = vld [vmem:[#allocation10 + $0x400] sm:$0xff]
    %v1154 = vld [vmem:[#allocation10 + $0x408] sm:$0xf]
    %v1155 = vld [vmem:[#allocation10 + $0x40c] sm:$0xff]
    %v1156 = vld [vmem:[#allocation10 + $0x414] sm:$0xff]
    %v1157 = vld [vmem:[#allocation10 + $0x41c] sm:$0xff]
    %v1158 = vld [vmem:[#allocation10 + $0x424] sm:$0xf]
    %v1159 = vld [vmem:[#allocation10 + $0x428] sm:$0xff]
    %v1160 = vld [vmem:[#allocation10 + $0x430] sm:$0xff]
    %v1161 = vld [vmem:[#allocation10 + $0x438] sm:$0xff]
    %v1162 = vld [vmem:[#allocation10 + $0x440] sm:$0xf]
    %v1163 = vld [vmem:[#allocation10 + $0x444] sm:$0xff]
    %v1164 = vld [vmem:[#allocation10 + $0x44c] sm:$0xff]
    %v1165 = vld [vmem:[#allocation10 + $0x454] sm:$0xff]
    %v1166 = vld [vmem:[#allocation10 + $0x45c] sm:$0xf]
    %v1167 = vld [vmem:[#allocation10 + $0x460] sm:$0xff]
    %v1168 = vld [vmem:[#allocation10 + $0x468] sm:$0xff]
    %v1169 = vld [vmem:[#allocation10 + $0x470] sm:$0xff]
    %v1170 = vld [vmem:[#allocation10 + $0x478] sm:$0xf]
    %v1171 = vld [vmem:[#allocation10 + $0x47c] sm:$0xff]
    %v1172 = vld [vmem:[#allocation10 + $0x484] sm:$0xff]
    %v1173 = vld [vmem:[#allocation10 + $0x48c] sm:$0xff]
    %v1174 = vld [vmem:[#allocation10 + $0x494] sm:$0xf]
    %v1175 = vld [vmem:[#allocation10 + $0x498] sm:$0xff]
    %v1176 = vld [vmem:[#allocation10 + $0x4a0] sm:$0xff]
    %v1177 = vld [vmem:[#allocation10 + $0x4a8] sm:$0xff]
    %v1178 = vld [vmem:[#allocation10 + $0x4b0] sm:$0xf]
    %v1179 = vld [vmem:[#allocation10 + $0x4b4] sm:$0xff]
    %v1180 = vld [vmem:[#allocation10 + $0x4bc] sm:$0xff]
    %v1181 = vld [vmem:[#allocation10 + $0x4c4] sm:$0xff]
    %v1182 = vld [vmem:[#allocation10 + $0x4cc] sm:$0xf]
    %v1183 = vld [vmem:[#allocation10 + $0x4d0] sm:$0xff]
    %v1184 = vld [vmem:[#allocation10 + $0x4d8] sm:$0xff]
    %v1185 = vld [vmem:[#allocation10 + $0x4e0] sm:$0xff]
    %v1186 = vld [vmem:[#allocation10 + $0x4e8] sm:$0xf]
    %v1187 = vld [vmem:[#allocation10 + $0x4ec] sm:$0xff]
    %v1188 = vld [vmem:[#allocation10 + $0x4f4] sm:$0xff]
    %v1189 = vld [vmem:[#allocation10 + $0x4fc] sm:$0xff]
    %v1190 = vld [vmem:[#allocation10 + $0x504] sm:$0xf]
    %v1191 = vld [vmem:[#allocation10 + $0x508] sm:$0xff]
    %v1192 = vld [vmem:[#allocation10 + $0x510] sm:$0xff]
    %v1193 = vld [vmem:[#allocation10 + $0x518] sm:$0xff]
    %v1194 = vld [vmem:[#allocation10 + $0x520] sm:$0xf]
    %v1195 = vld [vmem:[#allocation10 + $0x524] sm:$0xff]
    %v1196 = vld [vmem:[#allocation10 + $0x52c] sm:$0xff]
    %v1197 = vld [vmem:[#allocation10 + $0x534] sm:$0xff]
    %v1198 = vld [vmem:[#allocation10 + $0x53c] sm:$0xf]
    %v1199 = vld [vmem:[#allocation10 + $0x540] sm:$0xff]
    %v1200 = vld [vmem:[#allocation10 + $0x548] sm:$0xff]
    %v1201 = vld [vmem:[#allocation10 + $0x550] sm:$0xff]
    %v1202 = vld [vmem:[#allocation10 + $0x558] sm:$0xf]
    %v1203 = vld [vmem:[#allocation10 + $0x55c] sm:$0xff]
    %v1204 = vld [vmem:[#allocation10 + $0x564] sm:$0xff]
    %v1205 = vld [vmem:[#allocation10 + $0x56c] sm:$0xff]
    %v1206 = vld [vmem:[#allocation10 + $0x574] sm:$0xf]
    %v1207 = vld [vmem:[#allocation10 + $0x578] sm:$0xff]
    %v1208 = vld [vmem:[#allocation10 + $0x580] sm:$0xff]
    %v1209 = vld [vmem:[#allocation10 + $0x588] sm:$0xff]
    %v1210 = vld [vmem:[#allocation10 + $0x590] sm:$0xf]
    %v1211 = vld [vmem:[#allocation10 + $0x594] sm:$0xff]
    %v1212 = vld [vmem:[#allocation10 + $0x59c] sm:$0xff]
    %v1213 = vld [vmem:[#allocation10 + $0x5a4] sm:$0xff]
    %v1214 = vld [vmem:[#allocation10 + $0x5ac] sm:$0xf]
    %v1215 = vld [vmem:[#allocation10 + $0x5b0] sm:$0xff]
    %v1216 = vld [vmem:[#allocation10 + $0x5b8] sm:$0xff]
    %v1217 = vld [vmem:[#allocation10 + $0x5c0] sm:$0xff]
    %v1218 = vld [vmem:[#allocation10 + $0x5c8] sm:$0xf]
    %v1219 = vld [vmem:[#allocation10 + $0x5cc] sm:$0xff]
    %v1220 = vld [vmem:[#allocation10 + $0x5d4] sm:$0xff]
    %v1221 = vld [vmem:[#allocation10 + $0x5dc] sm:$0xff]
    %v1222 = vld [vmem:[#allocation10 + $0x5e4] sm:$0xf]
    %v1223 = vld [vmem:[#allocation10 + $0x5e8] sm:$0xff]
    %v1224 = vld [vmem:[#allocation10 + $0x5f0] sm:$0xff]
    %v1225 = vld [vmem:[#allocation10 + $0x5f8] sm:$0xff]
    %v1226 = vld [vmem:[#allocation10 + $0x600] sm:$0xf]
    %v1227 = vld [vmem:[#allocation10 + $0x604] sm:$0xff]
    %v1228 = vld [vmem:[#allocation10 + $0x60c] sm:$0xff]
    %v1229 = vld [vmem:[#allocation10 + $0x614] sm:$0xff]
    %v1230 = vld [vmem:[#allocation10 + $0x61c] sm:$0xf]
    %v1231 = vld [vmem:[#allocation10 + $0x620] sm:$0xff]
    %v1232 = vld [vmem:[#allocation10 + $0x628] sm:$0xff]
    %v1233 = vld [vmem:[#allocation10 + $0x630] sm:$0xff]
    %v1234 = vld [vmem:[#allocation10 + $0x638] sm:$0xf]
    %v1235 = vld [vmem:[#allocation10 + $0x63c] sm:$0xff]
    %v1236 = vld [vmem:[#allocation10 + $0x644] sm:$0xff]
    %v1237 = vld [vmem:[#allocation10 + $0x64c] sm:$0xff]
    %v1238 = vld [vmem:[#allocation10 + $0x654] sm:$0xf]
    %v1239 = vld [vmem:[#allocation10 + $0x658] sm:$0xff]
    %v1240 = vld [vmem:[#allocation10 + $0x660] sm:$0xff]
    %v1241 = vld [vmem:[#allocation10 + $0x668] sm:$0xff]
    %v1242 = vld [vmem:[#allocation10 + $0x670] sm:$0xf]
    %v1243 = vld [vmem:[#allocation10 + $0x674] sm:$0xff]
    %v1244 = vld [vmem:[#allocation10 + $0x67c] sm:$0xff]
    %v1245 = vld [vmem:[#allocation10 + $0x684] sm:$0xff]
    %v1246 = vld [vmem:[#allocation10 + $0x68c] sm:$0xf]
    %v1247 = vld [vmem:[#allocation10 + $0x690] sm:$0xff]
    %v1248 = vld [vmem:[#allocation10 + $0x698] sm:$0xff]
    %v1249 = vld [vmem:[#allocation10 + $0x6a0] sm:$0xff]
    %v1250 = vld [vmem:[#allocation10 + $0x6a8] sm:$0xf]
    %v1251 = vld [vmem:[#allocation10 + $0x6ac] sm:$0xff]
    %v1252 = vld [vmem:[#allocation10 + $0x6b4] sm:$0xff]
    %v1253 = vld [vmem:[#allocation10 + $0x6bc] sm:$0xff]
    %v1254 = vld [vmem:[#allocation10 + $0x6c4] sm:$0xf]
    %v1255 = vld [vmem:[#allocation10 + $0x6c8] sm:$0xff]
    %v1256 = vld [vmem:[#allocation10 + $0x6d0] sm:$0xff]
    %v1257 = vld [vmem:[#allocation10 + $0x6d8] sm:$0xff]
    %v1258 = vld [vmem:[#allocation10 + $0x6e0] sm:$0xf]
    %v1259 = vld [vmem:[#allocation10 + $0x6e4] sm:$0xff]
    %v1260 = vld [vmem:[#allocation10 + $0x6ec] sm:$0xff]
    %v1261 = vld [vmem:[#allocation10 + $0x6f4] sm:$0xff]
    %v1262 = vld [vmem:[#allocation10 + $0x6fc] sm:$0xf]
    %v1263 = vld [vmem:[#allocation10 + $0x700] sm:$0xff]
    %v1264 = vld [vmem:[#allocation10 + $0x708] sm:$0xff]
    %v1265 = vld [vmem:[#allocation10 + $0x710] sm:$0xff]
    %v1266 = vld [vmem:[#allocation10 + $0x718] sm:$0xf]
    %v1267 = vld [vmem:[#allocation10 + $0x71c] sm:$0xff]
    %v1268 = vld [vmem:[#allocation10 + $0x724] sm:$0xff]
    %v1269 = vld [vmem:[#allocation10 + $0x72c] sm:$0xff]
    %v1270 = vld [vmem:[#allocation10 + $0x734] sm:$0xf]
    %v1271 = vld [vmem:[#allocation10 + $0x738] sm:$0xff]
    %v1272 = vld [vmem:[#allocation10 + $0x740] sm:$0xff]
    %v1273 = vld [vmem:[#allocation10 + $0x748] sm:$0xff]
    %v1274 = vld [vmem:[#allocation10 + $0x750] sm:$0xf]
    %v1275 = vld [vmem:[#allocation10 + $0x754] sm:$0xff]
    %v1276 = vld [vmem:[#allocation10 + $0x75c] sm:$0xff]
    %v1277 = vld [vmem:[#allocation10 + $0x764] sm:$0xff]
    %v1278 = vld [vmem:[#allocation10 + $0x76c] sm:$0xf]
    %v1279 = vld [vmem:[#allocation10 + $0x770] sm:$0xff]
    %v1280 = vld [vmem:[#allocation10 + $0x778] sm:$0xff]
    %v1281 = vld [vmem:[#allocation10 + $0x780] sm:$0xff]
    %v1282 = vld [vmem:[#allocation10 + $0x788] sm:$0xf]
    %v1283 = vld [vmem:[#allocation10 + $0x78c] sm:$0xff]
    %v1284 = vld [vmem:[#allocation10 + $0x794] sm:$0xff]
    %v1285 = vld [vmem:[#allocation10 + $0x79c] sm:$0xff]
    %v1286 = vld [vmem:[#allocation10 + $0x7a4] sm:$0xf]
    %v1287 = vld [vmem:[#allocation10 + $0x7a8] sm:$0xff]
    %v1288 = vld [vmem:[#allocation10 + $0x7b0] sm:$0xff]
    %v1289 = vld [vmem:[#allocation10 + $0x7b8] sm:$0xff]
    %v1290 = vld [vmem:[#allocation10 + $0x7c0] sm:$0xf]
    %v1291 = vld [vmem:[#allocation10 + $0x7c4] sm:$0xff]
    %v1292 = vld [vmem:[#allocation10 + $0x7cc] sm:$0xff]
    %v1293 = vld [vmem:[#allocation10 + $0x7d4] sm:$0xff]
    %v1294 = vld [vmem:[#allocation10 + $0x7dc] sm:$0xf]
    %v1295 = vld [vmem:[#allocation10 + $0x7e0] sm:$0xff]
    %v1296 = vld [vmem:[#allocation10 + $0x7e8] sm:$0xff]
    %v1297 = vld [vmem:[#allocation10 + $0x7f0] sm:$0xff]
    %v1298 = vld [vmem:[#allocation10 + $0x7f8] sm:$0xf]
    %v1299 = vld [vmem:[#allocation10 + $0x7fc] sm:$0xff]
    %v1300 = vld [vmem:[#allocation10 + $0x804] sm:$0xff]
    %v1301 = vld [vmem:[#allocation10 + $0x80c] sm:$0xff]
    %v1302 = vld [vmem:[#allocation10 + $0x814] sm:$0xf]
    %v1303 = vld [vmem:[#allocation10 + $0x818] sm:$0xff]
    %v1304 = vld [vmem:[#allocation10 + $0x820] sm:$0xff]
    %v1305 = vld [vmem:[#allocation10 + $0x828] sm:$0xff]
    %v1306 = vld [vmem:[#allocation10 + $0x830] sm:$0xf]
    %v1307 = vld [vmem:[#allocation10 + $0x834] sm:$0xff]
    %v1308 = vld [vmem:[#allocation10 + $0x83c] sm:$0xff]
    %v1309 = vld [vmem:[#allocation10 + $0x844] sm:$0xff]
    %v1310 = vld [vmem:[#allocation10 + $0x84c] sm:$0xf]
    %v1311 = vld [vmem:[#allocation10 + $0x850] sm:$0xff]
    %v1312 = vld [vmem:[#allocation10 + $0x858] sm:$0xff]
    %v1313 = vld [vmem:[#allocation10 + $0x860] sm:$0xff]
    %v1314 = vld [vmem:[#allocation10 + $0x868] sm:$0xf]
    %v1315 = vld [vmem:[#allocation10 + $0x86c] sm:$0xff]
    %v1316 = vld [vmem:[#allocation10 + $0x874] sm:$0xff]
    %v1317 = vld [vmem:[#allocation10 + $0x87c] sm:$0xff]
    %v1318 = vld [vmem:[#allocation10 + $0x884] sm:$0xf]
    %v1319 = vld [vmem:[#allocation10 + $0x888] sm:$0xff]
    %v1320 = vld [vmem:[#allocation10 + $0x890] sm:$0xff]
    %v1321 = vld [vmem:[#allocation10 + $0x898] sm:$0xff]
    %v1322 = vld [vmem:[#allocation10 + $0x8a0] sm:$0xf]
    %v1323 = vld [vmem:[#allocation10 + $0x8a4] sm:$0xff]
    %v1324 = vld [vmem:[#allocation10 + $0x8ac] sm:$0xff]
    %v1325 = vld [vmem:[#allocation10 + $0x8b4] sm:$0xff]
    %v1326 = vld [vmem:[#allocation10 + $0x8bc] sm:$0xf]
    %v1327 = vld [vmem:[#allocation10 + $0x8c0] sm:$0xff]
    %v1328 = vld [vmem:[#allocation10 + $0x8c8] sm:$0xff]
    %v1329 = vld [vmem:[#allocation10 + $0x8d0] sm:$0xff]
    %v1330 = vld [vmem:[#allocation10 + $0x8d8] sm:$0xf]
    %v1331 = vld [vmem:[#allocation10 + $0x8dc] sm:$0xff]
    %v1332 = vld [vmem:[#allocation10 + $0x8e4] sm:$0xff]
    %v1333 = vld [vmem:[#allocation10 + $0x8ec] sm:$0xff]
    %v1334 = vld [vmem:[#allocation10 + $0x8f4] sm:$0xf]
    %v1335 = vld [vmem:[#allocation10 + $0x8f8] sm:$0xff]
    %v1336 = vld [vmem:[#allocation10 + $0x900] sm:$0xff]
    %v1337 = vld [vmem:[#allocation10 + $0x908] sm:$0xff]
    %v1338 = vld [vmem:[#allocation10 + $0x910] sm:$0xf]
    %v1339 = vld [vmem:[#allocation10 + $0x914] sm:$0xff]
    %v1340 = vld [vmem:[#allocation10 + $0x91c] sm:$0xff]
    %v1341 = vld [vmem:[#allocation10 + $0x924] sm:$0xff]
    %v1342 = vld [vmem:[#allocation10 + $0x92c] sm:$0xf]
    %v1343 = vld [vmem:[#allocation10 + $0x930] sm:$0xff]
    %v1344 = vld [vmem:[#allocation10 + $0x938] sm:$0xff]
    %v1345 = vld [vmem:[#allocation10 + $0x940] sm:$0xff]
    %v1346 = vld [vmem:[#allocation10 + $0x948] sm:$0xf]
    %v1347 = vld [vmem:[#allocation10 + $0x94c] sm:$0xff]
    %v1348 = vld [vmem:[#allocation10 + $0x954] sm:$0xff]
    %v1349 = vld [vmem:[#allocation10 + $0x95c] sm:$0xff]
    %v1350 = vld [vmem:[#allocation10 + $0x964] sm:$0xf]
    %v1351 = vld [vmem:[#allocation10 + $0x968] sm:$0xff]
    %v1352 = vld [vmem:[#allocation10 + $0x970] sm:$0xff]
    %v1353 = vld [vmem:[#allocation10 + $0x978] sm:$0xff]
    %v1354 = vld [vmem:[#allocation10 + $0x980] sm:$0xf]
    %v1355 = vld [vmem:[#allocation10 + $0x984] sm:$0xff]
    %v1356 = vld [vmem:[#allocation10 + $0x98c] sm:$0xff]
    %v1357 = vld [vmem:[#allocation10 + $0x994] sm:$0xff]
    %v1358 = vld [vmem:[#allocation10 + $0x99c] sm:$0xf]
    %v1359 = vld [vmem:[#allocation10 + $0x9a0] sm:$0xff]
    %v1360 = vld [vmem:[#allocation10 + $0x9a8] sm:$0xff]
    %v1361 = vld [vmem:[#allocation10 + $0x9b0] sm:$0xff]
    %v1362 = vld [vmem:[#allocation10 + $0x9b8] sm:$0xf]
    %v1363 = vld [vmem:[#allocation10 + $0x9bc] sm:$0xff]
    %v1364 = vld [vmem:[#allocation10 + $0x9c4] sm:$0xff]
    %v1365 = vld [vmem:[#allocation10 + $0x9cc] sm:$0xff]
    %v1366 = vld [vmem:[#allocation10 + $0x9d4] sm:$0xf]
    %v1367 = vld [vmem:[#allocation10 + $0x9d8] sm:$0xff]
    %v1368 = vld [vmem:[#allocation10 + $0x9e0] sm:$0xff]
    %v1369 = vld [vmem:[#allocation10 + $0x9e8] sm:$0xff]
    %v1370 = vld [vmem:[#allocation10 + $0x9f0] sm:$0xf]
    %v1371 = vld [vmem:[#allocation10 + $0x9f4] sm:$0xff]
    %v1372 = vld [vmem:[#allocation10 + $0x9fc] sm:$0xff]
    %v1373 = vld [vmem:[#allocation10 + $0xa04] sm:$0xff]
    %v1374 = vld [vmem:[#allocation10 + $0xa0c] sm:$0xf]
    %v1375 = vld [vmem:[#allocation10 + $0xa10] sm:$0xff]
    %v1376 = vld [vmem:[#allocation10 + $0xa18] sm:$0xff]
    %v1377 = vld [vmem:[#allocation10 + $0xa20] sm:$0xff]
    %v1378 = vld [vmem:[#allocation10 + $0xa28] sm:$0xf]
    %v1379 = vld [vmem:[#allocation10 + $0xa2c] sm:$0xff]
    %v1380 = vld [vmem:[#allocation10 + $0xa34] sm:$0xff]
    %v1381 = vld [vmem:[#allocation10 + $0xa3c] sm:$0xff]
    %v1382 = vld [vmem:[#allocation10 + $0xa44] sm:$0xf]
    %v1383 = vld [vmem:[#allocation10 + $0xa48] sm:$0xff]
    %v1384 = vld [vmem:[#allocation10 + $0xa50] sm:$0xff]
    %v1385 = vld [vmem:[#allocation10 + $0xa58] sm:$0xff]
    %v1386 = vld [vmem:[#allocation10 + $0xa60] sm:$0xf]
    %v1387 = vld [vmem:[#allocation10 + $0xa64] sm:$0xff]
    %v1388 = vld [vmem:[#allocation10 + $0xa6c] sm:$0xff]
    %v1389 = vld [vmem:[#allocation10 + $0xa74] sm:$0xff]
    %v1390 = vld [vmem:[#allocation10 + $0xa7c] sm:$0xf]
    %v1391 = vld [vmem:[#allocation10 + $0xa80] sm:$0xff]
    %v1392 = vld [vmem:[#allocation10 + $0xa88] sm:$0xff]
    %v1393 = vld [vmem:[#allocation10 + $0xa90] sm:$0xff]
    %v1394 = vld [vmem:[#allocation10 + $0xa98] sm:$0xf]
    %v1395 = vld [vmem:[#allocation10 + $0xa9c] sm:$0xff]
    %v1396 = vld [vmem:[#allocation10 + $0xaa4] sm:$0xff]
    %v1397 = vld [vmem:[#allocation10 + $0xaac] sm:$0xff]
    %v1398 = vld [vmem:[#allocation10 + $0xab4] sm:$0xf]
    %v1399 = vld [vmem:[#allocation10 + $0xab8] sm:$0xff]
    %v1400 = vld [vmem:[#allocation10 + $0xac0] sm:$0xff]
    %v1401 = vld [vmem:[#allocation10 + $0xac8] sm:$0xff]
    %v1402 = vld [vmem:[#allocation10 + $0xad0] sm:$0xf]
    %v1403 = vld [vmem:[#allocation10 + $0xad4] sm:$0xff]
    %v1404 = vld [vmem:[#allocation10 + $0xadc] sm:$0xff]
    %v1405 = vld [vmem:[#allocation10 + $0xae4] sm:$0xff]
    %v1406 = vld [vmem:[#allocation10 + $0xaec] sm:$0xf]
    %v1407 = vld [vmem:[#allocation10 + $0xaf0] sm:$0xff]
    %v1408 = vld [vmem:[#allocation10 + $0xaf8] sm:$0xff]
    %v1409 = vld [vmem:[#allocation10 + $0xb00] sm:$0xff]
    %v1410 = vld [vmem:[#allocation10 + $0xb08] sm:$0xf]
    %v1411 = vld [vmem:[#allocation10 + $0xb0c] sm:$0xff]
    %v1412 = vld [vmem:[#allocation10 + $0xb14] sm:$0xff]
    %v1413 = vld [vmem:[#allocation10 + $0xb1c] sm:$0xff]
    %v1414 = vld [vmem:[#allocation10 + $0xb24] sm:$0xf]
    %v1415 = vld [vmem:[#allocation10 + $0xb28] sm:$0xff]
    %v1416 = vld [vmem:[#allocation10 + $0xb30] sm:$0xff]
    %v1417 = vld [vmem:[#allocation10 + $0xb38] sm:$0xff]
    %v1418 = vld [vmem:[#allocation10 + $0xb40] sm:$0xf]
    %v1419 = vld [vmem:[#allocation10 + $0xb44] sm:$0xff]
    %v1420 = vld [vmem:[#allocation10 + $0xb4c] sm:$0xff]
    %v1421 = vld [vmem:[#allocation10 + $0xb54] sm:$0xff]
    %v1422 = vld [vmem:[#allocation10 + $0xb5c] sm:$0xf]
    %v1423 = vld [vmem:[#allocation10 + $0xb60] sm:$0xff]
    %v1424 = vld [vmem:[#allocation10 + $0xb68] sm:$0xff]
    %v1425 = vld [vmem:[#allocation10 + $0xb70] sm:$0xff]
    %v1426 = vld [vmem:[#allocation10 + $0xb78] sm:$0xf]
    %v1427 = vld [vmem:[#allocation10 + $0xb7c] sm:$0xff]
    %v1428 = vld [vmem:[#allocation10 + $0xb84] sm:$0xff]
    %v1429 = vld [vmem:[#allocation10 + $0xb8c] sm:$0xff]
    %v1430 = vld [vmem:[#allocation10 + $0xb94] sm:$0xf]
    %v1431 = vld [vmem:[#allocation10 + $0xb98] sm:$0xff]
    %v1432 = vld [vmem:[#allocation10 + $0xba0] sm:$0xff]
    %v1433 = vld [vmem:[#allocation10 + $0xba8] sm:$0xff]
    %v1434 = vld [vmem:[#allocation10 + $0xbb0] sm:$0xf]
    %v1435 = vld [vmem:[#allocation10 + $0xbb4] sm:$0xff]
    %v1436 = vld [vmem:[#allocation10 + $0xbbc] sm:$0xff]
    %v1437 = vld [vmem:[#allocation10 + $0xbc4] sm:$0xff]
    %v1438 = vld [vmem:[#allocation10 + $0xbcc] sm:$0xf]
    %v1439 = vld [vmem:[#allocation10 + $0xbd0] sm:$0xff]
    %v1440 = vld [vmem:[#allocation10 + $0xbd8] sm:$0xff]
    %v1441 = vld [vmem:[#allocation10 + $0xbe0] sm:$0xff]
    %v1442 = vld [vmem:[#allocation10 + $0xbe8] sm:$0xf]
    %v1443 = vld [vmem:[#allocation10 + $0xbec] sm:$0xff]
    %v1444 = vld [vmem:[#allocation10 + $0xbf4] sm:$0xff]
    %v1445 = vld [vmem:[#allocation10 + $0xbfc] sm:$0xff]
    %v1446 = vld [vmem:[#allocation10 + $0xc04] sm:$0xf]
    %v1447 = vld [vmem:[#allocation10 + $0xc08] sm:$0xff]
    %v1448 = vld [vmem:[#allocation10 + $0xc10] sm:$0xff]
    %v1449 = vld [vmem:[#allocation10 + $0xc18] sm:$0xff]
    %v1450 = vld [vmem:[#allocation10 + $0xc20] sm:$0xf]
    %v1451 = vld [vmem:[#allocation10 + $0xc24] sm:$0xff]
    %v1452 = vld [vmem:[#allocation10 + $0xc2c] sm:$0xff]
    %v1453 = vld [vmem:[#allocation10 + $0xc34] sm:$0xff]
    %v1454 = vld [vmem:[#allocation10 + $0xc3c] sm:$0xf]
    %v1455 = vld [vmem:[#allocation10 + $0xc40] sm:$0xff]
    %v1456 = vld [vmem:[#allocation10 + $0xc48] sm:$0xff]
    %v1457 = vld [vmem:[#allocation10 + $0xc50] sm:$0xff]
    %v1458 = vld [vmem:[#allocation10 + $0xc58] sm:$0xf]
    %v1459 = vld [vmem:[#allocation10 + $0xc5c] sm:$0xff]
    %v1460 = vld [vmem:[#allocation10 + $0xc64] sm:$0xff]
    %v1461 = vld [vmem:[#allocation10 + $0xc6c] sm:$0xff]
    %v1462 = vld [vmem:[#allocation10 + $0xc74] sm:$0xf]
    %v1463 = vld [vmem:[#allocation10 + $0xc78] sm:$0xff]
    %v1464 = vld [vmem:[#allocation10 + $0xc80] sm:$0xff]
    %v1465 = vld [vmem:[#allocation10 + $0xc88] sm:$0xff]
    %v1466 = vld [vmem:[#allocation10 + $0xc90] sm:$0xf]
    %v1467 = vld [vmem:[#allocation10 + $0xc94] sm:$0xff]
    %v1468 = vld [vmem:[#allocation10 + $0xc9c] sm:$0xff]
    %v1469 = vld [vmem:[#allocation10 + $0xca4] sm:$0xff]
    %v1470 = vld [vmem:[#allocation10 + $0xcac] sm:$0xf]
    %v1471 = vld [vmem:[#allocation10 + $0xcb0] sm:$0xff]
    %v1472 = vld [vmem:[#allocation10 + $0xcb8] sm:$0xff]
    %v1473 = vld [vmem:[#allocation10 + $0xcc0] sm:$0xff]
    %v1474 = vld [vmem:[#allocation10 + $0xcc8] sm:$0xf]
    %v1475 = vld [vmem:[#allocation10 + $0xccc] sm:$0xff]
    %v1476 = vld [vmem:[#allocation10 + $0xcd4] sm:$0xff]
    %v1477 = vld [vmem:[#allocation10 + $0xcdc] sm:$0xff]
    %v1478 = vld [vmem:[#allocation10 + $0xce4] sm:$0xf]
    %v1479 = vld [vmem:[#allocation10 + $0xce8] sm:$0xff]
    %v1480 = vld [vmem:[#allocation10 + $0xcf0] sm:$0xff]
    %v1481 = vld [vmem:[#allocation10 + $0xcf8] sm:$0xff]
    %v1482 = vld [vmem:[#allocation10 + $0xd00] sm:$0xf]
    %v1483 = vld [vmem:[#allocation10 + $0xd04] sm:$0xff]
    %v1484 = vld [vmem:[#allocation10 + $0xd0c] sm:$0xff]
    %v1485 = vld [vmem:[#allocation10 + $0xd14] sm:$0xff]
    %v1486 = vld [vmem:[#allocation10 + $0xd1c] sm:$0xf]
    %v1487 = vld [vmem:[#allocation10 + $0xd20] sm:$0xff]
    %v1488 = vld [vmem:[#allocation10 + $0xd28] sm:$0xff]
    %v1489 = vld [vmem:[#allocation10 + $0xd30] sm:$0xff]
    %v1490 = vld [vmem:[#allocation10 + $0xd38] sm:$0xf]
    %v1491 = vld [vmem:[#allocation10 + $0xd3c] sm:$0xff]
    %v1492 = vld [vmem:[#allocation10 + $0xd44] sm:$0xff]
    %v1493 = vld [vmem:[#allocation10 + $0xd4c] sm:$0xff]
    %v1494 = vld [vmem:[#allocation10 + $0xd54] sm:$0xf]
    %v1495 = vld [vmem:[#allocation10 + $0xd58] sm:$0xff]
    %v1496 = vld [vmem:[#allocation10 + $0xd60] sm:$0xff]
    %v1497 = vld [vmem:[#allocation10 + $0xd68] sm:$0xff]
    %v1498 = vld [vmem:[#allocation10 + $0xd70] sm:$0xf]
    %v1499 = vld [vmem:[#allocation10 + $0xd74] sm:$0xff]
    %v1500 = vld [vmem:[#allocation10 + $0xd7c] sm:$0xff]
    %v1501 = vld [vmem:[#allocation10 + $0xd84] sm:$0xff]
    %v1502 = vld [vmem:[#allocation10 + $0xd8c] sm:$0xf]
    %v1503 = vld [vmem:[#allocation10 + $0xd90] sm:$0xff]
    %v1504 = vld [vmem:[#allocation10 + $0xd98] sm:$0xff]
    %v1505 = vld [vmem:[#allocation10 + $0xda0] sm:$0xff]
    %v1506 = vld [vmem:[#allocation10 + $0xda8] sm:$0xf]
    %v1507 = vld [vmem:[#allocation10 + $0xdac] sm:$0xff]
    %v1508 = vld [vmem:[#allocation10 + $0xdb4] sm:$0xff]
    %v1509 = vld [vmem:[#allocation10 + $0xdbc] sm:$0xff]
    %v1510 = vld [vmem:[#allocation10 + $0xdc4] sm:$0xf]
    %v1511 = vld [vmem:[#allocation10 + $0xdc8] sm:$0xff]
    %v1512 = vld [vmem:[#allocation10 + $0xdd0] sm:$0xff]
    %v1513 = vld [vmem:[#allocation10 + $0xdd8] sm:$0xff]
    %v1514 = vld [vmem:[#allocation10 + $0xde0] sm:$0xf]
    %v1515 = vld [vmem:[#allocation10 + $0xde4] sm:$0xff]
    %v1516 = vld [vmem:[#allocation10 + $0xdec] sm:$0xff]
    %v1517 = vld [vmem:[#allocation10 + $0xdf4] sm:$0xff]
    %v1518 = vld [vmem:[#allocation10 + $0xdfc] sm:$0xf]
    %v2031 = vunpack.c.l.b16 %v1007
    %v2032 = vunpack.c.h.b16 %v1007
    %v2033 = vunpack.c.l.b16 %v1008
    %v2034 = vunpack.c.h.b16 %v1008
    %v2035 = vunpack.c.l.b16 %v1009
    %v2036 = vunpack.c.h.b16 %v1009
    %v2037 = vunpack.c.l.b16 %v1010
    %v2038 = vunpack.c.l.b16 %v1011
    %v2039 = vunpack.c.h.b16 %v1011
    %v2040 = vunpack.c.l.b16 %v1012
    %v2041 = vunpack.c.h.b16 %v1012
    %v2042 = vunpack.c.l.b16 %v1013
    %v2043 = vunpack.c.h.b16 %v1013
    %v2044 = vunpack.c.l.b16 %v1014
    %v2045 = vunpack.c.l.b16 %v1015
    %v2046 = vunpack.c.h.b16 %v1015
    %v2047 = vunpack.c.l.b16 %v1016
    %v2048 = vunpack.c.h.b16 %v1016
    %v2049 = vunpack.c.l.b16 %v1017
    %v2050 = vunpack.c.h.b16 %v1017
    %v2051 = vunpack.c.l.b16 %v1018
    %v2052 = vunpack.c.l.b16 %v1019
    %v2053 = vunpack.c.h.b16 %v1019
    %v2054 = vunpack.c.l.b16 %v1020
    %v2055 = vunpack.c.h.b16 %v1020
    %v2056 = vunpack.c.l.b16 %v1021
    %v2057 = vunpack.c.h.b16 %v1021
    %v2058 = vunpack.c.l.b16 %v1022
    %v2059 = vunpack.c.l.b16 %v1023
    %v2060 = vunpack.c.h.b16 %v1023
    %v2061 = vunpack.c.l.b16 %v1024
    %v2062 = vunpack.c.h.b16 %v1024
    %v2063 = vunpack.c.l.b16 %v1025
    %v2064 = vunpack.c.h.b16 %v1025
    %v2065 = vunpack.c.l.b16 %v1026
    %v2066 = vunpack.c.l.b16 %v1027
    %v2067 = vunpack.c.h.b16 %v1027
    %v2068 = vunpack.c.l.b16 %v1028
    %v2069 = vunpack.c.h.b16 %v1028
    %v2070 = vunpack.c.l.b16 %v1029
    %v2071 = vunpack.c.h.b16 %v1029
    %v2072 = vunpack.c.l.b16 %v1030
    %v2073 = vunpack.c.l.b16 %v1031
    %v2074 = vunpack.c.h.b16 %v1031
    %v2075 = vunpack.c.l.b16 %v1032
    %v2076 = vunpack.c.h.b16 %v1032
    %v2077 = vunpack.c.l.b16 %v1033
    %v2078 = vunpack.c.h.b16 %v1033
    %v2079 = vunpack.c.l.b16 %v1034
    %v2080 = vunpack.c.l.b16 %v1035
    %v2081 = vunpack.c.h.b16 %v1035
    %v2082 = vunpack.c.l.b16 %v1036
    %v2083 = vunpack.c.h.b16 %v1036
    %v2084 = vunpack.c.l.b16 %v1037
    %v2085 = vunpack.c.h.b16 %v1037
    %v2086 = vunpack.c.l.b16 %v1038
    %v2087 = vunpack.c.l.b16 %v1039
    %v2088 = vunpack.c.h.b16 %v1039
    %v2089 = vunpack.c.l.b16 %v1040
    %v2090 = vunpack.c.h.b16 %v1040
    %v2091 = vunpack.c.l.b16 %v1041
    %v2092 = vunpack.c.h.b16 %v1041
    %v2093 = vunpack.c.l.b16 %v1042
    %v2094 = vunpack.c.l.b16 %v1043
    %v2095 = vunpack.c.h.b16 %v1043
    %v2096 = vunpack.c.l.b16 %v1044
    %v2097 = vunpack.c.h.b16 %v1044
    %v2098 = vunpack.c.l.b16 %v1045
    %v2099 = vunpack.c.h.b16 %v1045
    %v2100 = vunpack.c.l.b16 %v1046
    %v2101 = vunpack.c.l.b16 %v1047
    %v2102 = vunpack.c.h.b16 %v1047
    %v2103 = vunpack.c.l.b16 %v1048
    %v2104 = vunpack.c.h.b16 %v1048
    %v2105 = vunpack.c.l.b16 %v1049
    %v2106 = vunpack.c.h.b16 %v1049
    %v2107 = vunpack.c.l.b16 %v1050
    %v2108 = vunpack.c.l.b16 %v1051
    %v2109 = vunpack.c.h.b16 %v1051
    %v2110 = vunpack.c.l.b16 %v1052
    %v2111 = vunpack.c.h.b16 %v1052
    %v2112 = vunpack.c.l.b16 %v1053
    %v2113 = vunpack.c.h.b16 %v1053
    %v2114 = vunpack.c.l.b16 %v1054
    %v2115 = vunpack.c.l.b16 %v1055
    %v2116 = vunpack.c.h.b16 %v1055
    %v2117 = vunpack.c.l.b16 %v1056
    %v2118 = vunpack.c.h.b16 %v1056
    %v2119 = vunpack.c.l.b16 %v1057
    %v2120 = vunpack.c.h.b16 %v1057
    %v2121 = vunpack.c.l.b16 %v1058
    %v2122 = vunpack.c.l.b16 %v1059
    %v2123 = vunpack.c.h.b16 %v1059
    %v2124 = vunpack.c.l.b16 %v1060
    %v2125 = vunpack.c.h.b16 %v1060
    %v2126 = vunpack.c.l.b16 %v1061
    %v2127 = vunpack.c.h.b16 %v1061
    %v2128 = vunpack.c.l.b16 %v1062
    %v2129 = vunpack.c.l.b16 %v1063
    %v2130 = vunpack.c.h.b16 %v1063
    %v2131 = vunpack.c.l.b16 %v1064
    %v2132 = vunpack.c.h.b16 %v1064
    %v2133 = vunpack.c.l.b16 %v1065
    %v2134 = vunpack.c.h.b16 %v1065
    %v2135 = vunpack.c.l.b16 %v1066
    %v2136 = vunpack.c.l.b16 %v1067
    %v2137 = vunpack.c.h.b16 %v1067
    %v2138 = vunpack.c.l.b16 %v1068
    %v2139 = vunpack.c.h.b16 %v1068
    %v2140 = vunpack.c.l.b16 %v1069
    %v2141 = vunpack.c.h.b16 %v1069
    %v2142 = vunpack.c.l.b16 %v1070
    %v2143 = vunpack.c.l.b16 %v1071
    %v2144 = vunpack.c.h.b16 %v1071
    %v2145 = vunpack.c.l.b16 %v1072
    %v2146 = vunpack.c.h.b16 %v1072
    %v2147 = vunpack.c.l.b16 %v1073
    %v2148 = vunpack.c.h.b16 %v1073
    %v2149 = vunpack.c.l.b16 %v1074
    %v2150 = vunpack.c.l.b16 %v1075
    %v2151 = vunpack.c.h.b16 %v1075
    %v2152 = vunpack.c.l.b16 %v1076
    %v2153 = vunpack.c.h.b16 %v1076
    %v2154 = vunpack.c.l.b16 %v1077
    %v2155 = vunpack.c.h.b16 %v1077
    %v2156 = vunpack.c.l.b16 %v1078
    %v2157 = vunpack.c.l.b16 %v1079
    %v2158 = vunpack.c.h.b16 %v1079
    %v2159 = vunpack.c.l.b16 %v1080
    %v2160 = vunpack.c.h.b16 %v1080
    %v2161 = vunpack.c.l.b16 %v1081
    %v2162 = vunpack.c.h.b16 %v1081
    %v2163 = vunpack.c.l.b16 %v1082
    %v2164 = vunpack.c.l.b16 %v1083
    %v2165 = vunpack.c.h.b16 %v1083
    %v2166 = vunpack.c.l.b16 %v1084
    %v2167 = vunpack.c.h.b16 %v1084
    %v2168 = vunpack.c.l.b16 %v1085
    %v2169 = vunpack.c.h.b16 %v1085
    %v2170 = vunpack.c.l.b16 %v1086
    %v2171 = vunpack.c.l.b16 %v1087
    %v2172 = vunpack.c.h.b16 %v1087
    %v2173 = vunpack.c.l.b16 %v1088
    %v2174 = vunpack.c.h.b16 %v1088
    %v2175 = vunpack.c.l.b16 %v1089
    %v2176 = vunpack.c.h.b16 %v1089
    %v2177 = vunpack.c.l.b16 %v1090
    %v2178 = vunpack.c.l.b16 %v1091
    %v2179 = vunpack.c.h.b16 %v1091
    %v2180 = vunpack.c.l.b16 %v1092
    %v2181 = vunpack.c.h.b16 %v1092
    %v2182 = vunpack.c.l.b16 %v1093
    %v2183 = vunpack.c.h.b16 %v1093
    %v2184 = vunpack.c.l.b16 %v1094
    %v2185 = vunpack.c.l.b16 %v1095
    %v2186 = vunpack.c.h.b16 %v1095
    %v2187 = vunpack.c.l.b16 %v1096
    %v2188 = vunpack.c.h.b16 %v1096
    %v2189 = vunpack.c.l.b16 %v1097
    %v2190 = vunpack.c.h.b16 %v1097
    %v2191 = vunpack.c.l.b16 %v1098
    %v2192 = vunpack.c.l.b16 %v1099
    %v2193 = vunpack.c.h.b16 %v1099
    %v2194 = vunpack.c.l.b16 %v1100
    %v2195 = vunpack.c.h.b16 %v1100
    %v2196 = vunpack.c.l.b16 %v1101
    %v2197 = vunpack.c.h.b16 %v1101
    %v2198 = vunpack.c.l.b16 %v1102
    %v2199 = vunpack.c.l.b16 %v1103
    %v2200 = vunpack.c.h.b16 %v1103
    %v2201 = vunpack.c.l.b16 %v1104
    %v2202 = vunpack.c.h.b16 %v1104
    %v2203 = vunpack.c.l.b16 %v1105
    %v2204 = vunpack.c.h.b16 %v1105
    %v2205 = vunpack.c.l.b16 %v1106
    %v2206 = vunpack.c.l.b16 %v1107
    %v2207 = vunpack.c.h.b16 %v1107
    %v2208 = vunpack.c.l.b16 %v1108
    %v2209 = vunpack.c.h.b16 %v1108
    %v2210 = vunpack.c.l.b16 %v1109
    %v2211 = vunpack.c.h.b16 %v1109
    %v2212 = vunpack.c.l.b16 %v1110
    %v2213 = vunpack.c.l.b16 %v1111
    %v2214 = vunpack.c.h.b16 %v1111
    %v2215 = vunpack.c.l.b16 %v1112
    %v2216 = vunpack.c.h.b16 %v1112
    %v2217 = vunpack.c.l.b16 %v1113
    %v2218 = vunpack.c.h.b16 %v1113
    %v2219 = vunpack.c.l.b16 %v1114
    %v2220 = vunpack.c.l.b16 %v1115
    %v2221 = vunpack.c.h.b16 %v1115
    %v2222 = vunpack.c.l.b16 %v1116
    %v2223 = vunpack.c.h.b16 %v1116
    %v2224 = vunpack.c.l.b16 %v1117
    %v2225 = vunpack.c.h.b16 %v1117
    %v2226 = vunpack.c.l.b16 %v1118
    %v2227 = vunpack.c.l.b16 %v1119
    %v2228 = vunpack.c.h.b16 %v1119
    %v2229 = vunpack.c.l.b16 %v1120
    %v2230 = vunpack.c.h.b16 %v1120
    %v2231 = vunpack.c.l.b16 %v1121
    %v2232 = vunpack.c.h.b16 %v1121
    %v2233 = vunpack.c.l.b16 %v1122
    %v2234 = vunpack.c.l.b16 %v1123
    %v2235 = vunpack.c.h.b16 %v1123
    %v2236 = vunpack.c.l.b16 %v1124
    %v2237 = vunpack.c.h.b16 %v1124
    %v2238 = vunpack.c.l.b16 %v1125
    %v2239 = vunpack.c.h.b16 %v1125
    %v2240 = vunpack.c.l.b16 %v1126
    %v2241 = vunpack.c.l.b16 %v1127
    %v2242 = vunpack.c.h.b16 %v1127
    %v2243 = vunpack.c.l.b16 %v1128
    %v2244 = vunpack.c.h.b16 %v1128
    %v2245 = vunpack.c.l.b16 %v1129
    %v2246 = vunpack.c.h.b16 %v1129
    %v2247 = vunpack.c.l.b16 %v1130
    %v2248 = vunpack.c.l.b16 %v1131
    %v2249 = vunpack.c.h.b16 %v1131
    %v2250 = vunpack.c.l.b16 %v1132
    %v2251 = vunpack.c.h.b16 %v1132
    %v2252 = vunpack.c.l.b16 %v1133
    %v2253 = vunpack.c.h.b16 %v1133
    %v2254 = vunpack.c.l.b16 %v1134
    %v2255 = vunpack.c.l.b16 %v1135
    %v2256 = vunpack.c.h.b16 %v1135
    %v2257 = vunpack.c.l.b16 %v1136
    %v2258 = vunpack.c.h.b16 %v1136
    %v2259 = vunpack.c.l.b16 %v1137
    %v2260 = vunpack.c.h.b16 %v1137
    %v2261 = vunpack.c.l.b16 %v1138
    %v2262 = vunpack.c.l.b16 %v1139
    %v2263 = vunpack.c.h.b16 %v1139
    %v2264 = vunpack.c.l.b16 %v1140
    %v2265 = vunpack.c.h.b16 %v1140
    %v2266 = vunpack.c.l.b16 %v1141
    %v2267 = vunpack.c.h.b16 %v1141
    %v2268 = vunpack.c.l.b16 %v1142
    %v2269 = vunpack.c.l.b16 %v1143
    %v2270 = vunpack.c.h.b16 %v1143
    %v2271 = vunpack.c.l.b16 %v1144
    %v2272 = vunpack.c.h.b16 %v1144
    %v2273 = vunpack.c.l.b16 %v1145
    %v2274 = vunpack.c.h.b16 %v1145
    %v2275 = vunpack.c.l.b16 %v1146
    %v2276 = vunpack.c.l.b16 %v1147
    %v2277 = vunpack.c.h.b16 %v1147
    %v2278 = vunpack.c.l.b16 %v1148
    %v2279 = vunpack.c.h.b16 %v1148
    %v2280 = vunpack.c.l.b16 %v1149
    %v2281 = vunpack.c.h.b16 %v1149
    %v2282 = vunpack.c.l.b16 %v1150
    %v2283 = vunpack.c.l.b16 %v1151
    %v2284 = vunpack.c.h.b16 %v1151
    %v2285 = vunpack.c.l.b16 %v1152
    %v2286 = vunpack.c.h.b16 %v1152
    %v2287 = vunpack.c.l.b16 %v1153
    %v2288 = vunpack.c.h.b16 %v1153
    %v2289 = vunpack.c.l.b16 %v1154
    %v2290 = vunpack.c.l.b16 %v1155
    %v2291 = vunpack.c.h.b16 %v1155
    %v2292 = vunpack.c.l.b16 %v1156
    %v2293 = vunpack.c.h.b16 %v1156
    %v2294 = vunpack.c.l.b16 %v1157
    %v2295 = vunpack.c.h.b16 %v1157
    %v2296 = vunpack.c.l.b16 %v1158
    %v2297 = vunpack.c.l.b16 %v1159
    %v2298 = vunpack.c.h.b16 %v1159
    %v2299 = vunpack.c.l.b16 %v1160
    %v2300 = vunpack.c.h.b16 %v1160
    %v2301 = vunpack.c.l.b16 %v1161
    %v2302 = vunpack.c.h.b16 %v1161
    %v2303 = vunpack.c.l.b16 %v1162
    %v2304 = vunpack.c.l.b16 %v1163
    %v2305 = vunpack.c.h.b16 %v1163
    %v2306 = vunpack.c.l.b16 %v1164
    %v2307 = vunpack.c.h.b16 %v1164
    %v2308 = vunpack.c.l.b16 %v1165
    %v2309 = vunpack.c.h.b16 %v1165
    %v2310 = vunpack.c.l.b16 %v1166
    %v2311 = vunpack.c.l.b16 %v1167
    %v2312 = vunpack.c.h.b16 %v1167
    %v2313 = vunpack.c.l.b16 %v1168
    %v2314 = vunpack.c.h.b16 %v1168
    %v2315 = vunpack.c.l.b16 %v1169
    %v2316 = vunpack.c.h.b16 %v1169
    %v2317 = vunpack.c.l.b16 %v1170
    %v2318 = vunpack.c.l.b16 %v1171
    %v2319 = vunpack.c.h.b16 %v1171
    %v2320 = vunpack.c.l.b16 %v1172
    %v2321 = vunpack.c.h.b16 %v1172
    %v2322 = vunpack.c.l.b16 %v1173
    %v2323 = vunpack.c.h.b16 %v1173
    %v2324 = vunpack.c.l.b16 %v1174
    %v2325 = vunpack.c.l.b16 %v1175
    %v2326 = vunpack.c.h.b16 %v1175
    %v2327 = vunpack.c.l.b16 %v1176
    %v2328 = vunpack.c.h.b16 %v1176
    %v2329 = vunpack.c.l.b16 %v1177
    %v2330 = vunpack.c.h.b16 %v1177
    %v2331 = vunpack.c.l.b16 %v1178
    %v2332 = vunpack.c.l.b16 %v1179
    %v2333 = vunpack.c.h.b16 %v1179
    %v2334 = vunpack.c.l.b16 %v1180
    %v2335 = vunpack.c.h.b16 %v1180
    %v2336 = vunpack.c.l.b16 %v1181
    %v2337 = vunpack.c.h.b16 %v1181
    %v2338 = vunpack.c.l.b16 %v1182
    %v2339 = vunpack.c.l.b16 %v1183
    %v2340 = vunpack.c.h.b16 %v1183
    %v2341 = vunpack.c.l.b16 %v1184
    %v2342 = vunpack.c.h.b16 %v1184
    %v2343 = vunpack.c.l.b16 %v1185
    %v2344 = vunpack.c.h.b16 %v1185
    %v2345 = vunpack.c.l.b16 %v1186
    %v2346 = vunpack.c.l.b16 %v1187
    %v2347 = vunpack.c.h.b16 %v1187
    %v2348 = vunpack.c.l.b16 %v1188
    %v2349 = vunpack.c.h.b16 %v1188
    %v2350 = vunpack.c.l.b16 %v1189
    %v2351 = vunpack.c.h.b16 %v1189
    %v2352 = vunpack.c.l.b16 %v1190
    %v2353 = vunpack.c.l.b16 %v1191
    %v2354 = vunpack.c.h.b16 %v1191
    %v2355 = vunpack.c.l.b16 %v1192
    %v2356 = vunpack.c.h.b16 %v1192
    %v2357 = vunpack.c.l.b16 %v1193
    %v2358 = vunpack.c.h.b16 %v1193
    %v2359 = vunpack.c.l.b16 %v1194
    %v2360 = vunpack.c.l.b16 %v1195
    %v2361 = vunpack.c.h.b16 %v1195
    %v2362 = vunpack.c.l.b16 %v1196
    %v2363 = vunpack.c.h.b16 %v1196
    %v2364 = vunpack.c.l.b16 %v1197
    %v2365 = vunpack.c.h.b16 %v1197
    %v2366 = vunpack.c.l.b16 %v1198
    %v2367 = vunpack.c.l.b16 %v1199
    %v2368 = vunpack.c.h.b16 %v1199
    %v2369 = vunpack.c.l.b16 %v1200
    %v2370 = vunpack.c.h.b16 %v1200
    %v2371 = vunpack.c.l.b16 %v1201
    %v2372 = vunpack.c.h.b16 %v1201
    %v2373 = vunpack.c.l.b16 %v1202
    %v2374 = vunpack.c.l.b16 %v1203
    %v2375 = vunpack.c.h.b16 %v1203
    %v2376 = vunpack.c.l.b16 %v1204
    %v2377 = vunpack.c.h.b16 %v1204
    %v2378 = vunpack.c.l.b16 %v1205
    %v2379 = vunpack.c.h.b16 %v1205
    %v2380 = vunpack.c.l.b16 %v1206
    %v2381 = vunpack.c.l.b16 %v1207
    %v2382 = vunpack.c.h.b16 %v1207
    %v2383 = vunpack.c.l.b16 %v1208
    %v2384 = vunpack.c.h.b16 %v1208
    %v2385 = vunpack.c.l.b16 %v1209
    %v2386 = vunpack.c.h.b16 %v1209
    %v2387 = vunpack.c.l.b16 %v1210
    %v2388 = vunpack.c.l.b16 %v1211
    %v2389 = vunpack.c.h.b16 %v1211
    %v2390 = vunpack.c.l.b16 %v1212
    %v2391 = vunpack.c.h.b16 %v1212
    %v2392 = vunpack.c.l.b16 %v1213
    %v2393 = vunpack.c.h.b16 %v1213
    %v2394 = vunpack.c.l.b16 %v1214
    %v2395 = vunpack.c.l.b16 %v1215
    %v2396 = vunpack.c.h.b16 %v1215
    %v2397 = vunpack.c.l.b16 %v1216
    %v2398 = vunpack.c.h.b16 %v1216
    %v2399 = vunpack.c.l.b16 %v1217
    %v2400 = vunpack.c.h.b16 %v1217
    %v2401 = vunpack.c.l.b16 %v1218
    %v2402 = vunpack.c.l.b16 %v1219
    %v2403 = vunpack.c.h.b16 %v1219
    %v2404 = vunpack.c.l.b16 %v1220
    %v2405 = vunpack.c.h.b16 %v1220
    %v2406 = vunpack.c.l.b16 %v1221
    %v2407 = vunpack.c.h.b16 %v1221
    %v2408 = vunpack.c.l.b16 %v1222
    %v2409 = vunpack.c.l.b16 %v1223
    %v2410 = vunpack.c.h.b16 %v1223
    %v2411 = vunpack.c.l.b16 %v1224
    %v2412 = vunpack.c.h.b16 %v1224
    %v2413 = vunpack.c.l.b16 %v1225
    %v2414 = vunpack.c.h.b16 %v1225
    %v2415 = vunpack.c.l.b16 %v1226
    %v2416 = vunpack.c.l.b16 %v1227
    %v2417 = vunpack.c.h.b16 %v1227
    %v2418 = vunpack.c.l.b16 %v1228
    %v2419 = vunpack.c.h.b16 %v1228
    %v2420 = vunpack.c.l.b16 %v1229
    %v2421 = vunpack.c.h.b16 %v1229
    %v2422 = vunpack.c.l.b16 %v1230
    %v2423 = vunpack.c.l.b16 %v1231
    %v2424 = vunpack.c.h.b16 %v1231
    %v2425 = vunpack.c.l.b16 %v1232
    %v2426 = vunpack.c.h.b16 %v1232
    %v2427 = vunpack.c.l.b16 %v1233
    %v2428 = vunpack.c.h.b16 %v1233
    %v2429 = vunpack.c.l.b16 %v1234
    %v2430 = vunpack.c.l.b16 %v1235
    %v2431 = vunpack.c.h.b16 %v1235
    %v2432 = vunpack.c.l.b16 %v1236
    %v2433 = vunpack.c.h.b16 %v1236
    %v2434 = vunpack.c.l.b16 %v1237
    %v2435 = vunpack.c.h.b16 %v1237
    %v2436 = vunpack.c.l.b16 %v1238
    %v2437 = vunpack.c.l.b16 %v1239
    %v2438 = vunpack.c.h.b16 %v1239
    %v2439 = vunpack.c.l.b16 %v1240
    %v2440 = vunpack.c.h.b16 %v1240
    %v2441 = vunpack.c.l.b16 %v1241
    %v2442 = vunpack.c.h.b16 %v1241
    %v2443 = vunpack.c.l.b16 %v1242
    %v2444 = vunpack.c.l.b16 %v1243
    %v2445 = vunpack.c.h.b16 %v1243
    %v2446 = vunpack.c.l.b16 %v1244
    %v2447 = vunpack.c.h.b16 %v1244
    %v2448 = vunpack.c.l.b16 %v1245
    %v2449 = vunpack.c.h.b16 %v1245
    %v2450 = vunpack.c.l.b16 %v1246
    %v2451 = vunpack.c.l.b16 %v1247
    %v2452 = vunpack.c.h.b16 %v1247
    %v2453 = vunpack.c.l.b16 %v1248
    %v2454 = vunpack.c.h.b16 %v1248
    %v2455 = vunpack.c.l.b16 %v1249
    %v2456 = vunpack.c.h.b16 %v1249
    %v2457 = vunpack.c.l.b16 %v1250
    %v2458 = vunpack.c.l.b16 %v1251
    %v2459 = vunpack.c.h.b16 %v1251
    %v2460 = vunpack.c.l.b16 %v1252
    %v2461 = vunpack.c.h.b16 %v1252
    %v2462 = vunpack.c.l.b16 %v1253
    %v2463 = vunpack.c.h.b16 %v1253
    %v2464 = vunpack.c.l.b16 %v1254
    %v2465 = vunpack.c.l.b16 %v1255
    %v2466 = vunpack.c.h.b16 %v1255
    %v2467 = vunpack.c.l.b16 %v1256
    %v2468 = vunpack.c.h.b16 %v1256
    %v2469 = vunpack.c.l.b16 %v1257
    %v2470 = vunpack.c.h.b16 %v1257
    %v2471 = vunpack.c.l.b16 %v1258
    %v2472 = vunpack.c.l.b16 %v1259
    %v2473 = vunpack.c.h.b16 %v1259
    %v2474 = vunpack.c.l.b16 %v1260
    %v2475 = vunpack.c.h.b16 %v1260
    %v2476 = vunpack.c.l.b16 %v1261
    %v2477 = vunpack.c.h.b16 %v1261
    %v2478 = vunpack.c.l.b16 %v1262
    %v2479 = vunpack.c.l.b16 %v1263
    %v2480 = vunpack.c.h.b16 %v1263
    %v2481 = vunpack.c.l.b16 %v1264
    %v2482 = vunpack.c.h.b16 %v1264
    %v2483 = vunpack.c.l.b16 %v1265
    %v2484 = vunpack.c.h.b16 %v1265
    %v2485 = vunpack.c.l.b16 %v1266
    %v2486 = vunpack.c.l.b16 %v1267
    %v2487 = vunpack.c.h.b16 %v1267
    %v2488 = vunpack.c.l.b16 %v1268
    %v2489 = vunpack.c.h.b16 %v1268
    %v2490 = vunpack.c.l.b16 %v1269
    %v2491 = vunpack.c.h.b16 %v1269
    %v2492 = vunpack.c.l.b16 %v1270
    %v2493 = vunpack.c.l.b16 %v1271
    %v2494 = vunpack.c.h.b16 %v1271
    %v2495 = vunpack.c.l.b16 %v1272
    %v2496 = vunpack.c.h.b16 %v1272
    %v2497 = vunpack.c.l.b16 %v1273
    %v2498 = vunpack.c.h.b16 %v1273
    %v2499 = vunpack.c.l.b16 %v1274
    %v2500 = vunpack.c.l.b16 %v1275
    %v2501 = vunpack.c.h.b16 %v1275
    %v2502 = vunpack.c.l.b16 %v1276
    %v2503 = vunpack.c.h.b16 %v1276
    %v2504 = vunpack.c.l.b16 %v1277
    %v2505 = vunpack.c.h.b16 %v1277
    %v2506 = vunpack.c.l.b16 %v1278
    %v2507 = vunpack.c.l.b16 %v1279
    %v2508 = vunpack.c.h.b16 %v1279
    %v2509 = vunpack.c.l.b16 %v1280
    %v2510 = vunpack.c.h.b16 %v1280
    %v2511 = vunpack.c.l.b16 %v1281
    %v2512 = vunpack.c.h.b16 %v1281
    %v2513 = vunpack.c.l.b16 %v1282
    %v2514 = vunpack.c.l.b16 %v1283
    %v2515 = vunpack.c.h.b16 %v1283
    %v2516 = vunpack.c.l.b16 %v1284
    %v2517 = vunpack.c.h.b16 %v1284
    %v2518 = vunpack.c.l.b16 %v1285
    %v2519 = vunpack.c.h.b16 %v1285
    %v2520 = vunpack.c.l.b16 %v1286
    %v2521 = vunpack.c.l.b16 %v1287
    %v2522 = vunpack.c.h.b16 %v1287
    %v2523 = vunpack.c.l.b16 %v1288
    %v2524 = vunpack.c.h.b16 %v1288
    %v2525 = vunpack.c.l.b16 %v1289
    %v2526 = vunpack.c.h.b16 %v1289
    %v2527 = vunpack.c.l.b16 %v1290
    %v2528 = vunpack.c.l.b16 %v1291
    %v2529 = vunpack.c.h.b16 %v1291
    %v2530 = vunpack.c.l.b16 %v1292
    %v2531 = vunpack.c.h.b16 %v1292
    %v2532 = vunpack.c.l.b16 %v1293
    %v2533 = vunpack.c.h.b16 %v1293
    %v2534 = vunpack.c.l.b16 %v1294
    %v2535 = vunpack.c.l.b16 %v1295
    %v2536 = vunpack.c.h.b16 %v1295
    %v2537 = vunpack.c.l.b16 %v1296
    %v2538 = vunpack.c.h.b16 %v1296
    %v2539 = vunpack.c.l.b16 %v1297
    %v2540 = vunpack.c.h.b16 %v1297
    %v2541 = vunpack.c.l.b16 %v1298
    %v2542 = vunpack.c.l.b16 %v1299
    %v2543 = vunpack.c.h.b16 %v1299
    %v2544 = vunpack.c.l.b16 %v1300
    %v2545 = vunpack.c.h.b16 %v1300
    %v2546 = vunpack.c.l.b16 %v1301
    %v2547 = vunpack.c.h.b16 %v1301
    %v2548 = vunpack.c.l.b16 %v1302
    %v2549 = vunpack.c.l.b16 %v1303
    %v2550 = vunpack.c.h.b16 %v1303
    %v2551 = vunpack.c.l.b16 %v1304
    %v2552 = vunpack.c.h.b16 %v1304
    %v2553 = vunpack.c.l.b16 %v1305
    %v2554 = vunpack.c.h.b16 %v1305
    %v2555 = vunpack.c.l.b16 %v1306
    %v2556 = vunpack.c.l.b16 %v1307
    %v2557 = vunpack.c.h.b16 %v1307
    %v2558 = vunpack.c.l.b16 %v1308
    %v2559 = vunpack.c.h.b16 %v1308
    %v2560 = vunpack.c.l.b16 %v1309
    %v2561 = vunpack.c.h.b16 %v1309
    %v2562 = vunpack.c.l.b16 %v1310
    %v2563 = vunpack.c.l.b16 %v1311
    %v2564 = vunpack.c.h.b16 %v1311
    %v2565 = vunpack.c.l.b16 %v1312
    %v2566 = vunpack.c.h.b16 %v1312
    %v2567 = vunpack.c.l.b16 %v1313
    %v2568 = vunpack.c.h.b16 %v1313
    %v2569 = vunpack.c.l.b16 %v1314
    %v2570 = vunpack.c.l.b16 %v1315
    %v2571 = vunpack.c.h.b16 %v1315
    %v2572 = vunpack.c.l.b16 %v1316
    %v2573 = vunpack.c.h.b16 %v1316
    %v2574 = vunpack.c.l.b16 %v1317
    %v2575 = vunpack.c.h.b16 %v1317
    %v2576 = vunpack.c.l.b16 %v1318
    %v2577 = vunpack.c.l.b16 %v1319
    %v2578 = vunpack.c.h.b16 %v1319
    %v2579 = vunpack.c.l.b16 %v1320
    %v2580 = vunpack.c.h.b16 %v1320
    %v2581 = vunpack.c.l.b16 %v1321
    %v2582 = vunpack.c.h.b16 %v1321
    %v2583 = vunpack.c.l.b16 %v1322
    %v2584 = vunpack.c.l.b16 %v1323
    %v2585 = vunpack.c.h.b16 %v1323
    %v2586 = vunpack.c.l.b16 %v1324
    %v2587 = vunpack.c.h.b16 %v1324
    %v2588 = vunpack.c.l.b16 %v1325
    %v2589 = vunpack.c.h.b16 %v1325
    %v2590 = vunpack.c.l.b16 %v1326
    %v2591 = vunpack.c.l.b16 %v1327
    %v2592 = vunpack.c.h.b16 %v1327
    %v2593 = vunpack.c.l.b16 %v1328
    %v2594 = vunpack.c.h.b16 %v1328
    %v2595 = vunpack.c.l.b16 %v1329
    %v2596 = vunpack.c.h.b16 %v1329
    %v2597 = vunpack.c.l.b16 %v1330
    %v2598 = vunpack.c.l.b16 %v1331
    %v2599 = vunpack.c.h.b16 %v1331
    %v2600 = vunpack.c.l.b16 %v1332
    %v2601 = vunpack.c.h.b16 %v1332
    %v2602 = vunpack.c.l.b16 %v1333
    %v2603 = vunpack.c.h.b16 %v1333
    %v2604 = vunpack.c.l.b16 %v1334
    %v2605 = vunpack.c.l.b16 %v1335
    %v2606 = vunpack.c.h.b16 %v1335
    %v2607 = vunpack.c.l.b16 %v1336
    %v2608 = vunpack.c.h.b16 %v1336
    %v2609 = vunpack.c.l.b16 %v1337
    %v2610 = vunpack.c.h.b16 %v1337
    %v2611 = vunpack.c.l.b16 %v1338
    %v2612 = vunpack.c.l.b16 %v1339
    %v2613 = vunpack.c.h.b16 %v1339
    %v2614 = vunpack.c.l.b16 %v1340
    %v2615 = vunpack.c.h.b16 %v1340
    %v2616 = vunpack.c.l.b16 %v1341
    %v2617 = vunpack.c.h.b16 %v1341
    %v2618 = vunpack.c.l.b16 %v1342
    %v2619 = vunpack.c.l.b16 %v1343
    %v2620 = vunpack.c.h.b16 %v1343
    %v2621 = vunpack.c.l.b16 %v1344
    %v2622 = vunpack.c.h.b16 %v1344
    %v2623 = vunpack.c.l.b16 %v1345
    %v2624 = vunpack.c.h.b16 %v1345
    %v2625 = vunpack.c.l.b16 %v1346
    %v2626 = vunpack.c.l.b16 %v1347
    %v2627 = vunpack.c.h.b16 %v1347
    %v2628 = vunpack.c.l.b16 %v1348
    %v2629 = vunpack.c.h.b16 %v1348
    %v2630 = vunpack.c.l.b16 %v1349
    %v2631 = vunpack.c.h.b16 %v1349
    %v2632 = vunpack.c.l.b16 %v1350
    %v2633 = vunpack.c.l.b16 %v1351
    %v2634 = vunpack.c.h.b16 %v1351
    %v2635 = vunpack.c.l.b16 %v1352
    %v2636 = vunpack.c.h.b16 %v1352
    %v2637 = vunpack.c.l.b16 %v1353
    %v2638 = vunpack.c.h.b16 %v1353
    %v2639 = vunpack.c.l.b16 %v1354
    %v2640 = vunpack.c.l.b16 %v1355
    %v2641 = vunpack.c.h.b16 %v1355
    %v2642 = vunpack.c.l.b16 %v1356
    %v2643 = vunpack.c.h.b16 %v1356
    %v2644 = vunpack.c.l.b16 %v1357
    %v2645 = vunpack.c.h.b16 %v1357
    %v2646 = vunpack.c.l.b16 %v1358
    %v2647 = vunpack.c.l.b16 %v1359
    %v2648 = vunpack.c.h.b16 %v1359
    %v2649 = vunpack.c.l.b16 %v1360
    %v2650 = vunpack.c.h.b16 %v1360
    %v2651 = vunpack.c.l.b16 %v1361
    %v2652 = vunpack.c.h.b16 %v1361
    %v2653 = vunpack.c.l.b16 %v1362
    %v2654 = vunpack.c.l.b16 %v1363
    %v2655 = vunpack.c.h.b16 %v1363
    %v2656 = vunpack.c.l.b16 %v1364
    %v2657 = vunpack.c.h.b16 %v1364
    %v2658 = vunpack.c.l.b16 %v1365
    %v2659 = vunpack.c.h.b16 %v1365
    %v2660 = vunpack.c.l.b16 %v1366
    %v2661 = vunpack.c.l.b16 %v1367
    %v2662 = vunpack.c.h.b16 %v1367
    %v2663 = vunpack.c.l.b16 %v1368
    %v2664 = vunpack.c.h.b16 %v1368
    %v2665 = vunpack.c.l.b16 %v1369
    %v2666 = vunpack.c.h.b16 %v1369
    %v2667 = vunpack.c.l.b16 %v1370
    %v2668 = vunpack.c.l.b16 %v1371
    %v2669 = vunpack.c.h.b16 %v1371
    %v2670 = vunpack.c.l.b16 %v1372
    %v2671 = vunpack.c.h.b16 %v1372
    %v2672 = vunpack.c.l.b16 %v1373
    %v2673 = vunpack.c.h.b16 %v1373
    %v2674 = vunpack.c.l.b16 %v1374
    %v2675 = vunpack.c.l.b16 %v1375
    %v2676 = vunpack.c.h.b16 %v1375
    %v2677 = vunpack.c.l.b16 %v1376
    %v2678 = vunpack.c.h.b16 %v1376
    %v2679 = vunpack.c.l.b16 %v1377
    %v2680 = vunpack.c.h.b16 %v1377
    %v2681 = vunpack.c.l.b16 %v1378
    %v2682 = vunpack.c.l.b16 %v1379
    %v2683 = vunpack.c.h.b16 %v1379
    %v2684 = vunpack.c.l.b16 %v1380
    %v2685 = vunpack.c.h.b16 %v1380
    %v2686 = vunpack.c.l.b16 %v1381
    %v2687 = vunpack.c.h.b16 %v1381
    %v2688 = vunpack.c.l.b16 %v1382
    %v2689 = vunpack.c.l.b16 %v1383
    %v2690 = vunpack.c.h.b16 %v1383
    %v2691 = vunpack.c.l.b16 %v1384
    %v2692 = vunpack.c.h.b16 %v1384
    %v2693 = vunpack.c.l.b16 %v1385
    %v2694 = vunpack.c.h.b16 %v1385
    %v2695 = vunpack.c.l.b16 %v1386
    %v2696 = vunpack.c.l.b16 %v1387
    %v2697 = vunpack.c.h.b16 %v1387
    %v2698 = vunpack.c.l.b16 %v1388
    %v2699 = vunpack.c.h.b16 %v1388
    %v2700 = vunpack.c.l.b16 %v1389
    %v2701 = vunpack.c.h.b16 %v1389
    %v2702 = vunpack.c.l.b16 %v1390
    %v2703 = vunpack.c.l.b16 %v1391
    %v2704 = vunpack.c.h.b16 %v1391
    %v2705 = vunpack.c.l.b16 %v1392
    %v2706 = vunpack.c.h.b16 %v1392
    %v2707 = vunpack.c.l.b16 %v1393
    %v2708 = vunpack.c.h.b16 %v1393
    %v2709 = vunpack.c.l.b16 %v1394
    %v2710 = vunpack.c.l.b16 %v1395
    %v2711 = vunpack.c.h.b16 %v1395
    %v2712 = vunpack.c.l.b16 %v1396
    %v2713 = vunpack.c.h.b16 %v1396
    %v2714 = vunpack.c.l.b16 %v1397
    %v2715 = vunpack.c.h.b16 %v1397
    %v2716 = vunpack.c.l.b16 %v1398
    %v2717 = vunpack.c.l.b16 %v1399
    %v2718 = vunpack.c.h.b16 %v1399
    %v2719 = vunpack.c.l.b16 %v1400
    %v2720 = vunpack.c.h.b16 %v1400
    %v2721 = vunpack.c.l.b16 %v1401
    %v2722 = vunpack.c.h.b16 %v1401
    %v2723 = vunpack.c.l.b16 %v1402
    %v2724 = vunpack.c.l.b16 %v1403
    %v2725 = vunpack.c.h.b16 %v1403
    %v2726 = vunpack.c.l.b16 %v1404
    %v2727 = vunpack.c.h.b16 %v1404
    %v2728 = vunpack.c.l.b16 %v1405
    %v2729 = vunpack.c.h.b16 %v1405
    %v2730 = vunpack.c.l.b16 %v1406
    %v2731 = vunpack.c.l.b16 %v1407
    %v2732 = vunpack.c.h.b16 %v1407
    %v2733 = vunpack.c.l.b16 %v1408
    %v2734 = vunpack.c.h.b16 %v1408
    %v2735 = vunpack.c.l.b16 %v1409
    %v2736 = vunpack.c.h.b16 %v1409
    %v2737 = vunpack.c.l.b16 %v1410
    %v2738 = vunpack.c.l.b16 %v1411
    %v2739 = vunpack.c.h.b16 %v1411
    %v2740 = vunpack.c.l.b16 %v1412
    %v2741 = vunpack.c.h.b16 %v1412
    %v2742 = vunpack.c.l.b16 %v1413
    %v2743 = vunpack.c.h.b16 %v1413
    %v2744 = vunpack.c.l.b16 %v1414
    %v2745 = vunpack.c.l.b16 %v1415
    %v2746 = vunpack.c.h.b16 %v1415
    %v2747 = vunpack.c.l.b16 %v1416
    %v2748 = vunpack.c.h.b16 %v1416
    %v2749 = vunpack.c.l.b16 %v1417
    %v2750 = vunpack.c.h.b16 %v1417
    %v2751 = vunpack.c.l.b16 %v1418
    %v2752 = vunpack.c.l.b16 %v1419
    %v2753 = vunpack.c.h.b16 %v1419
    %v2754 = vunpack.c.l.b16 %v1420
    %v2755 = vunpack.c.h.b16 %v1420
    %v2756 = vunpack.c.l.b16 %v1421
    %v2757 = vunpack.c.h.b16 %v1421
    %v2758 = vunpack.c.l.b16 %v1422
    %v2759 = vunpack.c.l.b16 %v1423
    %v2760 = vunpack.c.h.b16 %v1423
    %v2761 = vunpack.c.l.b16 %v1424
    %v2762 = vunpack.c.h.b16 %v1424
    %v2763 = vunpack.c.l.b16 %v1425
    %v2764 = vunpack.c.h.b16 %v1425
    %v2765 = vunpack.c.l.b16 %v1426
    %v2766 = vunpack.c.l.b16 %v1427
    %v2767 = vunpack.c.h.b16 %v1427
    %v2768 = vunpack.c.l.b16 %v1428
    %v2769 = vunpack.c.h.b16 %v1428
    %v2770 = vunpack.c.l.b16 %v1429
    %v2771 = vunpack.c.h.b16 %v1429
    %v2772 = vunpack.c.l.b16 %v1430
    %v2773 = vunpack.c.l.b16 %v1431
    %v2774 = vunpack.c.h.b16 %v1431
    %v2775 = vunpack.c.l.b16 %v1432
    %v2776 = vunpack.c.h.b16 %v1432
    %v2777 = vunpack.c.l.b16 %v1433
    %v2778 = vunpack.c.h.b16 %v1433
    %v2779 = vunpack.c.l.b16 %v1434
    %v2780 = vunpack.c.l.b16 %v1435
    %v2781 = vunpack.c.h.b16 %v1435
    %v2782 = vunpack.c.l.b16 %v1436
    %v2783 = vunpack.c.h.b16 %v1436
    %v2784 = vunpack.c.l.b16 %v1437
    %v2785 = vunpack.c.h.b16 %v1437
    %v2786 = vunpack.c.l.b16 %v1438
    %v2787 = vunpack.c.l.b16 %v1439
    %v2788 = vunpack.c.h.b16 %v1439
    %v2789 = vunpack.c.l.b16 %v1440
    %v2790 = vunpack.c.h.b16 %v1440
    %v2791 = vunpack.c.l.b16 %v1441
    %v2792 = vunpack.c.h.b16 %v1441
    %v2793 = vunpack.c.l.b16 %v1442
    %v2794 = vunpack.c.l.b16 %v1443
    %v2795 = vunpack.c.h.b16 %v1443
    %v2796 = vunpack.c.l.b16 %v1444
    %v2797 = vunpack.c.h.b16 %v1444
    %v2798 = vunpack.c.l.b16 %v1445
    %v2799 = vunpack.c.h.b16 %v1445
    %v2800 = vunpack.c.l.b16 %v1446
    %v2801 = vunpack.c.l.b16 %v1447
    %v2802 = vunpack.c.h.b16 %v1447
    %v2803 = vunpack.c.l.b16 %v1448
    %v2804 = vunpack.c.h.b16 %v1448
    %v2805 = vunpack.c.l.b16 %v1449
    %v2806 = vunpack.c.h.b16 %v1449
    %v2807 = vunpack.c.l.b16 %v1450
    %v2808 = vunpack.c.l.b16 %v1451
    %v2809 = vunpack.c.h.b16 %v1451
    %v2810 = vunpack.c.l.b16 %v1452
    %v2811 = vunpack.c.h.b16 %v1452
    %v2812 = vunpack.c.l.b16 %v1453
    %v2813 = vunpack.c.h.b16 %v1453
    %v2814 = vunpack.c.l.b16 %v1454
    %v2815 = vunpack.c.l.b16 %v1455
    %v2816 = vunpack.c.h.b16 %v1455
    %v2817 = vunpack.c.l.b16 %v1456
    %v2818 = vunpack.c.h.b16 %v1456
    %v2819 = vunpack.c.l.b16 %v1457
    %v2820 = vunpack.c.h.b16 %v1457
    %v2821 = vunpack.c.l.b16 %v1458
    %v2822 = vunpack.c.l.b16 %v1459
    %v2823 = vunpack.c.h.b16 %v1459
    %v2824 = vunpack.c.l.b16 %v1460
    %v2825 = vunpack.c.h.b16 %v1460
    %v2826 = vunpack.c.l.b16 %v1461
    %v2827 = vunpack.c.h.b16 %v1461
    %v2828 = vunpack.c.l.b16 %v1462
    %v2829 = vunpack.c.l.b16 %v1463
    %v2830 = vunpack.c.h.b16 %v1463
    %v2831 = vunpack.c.l.b16 %v1464
    %v2832 = vunpack.c.h.b16 %v1464
    %v2833 = vunpack.c.l.b16 %v1465
    %v2834 = vunpack.c.h.b16 %v1465
    %v2835 = vunpack.c.l.b16 %v1466
    %v2836 = vunpack.c.l.b16 %v1467
    %v2837 = vunpack.c.h.b16 %v1467
    %v2838 = vunpack.c.l.b16 %v1468
    %v2839 = vunpack.c.h.b16 %v1468
    %v2840 = vunpack.c.l.b16 %v1469
    %v2841 = vunpack.c.h.b16 %v1469
    %v2842 = vunpack.c.l.b16 %v1470
    %v2843 = vunpack.c.l.b16 %v1471
    %v2844 = vunpack.c.h.b16 %v1471
    %v2845 = vunpack.c.l.b16 %v1472
    %v2846 = vunpack.c.h.b16 %v1472
    %v2847 = vunpack.c.l.b16 %v1473
    %v2848 = vunpack.c.h.b16 %v1473
    %v2849 = vunpack.c.l.b16 %v1474
    %v2850 = vunpack.c.l.b16 %v1475
    %v2851 = vunpack.c.h.b16 %v1475
    %v2852 = vunpack.c.l.b16 %v1476
    %v2853 = vunpack.c.h.b16 %v1476
    %v2854 = vunpack.c.l.b16 %v1477
    %v2855 = vunpack.c.h.b16 %v1477
    %v2856 = vunpack.c.l.b16 %v1478
    %v2857 = vunpack.c.l.b16 %v1479
    %v2858 = vunpack.c.h.b16 %v1479
    %v2859 = vunpack.c.l.b16 %v1480
    %v2860 = vunpack.c.h.b16 %v1480
    %v2861 = vunpack.c.l.b16 %v1481
    %v2862 = vunpack.c.h.b16 %v1481
    %v2863 = vunpack.c.l.b16 %v1482
    %v2864 = vunpack.c.l.b16 %v1483
    %v2865 = vunpack.c.h.b16 %v1483
    %v2866 = vunpack.c.l.b16 %v1484
    %v2867 = vunpack.c.h.b16 %v1484
    %v2868 = vunpack.c.l.b16 %v1485
    %v2869 = vunpack.c.h.b16 %v1485
    %v2870 = vunpack.c.l.b16 %v1486
    %v2871 = vunpack.c.l.b16 %v1487
    %v2872 = vunpack.c.h.b16 %v1487
    %v2873 = vunpack.c.l.b16 %v1488
    %v2874 = vunpack.c.h.b16 %v1488
    %v2875 = vunpack.c.l.b16 %v1489
    %v2876 = vunpack.c.h.b16 %v1489
    %v2877 = vunpack.c.l.b16 %v1490
    %v2878 = vunpack.c.l.b16 %v1491
    %v2879 = vunpack.c.h.b16 %v1491
    %v2880 = vunpack.c.l.b16 %v1492
    %v2881 = vunpack.c.h.b16 %v1492
    %v2882 = vunpack.c.l.b16 %v1493
    %v2883 = vunpack.c.h.b16 %v1493
    %v2884 = vunpack.c.l.b16 %v1494
    %v2885 = vunpack.c.l.b16 %v1495
    %v2886 = vunpack.c.h.b16 %v1495
    %v2887 = vunpack.c.l.b16 %v1496
    %v2888 = vunpack.c.h.b16 %v1496
    %v2889 = vunpack.c.l.b16 %v1497
    %v2890 = vunpack.c.h.b16 %v1497
    %v2891 = vunpack.c.l.b16 %v1498
    %v2892 = vunpack.c.l.b16 %v1499
    %v2893 = vunpack.c.h.b16 %v1499
    %v2894 = vunpack.c.l.b16 %v1500
    %v2895 = vunpack.c.h.b16 %v1500
    %v2896 = vunpack.c.l.b16 %v1501
    %v2897 = vunpack.c.h.b16 %v1501
    %v2898 = vunpack.c.l.b16 %v1502
    %v2899 = vunpack.c.l.b16 %v1503
    %v2900 = vunpack.c.h.b16 %v1503
    %v2901 = vunpack.c.l.b16 %v1504
    %v2902 = vunpack.c.h.b16 %v1504
    %v2903 = vunpack.c.l.b16 %v1505
    %v2904 = vunpack.c.h.b16 %v1505
    %v2905 = vunpack.c.l.b16 %v1506
    %v2906 = vunpack.c.l.b16 %v1507
    %v2907 = vunpack.c.h.b16 %v1507
    %v2908 = vunpack.c.l.b16 %v1508
    %v2909 = vunpack.c.h.b16 %v1508
    %v2910 = vunpack.c.l.b16 %v1509
    %v2911 = vunpack.c.h.b16 %v1509
    %v2912 = vunpack.c.l.b16 %v1510
    %v2913 = vunpack.c.l.b16 %v1511
    %v2914 = vunpack.c.h.b16 %v1511
    %v2915 = vunpack.c.l.b16 %v1512
    %v2916 = vunpack.c.h.b16 %v1512
    %v2917 = vunpack.c.l.b16 %v1513
    %v2918 = vunpack.c.h.b16 %v1513
    %v2919 = vunpack.c.l.b16 %v1514
    %v2920 = vunpack.c.l.b16 %v1515
    %v2921 = vunpack.c.h.b16 %v1515
    %v2922 = vunpack.c.l.b16 %v1516
    %v2923 = vunpack.c.h.b16 %v1516
    %v2924 = vunpack.c.l.b16 %v1517
    %v2925 = vunpack.c.h.b16 %v1517
    %v2926 = vunpack.c.l.b16 %v1518
    %v2927 = vpack.c.b16 %v2038, %v2031
    %v2928 = vpack.c.b16 %v2039, %v2032
    %v2929 = vpack.c.b16 %v2040, %v2033
    %v2930 = vpack.c.b16 %v2041, %v2034
    %v2931 = vpack.c.b16 %v2042, %v2035
    %v2932 = vpack.c.b16 %v2043, %v2036
    %v2933 = vpack.c.b16 %v2044, %v2037
    %v2934 = vpack.c.b16 %v2052, %v2045
    %v2935 = vpack.c.b16 %v2053, %v2046
    %v2936 = vpack.c.b16 %v2054, %v2047
    %v2937 = vpack.c.b16 %v2055, %v2048
    %v2938 = vpack.c.b16 %v2056, %v2049
    %v2939 = vpack.c.b16 %v2057, %v2050
    %v2940 = vpack.c.b16 %v2058, %v2051
    %v2941 = vpack.c.b16 %v2066, %v2059
    %v2942 = vpack.c.b16 %v2067, %v2060
    %v2943 = vpack.c.b16 %v2068, %v2061
    %v2944 = vpack.c.b16 %v2069, %v2062
    %v2945 = vpack.c.b16 %v2070, %v2063
    %v2946 = vpack.c.b16 %v2071, %v2064
    %v2947 = vpack.c.b16 %v2072, %v2065
    %v2948 = vpack.c.b16 %v2080, %v2073
    %v2949 = vpack.c.b16 %v2081, %v2074
    %v2950 = vpack.c.b16 %v2082, %v2075
    %v2951 = vpack.c.b16 %v2083, %v2076
    %v2952 = vpack.c.b16 %v2084, %v2077
    %v2953 = vpack.c.b16 %v2085, %v2078
    %v2954 = vpack.c.b16 %v2086, %v2079
    %v2955 = vpack.c.b16 %v2094, %v2087
    %v2956 = vpack.c.b16 %v2095, %v2088
    %v2957 = vpack.c.b16 %v2096, %v2089
    %v2958 = vpack.c.b16 %v2097, %v2090
    %v2959 = vpack.c.b16 %v2098, %v2091
    %v2960 = vpack.c.b16 %v2099, %v2092
    %v2961 = vpack.c.b16 %v2100, %v2093
    %v2962 = vpack.c.b16 %v2108, %v2101
    %v2963 = vpack.c.b16 %v2109, %v2102
    %v2964 = vpack.c.b16 %v2110, %v2103
    %v2965 = vpack.c.b16 %v2111, %v2104
    %v2966 = vpack.c.b16 %v2112, %v2105
    %v2967 = vpack.c.b16 %v2113, %v2106
    %v2968 = vpack.c.b16 %v2114, %v2107
    %v2969 = vpack.c.b16 %v2122, %v2115
    %v2970 = vpack.c.b16 %v2123, %v2116
    %v2971 = vpack.c.b16 %v2124, %v2117
    %v2972 = vpack.c.b16 %v2125, %v2118
    %v2973 = vpack.c.b16 %v2126, %v2119
    %v2974 = vpack.c.b16 %v2127, %v2120
    %v2975 = vpack.c.b16 %v2128, %v2121
    %v2976 = vpack.c.b16 %v2136, %v2129
    %v2977 = vpack.c.b16 %v2137, %v2130
    %v2978 = vpack.c.b16 %v2138, %v2131
    %v2979 = vpack.c.b16 %v2139, %v2132
    %v2980 = vpack.c.b16 %v2140, %v2133
    %v2981 = vpack.c.b16 %v2141, %v2134
    %v2982 = vpack.c.b16 %v2142, %v2135
    %v2983 = vpack.c.b16 %v2150, %v2143
    %v2984 = vpack.c.b16 %v2151, %v2144
    %v2985 = vpack.c.b16 %v2152, %v2145
    %v2986 = vpack.c.b16 %v2153, %v2146
    %v2987 = vpack.c.b16 %v2154, %v2147
    %v2988 = vpack.c.b16 %v2155, %v2148
    %v2989 = vpack.c.b16 %v2156, %v2149
    %v2990 = vpack.c.b16 %v2164, %v2157
    %v2991 = vpack.c.b16 %v2165, %v2158
    %v2992 = vpack.c.b16 %v2166, %v2159
    %v2993 = vpack.c.b16 %v2167, %v2160
    %v2994 = vpack.c.b16 %v2168, %v2161
    %v2995 = vpack.c.b16 %v2169, %v2162
    %v2996 = vpack.c.b16 %v2170, %v2163
    %v2997 = vpack.c.b16 %v2178, %v2171
    %v2998 = vpack.c.b16 %v2179, %v2172
    %v2999 = vpack.c.b16 %v2180, %v2173
    %v3000 = vpack.c.b16 %v2181, %v2174
    %v3001 = vpack.c.b16 %v2182, %v2175
    %v3002 = vpack.c.b16 %v2183, %v2176
    %v3003 = vpack.c.b16 %v2184, %v2177
    %v3004 = vpack.c.b16 %v2192, %v2185
    %v3005 = vpack.c.b16 %v2193, %v2186
    %v3006 = vpack.c.b16 %v2194, %v2187
    %v3007 = vpack.c.b16 %v2195, %v2188
    %v3008 = vpack.c.b16 %v2196, %v2189
    %v3009 = vpack.c.b16 %v2197, %v2190
    %v3010 = vpack.c.b16 %v2198, %v2191
    %v3011 = vpack.c.b16 %v2206, %v2199
    %v3012 = vpack.c.b16 %v2207, %v2200
    %v3013 = vpack.c.b16 %v2208, %v2201
    %v3014 = vpack.c.b16 %v2209, %v2202
    %v3015 = vpack.c.b16 %v2210, %v2203
    %v3016 = vpack.c.b16 %v2211, %v2204
    %v3017 = vpack.c.b16 %v2212, %v2205
    %v3018 = vpack.c.b16 %v2220, %v2213
    %v3019 = vpack.c.b16 %v2221, %v2214
    %v3020 = vpack.c.b16 %v2222, %v2215
    %v3021 = vpack.c.b16 %v2223, %v2216
    %v3022 = vpack.c.b16 %v2224, %v2217
    %v3023 = vpack.c.b16 %v2225, %v2218
    %v3024 = vpack.c.b16 %v2226, %v2219
    %v3025 = vpack.c.b16 %v2234, %v2227
    %v3026 = vpack.c.b16 %v2235, %v2228
    %v3027 = vpack.c.b16 %v2236, %v2229
    %v3028 = vpack.c.b16 %v2237, %v2230
    %v3029 = vpack.c.b16 %v2238, %v2231
    %v3030 = vpack.c.b16 %v2239, %v2232
    %v3031 = vpack.c.b16 %v2240, %v2233
    %v3032 = vpack.c.b16 %v2248, %v2241
    %v3033 = vpack.c.b16 %v2249, %v2242
    %v3034 = vpack.c.b16 %v2250, %v2243
    %v3035 = vpack.c.b16 %v2251, %v2244
    %v3036 = vpack.c.b16 %v2252, %v2245
    %v3037 = vpack.c.b16 %v2253, %v2246
    %v3038 = vpack.c.b16 %v2254, %v2247
    %v3039 = vpack.c.b16 %v2262, %v2255
    %v3040 = vpack.c.b16 %v2263, %v2256
    %v3041 = vpack.c.b16 %v2264, %v2257
    %v3042 = vpack.c.b16 %v2265, %v2258
    %v3043 = vpack.c.b16 %v2266, %v2259
    %v3044 = vpack.c.b16 %v2267, %v2260
    %v3045 = vpack.c.b16 %v2268, %v2261
    %v3046 = vpack.c.b16 %v2276, %v2269
    %v3047 = vpack.c.b16 %v2277, %v2270
    %v3048 = vpack.c.b16 %v2278, %v2271
    %v3049 = vpack.c.b16 %v2279, %v2272
    %v3050 = vpack.c.b16 %v2280, %v2273
    %v3051 = vpack.c.b16 %v2281, %v2274
    %v3052 = vpack.c.b16 %v2282, %v2275
    %v3053 = vpack.c.b16 %v2290, %v2283
    %v3054 = vpack.c.b16 %v2291, %v2284
    %v3055 = vpack.c.b16 %v2292, %v2285
    %v3056 = vpack.c.b16 %v2293, %v2286
    %v3057 = vpack.c.b16 %v2294, %v2287
    %v3058 = vpack.c.b16 %v2295, %v2288
    %v3059 = vpack.c.b16 %v2296, %v2289
    %v3060 = vpack.c.b16 %v2304, %v2297
    %v3061 = vpack.c.b16 %v2305, %v2298
    %v3062 = vpack.c.b16 %v2306, %v2299
    %v3063 = vpack.c.b16 %v2307, %v2300
    %v3064 = vpack.c.b16 %v2308, %v2301
    %v3065 = vpack.c.b16 %v2309, %v2302
    %v3066 = vpack.c.b16 %v2310, %v2303
    %v3067 = vpack.c.b16 %v2318, %v2311
    %v3068 = vpack.c.b16 %v2319, %v2312
    %v3069 = vpack.c.b16 %v2320, %v2313
    %v3070 = vpack.c.b16 %v2321, %v2314
    %v3071 = vpack.c.b16 %v2322, %v2315
    %v3072 = vpack.c.b16 %v2323, %v2316
    %v3073 = vpack.c.b16 %v2324, %v2317
    %v3074 = vpack.c.b16 %v2332, %v2325
    %v3075 = vpack.c.b16 %v2333, %v2326
    %v3076 = vpack.c.b16 %v2334, %v2327
    %v3077 = vpack.c.b16 %v2335, %v2328
    %v3078 = vpack.c.b16 %v2336, %v2329
    %v3079 = vpack.c.b16 %v2337, %v2330
    %v3080 = vpack.c.b16 %v2338, %v2331
    %v3081 = vpack.c.b16 %v2346, %v2339
    %v3082 = vpack.c.b16 %v2347, %v2340
    %v3083 = vpack.c.b16 %v2348, %v2341
    %v3084 = vpack.c.b16 %v2349, %v2342
    %v3085 = vpack.c.b16 %v2350, %v2343
    %v3086 = vpack.c.b16 %v2351, %v2344
    %v3087 = vpack.c.b16 %v2352, %v2345
    %v3088 = vpack.c.b16 %v2360, %v2353
    %v3089 = vpack.c.b16 %v2361, %v2354
    %v3090 = vpack.c.b16 %v2362, %v2355
    %v3091 = vpack.c.b16 %v2363, %v2356
    %v3092 = vpack.c.b16 %v2364, %v2357
    %v3093 = vpack.c.b16 %v2365, %v2358
    %v3094 = vpack.c.b16 %v2366, %v2359
    %v3095 = vpack.c.b16 %v2374, %v2367
    %v3096 = vpack.c.b16 %v2375, %v2368
    %v3097 = vpack.c.b16 %v2376, %v2369
    %v3098 = vpack.c.b16 %v2377, %v2370
    %v3099 = vpack.c.b16 %v2378, %v2371
    %v3100 = vpack.c.b16 %v2379, %v2372
    %v3101 = vpack.c.b16 %v2380, %v2373
    %v3102 = vpack.c.b16 %v2388, %v2381
    %v3103 = vpack.c.b16 %v2389, %v2382
    %v3104 = vpack.c.b16 %v2390, %v2383
    %v3105 = vpack.c.b16 %v2391, %v2384
    %v3106 = vpack.c.b16 %v2392, %v2385
    %v3107 = vpack.c.b16 %v2393, %v2386
    %v3108 = vpack.c.b16 %v2394, %v2387
    %v3109 = vpack.c.b16 %v2402, %v2395
    %v3110 = vpack.c.b16 %v2403, %v2396
    %v3111 = vpack.c.b16 %v2404, %v2397
    %v3112 = vpack.c.b16 %v2405, %v2398
    %v3113 = vpack.c.b16 %v2406, %v2399
    %v3114 = vpack.c.b16 %v2407, %v2400
    %v3115 = vpack.c.b16 %v2408, %v2401
    %v3116 = vpack.c.b16 %v2416, %v2409
    %v3117 = vpack.c.b16 %v2417, %v2410
    %v3118 = vpack.c.b16 %v2418, %v2411
    %v3119 = vpack.c.b16 %v2419, %v2412
    %v3120 = vpack.c.b16 %v2420, %v2413
    %v3121 = vpack.c.b16 %v2421, %v2414
    %v3122 = vpack.c.b16 %v2422, %v2415
    %v3123 = vpack.c.b16 %v2430, %v2423
    %v3124 = vpack.c.b16 %v2431, %v2424
    %v3125 = vpack.c.b16 %v2432, %v2425
    %v3126 = vpack.c.b16 %v2433, %v2426
    %v3127 = vpack.c.b16 %v2434, %v2427
    %v3128 = vpack.c.b16 %v2435, %v2428
    %v3129 = vpack.c.b16 %v2436, %v2429
    %v3130 = vpack.c.b16 %v2444, %v2437
    %v3131 = vpack.c.b16 %v2445, %v2438
    %v3132 = vpack.c.b16 %v2446, %v2439
    %v3133 = vpack.c.b16 %v2447, %v2440
    %v3134 = vpack.c.b16 %v2448, %v2441
    %v3135 = vpack.c.b16 %v2449, %v2442
    %v3136 = vpack.c.b16 %v2450, %v2443
    %v3137 = vpack.c.b16 %v2458, %v2451
    %v3138 = vpack.c.b16 %v2459, %v2452
    %v3139 = vpack.c.b16 %v2460, %v2453
    %v3140 = vpack.c.b16 %v2461, %v2454
    %v3141 = vpack.c.b16 %v2462, %v2455
    %v3142 = vpack.c.b16 %v2463, %v2456
    %v3143 = vpack.c.b16 %v2464, %v2457
    %v3144 = vpack.c.b16 %v2472, %v2465
    %v3145 = vpack.c.b16 %v2473, %v2466
    %v3146 = vpack.c.b16 %v2474, %v2467
    %v3147 = vpack.c.b16 %v2475, %v2468
    %v3148 = vpack.c.b16 %v2476, %v2469
    %v3149 = vpack.c.b16 %v2477, %v2470
    %v3150 = vpack.c.b16 %v2478, %v2471
    %v3151 = vpack.c.b16 %v2486, %v2479
    %v3152 = vpack.c.b16 %v2487, %v2480
    %v3153 = vpack.c.b16 %v2488, %v2481
    %v3154 = vpack.c.b16 %v2489, %v2482
    %v3155 = vpack.c.b16 %v2490, %v2483
    %v3156 = vpack.c.b16 %v2491, %v2484
    %v3157 = vpack.c.b16 %v2492, %v2485
    %v3158 = vpack.c.b16 %v2500, %v2493
    %v3159 = vpack.c.b16 %v2501, %v2494
    %v3160 = vpack.c.b16 %v2502, %v2495
    %v3161 = vpack.c.b16 %v2503, %v2496
    %v3162 = vpack.c.b16 %v2504, %v2497
    %v3163 = vpack.c.b16 %v2505, %v2498
    %v3164 = vpack.c.b16 %v2506, %v2499
    %v3165 = vpack.c.b16 %v2514, %v2507
    %v3166 = vpack.c.b16 %v2515, %v2508
    %v3167 = vpack.c.b16 %v2516, %v2509
    %v3168 = vpack.c.b16 %v2517, %v2510
    %v3169 = vpack.c.b16 %v2518, %v2511
    %v3170 = vpack.c.b16 %v2519, %v2512
    %v3171 = vpack.c.b16 %v2520, %v2513
    %v3172 = vpack.c.b16 %v2528, %v2521
    %v3173 = vpack.c.b16 %v2529, %v2522
    %v3174 = vpack.c.b16 %v2530, %v2523
    %v3175 = vpack.c.b16 %v2531, %v2524
    %v3176 = vpack.c.b16 %v2532, %v2525
    %v3177 = vpack.c.b16 %v2533, %v2526
    %v3178 = vpack.c.b16 %v2534, %v2527
    %v3179 = vpack.c.b16 %v2542, %v2535
    %v3180 = vpack.c.b16 %v2543, %v2536
    %v3181 = vpack.c.b16 %v2544, %v2537
    %v3182 = vpack.c.b16 %v2545, %v2538
    %v3183 = vpack.c.b16 %v2546, %v2539
    %v3184 = vpack.c.b16 %v2547, %v2540
    %v3185 = vpack.c.b16 %v2548, %v2541
    %v3186 = vpack.c.b16 %v2556, %v2549
    %v3187 = vpack.c.b16 %v2557, %v2550
    %v3188 = vpack.c.b16 %v2558, %v2551
    %v3189 = vpack.c.b16 %v2559, %v2552
    %v3190 = vpack.c.b16 %v2560, %v2553
    %v3191 = vpack.c.b16 %v2561, %v2554
    %v3192 = vpack.c.b16 %v2562, %v2555
    %v3193 = vpack.c.b16 %v2570, %v2563
    %v3194 = vpack.c.b16 %v2571, %v2564
    %v3195 = vpack.c.b16 %v2572, %v2565
    %v3196 = vpack.c.b16 %v2573, %v2566
    %v3197 = vpack.c.b16 %v2574, %v2567
    %v3198 = vpack.c.b16 %v2575, %v2568
    %v3199 = vpack.c.b16 %v2576, %v2569
    %v3200 = vpack.c.b16 %v2584, %v2577
    %v3201 = vpack.c.b16 %v2585, %v2578
    %v3202 = vpack.c.b16 %v2586, %v2579
    %v3203 = vpack.c.b16 %v2587, %v2580
    %v3204 = vpack.c.b16 %v2588, %v2581
    %v3205 = vpack.c.b16 %v2589, %v2582
    %v3206 = vpack.c.b16 %v2590, %v2583
    %v3207 = vpack.c.b16 %v2598, %v2591
    %v3208 = vpack.c.b16 %v2599, %v2592
    %v3209 = vpack.c.b16 %v2600, %v2593
    %v3210 = vpack.c.b16 %v2601, %v2594
    %v3211 = vpack.c.b16 %v2602, %v2595
    %v3212 = vpack.c.b16 %v2603, %v2596
    %v3213 = vpack.c.b16 %v2604, %v2597
    %v3214 = vpack.c.b16 %v2612, %v2605
    %v3215 = vpack.c.b16 %v2613, %v2606
    %v3216 = vpack.c.b16 %v2614, %v2607
    %v3217 = vpack.c.b16 %v2615, %v2608
    %v3218 = vpack.c.b16 %v2616, %v2609
    %v3219 = vpack.c.b16 %v2617, %v2610
    %v3220 = vpack.c.b16 %v2618, %v2611
    %v3221 = vpack.c.b16 %v2626, %v2619
    %v3222 = vpack.c.b16 %v2627, %v2620
    %v3223 = vpack.c.b16 %v2628, %v2621
    %v3224 = vpack.c.b16 %v2629, %v2622
    %v3225 = vpack.c.b16 %v2630, %v2623
    %v3226 = vpack.c.b16 %v2631, %v2624
    %v3227 = vpack.c.b16 %v2632, %v2625
    %v3228 = vpack.c.b16 %v2640, %v2633
    %v3229 = vpack.c.b16 %v2641, %v2634
    %v3230 = vpack.c.b16 %v2642, %v2635
    %v3231 = vpack.c.b16 %v2643, %v2636
    %v3232 = vpack.c.b16 %v2644, %v2637
    %v3233 = vpack.c.b16 %v2645, %v2638
    %v3234 = vpack.c.b16 %v2646, %v2639
    %v3235 = vpack.c.b16 %v2654, %v2647
    %v3236 = vpack.c.b16 %v2655, %v2648
    %v3237 = vpack.c.b16 %v2656, %v2649
    %v3238 = vpack.c.b16 %v2657, %v2650
    %v3239 = vpack.c.b16 %v2658, %v2651
    %v3240 = vpack.c.b16 %v2659, %v2652
    %v3241 = vpack.c.b16 %v2660, %v2653
    %v3242 = vpack.c.b16 %v2668, %v2661
    %v3243 = vpack.c.b16 %v2669, %v2662
    %v3244 = vpack.c.b16 %v2670, %v2663
    %v3245 = vpack.c.b16 %v2671, %v2664
    %v3246 = vpack.c.b16 %v2672, %v2665
    %v3247 = vpack.c.b16 %v2673, %v2666
    %v3248 = vpack.c.b16 %v2674, %v2667
    %v3249 = vpack.c.b16 %v2682, %v2675
    %v3250 = vpack.c.b16 %v2683, %v2676
    %v3251 = vpack.c.b16 %v2684, %v2677
    %v3252 = vpack.c.b16 %v2685, %v2678
    %v3253 = vpack.c.b16 %v2686, %v2679
    %v3254 = vpack.c.b16 %v2687, %v2680
    %v3255 = vpack.c.b16 %v2688, %v2681
    %v3256 = vpack.c.b16 %v2696, %v2689
    %v3257 = vpack.c.b16 %v2697, %v2690
    %v3258 = vpack.c.b16 %v2698, %v2691
    %v3259 = vpack.c.b16 %v2699, %v2692
    %v3260 = vpack.c.b16 %v2700, %v2693
    %v3261 = vpack.c.b16 %v2701, %v2694
    %v3262 = vpack.c.b16 %v2702, %v2695
    %v3263 = vpack.c.b16 %v2710, %v2703
    %v3264 = vpack.c.b16 %v2711, %v2704
    %v3265 = vpack.c.b16 %v2712, %v2705
    %v3266 = vpack.c.b16 %v2713, %v2706
    %v3267 = vpack.c.b16 %v2714, %v2707
    %v3268 = vpack.c.b16 %v2715, %v2708
    %v3269 = vpack.c.b16 %v2716, %v2709
    %v3270 = vpack.c.b16 %v2724, %v2717
    %v3271 = vpack.c.b16 %v2725, %v2718
    %v3272 = vpack.c.b16 %v2726, %v2719
    %v3273 = vpack.c.b16 %v2727, %v2720
    %v3274 = vpack.c.b16 %v2728, %v2721
    %v3275 = vpack.c.b16 %v2729, %v2722
    %v3276 = vpack.c.b16 %v2730, %v2723
    %v3277 = vpack.c.b16 %v2738, %v2731
    %v3278 = vpack.c.b16 %v2739, %v2732
    %v3279 = vpack.c.b16 %v2740, %v2733
    %v3280 = vpack.c.b16 %v2741, %v2734
    %v3281 = vpack.c.b16 %v2742, %v2735
    %v3282 = vpack.c.b16 %v2743, %v2736
    %v3283 = vpack.c.b16 %v2744, %v2737
    %v3284 = vpack.c.b16 %v2752, %v2745
    %v3285 = vpack.c.b16 %v2753, %v2746
    %v3286 = vpack.c.b16 %v2754, %v2747
    %v3287 = vpack.c.b16 %v2755, %v2748
    %v3288 = vpack.c.b16 %v2756, %v2749
    %v3289 = vpack.c.b16 %v2757, %v2750
    %v3290 = vpack.c.b16 %v2758, %v2751
    %v3291 = vpack.c.b16 %v2766, %v2759
    %v3292 = vpack.c.b16 %v2767, %v2760
    %v3293 = vpack.c.b16 %v2768, %v2761
    %v3294 = vpack.c.b16 %v2769, %v2762
    %v3295 = vpack.c.b16 %v2770, %v2763
    %v3296 = vpack.c.b16 %v2771, %v2764
    %v3297 = vpack.c.b16 %v2772, %v2765
    %v3298 = vpack.c.b16 %v2780, %v2773
    %v3299 = vpack.c.b16 %v2781, %v2774
    %v3300 = vpack.c.b16 %v2782, %v2775
    %v3301 = vpack.c.b16 %v2783, %v2776
    %v3302 = vpack.c.b16 %v2784, %v2777
    %v3303 = vpack.c.b16 %v2785, %v2778
    %v3304 = vpack.c.b16 %v2786, %v2779
    %v3305 = vpack.c.b16 %v2794, %v2787
    %v3306 = vpack.c.b16 %v2795, %v2788
    %v3307 = vpack.c.b16 %v2796, %v2789
    %v3308 = vpack.c.b16 %v2797, %v2790
    %v3309 = vpack.c.b16 %v2798, %v2791
    %v3310 = vpack.c.b16 %v2799, %v2792
    %v3311 = vpack.c.b16 %v2800, %v2793
    %v3312 = vpack.c.b16 %v2808, %v2801
    %v3313 = vpack.c.b16 %v2809, %v2802
    %v3314 = vpack.c.b16 %v2810, %v2803
    %v3315 = vpack.c.b16 %v2811, %v2804
    %v3316 = vpack.c.b16 %v2812, %v2805
    %v3317 = vpack.c.b16 %v2813, %v2806
    %v3318 = vpack.c.b16 %v2814, %v2807
    %v3319 = vpack.c.b16 %v2822, %v2815
    %v3320 = vpack.c.b16 %v2823, %v2816
    %v3321 = vpack.c.b16 %v2824, %v2817
    %v3322 = vpack.c.b16 %v2825, %v2818
    %v3323 = vpack.c.b16 %v2826, %v2819
    %v3324 = vpack.c.b16 %v2827, %v2820
    %v3325 = vpack.c.b16 %v2828, %v2821
    %v3326 = vpack.c.b16 %v2836, %v2829
    %v3327 = vpack.c.b16 %v2837, %v2830
    %v3328 = vpack.c.b16 %v2838, %v2831
    %v3329 = vpack.c.b16 %v2839, %v2832
    %v3330 = vpack.c.b16 %v2840, %v2833
    %v3331 = vpack.c.b16 %v2841, %v2834
    %v3332 = vpack.c.b16 %v2842, %v2835
    %v3333 = vpack.c.b16 %v2850, %v2843
    %v3334 = vpack.c.b16 %v2851, %v2844
    %v3335 = vpack.c.b16 %v2852, %v2845
    %v3336 = vpack.c.b16 %v2853, %v2846
    %v3337 = vpack.c.b16 %v2854, %v2847
    %v3338 = vpack.c.b16 %v2855, %v2848
    %v3339 = vpack.c.b16 %v2856, %v2849
    %v3340 = vpack.c.b16 %v2864, %v2857
    %v3341 = vpack.c.b16 %v2865, %v2858
    %v3342 = vpack.c.b16 %v2866, %v2859
    %v3343 = vpack.c.b16 %v2867, %v2860
    %v3344 = vpack.c.b16 %v2868, %v2861
    %v3345 = vpack.c.b16 %v2869, %v2862
    %v3346 = vpack.c.b16 %v2870, %v2863
    %v3347 = vpack.c.b16 %v2878, %v2871
    %v3348 = vpack.c.b16 %v2879, %v2872
    %v3349 = vpack.c.b16 %v2880, %v2873
    %v3350 = vpack.c.b16 %v2881, %v2874
    %v3351 = vpack.c.b16 %v2882, %v2875
    %v3352 = vpack.c.b16 %v2883, %v2876
    %v3353 = vpack.c.b16 %v2884, %v2877
    %v3354 = vpack.c.b16 %v2892, %v2885
    %v3355 = vpack.c.b16 %v2893, %v2886
    %v3356 = vpack.c.b16 %v2894, %v2887
    %v3357 = vpack.c.b16 %v2895, %v2888
    %v3358 = vpack.c.b16 %v2896, %v2889
    %v3359 = vpack.c.b16 %v2897, %v2890
    %v3360 = vpack.c.b16 %v2898, %v2891
    %v3361 = vpack.c.b16 %v2906, %v2899
    %v3362 = vpack.c.b16 %v2907, %v2900
    %v3363 = vpack.c.b16 %v2908, %v2901
    %v3364 = vpack.c.b16 %v2909, %v2902
    %v3365 = vpack.c.b16 %v2910, %v2903
    %v3366 = vpack.c.b16 %v2911, %v2904
    %v3367 = vpack.c.b16 %v2912, %v2905
    %v3368 = vpack.c.b16 %v2920, %v2913
    %v3369 = vpack.c.b16 %v2921, %v2914
    %v3370 = vpack.c.b16 %v2922, %v2915
    %v3371 = vpack.c.b16 %v2923, %v2916
    %v3372 = vpack.c.b16 %v2924, %v2917
    %v3373 = vpack.c.b16 %v2925, %v2918
    %v3374 = vpack.c.b16 %v2926, %v2919
    %3823 = vmatprep.subr.bf16.mxu0 %v2977
    %3824 = vmatpush1.bf16.msra.mxu0 %v2976
    %3825 = vmatprep.subr.bf16.mxu0 %v2970
    %3826 = vmatpush1.bf16.msra.mxu0 %v2969
    %3827 = vmatprep.subr.bf16.mxu0 %v2963
    %3828 = vmatpush1.bf16.msra.mxu0 %v2962
    %3829 = vmatprep.subr.bf16.mxu0 %v2956
    %3830 = vmatpush1.bf16.msra.mxu0 %v2955
    %3831 = vmatprep.subr.bf16.mxu0 %v2949
    %3832 = vmatpush1.bf16.msra.mxu0 %v2948
    %3833 = vmatprep.subr.bf16.mxu0 %v2942
    %3834 = vmatpush1.bf16.msra.mxu0 %v2941
    %3835 = vmatprep.subr.bf16.mxu0 %v2935
    %3836 = vmatpush1.bf16.msra.mxu0 %v2934
    %3837 = vmatprep.subr.bf16.mxu0 %v2928
    %3838 = vmatpush1.bf16.msra.mxu0 %v2927
    %3839 = vmatprep.subr.bf16.mxu0 %v3033
    %3840 = vmatpush2.bf16.msra.mxu0 %v3032
    %3841 = vmatprep.subr.bf16.mxu0 %v3026
    %3842 = vmatpush2.bf16.msra.mxu0 %v3025
    %3843 = vmatprep.subr.bf16.mxu0 %v3019
    %3844 = vmatpush2.bf16.msra.mxu0 %v3018
    %3845 = vmatprep.subr.bf16.mxu0 %v3012
    %3846 = vmatpush2.bf16.msra.mxu0 %v3011
    %3847 = vmatprep.subr.bf16.mxu0 %v3005
    %3848 = vmatpush2.bf16.msra.mxu0 %v3004
    %3849 = vmatprep.subr.bf16.mxu0 %v2998
    %3850 = vmatpush2.bf16.msra.mxu0 %v2997
    %3851 = vmatprep.subr.bf16.mxu0 %v2991
    %3852 = vmatpush2.bf16.msra.mxu0 %v2990
    %3853 = vmatprep.subr.bf16.mxu0 %v2984
    %3854 = vmatpush2.bf16.msra.mxu0 %v2983
    %3855 = vmatprep.mubr.bf16.mxu0 %v1000
    %3856 = vmatmul.mubr.bf16.gmra.mxu0 %v999
    %v3857 = vpop.f32.mrf.mxu0
    %v3858 = vadd.f32 0.0, %v3857
    %v3859 = vpop.f32.mrf.mxu0
    %v3860 = vadd.f32 0.0, %v3859
    %v3861 = vpop.f32.mrf.mxu0
    %v3862 = vpop.f32.mrf.mxu0
    %3863 = vdwg.mxu0
    %3864 = vmatprep.subr.bf16.mxu0 %v3089
    %3865 = vmatpush1.bf16.msra.mxu0 %v3088
    %3866 = vmatprep.subr.bf16.mxu0 %v3082
    %3867 = vmatpush1.bf16.msra.mxu0 %v3081
    %3868 = vmatprep.subr.bf16.mxu0 %v3075
    %3869 = vmatpush1.bf16.msra.mxu0 %v3074
    %3870 = vmatprep.subr.bf16.mxu0 %v3068
    %3871 = vmatpush1.bf16.msra.mxu0 %v3067
    %3872 = vmatprep.subr.bf16.mxu0 %v3061
    %3873 = vmatpush1.bf16.msra.mxu0 %v3060
    %3874 = vmatprep.subr.bf16.mxu0 %v3054
    %3875 = vmatpush1.bf16.msra.mxu0 %v3053
    %3876 = vmatprep.subr.bf16.mxu0 %v3047
    %3877 = vmatpush1.bf16.msra.mxu0 %v3046
    %3878 = vmatprep.subr.bf16.mxu0 %v3040
    %3879 = vmatpush1.bf16.msra.mxu0 %v3039
    %3880 = vmatprep.subr.bf16.mxu0 %v3145
    %3881 = vmatpush2.bf16.msra.mxu0 %v3144
    %3882 = vmatprep.subr.bf16.mxu0 %v3138
    %3883 = vmatpush2.bf16.msra.mxu0 %v3137
    %3884 = vmatprep.subr.bf16.mxu0 %v3131
    %3885 = vmatpush2.bf16.msra.mxu0 %v3130
    %3886 = vmatprep.subr.bf16.mxu0 %v3124
    %3887 = vmatpush2.bf16.msra.mxu0 %v3123
    %3888 = vmatprep.subr.bf16.mxu0 %v3117
    %3889 = vmatpush2.bf16.msra.mxu0 %v3116
    %3890 = vmatprep.subr.bf16.mxu0 %v3110
    %3891 = vmatpush2.bf16.msra.mxu0 %v3109
    %3892 = vmatprep.subr.bf16.mxu0 %v3103
    %3893 = vmatpush2.bf16.msra.mxu0 %v3102
    %3894 = vmatprep.subr.bf16.mxu0 %v3096
    %3895 = vmatpush2.bf16.msra.mxu0 %v3095
    %3896 = vmatprep.mubr.bf16.mxu0 %v1002
    %3897 = vmatmul.mubr.bf16.gmra.mxu0 %v1001
    %v3898 = vpop.f32.mrf.mxu0
    %v3899 = vadd.f32 %v3858, %v3898
    %v3900 = vpop.f32.mrf.mxu0
    %v3901 = vadd.f32 %v3860, %v3900
    %v3902 = vpop.f32.mrf.mxu0
    %v3903 = vpop.f32.mrf.mxu0
    %3904 = vdwg.mxu0
    %3905 = vmatprep.subr.bf16.mxu0 %v3201
    %3906 = vmatpush1.bf16.msra.mxu0 %v3200
    %3907 = vmatprep.subr.bf16.mxu0 %v3194
    %3908 = vmatpush1.bf16.msra.mxu0 %v3193
    %3909 = vmatprep.subr.bf16.mxu0 %v3187
    %3910 = vmatpush1.bf16.msra.mxu0 %v3186
    %3911 = vmatprep.subr.bf16.mxu0 %v3180
    %3912 = vmatpush1.bf16.msra.mxu0 %v3179
    %3913 = vmatprep.subr.bf16.mxu0 %v3173
    %3914 = vmatpush1.bf16.msra.mxu0 %v3172
    %3915 = vmatprep.subr.bf16.mxu0 %v3166
    %3916 = vmatpush1.bf16.msra.mxu0 %v3165
    %3917 = vmatprep.subr.bf16.mxu0 %v3159
    %3918 = vmatpush1.bf16.msra.mxu0 %v3158
    %3919 = vmatprep.subr.bf16.mxu0 %v3152
    %3920 = vmatpush1.bf16.msra.mxu0 %v3151
    %3921 = vmatprep.subr.bf16.mxu0 %v3257
    %3922 = vmatpush2.bf16.msra.mxu0 %v3256
    %3923 = vmatprep.subr.bf16.mxu0 %v3250
    %3924 = vmatpush2.bf16.msra.mxu0 %v3249
    %3925 = vmatprep.subr.bf16.mxu0 %v3243
    %3926 = vmatpush2.bf16.msra.mxu0 %v3242
    %3927 = vmatprep.subr.bf16.mxu0 %v3236
    %3928 = vmatpush2.bf16.msra.mxu0 %v3235
    %3929 = vmatprep.subr.bf16.mxu0 %v3229
    %3930 = vmatpush2.bf16.msra.mxu0 %v3228
    %3931 = vmatprep.subr.bf16.mxu0 %v3222
    %3932 = vmatpush2.bf16.msra.mxu0 %v3221
    %3933 = vmatprep.subr.bf16.mxu0 %v3215
    %3934 = vmatpush2.bf16.msra.mxu0 %v3214
    %3935 = vmatprep.subr.bf16.mxu0 %v3208
    %3936 = vmatpush2.bf16.msra.mxu0 %v3207
    %3937 = vmatprep.mubr.bf16.mxu0 %v1004
    %3938 = vmatmul.mubr.bf16.gmra.mxu0 %v1003
    %v3939 = vpop.f32.mrf.mxu0
    %v3940 = vadd.f32 %v3899, %v3939
    %v3941 = vpop.f32.mrf.mxu0
    %v3942 = vadd.f32 %v3901, %v3941
    %v3943 = vpop.f32.mrf.mxu0
    %v3944 = vpop.f32.mrf.mxu0
    %3945 = vdwg.mxu0
    %3946 = vmatprep.subr.bf16.mxu0 %v3313
    %3947 = vmatpush1.bf16.msra.mxu0 %v3312
    %3948 = vmatprep.subr.bf16.mxu0 %v3306
    %3949 = vmatpush1.bf16.msra.mxu0 %v3305
    %3950 = vmatprep.subr.bf16.mxu0 %v3299
    %3951 = vmatpush1.bf16.msra.mxu0 %v3298
    %3952 = vmatprep.subr.bf16.mxu0 %v3292
    %3953 = vmatpush1.bf16.msra.mxu0 %v3291
    %3954 = vmatprep.subr.bf16.mxu0 %v3285
    %3955 = vmatpush1.bf16.msra.mxu0 %v3284
    %3956 = vmatprep.subr.bf16.mxu0 %v3278
    %3957 = vmatpush1.bf16.msra.mxu0 %v3277
    %3958 = vmatprep.subr.bf16.mxu0 %v3271
    %3959 = vmatpush1.bf16.msra.mxu0 %v3270
    %3960 = vmatprep.subr.bf16.mxu0 %v3264
    %3961 = vmatpush1.bf16.msra.mxu0 %v3263
    %3962 = vmatprep.subr.bf16.mxu0 %v3369
    %3963 = vmatpush2.bf16.msra.mxu0 %v3368
    %3964 = vmatprep.subr.bf16.mxu0 %v3362
    %3965 = vmatpush2.bf16.msra.mxu0 %v3361
    %3966 = vmatprep.subr.bf16.mxu0 %v3355
    %3967 = vmatpush2.bf16.msra.mxu0 %v3354
    %3968 = vmatprep.subr.bf16.mxu0 %v3348
    %3969 = vmatpush2.bf16.msra.mxu0 %v3347
    %3970 = vmatprep.subr.bf16.mxu0 %v3341
    %3971 = vmatpush2.bf16.msra.mxu0 %v3340
    %3972 = vmatprep.subr.bf16.mxu0 %v3334
    %3973 = vmatpush2.bf16.msra.mxu0 %v3333
    %3974 = vmatprep.subr.bf16.mxu0 %v3327
    %3975 = vmatpush2.bf16.msra.mxu0 %v3326
    %3976 = vmatprep.subr.bf16.mxu0 %v3320
    %3977 = vmatpush2.bf16.msra.mxu0 %v3319
    %3978 = vmatprep.mubr.bf16.mxu0 %v1006
    %3979 = vmatmul.mubr.bf16.gmra.mxu0 %v1005
    %v3980 = vpop.f32.mrf.mxu0
    %v3981 = vadd.f32 %v3940, %v3980
    %v3982 = vpop.f32.mrf.mxu0
    %v3983 = vadd.f32 %v3942, %v3982
    %v3984 = vpop.f32.mrf.mxu0
    %v3985 = vpop.f32.mrf.mxu0
    %3986 = vdwg.mxu0
    %3987 = vmatprep.subr.bf16.mxu0 %v2979
    %3988 = vmatpush1.bf16.msra.mxu0 %v2978
    %3989 = vmatprep.subr.bf16.mxu0 %v2972
    %3990 = vmatpush1.bf16.msra.mxu0 %v2971
    %3991 = vmatprep.subr.bf16.mxu0 %v2965
    %3992 = vmatpush1.bf16.msra.mxu0 %v2964
    %3993 = vmatprep.subr.bf16.mxu0 %v2958
    %3994 = vmatpush1.bf16.msra.mxu0 %v2957
    %3995 = vmatprep.subr.bf16.mxu0 %v2951
    %3996 = vmatpush1.bf16.msra.mxu0 %v2950
    %3997 = vmatprep.subr.bf16.mxu0 %v2944
    %3998 = vmatpush1.bf16.msra.mxu0 %v2943
    %3999 = vmatprep.subr.bf16.mxu0 %v2937
    %4000 = vmatpush1.bf16.msra.mxu0 %v2936
    %4001 = vmatprep.subr.bf16.mxu0 %v2930
    %4002 = vmatpush1.bf16.msra.mxu0 %v2929
    %4003 = vmatprep.subr.bf16.mxu0 %v3035
    %4004 = vmatpush2.bf16.msra.mxu0 %v3034
    %4005 = vmatprep.subr.bf16.mxu0 %v3028
    %4006 = vmatpush2.bf16.msra.mxu0 %v3027
    %4007 = vmatprep.subr.bf16.mxu0 %v3021
    %4008 = vmatpush2.bf16.msra.mxu0 %v3020
    %4009 = vmatprep.subr.bf16.mxu0 %v3014
    %4010 = vmatpush2.bf16.msra.mxu0 %v3013
    %4011 = vmatprep.subr.bf16.mxu0 %v3007
    %4012 = vmatpush2.bf16.msra.mxu0 %v3006
    %4013 = vmatprep.subr.bf16.mxu0 %v3000
    %4014 = vmatpush2.bf16.msra.mxu0 %v2999
    %4015 = vmatprep.subr.bf16.mxu0 %v2993
    %4016 = vmatpush2.bf16.msra.mxu0 %v2992
    %4017 = vmatprep.subr.bf16.mxu0 %v2986
    %4018 = vmatpush2.bf16.msra.mxu0 %v2985
    %4019 = vmatprep.mubr.bf16.mxu0 %v1000
    %4020 = vmatmul.mubr.bf16.gmra.mxu0 %v999
    %v4021 = vpop.f32.mrf.mxu0
    %v4022 = vadd.f32 0.0, %v4021
    %v4023 = vpop.f32.mrf.mxu0
    %v4024 = vadd.f32 0.0, %v4023
    %v4025 = vpop.f32.mrf.mxu0
    %v4026 = vpop.f32.mrf.mxu0
    %4027 = vdwg.mxu0
    %4028 = vmatprep.subr.bf16.mxu0 %v3091
    %4029 = vmatpush1.bf16.msra.mxu0 %v3090
    %4030 = vmatprep.subr.bf16.mxu0 %v3084
    %4031 = vmatpush1.bf16.msra.mxu0 %v3083
    %4032 = vmatprep.subr.bf16.mxu0 %v3077
    %4033 = vmatpush1.bf16.msra.mxu0 %v3076
    %4034 = vmatprep.subr.bf16.mxu0 %v3070
    %4035 = vmatpush1.bf16.msra.mxu0 %v3069
    %4036 = vmatprep.subr.bf16.mxu0 %v3063
    %4037 = vmatpush1.bf16.msra.mxu0 %v3062
    %4038 = vmatprep.subr.bf16.mxu0 %v3056
    %4039 = vmatpush1.bf16.msra.mxu0 %v3055
    %4040 = vmatprep.subr.bf16.mxu0 %v3049
    %4041 = vmatpush1.bf16.msra.mxu0 %v3048
    %4042 = vmatprep.subr.bf16.mxu0 %v3042
    %4043 = vmatpush1.bf16.msra.mxu0 %v3041
    %4044 = vmatprep.subr.bf16.mxu0 %v3147
    %4045 = vmatpush2.bf16.msra.mxu0 %v3146
    %4046 = vmatprep.subr.bf16.mxu0 %v3140
    %4047 = vmatpush2.bf16.msra.mxu0 %v3139
    %4048 = vmatprep.subr.bf16.mxu0 %v3133
    %4049 = vmatpush2.bf16.msra.mxu0 %v3132
    %4050 = vmatprep.subr.bf16.mxu0 %v3126
    %4051 = vmatpush2.bf16.msra.mxu0 %v3125
    %4052 = vmatprep.subr.bf16.mxu0 %v3119
    %4053 = vmatpush2.bf16.msra.mxu0 %v3118
    %4054 = vmatprep.subr.bf16.mxu0 %v3112
    %4055 = vmatpush2.bf16.msra.mxu0 %v3111
    %4056 = vmatprep.subr.bf16.mxu0 %v3105
    %4057 = vmatpush2.bf16.msra.mxu0 %v3104
    %4058 = vmatprep.subr.bf16.mxu0 %v3098
    %4059 = vmatpush2.bf16.msra.mxu0 %v3097
    %4060 = vmatprep.mubr.bf16.mxu0 %v1002
    %4061 = vmatmul.mubr.bf16.gmra.mxu0 %v1001
    %v4062 = vpop.f32.mrf.mxu0
    %v4063 = vadd.f32 %v4022, %v4062
    %v4064 = vpop.f32.mrf.mxu0
    %v4065 = vadd.f32 %v4024, %v4064
    %v4066 = vpop.f32.mrf.mxu0
    %v4067 = vpop.f32.mrf.mxu0
    %4068 = vdwg.mxu0
    %4069 = vmatprep.subr.bf16.mxu0 %v3203
    %4070 = vmatpush1.bf16.msra.mxu0 %v3202
    %4071 = vmatprep.subr.bf16.mxu0 %v3196
    %4072 = vmatpush1.bf16.msra.mxu0 %v3195
    %4073 = vmatprep.subr.bf16.mxu0 %v3189
    %4074 = vmatpush1.bf16.msra.mxu0 %v3188
    %4075 = vmatprep.subr.bf16.mxu0 %v3182
    %4076 = vmatpush1.bf16.msra.mxu0 %v3181
    %4077 = vmatprep.subr.bf16.mxu0 %v3175
    %4078 = vmatpush1.bf16.msra.mxu0 %v3174
    %4079 = vmatprep.subr.bf16.mxu0 %v3168
    %4080 = vmatpush1.bf16.msra.mxu0 %v3167
    %4081 = vmatprep.subr.bf16.mxu0 %v3161
    %4082 = vmatpush1.bf16.msra.mxu0 %v3160
    %4083 = vmatprep.subr.bf16.mxu0 %v3154
    %4084 = vmatpush1.bf16.msra.mxu0 %v3153
    %4085 = vmatprep.subr.bf16.mxu0 %v3259
    %4086 = vmatpush2.bf16.msra.mxu0 %v3258
    %4087 = vmatprep.subr.bf16.mxu0 %v3252
    %4088 = vmatpush2.bf16.msra.mxu0 %v3251
    %4089 = vmatprep.subr.bf16.mxu0 %v3245
    %4090 = vmatpush2.bf16.msra.mxu0 %v3244
    %4091 = vmatprep.subr.bf16.mxu0 %v3238
    %4092 = vmatpush2.bf16.msra.mxu0 %v3237
    %4093 = vmatprep.subr.bf16.mxu0 %v3231
    %4094 = vmatpush2.bf16.msra.mxu0 %v3230
    %4095 = vmatprep.subr.bf16.mxu0 %v3224
    %4096 = vmatpush2.bf16.msra.mxu0 %v3223
    %4097 = vmatprep.subr.bf16.mxu0 %v3217
    %4098 = vmatpush2.bf16.msra.mxu0 %v3216
    %4099 = vmatprep.subr.bf16.mxu0 %v3210
    %4100 = vmatpush2.bf16.msra.mxu0 %v3209
    %4101 = vmatprep.mubr.bf16.mxu0 %v1004
    %4102 = vmatmul.mubr.bf16.gmra.mxu0 %v1003
    %v4103 = vpop.f32.mrf.mxu0
    %v4104 = vadd.f32 %v4063, %v4103
    %v4105 = vpop.f32.mrf.mxu0
    %v4106 = vadd.f32 %v4065, %v4105
    %v4107 = vpop.f32.mrf.mxu0
    %v4108 = vpop.f32.mrf.mxu0
    %4109 = vdwg.mxu0
    %4110 = vmatprep.subr.bf16.mxu0 %v3315
    %4111 = vmatpush1.bf16.msra.mxu0 %v3314
    %4112 = vmatprep.subr.bf16.mxu0 %v3308
    %4113 = vmatpush1.bf16.msra.mxu0 %v3307
    %4114 = vmatprep.subr.bf16.mxu0 %v3301
    %4115 = vmatpush1.bf16.msra.mxu0 %v3300
    %4116 = vmatprep.subr.bf16.mxu0 %v3294
    %4117 = vmatpush1.bf16.msra.mxu0 %v3293
    %4118 = vmatprep.subr.bf16.mxu0 %v3287
    %4119 = vmatpush1.bf16.msra.mxu0 %v3286
    %4120 = vmatprep.subr.bf16.mxu0 %v3280
    %4121 = vmatpush1.bf16.msra.mxu0 %v3279
    %4122 = vmatprep.subr.bf16.mxu0 %v3273
    %4123 = vmatpush1.bf16.msra.mxu0 %v3272
    %4124 = vmatprep.subr.bf16.mxu0 %v3266
    %4125 = vmatpush1.bf16.msra.mxu0 %v3265
    %4126 = vmatprep.subr.bf16.mxu0 %v3371
    %4127 = vmatpush2.bf16.msra.mxu0 %v3370
    %4128 = vmatprep.subr.bf16.mxu0 %v3364
    %4129 = vmatpush2.bf16.msra.mxu0 %v3363
    %4130 = vmatprep.subr.bf16.mxu0 %v3357
    %4131 = vmatpush2.bf16.msra.mxu0 %v3356
    %4132 = vmatprep.subr.bf16.mxu0 %v3350
    %4133 = vmatpush2.bf16.msra.mxu0 %v3349
    %4134 = vmatprep.subr.bf16.mxu0 %v3343
    %4135 = vmatpush2.bf16.msra.mxu0 %v3342
    %4136 = vmatprep.subr.bf16.mxu0 %v3336
    %4137 = vmatpush2.bf16.msra.mxu0 %v3335
    %4138 = vmatprep.subr.bf16.mxu0 %v3329
    %4139 = vmatpush2.bf16.msra.mxu0 %v3328
    %4140 = vmatprep.subr.bf16.mxu0 %v3322
    %4141 = vmatpush2.bf16.msra.mxu0 %v3321
    %4142 = vmatprep.mubr.bf16.mxu0 %v1006
    %4143 = vmatmul.mubr.bf16.gmra.mxu0 %v1005
    %v4144 = vpop.f32.mrf.mxu0
    %v4145 = vadd.f32 %v4104, %v4144
    %v4146 = vpop.f32.mrf.mxu0
    %v4147 = vadd.f32 %v4106, %v4146
    %v4148 = vpop.f32.mrf.mxu0
    %v4149 = vpop.f32.mrf.mxu0
    %4150 = vdwg.mxu0
    %4151 = vmatprep.subr.bf16.mxu0 %v2981
    %4152 = vmatpush1.bf16.msra.mxu0 %v2980
    %4153 = vmatprep.subr.bf16.mxu0 %v2974
    %4154 = vmatpush1.bf16.msra.mxu0 %v2973
    %4155 = vmatprep.subr.bf16.mxu0 %v2967
    %4156 = vmatpush1.bf16.msra.mxu0 %v2966
    %4157 = vmatprep.subr.bf16.mxu0 %v2960
    %4158 = vmatpush1.bf16.msra.mxu0 %v2959
    %4159 = vmatprep.subr.bf16.mxu0 %v2953
    %4160 = vmatpush1.bf16.msra.mxu0 %v2952
    %4161 = vmatprep.subr.bf16.mxu0 %v2946
    %4162 = vmatpush1.bf16.msra.mxu0 %v2945
    %4163 = vmatprep.subr.bf16.mxu0 %v2939
    %4164 = vmatpush1.bf16.msra.mxu0 %v2938
    %4165 = vmatprep.subr.bf16.mxu0 %v2932
    %4166 = vmatpush1.bf16.msra.mxu0 %v2931
    %4167 = vmatprep.subr.bf16.mxu0 %v3037
    %4168 = vmatpush2.bf16.msra.mxu0 %v3036
    %4169 = vmatprep.subr.bf16.mxu0 %v3030
    %4170 = vmatpush2.bf16.msra.mxu0 %v3029
    %4171 = vmatprep.subr.bf16.mxu0 %v3023
    %4172 = vmatpush2.bf16.msra.mxu0 %v3022
    %4173 = vmatprep.subr.bf16.mxu0 %v3016
    %4174 = vmatpush2.bf16.msra.mxu0 %v3015
    %4175 = vmatprep.subr.bf16.mxu0 %v3009
    %4176 = vmatpush2.bf16.msra.mxu0 %v3008
    %4177 = vmatprep.subr.bf16.mxu0 %v3002
    %4178 = vmatpush2.bf16.msra.mxu0 %v3001
    %4179 = vmatprep.subr.bf16.mxu0 %v2995
    %4180 = vmatpush2.bf16.msra.mxu0 %v2994
    %4181 = vmatprep.subr.bf16.mxu0 %v2988
    %4182 = vmatpush2.bf16.msra.mxu0 %v2987
    %4183 = vmatprep.mubr.bf16.mxu0 %v1000
    %4184 = vmatmul.mubr.bf16.gmra.mxu0 %v999
    %v4185 = vpop.f32.mrf.mxu0
    %v4186 = vadd.f32 0.0, %v4185
    %v4187 = vpop.f32.mrf.mxu0
    %v4188 = vadd.f32 0.0, %v4187
    %v4189 = vpop.f32.mrf.mxu0
    %v4190 = vpop.f32.mrf.mxu0
    %4191 = vdwg.mxu0
    %4192 = vmatprep.subr.bf16.mxu0 %v3093
    %4193 = vmatpush1.bf16.msra.mxu0 %v3092
    %4194 = vmatprep.subr.bf16.mxu0 %v3086
    %4195 = vmatpush1.bf16.msra.mxu0 %v3085
    %4196 = vmatprep.subr.bf16.mxu0 %v3079
    %4197 = vmatpush1.bf16.msra.mxu0 %v3078
    %4198 = vmatprep.subr.bf16.mxu0 %v3072
    %4199 = vmatpush1.bf16.msra.mxu0 %v3071
    %4200 = vmatprep.subr.bf16.mxu0 %v3065
    %4201 = vmatpush1.bf16.msra.mxu0 %v3064
    %4202 = vmatprep.subr.bf16.mxu0 %v3058
    %4203 = vmatpush1.bf16.msra.mxu0 %v3057
    %4204 = vmatprep.subr.bf16.mxu0 %v3051
    %4205 = vmatpush1.bf16.msra.mxu0 %v3050
    %4206 = vmatprep.subr.bf16.mxu0 %v3044
    %4207 = vmatpush1.bf16.msra.mxu0 %v3043
    %4208 = vmatprep.subr.bf16.mxu0 %v3149
    %4209 = vmatpush2.bf16.msra.mxu0 %v3148
    %4210 = vmatprep.subr.bf16.mxu0 %v3142
    %4211 = vmatpush2.bf16.msra.mxu0 %v3141
    %4212 = vmatprep.subr.bf16.mxu0 %v3135
    %4213 = vmatpush2.bf16.msra.mxu0 %v3134
    %4214 = vmatprep.subr.bf16.mxu0 %v3128
    %4215 = vmatpush2.bf16.msra.mxu0 %v3127
    %4216 = vmatprep.subr.bf16.mxu0 %v3121
    %4217 = vmatpush2.bf16.msra.mxu0 %v3120
    %4218 = vmatprep.subr.bf16.mxu0 %v3114
    %4219 = vmatpush2.bf16.msra.mxu0 %v3113
    %4220 = vmatprep.subr.bf16.mxu0 %v3107
    %4221 = vmatpush2.bf16.msra.mxu0 %v3106
    %4222 = vmatprep.subr.bf16.mxu0 %v3100
    %4223 = vmatpush2.bf16.msra.mxu0 %v3099
    %4224 = vmatprep.mubr.bf16.mxu0 %v1002
    %4225 = vmatmul.mubr.bf16.gmra.mxu0 %v1001
    %v4226 = vpop.f32.mrf.mxu0
    %v4227 = vadd.f32 %v4186, %v4226
    %v4228 = vpop.f32.mrf.mxu0
    %v4229 = vadd.f32 %v4188, %v4228
    %v4230 = vpop.f32.mrf.mxu0
    %v4231 = vpop.f32.mrf.mxu0
    %4232 = vdwg.mxu0
    %4233 = vmatprep.subr.bf16.mxu0 %v3205
    %4234 = vmatpush1.bf16.msra.mxu0 %v3204
    %4235 = vmatprep.subr.bf16.mxu0 %v3198
    %4236 = vmatpush1.bf16.msra.mxu0 %v3197
    %4237 = vmatprep.subr.bf16.mxu0 %v3191
    %4238 = vmatpush1.bf16.msra.mxu0 %v3190
    %4239 = vmatprep.subr.bf16.mxu0 %v3184
    %4240 = vmatpush1.bf16.msra.mxu0 %v3183
    %4241 = vmatprep.subr.bf16.mxu0 %v3177
    %4242 = vmatpush1.bf16.msra.mxu0 %v3176
    %4243 = vmatprep.subr.bf16.mxu0 %v3170
    %4244 = vmatpush1.bf16.msra.mxu0 %v3169
    %4245 = vmatprep.subr.bf16.mxu0 %v3163
    %4246 = vmatpush1.bf16.msra.mxu0 %v3162
    %4247 = vmatprep.subr.bf16.mxu0 %v3156
    %4248 = vmatpush1.bf16.msra.mxu0 %v3155
    %4249 = vmatprep.subr.bf16.mxu0 %v3261
    %4250 = vmatpush2.bf16.msra.mxu0 %v3260
    %4251 = vmatprep.subr.bf16.mxu0 %v3254
    %4252 = vmatpush2.bf16.msra.mxu0 %v3253
    %4253 = vmatprep.subr.bf16.mxu0 %v3247
    %4254 = vmatpush2.bf16.msra.mxu0 %v3246
    %4255 = vmatprep.subr.bf16.mxu0 %v3240
    %4256 = vmatpush2.bf16.msra.mxu0 %v3239
    %4257 = vmatprep.subr.bf16.mxu0 %v3233
    %4258 = vmatpush2.bf16.msra.mxu0 %v3232
    %4259 = vmatprep.subr.bf16.mxu0 %v3226
    %4260 = vmatpush2.bf16.msra.mxu0 %v3225
    %4261 = vmatprep.subr.bf16.mxu0 %v3219
    %4262 = vmatpush2.bf16.msra.mxu0 %v3218
    %4263 = vmatprep.subr.bf16.mxu0 %v3212
    %4264 = vmatpush2.bf16.msra.mxu0 %v3211
    %4265 = vmatprep.mubr.bf16.mxu0 %v1004
    %4266 = vmatmul.mubr.bf16.gmra.mxu0 %v1003
    %v4267 = vpop.f32.mrf.mxu0
    %v4268 = vadd.f32 %v4227, %v4267
    %v4269 = vpop.f32.mrf.mxu0
    %v4270 = vadd.f32 %v4229, %v4269
    %v4271 = vpop.f32.mrf.mxu0
    %v4272 = vpop.f32.mrf.mxu0
    %4273 = vdwg.mxu0
    %4274 = vmatprep.subr.bf16.mxu0 %v3317
    %4275 = vmatpush1.bf16.msra.mxu0 %v3316
    %4276 = vmatprep.subr.bf16.mxu0 %v3310
    %4277 = vmatpush1.bf16.msra.mxu0 %v3309
    %4278 = vmatprep.subr.bf16.mxu0 %v3303
    %4279 = vmatpush1.bf16.msra.mxu0 %v3302
    %4280 = vmatprep.subr.bf16.mxu0 %v3296
    %4281 = vmatpush1.bf16.msra.mxu0 %v3295
    %4282 = vmatprep.subr.bf16.mxu0 %v3289
    %4283 = vmatpush1.bf16.msra.mxu0 %v3288
    %4284 = vmatprep.subr.bf16.mxu0 %v3282
    %4285 = vmatpush1.bf16.msra.mxu0 %v3281
    %4286 = vmatprep.subr.bf16.mxu0 %v3275
    %4287 = vmatpush1.bf16.msra.mxu0 %v3274
    %4288 = vmatprep.subr.bf16.mxu0 %v3268
    %4289 = vmatpush1.bf16.msra.mxu0 %v3267
    %4290 = vmatprep.subr.bf16.mxu0 %v3373
    %4291 = vmatpush2.bf16.msra.mxu0 %v3372
    %4292 = vmatprep.subr.bf16.mxu0 %v3366
    %4293 = vmatpush2.bf16.msra.mxu0 %v3365
    %4294 = vmatprep.subr.bf16.mxu0 %v3359
    %4295 = vmatpush2.bf16.msra.mxu0 %v3358
    %4296 = vmatprep.subr.bf16.mxu0 %v3352
    %4297 = vmatpush2.bf16.msra.mxu0 %v3351
    %4298 = vmatprep.subr.bf16.mxu0 %v3345
    %4299 = vmatpush2.bf16.msra.mxu0 %v3344
    %4300 = vmatprep.subr.bf16.mxu0 %v3338
    %4301 = vmatpush2.bf16.msra.mxu0 %v3337
    %4302 = vmatprep.subr.bf16.mxu0 %v3331
    %4303 = vmatpush2.bf16.msra.mxu0 %v3330
    %4304 = vmatprep.subr.bf16.mxu0 %v3324
    %4305 = vmatpush2.bf16.msra.mxu0 %v3323
    %4306 = vmatprep.mubr.bf16.mxu0 %v1006
    %4307 = vmatmul.mubr.bf16.gmra.mxu0 %v1005
    %v4308 = vpop.f32.mrf.mxu0
    %v4309 = vadd.f32 %v4268, %v4308
    %v4310 = vpop.f32.mrf.mxu0
    %v4311 = vadd.f32 %v4270, %v4310
    %v4312 = vpop.f32.mrf.mxu0
    %v4313 = vpop.f32.mrf.mxu0
    %4314 = vdwg.mxu0
    %4315 = vmatprep.subr.bf16.mxu0 0
    %4316 = vmatpush1.bf16.msra.mxu0 %v2982
    %4317 = vmatprep.subr.bf16.mxu0 0
    %4318 = vmatpush1.bf16.msra.mxu0 %v2975
    %4319 = vmatprep.subr.bf16.mxu0 0
    %4320 = vmatpush1.bf16.msra.mxu0 %v2968
    %4321 = vmatprep.subr.bf16.mxu0 0
    %4322 = vmatpush1.bf16.msra.mxu0 %v2961
    %4323 = vmatprep.subr.bf16.mxu0 0
    %4324 = vmatpush1.bf16.msra.mxu0 %v2954
    %4325 = vmatprep.subr.bf16.mxu0 0
    %4326 = vmatpush1.bf16.msra.mxu0 %v2947
    %4327 = vmatprep.subr.bf16.mxu0 0
    %4328 = vmatpush1.bf16.msra.mxu0 %v2940
    %4329 = vmatprep.subr.bf16.mxu0 0
    %4330 = vmatpush1.bf16.msra.mxu0 %v2933
    %4331 = vmatprep.subr.bf16.mxu0 0
    %4332 = vmatpush2.bf16.msra.mxu0 %v3038
    %4333 = vmatprep.subr.bf16.mxu0 0
    %4334 = vmatpush2.bf16.msra.mxu0 %v3031
    %4335 = vmatprep.subr.bf16.mxu0 0
    %4336 = vmatpush2.bf16.msra.mxu0 %v3024
    %4337 = vmatprep.subr.bf16.mxu0 0
    %4338 = vmatpush2.bf16.msra.mxu0 %v3017
    %4339 = vmatprep.subr.bf16.mxu0 0
    %4340 = vmatpush2.bf16.msra.mxu0 %v3010
    %4341 = vmatprep.subr.bf16.mxu0 0
    %4342 = vmatpush2.bf16.msra.mxu0 %v3003
    %4343 = vmatprep.subr.bf16.mxu0 0
    %4344 = vmatpush2.bf16.msra.mxu0 %v2996
    %4345 = vmatprep.subr.bf16.mxu0 0
    %4346 = vmatpush2.bf16.msra.mxu0 %v2989
    %4347 = vmatprep.mubr.bf16.mxu0 %v1000
    %4348 = vmatmul.mubr.bf16.gmra.mxu0 %v999
    %v4349 = vpop.f32.mrf.mxu0
    %v4350 = vadd.f32 0.0, %v4349
    %v4351 = vpop.f32.mrf.mxu0
    %v4352 = vpop.f32.mrf.mxu0
    %v4353 = vpop.f32.mrf.mxu0
    %4354 = vdwg.mxu0
    %4355 = vmatprep.subr.bf16.mxu0 0
    %4356 = vmatpush1.bf16.msra.mxu0 %v3094
    %4357 = vmatprep.subr.bf16.mxu0 0
    %4358 = vmatpush1.bf16.msra.mxu0 %v3087
    %4359 = vmatprep.subr.bf16.mxu0 0
    %4360 = vmatpush1.bf16.msra.mxu0 %v3080
    %4361 = vmatprep.subr.bf16.mxu0 0
    %4362 = vmatpush1.bf16.msra.mxu0 %v3073
    %4363 = vmatprep.subr.bf16.mxu0 0
    %4364 = vmatpush1.bf16.msra.mxu0 %v3066
    %4365 = vmatprep.subr.bf16.mxu0 0
    %4366 = vmatpush1.bf16.msra.mxu0 %v3059
    %4367 = vmatprep.subr.bf16.mxu0 0
    %4368 = vmatpush1.bf16.msra.mxu0 %v3052
    %4369 = vmatprep.subr.bf16.mxu0 0
    %4370 = vmatpush1.bf16.msra.mxu0 %v3045
    %4371 = vmatprep.subr.bf16.mxu0 0
    %4372 = vmatpush2.bf16.msra.mxu0 %v3150
    %4373 = vmatprep.subr.bf16.mxu0 0
    %4374 = vmatpush2.bf16.msra.mxu0 %v3143
    %4375 = vmatprep.subr.bf16.mxu0 0
    %4376 = vmatpush2.bf16.msra.mxu0 %v3136
    %4377 = vmatprep.subr.bf16.mxu0 0
    %4378 = vmatpush2.bf16.msra.mxu0 %v3129
    %4379 = vmatprep.subr.bf16.mxu0 0
    %4380 = vmatpush2.bf16.msra.mxu0 %v3122
    %4381 = vmatprep.subr.bf16.mxu0 0
    %4382 = vmatpush2.bf16.msra.mxu0 %v3115
    %4383 = vmatprep.subr.bf16.mxu0 0
    %4384 = vmatpush2.bf16.msra.mxu0 %v3108
    %4385 = vmatprep.subr.bf16.mxu0 0
    %4386 = vmatpush2.bf16.msra.mxu0 %v3101
    %4387 = vmatprep.mubr.bf16.mxu0 %v1002
    %4388 = vmatmul.mubr.bf16.gmra.mxu0 %v1001
    %v4389 = vpop.f32.mrf.mxu0
    %v4390 = vadd.f32 %v4350, %v4389
    %v4391 = vpop.f32.mrf.mxu0
    %v4392 = vpop.f32.mrf.mxu0
    %v4393 = vpop.f32.mrf.mxu0
    %4394 = vdwg.mxu0
    %4395 = vmatprep.subr.bf16.mxu0 0
    %4396 = vmatpush1.bf16.msra.mxu0 %v3206
    %4397 = vmatprep.subr.bf16.mxu0 0
    %4398 = vmatpush1.bf16.msra.mxu0 %v3199
    %4399 = vmatprep.subr.bf16.mxu0 0
    %4400 = vmatpush1.bf16.msra.mxu0 %v3192
    %4401 = vmatprep.subr.bf16.mxu0 0
    %4402 = vmatpush1.bf16.msra.mxu0 %v3185
    %4403 = vmatprep.subr.bf16.mxu0 0
    %4404 = vmatpush1.bf16.msra.mxu0 %v3178
    %4405 = vmatprep.subr.bf16.mxu0 0
    %4406 = vmatpush1.bf16.msra.mxu0 %v3171
    %4407 = vmatprep.subr.bf16.mxu0 0
    %4408 = vmatpush1.bf16.msra.mxu0 %v3164
    %4409 = vmatprep.subr.bf16.mxu0 0
    %4410 = vmatpush1.bf16.msra.mxu0 %v3157
    %4411 = vmatprep.subr.bf16.mxu0 0
    %4412 = vmatpush2.bf16.msra.mxu0 %v3262
    %4413 = vmatprep.subr.bf16.mxu0 0
    %4414 = vmatpush2.bf16.msra.mxu0 %v3255
    %4415 = vmatprep.subr.bf16.mxu0 0
    %4416 = vmatpush2.bf16.msra.mxu0 %v3248
    %4417 = vmatprep.subr.bf16.mxu0 0
    %4418 = vmatpush2.bf16.msra.mxu0 %v3241
    %4419 = vmatprep.subr.bf16.mxu0 0
    %4420 = vmatpush2.bf16.msra.mxu0 %v3234
    %4421 = vmatprep.subr.bf16.mxu0 0
    %4422 = vmatpush2.bf16.msra.mxu0 %v3227
    %4423 = vmatprep.subr.bf16.mxu0 0
    %4424 = vmatpush2.bf16.msra.mxu0 %v3220
    %4425 = vmatprep.subr.bf16.mxu0 0
    %4426 = vmatpush2.bf16.msra.mxu0 %v3213
    %4427 = vmatprep.mubr.bf16.mxu0 %v1004
    %4428 = vmatmul.mubr.bf16.gmra.mxu0 %v1003
    %v4429 = vpop.f32.mrf.mxu0
    %v4430 = vadd.f32 %v4390, %v4429
    %v4431 = vpop.f32.mrf.mxu0
    %v4432 = vpop.f32.mrf.mxu0
    %v4433 = vpop.f32.mrf.mxu0
    %4434 = vdwg.mxu0
    %4435 = vmatprep.subr.bf16.mxu0 0
    %4436 = vmatpush1.bf16.msra.mxu0 %v3318
    %4437 = vmatprep.subr.bf16.mxu0 0
    %4438 = vmatpush1.bf16.msra.mxu0 %v3311
    %4439 = vmatprep.subr.bf16.mxu0 0
    %4440 = vmatpush1.bf16.msra.mxu0 %v3304
    %4441 = vmatprep.subr.bf16.mxu0 0
    %4442 = vmatpush1.bf16.msra.mxu0 %v3297
    %4443 = vmatprep.subr.bf16.mxu0 0
    %4444 = vmatpush1.bf16.msra.mxu0 %v3290
    %4445 = vmatprep.subr.bf16.mxu0 0
    %4446 = vmatpush1.bf16.msra.mxu0 %v3283
    %4447 = vmatprep.subr.bf16.mxu0 0
    %4448 = vmatpush1.bf16.msra.mxu0 %v3276
    %4449 = vmatprep.subr.bf16.mxu0 0
    %4450 = vmatpush1.bf16.msra.mxu0 %v3269
    %4451 = vmatprep.subr.bf16.mxu0 0
    %4452 = vmatpush2.bf16.msra.mxu0 %v3374
    %4453 = vmatprep.subr.bf16.mxu0 0
    %4454 = vmatpush2.bf16.msra.mxu0 %v3367
    %4455 = vmatprep.subr.bf16.mxu0 0
    %4456 = vmatpush2.bf16.msra.mxu0 %v3360
    %4457 = vmatprep.subr.bf16.mxu0 0
    %4458 = vmatpush2.bf16.msra.mxu0 %v3353
    %4459 = vmatprep.subr.bf16.mxu0 0
    %4460 = vmatpush2.bf16.msra.mxu0 %v3346
    %4461 = vmatprep.subr.bf16.mxu0 0
    %4462 = vmatpush2.bf16.msra.mxu0 %v3339
    %4463 = vmatprep.subr.bf16.mxu0 0
    %4464 = vmatpush2.bf16.msra.mxu0 %v3332
    %4465 = vmatprep.subr.bf16.mxu0 0
    %4466 = vmatpush2.bf16.msra.mxu0 %v3325
    %4467 = vmatprep.mubr.bf16.mxu0 %v1006
    %4468 = vmatmul.mubr.bf16.gmra.mxu0 %v1005
    %v4469 = vpop.f32.mrf.mxu0
    %v4470 = vadd.f32 %v4430, %v4469
    %v4471 = vpop.f32.mrf.mxu0
    %v4472 = vpop.f32.mrf.mxu0
    %v4473 = vpop.f32.mrf.mxu0
    %4474 = vdwg.mxu0
    %v4475 = vld [vmem:[#allocation11] sm:$0xff]
    %v4476 = vld [vmem:[#allocation11 + $0x8] sm:$0xff]
    %v4477 = vld [vmem:[#allocation11 + $0x10] sm:$0xff]
    %v4478 = vld [vmem:[#allocation11 + $0x18] sm:$0xf]
    %v4479 = vld [vmem:[#allocation11 + $0x1c] sm:$0xff]
    %v4480 = vld [vmem:[#allocation11 + $0x24] sm:$0xff]
    %v4481 = vld [vmem:[#allocation11 + $0x2c] sm:$0xff]
    %v4482 = vld [vmem:[#allocation11 + $0x34] sm:$0xf]
    %v4483 = vld [vmem:[#allocation11 + $0x38] sm:$0xff]
    %v4484 = vld [vmem:[#allocation11 + $0x40] sm:$0xff]
    %v4485 = vld [vmem:[#allocation11 + $0x48] sm:$0xff]
    %v4486 = vld [vmem:[#allocation11 + $0x50] sm:$0xf]
    %v4487 = vld [vmem:[#allocation11 + $0x54] sm:$0xff]
    %v4488 = vld [vmem:[#allocation11 + $0x5c] sm:$0xff]
    %v4489 = vld [vmem:[#allocation11 + $0x64] sm:$0xff]
    %v4490 = vld [vmem:[#allocation11 + $0x6c] sm:$0xf]
    %v4491 = vld [vmem:[#allocation11 + $0x70] sm:$0xff]
    %v4492 = vld [vmem:[#allocation11 + $0x78] sm:$0xff]
    %v4493 = vld [vmem:[#allocation11 + $0x80] sm:$0xff]
    %v4494 = vld [vmem:[#allocation11 + $0x88] sm:$0xf]
    %v4495 = vld [vmem:[#allocation11 + $0x8c] sm:$0xff]
    %v4496 = vld [vmem:[#allocation11 + $0x94] sm:$0xff]
    %v4497 = vld [vmem:[#allocation11 + $0x9c] sm:$0xff]
    %v4498 = vld [vmem:[#allocation11 + $0xa4] sm:$0xf]
    %v4499 = vld [vmem:[#allocation11 + $0xa8] sm:$0xff]
    %v4500 = vld [vmem:[#allocation11 + $0xb0] sm:$0xff]
    %v4501 = vld [vmem:[#allocation11 + $0xb8] sm:$0xff]
    %v4502 = vld [vmem:[#allocation11 + $0xc0] sm:$0xf]
    %v4503 = vld [vmem:[#allocation11 + $0xc4] sm:$0xff]
    %v4504 = vld [vmem:[#allocation11 + $0xcc] sm:$0xff]
    %v4505 = vld [vmem:[#allocation11 + $0xd4] sm:$0xff]
    %v4506 = vld [vmem:[#allocation11 + $0xdc] sm:$0xf]
    %v4507 = vld [vmem:[#allocation11 + $0xe0] sm:$0xff]
    %v4508 = vld [vmem:[#allocation11 + $0xe8] sm:$0xff]
    %v4509 = vld [vmem:[#allocation11 + $0xf0] sm:$0xff]
    %v4510 = vld [vmem:[#allocation11 + $0xf8] sm:$0xf]
    %v4511 = vld [vmem:[#allocation11 + $0xfc] sm:$0xff]
    %v4512 = vld [vmem:[#allocation11 + $0x104] sm:$0xff]
    %v4513 = vld [vmem:[#allocation11 + $0x10c] sm:$0xff]
    %v4514 = vld [vmem:[#allocation11 + $0x114] sm:$0xf]
    %v4515 = vld [vmem:[#allocation11 + $0x118] sm:$0xff]
    %v4516 = vld [vmem:[#allocation11 + $0x120] sm:$0xff]
    %v4517 = vld [vmem:[#allocation11 + $0x128] sm:$0xff]
    %v4518 = vld [vmem:[#allocation11 + $0x130] sm:$0xf]
    %v4519 = vld [vmem:[#allocation11 + $0x134] sm:$0xff]
    %v4520 = vld [vmem:[#allocation11 + $0x13c] sm:$0xff]
    %v4521 = vld [vmem:[#allocation11 + $0x144] sm:$0xff]
    %v4522 = vld [vmem:[#allocation11 + $0x14c] sm:$0xf]
    %v4523 = vld [vmem:[#allocation11 + $0x150] sm:$0xff]
    %v4524 = vld [vmem:[#allocation11 + $0x158] sm:$0xff]
    %v4525 = vld [vmem:[#allocation11 + $0x160] sm:$0xff]
    %v4526 = vld [vmem:[#allocation11 + $0x168] sm:$0xf]
    %v4527 = vld [vmem:[#allocation11 + $0x16c] sm:$0xff]
    %v4528 = vld [vmem:[#allocation11 + $0x174] sm:$0xff]
    %v4529 = vld [vmem:[#allocation11 + $0x17c] sm:$0xff]
    %v4530 = vld [vmem:[#allocation11 + $0x184] sm:$0xf]
    %v4531 = vld [vmem:[#allocation11 + $0x188] sm:$0xff]
    %v4532 = vld [vmem:[#allocation11 + $0x190] sm:$0xff]
    %v4533 = vld [vmem:[#allocation11 + $0x198] sm:$0xff]
    %v4534 = vld [vmem:[#allocation11 + $0x1a0] sm:$0xf]
    %v4535 = vld [vmem:[#allocation11 + $0x1a4] sm:$0xff]
    %v4536 = vld [vmem:[#allocation11 + $0x1ac] sm:$0xff]
    %v4537 = vld [vmem:[#allocation11 + $0x1b4] sm:$0xff]
    %v4538 = vld [vmem:[#allocation11 + $0x1bc] sm:$0xf]
    %v4539 = vld [vmem:[#allocation11 + $0x1c0] sm:$0xff]
    %v4540 = vld [vmem:[#allocation11 + $0x1c8] sm:$0xff]
    %v4541 = vld [vmem:[#allocation11 + $0x1d0] sm:$0xff]
    %v4542 = vld [vmem:[#allocation11 + $0x1d8] sm:$0xf]
    %v4543 = vld [vmem:[#allocation11 + $0x1dc] sm:$0xff]
    %v4544 = vld [vmem:[#allocation11 + $0x1e4] sm:$0xff]
    %v4545 = vld [vmem:[#allocation11 + $0x1ec] sm:$0xff]
    %v4546 = vld [vmem:[#allocation11 + $0x1f4] sm:$0xf]
    %v4547 = vld [vmem:[#allocation11 + $0x1f8] sm:$0xff]
    %v4548 = vld [vmem:[#allocation11 + $0x200] sm:$0xff]
    %v4549 = vld [vmem:[#allocation11 + $0x208] sm:$0xff]
    %v4550 = vld [vmem:[#allocation11 + $0x210] sm:$0xf]
    %v4551 = vld [vmem:[#allocation11 + $0x214] sm:$0xff]
    %v4552 = vld [vmem:[#allocation11 + $0x21c] sm:$0xff]
    %v4553 = vld [vmem:[#allocation11 + $0x224] sm:$0xff]
    %v4554 = vld [vmem:[#allocation11 + $0x22c] sm:$0xf]
    %v4555 = vld [vmem:[#allocation11 + $0x230] sm:$0xff]
    %v4556 = vld [vmem:[#allocation11 + $0x238] sm:$0xff]
    %v4557 = vld [vmem:[#allocation11 + $0x240] sm:$0xff]
    %v4558 = vld [vmem:[#allocation11 + $0x248] sm:$0xf]
    %v4559 = vld [vmem:[#allocation11 + $0x24c] sm:$0xff]
    %v4560 = vld [vmem:[#allocation11 + $0x254] sm:$0xff]
    %v4561 = vld [vmem:[#allocation11 + $0x25c] sm:$0xff]
    %v4562 = vld [vmem:[#allocation11 + $0x264] sm:$0xf]
    %v4563 = vld [vmem:[#allocation11 + $0x268] sm:$0xff]
    %v4564 = vld [vmem:[#allocation11 + $0x270] sm:$0xff]
    %v4565 = vld [vmem:[#allocation11 + $0x278] sm:$0xff]
    %v4566 = vld [vmem:[#allocation11 + $0x280] sm:$0xf]
    %v4567 = vld [vmem:[#allocation11 + $0x284] sm:$0xff]
    %v4568 = vld [vmem:[#allocation11 + $0x28c] sm:$0xff]
    %v4569 = vld [vmem:[#allocation11 + $0x294] sm:$0xff]
    %v4570 = vld [vmem:[#allocation11 + $0x29c] sm:$0xf]
    %v4571 = vld [vmem:[#allocation11 + $0x2a0] sm:$0xff]
    %v4572 = vld [vmem:[#allocation11 + $0x2a8] sm:$0xff]
    %v4573 = vld [vmem:[#allocation11 + $0x2b0] sm:$0xff]
    %v4574 = vld [vmem:[#allocation11 + $0x2b8] sm:$0xf]
    %v4575 = vld [vmem:[#allocation11 + $0x2bc] sm:$0xff]
    %v4576 = vld [vmem:[#allocation11 + $0x2c4] sm:$0xff]
    %v4577 = vld [vmem:[#allocation11 + $0x2cc] sm:$0xff]
    %v4578 = vld [vmem:[#allocation11 + $0x2d4] sm:$0xf]
    %v4579 = vld [vmem:[#allocation11 + $0x2d8] sm:$0xff]
    %v4580 = vld [vmem:[#allocation11 + $0x2e0] sm:$0xff]
    %v4581 = vld [vmem:[#allocation11 + $0x2e8] sm:$0xff]
    %v4582 = vld [vmem:[#allocation11 + $0x2f0] sm:$0xf]
    %v4583 = vld [vmem:[#allocation11 + $0x2f4] sm:$0xff]
    %v4584 = vld [vmem:[#allocation11 + $0x2fc] sm:$0xff]
    %v4585 = vld [vmem:[#allocation11 + $0x304] sm:$0xff]
    %v4586 = vld [vmem:[#allocation11 + $0x30c] sm:$0xf]
    %v4587 = vld [vmem:[#allocation11 + $0x310] sm:$0xff]
    %v4588 = vld [vmem:[#allocation11 + $0x318] sm:$0xff]
    %v4589 = vld [vmem:[#allocation11 + $0x320] sm:$0xff]
    %v4590 = vld [vmem:[#allocation11 + $0x328] sm:$0xf]
    %v4591 = vld [vmem:[#allocation11 + $0x32c] sm:$0xff]
    %v4592 = vld [vmem:[#allocation11 + $0x334] sm:$0xff]
    %v4593 = vld [vmem:[#allocation11 + $0x33c] sm:$0xff]
    %v4594 = vld [vmem:[#allocation11 + $0x344] sm:$0xf]
    %v4595 = vld [vmem:[#allocation11 + $0x348] sm:$0xff]
    %v4596 = vld [vmem:[#allocation11 + $0x350] sm:$0xff]
    %v4597 = vld [vmem:[#allocation11 + $0x358] sm:$0xff]
    %v4598 = vld [vmem:[#allocation11 + $0x360] sm:$0xf]
    %v4599 = vld [vmem:[#allocation11 + $0x364] sm:$0xff]
    %v4600 = vld [vmem:[#allocation11 + $0x36c] sm:$0xff]
    %v4601 = vld [vmem:[#allocation11 + $0x374] sm:$0xff]
    %v4602 = vld [vmem:[#allocation11 + $0x37c] sm:$0xf]
    %v4603 = vld [vmem:[#allocation11 + $0x380] sm:$0xff]
    %v4604 = vld [vmem:[#allocation11 + $0x388] sm:$0xff]
    %v4605 = vld [vmem:[#allocation11 + $0x390] sm:$0xff]
    %v4606 = vld [vmem:[#allocation11 + $0x398] sm:$0xf]
    %v4607 = vld [vmem:[#allocation11 + $0x39c] sm:$0xff]
    %v4608 = vld [vmem:[#allocation11 + $0x3a4] sm:$0xff]
    %v4609 = vld [vmem:[#allocation11 + $0x3ac] sm:$0xff]
    %v4610 = vld [vmem:[#allocation11 + $0x3b4] sm:$0xf]
    %v4611 = vld [vmem:[#allocation11 + $0x3b8] sm:$0xff]
    %v4612 = vld [vmem:[#allocation11 + $0x3c0] sm:$0xff]
    %v4613 = vld [vmem:[#allocation11 + $0x3c8] sm:$0xff]
    %v4614 = vld [vmem:[#allocation11 + $0x3d0] sm:$0xf]
    %v4615 = vld [vmem:[#allocation11 + $0x3d4] sm:$0xff]
    %v4616 = vld [vmem:[#allocation11 + $0x3dc] sm:$0xff]
    %v4617 = vld [vmem:[#allocation11 + $0x3e4] sm:$0xff]
    %v4618 = vld [vmem:[#allocation11 + $0x3ec] sm:$0xf]
    %v4619 = vld [vmem:[#allocation11 + $0x3f0] sm:$0xff]
    %v4620 = vld [vmem:[#allocation11 + $0x3f8] sm:$0xff]
    %v4621 = vld [vmem:[#allocation11 + $0x400] sm:$0xff]
    %v4622 = vld [vmem:[#allocation11 + $0x408] sm:$0xf]
    %v4623 = vld [vmem:[#allocation11 + $0x40c] sm:$0xff]
    %v4624 = vld [vmem:[#allocation11 + $0x414] sm:$0xff]
    %v4625 = vld [vmem:[#allocation11 + $0x41c] sm:$0xff]
    %v4626 = vld [vmem:[#allocation11 + $0x424] sm:$0xf]
    %v4627 = vld [vmem:[#allocation11 + $0x428] sm:$0xff]
    %v4628 = vld [vmem:[#allocation11 + $0x430] sm:$0xff]
    %v4629 = vld [vmem:[#allocation11 + $0x438] sm:$0xff]
    %v4630 = vld [vmem:[#allocation11 + $0x440] sm:$0xf]
    %v4631 = vld [vmem:[#allocation11 + $0x444] sm:$0xff]
    %v4632 = vld [vmem:[#allocation11 + $0x44c] sm:$0xff]
    %v4633 = vld [vmem:[#allocation11 + $0x454] sm:$0xff]
    %v4634 = vld [vmem:[#allocation11 + $0x45c] sm:$0xf]
    %v4635 = vld [vmem:[#allocation11 + $0x460] sm:$0xff]
    %v4636 = vld [vmem:[#allocation11 + $0x468] sm:$0xff]
    %v4637 = vld [vmem:[#allocation11 + $0x470] sm:$0xff]
    %v4638 = vld [vmem:[#allocation11 + $0x478] sm:$0xf]
    %v4639 = vld [vmem:[#allocation11 + $0x47c] sm:$0xff]
    %v4640 = vld [vmem:[#allocation11 + $0x484] sm:$0xff]
    %v4641 = vld [vmem:[#allocation11 + $0x48c] sm:$0xff]
    %v4642 = vld [vmem:[#allocation11 + $0x494] sm:$0xf]
    %v4643 = vld [vmem:[#allocation11 + $0x498] sm:$0xff]
    %v4644 = vld [vmem:[#allocation11 + $0x4a0] sm:$0xff]
    %v4645 = vld [vmem:[#allocation11 + $0x4a8] sm:$0xff]
    %v4646 = vld [vmem:[#allocation11 + $0x4b0] sm:$0xf]
    %v4647 = vld [vmem:[#allocation11 + $0x4b4] sm:$0xff]
    %v4648 = vld [vmem:[#allocation11 + $0x4bc] sm:$0xff]
    %v4649 = vld [vmem:[#allocation11 + $0x4c4] sm:$0xff]
    %v4650 = vld [vmem:[#allocation11 + $0x4cc] sm:$0xf]
    %v4651 = vld [vmem:[#allocation11 + $0x4d0] sm:$0xff]
    %v4652 = vld [vmem:[#allocation11 + $0x4d8] sm:$0xff]
    %v4653 = vld [vmem:[#allocation11 + $0x4e0] sm:$0xff]
    %v4654 = vld [vmem:[#allocation11 + $0x4e8] sm:$0xf]
    %v4655 = vld [vmem:[#allocation11 + $0x4ec] sm:$0xff]
    %v4656 = vld [vmem:[#allocation11 + $0x4f4] sm:$0xff]
    %v4657 = vld [vmem:[#allocation11 + $0x4fc] sm:$0xff]
    %v4658 = vld [vmem:[#allocation11 + $0x504] sm:$0xf]
    %v4659 = vld [vmem:[#allocation11 + $0x508] sm:$0xff]
    %v4660 = vld [vmem:[#allocation11 + $0x510] sm:$0xff]
    %v4661 = vld [vmem:[#allocation11 + $0x518] sm:$0xff]
    %v4662 = vld [vmem:[#allocation11 + $0x520] sm:$0xf]
    %v4663 = vld [vmem:[#allocation11 + $0x524] sm:$0xff]
    %v4664 = vld [vmem:[#allocation11 + $0x52c] sm:$0xff]
    %v4665 = vld [vmem:[#allocation11 + $0x534] sm:$0xff]
    %v4666 = vld [vmem:[#allocation11 + $0x53c] sm:$0xf]
    %v4667 = vld [vmem:[#allocation11 + $0x540] sm:$0xff]
    %v4668 = vld [vmem:[#allocation11 + $0x548] sm:$0xff]
    %v4669 = vld [vmem:[#allocation11 + $0x550] sm:$0xff]
    %v4670 = vld [vmem:[#allocation11 + $0x558] sm:$0xf]
    %v4671 = vld [vmem:[#allocation11 + $0x55c] sm:$0xff]
    %v4672 = vld [vmem:[#allocation11 + $0x564] sm:$0xff]
    %v4673 = vld [vmem:[#allocation11 + $0x56c] sm:$0xff]
    %v4674 = vld [vmem:[#allocation11 + $0x574] sm:$0xf]
    %v4675 = vld [vmem:[#allocation11 + $0x578] sm:$0xff]
    %v4676 = vld [vmem:[#allocation11 + $0x580] sm:$0xff]
    %v4677 = vld [vmem:[#allocation11 + $0x588] sm:$0xff]
    %v4678 = vld [vmem:[#allocation11 + $0x590] sm:$0xf]
    %v4679 = vld [vmem:[#allocation11 + $0x594] sm:$0xff]
    %v4680 = vld [vmem:[#allocation11 + $0x59c] sm:$0xff]
    %v4681 = vld [vmem:[#allocation11 + $0x5a4] sm:$0xff]
    %v4682 = vld [vmem:[#allocation11 + $0x5ac] sm:$0xf]
    %v4683 = vld [vmem:[#allocation11 + $0x5b0] sm:$0xff]
    %v4684 = vld [vmem:[#allocation11 + $0x5b8] sm:$0xff]
    %v4685 = vld [vmem:[#allocation11 + $0x5c0] sm:$0xff]
    %v4686 = vld [vmem:[#allocation11 + $0x5c8] sm:$0xf]
    %v4687 = vld [vmem:[#allocation11 + $0x5cc] sm:$0xff]
    %v4688 = vld [vmem:[#allocation11 + $0x5d4] sm:$0xff]
    %v4689 = vld [vmem:[#allocation11 + $0x5dc] sm:$0xff]
    %v4690 = vld [vmem:[#allocation11 + $0x5e4] sm:$0xf]
    %v4691 = vld [vmem:[#allocation11 + $0x5e8] sm:$0xff]
    %v4692 = vld [vmem:[#allocation11 + $0x5f0] sm:$0xff]
    %v4693 = vld [vmem:[#allocation11 + $0x5f8] sm:$0xff]
    %v4694 = vld [vmem:[#allocation11 + $0x600] sm:$0xf]
    %v4695 = vld [vmem:[#allocation11 + $0x604] sm:$0xff]
    %v4696 = vld [vmem:[#allocation11 + $0x60c] sm:$0xff]
    %v4697 = vld [vmem:[#allocation11 + $0x614] sm:$0xff]
    %v4698 = vld [vmem:[#allocation11 + $0x61c] sm:$0xf]
    %v4699 = vld [vmem:[#allocation11 + $0x620] sm:$0xff]
    %v4700 = vld [vmem:[#allocation11 + $0x628] sm:$0xff]
    %v4701 = vld [vmem:[#allocation11 + $0x630] sm:$0xff]
    %v4702 = vld [vmem:[#allocation11 + $0x638] sm:$0xf]
    %v4703 = vld [vmem:[#allocation11 + $0x63c] sm:$0xff]
    %v4704 = vld [vmem:[#allocation11 + $0x644] sm:$0xff]
    %v4705 = vld [vmem:[#allocation11 + $0x64c] sm:$0xff]
    %v4706 = vld [vmem:[#allocation11 + $0x654] sm:$0xf]
    %v4707 = vld [vmem:[#allocation11 + $0x658] sm:$0xff]
    %v4708 = vld [vmem:[#allocation11 + $0x660] sm:$0xff]
    %v4709 = vld [vmem:[#allocation11 + $0x668] sm:$0xff]
    %v4710 = vld [vmem:[#allocation11 + $0x670] sm:$0xf]
    %v4711 = vld [vmem:[#allocation11 + $0x674] sm:$0xff]
    %v4712 = vld [vmem:[#allocation11 + $0x67c] sm:$0xff]
    %v4713 = vld [vmem:[#allocation11 + $0x684] sm:$0xff]
    %v4714 = vld [vmem:[#allocation11 + $0x68c] sm:$0xf]
    %v4715 = vld [vmem:[#allocation11 + $0x690] sm:$0xff]
    %v4716 = vld [vmem:[#allocation11 + $0x698] sm:$0xff]
    %v4717 = vld [vmem:[#allocation11 + $0x6a0] sm:$0xff]
    %v4718 = vld [vmem:[#allocation11 + $0x6a8] sm:$0xf]
    %v4719 = vld [vmem:[#allocation11 + $0x6ac] sm:$0xff]
    %v4720 = vld [vmem:[#allocation11 + $0x6b4] sm:$0xff]
    %v4721 = vld [vmem:[#allocation11 + $0x6bc] sm:$0xff]
    %v4722 = vld [vmem:[#allocation11 + $0x6c4] sm:$0xf]
    %v4723 = vld [vmem:[#allocation11 + $0x6c8] sm:$0xff]
    %v4724 = vld [vmem:[#allocation11 + $0x6d0] sm:$0xff]
    %v4725 = vld [vmem:[#allocation11 + $0x6d8] sm:$0xff]
    %v4726 = vld [vmem:[#allocation11 + $0x6e0] sm:$0xf]
    %v4727 = vld [vmem:[#allocation11 + $0x6e4] sm:$0xff]
    %v4728 = vld [vmem:[#allocation11 + $0x6ec] sm:$0xff]
    %v4729 = vld [vmem:[#allocation11 + $0x6f4] sm:$0xff]
    %v4730 = vld [vmem:[#allocation11 + $0x6fc] sm:$0xf]
    %v4731 = vld [vmem:[#allocation11 + $0x700] sm:$0xff]
    %v4732 = vld [vmem:[#allocation11 + $0x708] sm:$0xff]
    %v4733 = vld [vmem:[#allocation11 + $0x710] sm:$0xff]
    %v4734 = vld [vmem:[#allocation11 + $0x718] sm:$0xf]
    %v4735 = vld [vmem:[#allocation11 + $0x71c] sm:$0xff]
    %v4736 = vld [vmem:[#allocation11 + $0x724] sm:$0xff]
    %v4737 = vld [vmem:[#allocation11 + $0x72c] sm:$0xff]
    %v4738 = vld [vmem:[#allocation11 + $0x734] sm:$0xf]
    %v4739 = vld [vmem:[#allocation11 + $0x738] sm:$0xff]
    %v4740 = vld [vmem:[#allocation11 + $0x740] sm:$0xff]
    %v4741 = vld [vmem:[#allocation11 + $0x748] sm:$0xff]
    %v4742 = vld [vmem:[#allocation11 + $0x750] sm:$0xf]
    %v4743 = vld [vmem:[#allocation11 + $0x754] sm:$0xff]
    %v4744 = vld [vmem:[#allocation11 + $0x75c] sm:$0xff]
    %v4745 = vld [vmem:[#allocation11 + $0x764] sm:$0xff]
    %v4746 = vld [vmem:[#allocation11 + $0x76c] sm:$0xf]
    %v4747 = vld [vmem:[#allocation11 + $0x770] sm:$0xff]
    %v4748 = vld [vmem:[#allocation11 + $0x778] sm:$0xff]
    %v4749 = vld [vmem:[#allocation11 + $0x780] sm:$0xff]
    %v4750 = vld [vmem:[#allocation11 + $0x788] sm:$0xf]
    %v4751 = vld [vmem:[#allocation11 + $0x78c] sm:$0xff]
    %v4752 = vld [vmem:[#allocation11 + $0x794] sm:$0xff]
    %v4753 = vld [vmem:[#allocation11 + $0x79c] sm:$0xff]
    %v4754 = vld [vmem:[#allocation11 + $0x7a4] sm:$0xf]
    %v4755 = vld [vmem:[#allocation11 + $0x7a8] sm:$0xff]
    %v4756 = vld [vmem:[#allocation11 + $0x7b0] sm:$0xff]
    %v4757 = vld [vmem:[#allocation11 + $0x7b8] sm:$0xff]
    %v4758 = vld [vmem:[#allocation11 + $0x7c0] sm:$0xf]
    %v4759 = vld [vmem:[#allocation11 + $0x7c4] sm:$0xff]
    %v4760 = vld [vmem:[#allocation11 + $0x7cc] sm:$0xff]
    %v4761 = vld [vmem:[#allocation11 + $0x7d4] sm:$0xff]
    %v4762 = vld [vmem:[#allocation11 + $0x7dc] sm:$0xf]
    %v4763 = vld [vmem:[#allocation11 + $0x7e0] sm:$0xff]
    %v4764 = vld [vmem:[#allocation11 + $0x7e8] sm:$0xff]
    %v4765 = vld [vmem:[#allocation11 + $0x7f0] sm:$0xff]
    %v4766 = vld [vmem:[#allocation11 + $0x7f8] sm:$0xf]
    %v4767 = vld [vmem:[#allocation11 + $0x7fc] sm:$0xff]
    %v4768 = vld [vmem:[#allocation11 + $0x804] sm:$0xff]
    %v4769 = vld [vmem:[#allocation11 + $0x80c] sm:$0xff]
    %v4770 = vld [vmem:[#allocation11 + $0x814] sm:$0xf]
    %v4771 = vld [vmem:[#allocation11 + $0x818] sm:$0xff]
    %v4772 = vld [vmem:[#allocation11 + $0x820] sm:$0xff]
    %v4773 = vld [vmem:[#allocation11 + $0x828] sm:$0xff]
    %v4774 = vld [vmem:[#allocation11 + $0x830] sm:$0xf]
    %v4775 = vld [vmem:[#allocation11 + $0x834] sm:$0xff]
    %v4776 = vld [vmem:[#allocation11 + $0x83c] sm:$0xff]
    %v4777 = vld [vmem:[#allocation11 + $0x844] sm:$0xff]
    %v4778 = vld [vmem:[#allocation11 + $0x84c] sm:$0xf]
    %v4779 = vld [vmem:[#allocation11 + $0x850] sm:$0xff]
    %v4780 = vld [vmem:[#allocation11 + $0x858] sm:$0xff]
    %v4781 = vld [vmem:[#allocation11 + $0x860] sm:$0xff]
    %v4782 = vld [vmem:[#allocation11 + $0x868] sm:$0xf]
    %v4783 = vld [vmem:[#allocation11 + $0x86c] sm:$0xff]
    %v4784 = vld [vmem:[#allocation11 + $0x874] sm:$0xff]
    %v4785 = vld [vmem:[#allocation11 + $0x87c] sm:$0xff]
    %v4786 = vld [vmem:[#allocation11 + $0x884] sm:$0xf]
    %v4787 = vld [vmem:[#allocation11 + $0x888] sm:$0xff]
    %v4788 = vld [vmem:[#allocation11 + $0x890] sm:$0xff]
    %v4789 = vld [vmem:[#allocation11 + $0x898] sm:$0xff]
    %v4790 = vld [vmem:[#allocation11 + $0x8a0] sm:$0xf]
    %v4791 = vld [vmem:[#allocation11 + $0x8a4] sm:$0xff]
    %v4792 = vld [vmem:[#allocation11 + $0x8ac] sm:$0xff]
    %v4793 = vld [vmem:[#allocation11 + $0x8b4] sm:$0xff]
    %v4794 = vld [vmem:[#allocation11 + $0x8bc] sm:$0xf]
    %v4795 = vld [vmem:[#allocation11 + $0x8c0] sm:$0xff]
    %v4796 = vld [vmem:[#allocation11 + $0x8c8] sm:$0xff]
    %v4797 = vld [vmem:[#allocation11 + $0x8d0] sm:$0xff]
    %v4798 = vld [vmem:[#allocation11 + $0x8d8] sm:$0xf]
    %v4799 = vld [vmem:[#allocation11 + $0x8dc] sm:$0xff]
    %v4800 = vld [vmem:[#allocation11 + $0x8e4] sm:$0xff]
    %v4801 = vld [vmem:[#allocation11 + $0x8ec] sm:$0xff]
    %v4802 = vld [vmem:[#allocation11 + $0x8f4] sm:$0xf]
    %v4803 = vld [vmem:[#allocation11 + $0x8f8] sm:$0xff]
    %v4804 = vld [vmem:[#allocation11 + $0x900] sm:$0xff]
    %v4805 = vld [vmem:[#allocation11 + $0x908] sm:$0xff]
    %v4806 = vld [vmem:[#allocation11 + $0x910] sm:$0xf]
    %v4807 = vld [vmem:[#allocation11 + $0x914] sm:$0xff]
    %v4808 = vld [vmem:[#allocation11 + $0x91c] sm:$0xff]
    %v4809 = vld [vmem:[#allocation11 + $0x924] sm:$0xff]
    %v4810 = vld [vmem:[#allocation11 + $0x92c] sm:$0xf]
    %v4811 = vld [vmem:[#allocation11 + $0x930] sm:$0xff]
    %v4812 = vld [vmem:[#allocation11 + $0x938] sm:$0xff]
    %v4813 = vld [vmem:[#allocation11 + $0x940] sm:$0xff]
    %v4814 = vld [vmem:[#allocation11 + $0x948] sm:$0xf]
    %v4815 = vld [vmem:[#allocation11 + $0x94c] sm:$0xff]
    %v4816 = vld [vmem:[#allocation11 + $0x954] sm:$0xff]
    %v4817 = vld [vmem:[#allocation11 + $0x95c] sm:$0xff]
    %v4818 = vld [vmem:[#allocation11 + $0x964] sm:$0xf]
    %v4819 = vld [vmem:[#allocation11 + $0x968] sm:$0xff]
    %v4820 = vld [vmem:[#allocation11 + $0x970] sm:$0xff]
    %v4821 = vld [vmem:[#allocation11 + $0x978] sm:$0xff]
    %v4822 = vld [vmem:[#allocation11 + $0x980] sm:$0xf]
    %v4823 = vld [vmem:[#allocation11 + $0x984] sm:$0xff]
    %v4824 = vld [vmem:[#allocation11 + $0x98c] sm:$0xff]
    %v4825 = vld [vmem:[#allocation11 + $0x994] sm:$0xff]
    %v4826 = vld [vmem:[#allocation11 + $0x99c] sm:$0xf]
    %v4827 = vld [vmem:[#allocation11 + $0x9a0] sm:$0xff]
    %v4828 = vld [vmem:[#allocation11 + $0x9a8] sm:$0xff]
    %v4829 = vld [vmem:[#allocation11 + $0x9b0] sm:$0xff]
    %v4830 = vld [vmem:[#allocation11 + $0x9b8] sm:$0xf]
    %v4831 = vld [vmem:[#allocation11 + $0x9bc] sm:$0xff]
    %v4832 = vld [vmem:[#allocation11 + $0x9c4] sm:$0xff]
    %v4833 = vld [vmem:[#allocation11 + $0x9cc] sm:$0xff]
    %v4834 = vld [vmem:[#allocation11 + $0x9d4] sm:$0xf]
    %v4835 = vld [vmem:[#allocation11 + $0x9d8] sm:$0xff]
    %v4836 = vld [vmem:[#allocation11 + $0x9e0] sm:$0xff]
    %v4837 = vld [vmem:[#allocation11 + $0x9e8] sm:$0xff]
    %v4838 = vld [vmem:[#allocation11 + $0x9f0] sm:$0xf]
    %v4839 = vld [vmem:[#allocation11 + $0x9f4] sm:$0xff]
    %v4840 = vld [vmem:[#allocation11 + $0x9fc] sm:$0xff]
    %v4841 = vld [vmem:[#allocation11 + $0xa04] sm:$0xff]
    %v4842 = vld [vmem:[#allocation11 + $0xa0c] sm:$0xf]
    %v4843 = vld [vmem:[#allocation11 + $0xa10] sm:$0xff]
    %v4844 = vld [vmem:[#allocation11 + $0xa18] sm:$0xff]
    %v4845 = vld [vmem:[#allocation11 + $0xa20] sm:$0xff]
    %v4846 = vld [vmem:[#allocation11 + $0xa28] sm:$0xf]
    %v4847 = vld [vmem:[#allocation11 + $0xa2c] sm:$0xff]
    %v4848 = vld [vmem:[#allocation11 + $0xa34] sm:$0xff]
    %v4849 = vld [vmem:[#allocation11 + $0xa3c] sm:$0xff]
    %v4850 = vld [vmem:[#allocation11 + $0xa44] sm:$0xf]
    %v4851 = vld [vmem:[#allocation11 + $0xa48] sm:$0xff]
    %v4852 = vld [vmem:[#allocation11 + $0xa50] sm:$0xff]
    %v4853 = vld [vmem:[#allocation11 + $0xa58] sm:$0xff]
    %v4854 = vld [vmem:[#allocation11 + $0xa60] sm:$0xf]
    %v4855 = vld [vmem:[#allocation11 + $0xa64] sm:$0xff]
    %v4856 = vld [vmem:[#allocation11 + $0xa6c] sm:$0xff]
    %v4857 = vld [vmem:[#allocation11 + $0xa74] sm:$0xff]
    %v4858 = vld [vmem:[#allocation11 + $0xa7c] sm:$0xf]
    %v4859 = vld [vmem:[#allocation11 + $0xa80] sm:$0xff]
    %v4860 = vld [vmem:[#allocation11 + $0xa88] sm:$0xff]
    %v4861 = vld [vmem:[#allocation11 + $0xa90] sm:$0xff]
    %v4862 = vld [vmem:[#allocation11 + $0xa98] sm:$0xf]
    %v4863 = vld [vmem:[#allocation11 + $0xa9c] sm:$0xff]
    %v4864 = vld [vmem:[#allocation11 + $0xaa4] sm:$0xff]
    %v4865 = vld [vmem:[#allocation11 + $0xaac] sm:$0xff]
    %v4866 = vld [vmem:[#allocation11 + $0xab4] sm:$0xf]
    %v4867 = vld [vmem:[#allocation11 + $0xab8] sm:$0xff]
    %v4868 = vld [vmem:[#allocation11 + $0xac0] sm:$0xff]
    %v4869 = vld [vmem:[#allocation11 + $0xac8] sm:$0xff]
    %v4870 = vld [vmem:[#allocation11 + $0xad0] sm:$0xf]
    %v4871 = vld [vmem:[#allocation11 + $0xad4] sm:$0xff]
    %v4872 = vld [vmem:[#allocation11 + $0xadc] sm:$0xff]
    %v4873 = vld [vmem:[#allocation11 + $0xae4] sm:$0xff]
    %v4874 = vld [vmem:[#allocation11 + $0xaec] sm:$0xf]
    %v4875 = vld [vmem:[#allocation11 + $0xaf0] sm:$0xff]
    %v4876 = vld [vmem:[#allocation11 + $0xaf8] sm:$0xff]
    %v4877 = vld [vmem:[#allocation11 + $0xb00] sm:$0xff]
    %v4878 = vld [vmem:[#allocation11 + $0xb08] sm:$0xf]
    %v4879 = vld [vmem:[#allocation11 + $0xb0c] sm:$0xff]
    %v4880 = vld [vmem:[#allocation11 + $0xb14] sm:$0xff]
    %v4881 = vld [vmem:[#allocation11 + $0xb1c] sm:$0xff]
    %v4882 = vld [vmem:[#allocation11 + $0xb24] sm:$0xf]
    %v4883 = vld [vmem:[#allocation11 + $0xb28] sm:$0xff]
    %v4884 = vld [vmem:[#allocation11 + $0xb30] sm:$0xff]
    %v4885 = vld [vmem:[#allocation11 + $0xb38] sm:$0xff]
    %v4886 = vld [vmem:[#allocation11 + $0xb40] sm:$0xf]
    %v4887 = vld [vmem:[#allocation11 + $0xb44] sm:$0xff]
    %v4888 = vld [vmem:[#allocation11 + $0xb4c] sm:$0xff]
    %v4889 = vld [vmem:[#allocation11 + $0xb54] sm:$0xff]
    %v4890 = vld [vmem:[#allocation11 + $0xb5c] sm:$0xf]
    %v4891 = vld [vmem:[#allocation11 + $0xb60] sm:$0xff]
    %v4892 = vld [vmem:[#allocation11 + $0xb68] sm:$0xff]
    %v4893 = vld [vmem:[#allocation11 + $0xb70] sm:$0xff]
    %v4894 = vld [vmem:[#allocation11 + $0xb78] sm:$0xf]
    %v4895 = vld [vmem:[#allocation11 + $0xb7c] sm:$0xff]
    %v4896 = vld [vmem:[#allocation11 + $0xb84] sm:$0xff]
    %v4897 = vld [vmem:[#allocation11 + $0xb8c] sm:$0xff]
    %v4898 = vld [vmem:[#allocation11 + $0xb94] sm:$0xf]
    %v4899 = vld [vmem:[#allocation11 + $0xb98] sm:$0xff]
    %v4900 = vld [vmem:[#allocation11 + $0xba0] sm:$0xff]
    %v4901 = vld [vmem:[#allocation11 + $0xba8] sm:$0xff]
    %v4902 = vld [vmem:[#allocation11 + $0xbb0] sm:$0xf]
    %v4903 = vld [vmem:[#allocation11 + $0xbb4] sm:$0xff]
    %v4904 = vld [vmem:[#allocation11 + $0xbbc] sm:$0xff]
    %v4905 = vld [vmem:[#allocation11 + $0xbc4] sm:$0xff]
    %v4906 = vld [vmem:[#allocation11 + $0xbcc] sm:$0xf]
    %v4907 = vld [vmem:[#allocation11 + $0xbd0] sm:$0xff]
    %v4908 = vld [vmem:[#allocation11 + $0xbd8] sm:$0xff]
    %v4909 = vld [vmem:[#allocation11 + $0xbe0] sm:$0xff]
    %v4910 = vld [vmem:[#allocation11 + $0xbe8] sm:$0xf]
    %v4911 = vld [vmem:[#allocation11 + $0xbec] sm:$0xff]
    %v4912 = vld [vmem:[#allocation11 + $0xbf4] sm:$0xff]
    %v4913 = vld [vmem:[#allocation11 + $0xbfc] sm:$0xff]
    %v4914 = vld [vmem:[#allocation11 + $0xc04] sm:$0xf]
    %v4915 = vld [vmem:[#allocation11 + $0xc08] sm:$0xff]
    %v4916 = vld [vmem:[#allocation11 + $0xc10] sm:$0xff]
    %v4917 = vld [vmem:[#allocation11 + $0xc18] sm:$0xff]
    %v4918 = vld [vmem:[#allocation11 + $0xc20] sm:$0xf]
    %v4919 = vld [vmem:[#allocation11 + $0xc24] sm:$0xff]
    %v4920 = vld [vmem:[#allocation11 + $0xc2c] sm:$0xff]
    %v4921 = vld [vmem:[#allocation11 + $0xc34] sm:$0xff]
    %v4922 = vld [vmem:[#allocation11 + $0xc3c] sm:$0xf]
    %v4923 = vld [vmem:[#allocation11 + $0xc40] sm:$0xff]
    %v4924 = vld [vmem:[#allocation11 + $0xc48] sm:$0xff]
    %v4925 = vld [vmem:[#allocation11 + $0xc50] sm:$0xff]
    %v4926 = vld [vmem:[#allocation11 + $0xc58] sm:$0xf]
    %v4927 = vld [vmem:[#allocation11 + $0xc5c] sm:$0xff]
    %v4928 = vld [vmem:[#allocation11 + $0xc64] sm:$0xff]
    %v4929 = vld [vmem:[#allocation11 + $0xc6c] sm:$0xff]
    %v4930 = vld [vmem:[#allocation11 + $0xc74] sm:$0xf]
    %v4931 = vld [vmem:[#allocation11 + $0xc78] sm:$0xff]
    %v4932 = vld [vmem:[#allocation11 + $0xc80] sm:$0xff]
    %v4933 = vld [vmem:[#allocation11 + $0xc88] sm:$0xff]
    %v4934 = vld [vmem:[#allocation11 + $0xc90] sm:$0xf]
    %v4935 = vld [vmem:[#allocation11 + $0xc94] sm:$0xff]
    %v4936 = vld [vmem:[#allocation11 + $0xc9c] sm:$0xff]
    %v4937 = vld [vmem:[#allocation11 + $0xca4] sm:$0xff]
    %v4938 = vld [vmem:[#allocation11 + $0xcac] sm:$0xf]
    %v4939 = vld [vmem:[#allocation11 + $0xcb0] sm:$0xff]
    %v4940 = vld [vmem:[#allocation11 + $0xcb8] sm:$0xff]
    %v4941 = vld [vmem:[#allocation11 + $0xcc0] sm:$0xff]
    %v4942 = vld [vmem:[#allocation11 + $0xcc8] sm:$0xf]
    %v4943 = vld [vmem:[#allocation11 + $0xccc] sm:$0xff]
    %v4944 = vld [vmem:[#allocation11 + $0xcd4] sm:$0xff]
    %v4945 = vld [vmem:[#allocation11 + $0xcdc] sm:$0xff]
    %v4946 = vld [vmem:[#allocation11 + $0xce4] sm:$0xf]
    %v4947 = vld [vmem:[#allocation11 + $0xce8] sm:$0xff]
    %v4948 = vld [vmem:[#allocation11 + $0xcf0] sm:$0xff]
    %v4949 = vld [vmem:[#allocation11 + $0xcf8] sm:$0xff]
    %v4950 = vld [vmem:[#allocation11 + $0xd00] sm:$0xf]
    %v4951 = vld [vmem:[#allocation11 + $0xd04] sm:$0xff]
    %v4952 = vld [vmem:[#allocation11 + $0xd0c] sm:$0xff]
    %v4953 = vld [vmem:[#allocation11 + $0xd14] sm:$0xff]
    %v4954 = vld [vmem:[#allocation11 + $0xd1c] sm:$0xf]
    %v4955 = vld [vmem:[#allocation11 + $0xd20] sm:$0xff]
    %v4956 = vld [vmem:[#allocation11 + $0xd28] sm:$0xff]
    %v4957 = vld [vmem:[#allocation11 + $0xd30] sm:$0xff]
    %v4958 = vld [vmem:[#allocation11 + $0xd38] sm:$0xf]
    %v4959 = vld [vmem:[#allocation11 + $0xd3c] sm:$0xff]
    %v4960 = vld [vmem:[#allocation11 + $0xd44] sm:$0xff]
    %v4961 = vld [vmem:[#allocation11 + $0xd4c] sm:$0xff]
    %v4962 = vld [vmem:[#allocation11 + $0xd54] sm:$0xf]
    %v4963 = vld [vmem:[#allocation11 + $0xd58] sm:$0xff]
    %v4964 = vld [vmem:[#allocation11 + $0xd60] sm:$0xff]
    %v4965 = vld [vmem:[#allocation11 + $0xd68] sm:$0xff]
    %v4966 = vld [vmem:[#allocation11 + $0xd70] sm:$0xf]
    %v4967 = vld [vmem:[#allocation11 + $0xd74] sm:$0xff]
    %v4968 = vld [vmem:[#allocation11 + $0xd7c] sm:$0xff]
    %v4969 = vld [vmem:[#allocation11 + $0xd84] sm:$0xff]
    %v4970 = vld [vmem:[#allocation11 + $0xd8c] sm:$0xf]
    %v4971 = vld [vmem:[#allocation11 + $0xd90] sm:$0xff]
    %v4972 = vld [vmem:[#allocation11 + $0xd98] sm:$0xff]
    %v4973 = vld [vmem:[#allocation11 + $0xda0] sm:$0xff]
    %v4974 = vld [vmem:[#allocation11 + $0xda8] sm:$0xf]
    %v4975 = vld [vmem:[#allocation11 + $0xdac] sm:$0xff]
    %v4976 = vld [vmem:[#allocation11 + $0xdb4] sm:$0xff]
    %v4977 = vld [vmem:[#allocation11 + $0xdbc] sm:$0xff]
    %v4978 = vld [vmem:[#allocation11 + $0xdc4] sm:$0xf]
    %v4979 = vld [vmem:[#allocation11 + $0xdc8] sm:$0xff]
    %v4980 = vld [vmem:[#allocation11 + $0xdd0] sm:$0xff]
    %v4981 = vld [vmem:[#allocation11 + $0xdd8] sm:$0xff]
    %v4982 = vld [vmem:[#allocation11 + $0xde0] sm:$0xf]
    %v4983 = vld [vmem:[#allocation11 + $0xde4] sm:$0xff]
    %v4984 = vld [vmem:[#allocation11 + $0xdec] sm:$0xff]
    %v4985 = vld [vmem:[#allocation11 + $0xdf4] sm:$0xff]
    %v4986 = vld [vmem:[#allocation11 + $0xdfc] sm:$0xf]
    %v5499 = vunpack.c.l.b16 %v4475
    %v5500 = vunpack.c.h.b16 %v4475
    %v5501 = vunpack.c.l.b16 %v4476
    %v5502 = vunpack.c.h.b16 %v4476
    %v5503 = vunpack.c.l.b16 %v4477
    %v5504 = vunpack.c.h.b16 %v4477
    %v5505 = vunpack.c.l.b16 %v4478
    %v5506 = vunpack.c.l.b16 %v4479
    %v5507 = vunpack.c.h.b16 %v4479
    %v5508 = vunpack.c.l.b16 %v4480
    %v5509 = vunpack.c.h.b16 %v4480
    %v5510 = vunpack.c.l.b16 %v4481
    %v5511 = vunpack.c.h.b16 %v4481
    %v5512 = vunpack.c.l.b16 %v4482
    %v5513 = vunpack.c.l.b16 %v4483
    %v5514 = vunpack.c.h.b16 %v4483
    %v5515 = vunpack.c.l.b16 %v4484
    %v5516 = vunpack.c.h.b16 %v4484
    %v5517 = vunpack.c.l.b16 %v4485
    %v5518 = vunpack.c.h.b16 %v4485
    %v5519 = vunpack.c.l.b16 %v4486
    %v5520 = vunpack.c.l.b16 %v4487
    %v5521 = vunpack.c.h.b16 %v4487
    %v5522 = vunpack.c.l.b16 %v4488
    %v5523 = vunpack.c.h.b16 %v4488
    %v5524 = vunpack.c.l.b16 %v4489
    %v5525 = vunpack.c.h.b16 %v4489
    %v5526 = vunpack.c.l.b16 %v4490
    %v5527 = vunpack.c.l.b16 %v4491
    %v5528 = vunpack.c.h.b16 %v4491
    %v5529 = vunpack.c.l.b16 %v4492
    %v5530 = vunpack.c.h.b16 %v4492
    %v5531 = vunpack.c.l.b16 %v4493
    %v5532 = vunpack.c.h.b16 %v4493
    %v5533 = vunpack.c.l.b16 %v4494
    %v5534 = vunpack.c.l.b16 %v4495
    %v5535 = vunpack.c.h.b16 %v4495
    %v5536 = vunpack.c.l.b16 %v4496
    %v5537 = vunpack.c.h.b16 %v4496
    %v5538 = vunpack.c.l.b16 %v4497
    %v5539 = vunpack.c.h.b16 %v4497
    %v5540 = vunpack.c.l.b16 %v4498
    %v5541 = vunpack.c.l.b16 %v4499
    %v5542 = vunpack.c.h.b16 %v4499
    %v5543 = vunpack.c.l.b16 %v4500
    %v5544 = vunpack.c.h.b16 %v4500
    %v5545 = vunpack.c.l.b16 %v4501
    %v5546 = vunpack.c.h.b16 %v4501
    %v5547 = vunpack.c.l.b16 %v4502
    %v5548 = vunpack.c.l.b16 %v4503
    %v5549 = vunpack.c.h.b16 %v4503
    %v5550 = vunpack.c.l.b16 %v4504
    %v5551 = vunpack.c.h.b16 %v4504
    %v5552 = vunpack.c.l.b16 %v4505
    %v5553 = vunpack.c.h.b16 %v4505
    %v5554 = vunpack.c.l.b16 %v4506
    %v5555 = vunpack.c.l.b16 %v4507
    %v5556 = vunpack.c.h.b16 %v4507
    %v5557 = vunpack.c.l.b16 %v4508
    %v5558 = vunpack.c.h.b16 %v4508
    %v5559 = vunpack.c.l.b16 %v4509
    %v5560 = vunpack.c.h.b16 %v4509
    %v5561 = vunpack.c.l.b16 %v4510
    %v5562 = vunpack.c.l.b16 %v4511
    %v5563 = vunpack.c.h.b16 %v4511
    %v5564 = vunpack.c.l.b16 %v4512
    %v5565 = vunpack.c.h.b16 %v4512
    %v5566 = vunpack.c.l.b16 %v4513
    %v5567 = vunpack.c.h.b16 %v4513
    %v5568 = vunpack.c.l.b16 %v4514
    %v5569 = vunpack.c.l.b16 %v4515
    %v5570 = vunpack.c.h.b16 %v4515
    %v5571 = vunpack.c.l.b16 %v4516
    %v5572 = vunpack.c.h.b16 %v4516
    %v5573 = vunpack.c.l.b16 %v4517
    %v5574 = vunpack.c.h.b16 %v4517
    %v5575 = vunpack.c.l.b16 %v4518
    %v5576 = vunpack.c.l.b16 %v4519
    %v5577 = vunpack.c.h.b16 %v4519
    %v5578 = vunpack.c.l.b16 %v4520
    %v5579 = vunpack.c.h.b16 %v4520
    %v5580 = vunpack.c.l.b16 %v4521
    %v5581 = vunpack.c.h.b16 %v4521
    %v5582 = vunpack.c.l.b16 %v4522
    %v5583 = vunpack.c.l.b16 %v4523
    %v5584 = vunpack.c.h.b16 %v4523
    %v5585 = vunpack.c.l.b16 %v4524
    %v5586 = vunpack.c.h.b16 %v4524
    %v5587 = vunpack.c.l.b16 %v4525
    %v5588 = vunpack.c.h.b16 %v4525
    %v5589 = vunpack.c.l.b16 %v4526
    %v5590 = vunpack.c.l.b16 %v4527
    %v5591 = vunpack.c.h.b16 %v4527
    %v5592 = vunpack.c.l.b16 %v4528
    %v5593 = vunpack.c.h.b16 %v4528
    %v5594 = vunpack.c.l.b16 %v4529
    %v5595 = vunpack.c.h.b16 %v4529
    %v5596 = vunpack.c.l.b16 %v4530
    %v5597 = vunpack.c.l.b16 %v4531
    %v5598 = vunpack.c.h.b16 %v4531
    %v5599 = vunpack.c.l.b16 %v4532
    %v5600 = vunpack.c.h.b16 %v4532
    %v5601 = vunpack.c.l.b16 %v4533
    %v5602 = vunpack.c.h.b16 %v4533
    %v5603 = vunpack.c.l.b16 %v4534
    %v5604 = vunpack.c.l.b16 %v4535
    %v5605 = vunpack.c.h.b16 %v4535
    %v5606 = vunpack.c.l.b16 %v4536
    %v5607 = vunpack.c.h.b16 %v4536
    %v5608 = vunpack.c.l.b16 %v4537
    %v5609 = vunpack.c.h.b16 %v4537
    %v5610 = vunpack.c.l.b16 %v4538
    %v5611 = vunpack.c.l.b16 %v4539
    %v5612 = vunpack.c.h.b16 %v4539
    %v5613 = vunpack.c.l.b16 %v4540
    %v5614 = vunpack.c.h.b16 %v4540
    %v5615 = vunpack.c.l.b16 %v4541
    %v5616 = vunpack.c.h.b16 %v4541
    %v5617 = vunpack.c.l.b16 %v4542
    %v5618 = vunpack.c.l.b16 %v4543
    %v5619 = vunpack.c.h.b16 %v4543
    %v5620 = vunpack.c.l.b16 %v4544
    %v5621 = vunpack.c.h.b16 %v4544
    %v5622 = vunpack.c.l.b16 %v4545
    %v5623 = vunpack.c.h.b16 %v4545
    %v5624 = vunpack.c.l.b16 %v4546
    %v5625 = vunpack.c.l.b16 %v4547
    %v5626 = vunpack.c.h.b16 %v4547
    %v5627 = vunpack.c.l.b16 %v4548
    %v5628 = vunpack.c.h.b16 %v4548
    %v5629 = vunpack.c.l.b16 %v4549
    %v5630 = vunpack.c.h.b16 %v4549
    %v5631 = vunpack.c.l.b16 %v4550
    %v5632 = vunpack.c.l.b16 %v4551
    %v5633 = vunpack.c.h.b16 %v4551
    %v5634 = vunpack.c.l.b16 %v4552
    %v5635 = vunpack.c.h.b16 %v4552
    %v5636 = vunpack.c.l.b16 %v4553
    %v5637 = vunpack.c.h.b16 %v4553
    %v5638 = vunpack.c.l.b16 %v4554
    %v5639 = vunpack.c.l.b16 %v4555
    %v5640 = vunpack.c.h.b16 %v4555
    %v5641 = vunpack.c.l.b16 %v4556
    %v5642 = vunpack.c.h.b16 %v4556
    %v5643 = vunpack.c.l.b16 %v4557
    %v5644 = vunpack.c.h.b16 %v4557
    %v5645 = vunpack.c.l.b16 %v4558
    %v5646 = vunpack.c.l.b16 %v4559
    %v5647 = vunpack.c.h.b16 %v4559
    %v5648 = vunpack.c.l.b16 %v4560
    %v5649 = vunpack.c.h.b16 %v4560
    %v5650 = vunpack.c.l.b16 %v4561
    %v5651 = vunpack.c.h.b16 %v4561
    %v5652 = vunpack.c.l.b16 %v4562
    %v5653 = vunpack.c.l.b16 %v4563
    %v5654 = vunpack.c.h.b16 %v4563
    %v5655 = vunpack.c.l.b16 %v4564
    %v5656 = vunpack.c.h.b16 %v4564
    %v5657 = vunpack.c.l.b16 %v4565
    %v5658 = vunpack.c.h.b16 %v4565
    %v5659 = vunpack.c.l.b16 %v4566
    %v5660 = vunpack.c.l.b16 %v4567
    %v5661 = vunpack.c.h.b16 %v4567
    %v5662 = vunpack.c.l.b16 %v4568
    %v5663 = vunpack.c.h.b16 %v4568
    %v5664 = vunpack.c.l.b16 %v4569
    %v5665 = vunpack.c.h.b16 %v4569
    %v5666 = vunpack.c.l.b16 %v4570
    %v5667 = vunpack.c.l.b16 %v4571
    %v5668 = vunpack.c.h.b16 %v4571
    %v5669 = vunpack.c.l.b16 %v4572
    %v5670 = vunpack.c.h.b16 %v4572
    %v5671 = vunpack.c.l.b16 %v4573
    %v5672 = vunpack.c.h.b16 %v4573
    %v5673 = vunpack.c.l.b16 %v4574
    %v5674 = vunpack.c.l.b16 %v4575
    %v5675 = vunpack.c.h.b16 %v4575
    %v5676 = vunpack.c.l.b16 %v4576
    %v5677 = vunpack.c.h.b16 %v4576
    %v5678 = vunpack.c.l.b16 %v4577
    %v5679 = vunpack.c.h.b16 %v4577
    %v5680 = vunpack.c.l.b16 %v4578
    %v5681 = vunpack.c.l.b16 %v4579
    %v5682 = vunpack.c.h.b16 %v4579
    %v5683 = vunpack.c.l.b16 %v4580
    %v5684 = vunpack.c.h.b16 %v4580
    %v5685 = vunpack.c.l.b16 %v4581
    %v5686 = vunpack.c.h.b16 %v4581
    %v5687 = vunpack.c.l.b16 %v4582
    %v5688 = vunpack.c.l.b16 %v4583
    %v5689 = vunpack.c.h.b16 %v4583
    %v5690 = vunpack.c.l.b16 %v4584
    %v5691 = vunpack.c.h.b16 %v4584
    %v5692 = vunpack.c.l.b16 %v4585
    %v5693 = vunpack.c.h.b16 %v4585
    %v5694 = vunpack.c.l.b16 %v4586
    %v5695 = vunpack.c.l.b16 %v4587
    %v5696 = vunpack.c.h.b16 %v4587
    %v5697 = vunpack.c.l.b16 %v4588
    %v5698 = vunpack.c.h.b16 %v4588
    %v5699 = vunpack.c.l.b16 %v4589
    %v5700 = vunpack.c.h.b16 %v4589
    %v5701 = vunpack.c.l.b16 %v4590
    %v5702 = vunpack.c.l.b16 %v4591
    %v5703 = vunpack.c.h.b16 %v4591
    %v5704 = vunpack.c.l.b16 %v4592
    %v5705 = vunpack.c.h.b16 %v4592
    %v5706 = vunpack.c.l.b16 %v4593
    %v5707 = vunpack.c.h.b16 %v4593
    %v5708 = vunpack.c.l.b16 %v4594
    %v5709 = vunpack.c.l.b16 %v4595
    %v5710 = vunpack.c.h.b16 %v4595
    %v5711 = vunpack.c.l.b16 %v4596
    %v5712 = vunpack.c.h.b16 %v4596
    %v5713 = vunpack.c.l.b16 %v4597
    %v5714 = vunpack.c.h.b16 %v4597
    %v5715 = vunpack.c.l.b16 %v4598
    %v5716 = vunpack.c.l.b16 %v4599
    %v5717 = vunpack.c.h.b16 %v4599
    %v5718 = vunpack.c.l.b16 %v4600
    %v5719 = vunpack.c.h.b16 %v4600
    %v5720 = vunpack.c.l.b16 %v4601
    %v5721 = vunpack.c.h.b16 %v4601
    %v5722 = vunpack.c.l.b16 %v4602
    %v5723 = vunpack.c.l.b16 %v4603
    %v5724 = vunpack.c.h.b16 %v4603
    %v5725 = vunpack.c.l.b16 %v4604
    %v5726 = vunpack.c.h.b16 %v4604
    %v5727 = vunpack.c.l.b16 %v4605
    %v5728 = vunpack.c.h.b16 %v4605
    %v5729 = vunpack.c.l.b16 %v4606
    %v5730 = vunpack.c.l.b16 %v4607
    %v5731 = vunpack.c.h.b16 %v4607
    %v5732 = vunpack.c.l.b16 %v4608
    %v5733 = vunpack.c.h.b16 %v4608
    %v5734 = vunpack.c.l.b16 %v4609
    %v5735 = vunpack.c.h.b16 %v4609
    %v5736 = vunpack.c.l.b16 %v4610
    %v5737 = vunpack.c.l.b16 %v4611
    %v5738 = vunpack.c.h.b16 %v4611
    %v5739 = vunpack.c.l.b16 %v4612
    %v5740 = vunpack.c.h.b16 %v4612
    %v5741 = vunpack.c.l.b16 %v4613
    %v5742 = vunpack.c.h.b16 %v4613
    %v5743 = vunpack.c.l.b16 %v4614
    %v5744 = vunpack.c.l.b16 %v4615
    %v5745 = vunpack.c.h.b16 %v4615
    %v5746 = vunpack.c.l.b16 %v4616
    %v5747 = vunpack.c.h.b16 %v4616
    %v5748 = vunpack.c.l.b16 %v4617
    %v5749 = vunpack.c.h.b16 %v4617
    %v5750 = vunpack.c.l.b16 %v4618
    %v5751 = vunpack.c.l.b16 %v4619
    %v5752 = vunpack.c.h.b16 %v4619
    %v5753 = vunpack.c.l.b16 %v4620
    %v5754 = vunpack.c.h.b16 %v4620
    %v5755 = vunpack.c.l.b16 %v4621
    %v5756 = vunpack.c.h.b16 %v4621
    %v5757 = vunpack.c.l.b16 %v4622
    %v5758 = vunpack.c.l.b16 %v4623
    %v5759 = vunpack.c.h.b16 %v4623
    %v5760 = vunpack.c.l.b16 %v4624
    %v5761 = vunpack.c.h.b16 %v4624
    %v5762 = vunpack.c.l.b16 %v4625
    %v5763 = vunpack.c.h.b16 %v4625
    %v5764 = vunpack.c.l.b16 %v4626
    %v5765 = vunpack.c.l.b16 %v4627
    %v5766 = vunpack.c.h.b16 %v4627
    %v5767 = vunpack.c.l.b16 %v4628
    %v5768 = vunpack.c.h.b16 %v4628
    %v5769 = vunpack.c.l.b16 %v4629
    %v5770 = vunpack.c.h.b16 %v4629
    %v5771 = vunpack.c.l.b16 %v4630
    %v5772 = vunpack.c.l.b16 %v4631
    %v5773 = vunpack.c.h.b16 %v4631
    %v5774 = vunpack.c.l.b16 %v4632
    %v5775 = vunpack.c.h.b16 %v4632
    %v5776 = vunpack.c.l.b16 %v4633
    %v5777 = vunpack.c.h.b16 %v4633
    %v5778 = vunpack.c.l.b16 %v4634
    %v5779 = vunpack.c.l.b16 %v4635
    %v5780 = vunpack.c.h.b16 %v4635
    %v5781 = vunpack.c.l.b16 %v4636
    %v5782 = vunpack.c.h.b16 %v4636
    %v5783 = vunpack.c.l.b16 %v4637
    %v5784 = vunpack.c.h.b16 %v4637
    %v5785 = vunpack.c.l.b16 %v4638
    %v5786 = vunpack.c.l.b16 %v4639
    %v5787 = vunpack.c.h.b16 %v4639
    %v5788 = vunpack.c.l.b16 %v4640
    %v5789 = vunpack.c.h.b16 %v4640
    %v5790 = vunpack.c.l.b16 %v4641
    %v5791 = vunpack.c.h.b16 %v4641
    %v5792 = vunpack.c.l.b16 %v4642
    %v5793 = vunpack.c.l.b16 %v4643
    %v5794 = vunpack.c.h.b16 %v4643
    %v5795 = vunpack.c.l.b16 %v4644
    %v5796 = vunpack.c.h.b16 %v4644
    %v5797 = vunpack.c.l.b16 %v4645
    %v5798 = vunpack.c.h.b16 %v4645
    %v5799 = vunpack.c.l.b16 %v4646
    %v5800 = vunpack.c.l.b16 %v4647
    %v5801 = vunpack.c.h.b16 %v4647
    %v5802 = vunpack.c.l.b16 %v4648
    %v5803 = vunpack.c.h.b16 %v4648
    %v5804 = vunpack.c.l.b16 %v4649
    %v5805 = vunpack.c.h.b16 %v4649
    %v5806 = vunpack.c.l.b16 %v4650
    %v5807 = vunpack.c.l.b16 %v4651
    %v5808 = vunpack.c.h.b16 %v4651
    %v5809 = vunpack.c.l.b16 %v4652
    %v5810 = vunpack.c.h.b16 %v4652
    %v5811 = vunpack.c.l.b16 %v4653
    %v5812 = vunpack.c.h.b16 %v4653
    %v5813 = vunpack.c.l.b16 %v4654
    %v5814 = vunpack.c.l.b16 %v4655
    %v5815 = vunpack.c.h.b16 %v4655
    %v5816 = vunpack.c.l.b16 %v4656
    %v5817 = vunpack.c.h.b16 %v4656
    %v5818 = vunpack.c.l.b16 %v4657
    %v5819 = vunpack.c.h.b16 %v4657
    %v5820 = vunpack.c.l.b16 %v4658
    %v5821 = vunpack.c.l.b16 %v4659
    %v5822 = vunpack.c.h.b16 %v4659
    %v5823 = vunpack.c.l.b16 %v4660
    %v5824 = vunpack.c.h.b16 %v4660
    %v5825 = vunpack.c.l.b16 %v4661
    %v5826 = vunpack.c.h.b16 %v4661
    %v5827 = vunpack.c.l.b16 %v4662
    %v5828 = vunpack.c.l.b16 %v4663
    %v5829 = vunpack.c.h.b16 %v4663
    %v5830 = vunpack.c.l.b16 %v4664
    %v5831 = vunpack.c.h.b16 %v4664
    %v5832 = vunpack.c.l.b16 %v4665
    %v5833 = vunpack.c.h.b16 %v4665
    %v5834 = vunpack.c.l.b16 %v4666
    %v5835 = vunpack.c.l.b16 %v4667
    %v5836 = vunpack.c.h.b16 %v4667
    %v5837 = vunpack.c.l.b16 %v4668
    %v5838 = vunpack.c.h.b16 %v4668
    %v5839 = vunpack.c.l.b16 %v4669
    %v5840 = vunpack.c.h.b16 %v4669
    %v5841 = vunpack.c.l.b16 %v4670
    %v5842 = vunpack.c.l.b16 %v4671
    %v5843 = vunpack.c.h.b16 %v4671
    %v5844 = vunpack.c.l.b16 %v4672
    %v5845 = vunpack.c.h.b16 %v4672
    %v5846 = vunpack.c.l.b16 %v4673
    %v5847 = vunpack.c.h.b16 %v4673
    %v5848 = vunpack.c.l.b16 %v4674
    %v5849 = vunpack.c.l.b16 %v4675
    %v5850 = vunpack.c.h.b16 %v4675
    %v5851 = vunpack.c.l.b16 %v4676
    %v5852 = vunpack.c.h.b16 %v4676
    %v5853 = vunpack.c.l.b16 %v4677
    %v5854 = vunpack.c.h.b16 %v4677
    %v5855 = vunpack.c.l.b16 %v4678
    %v5856 = vunpack.c.l.b16 %v4679
    %v5857 = vunpack.c.h.b16 %v4679
    %v5858 = vunpack.c.l.b16 %v4680
    %v5859 = vunpack.c.h.b16 %v4680
    %v5860 = vunpack.c.l.b16 %v4681
    %v5861 = vunpack.c.h.b16 %v4681
    %v5862 = vunpack.c.l.b16 %v4682
    %v5863 = vunpack.c.l.b16 %v4683
    %v5864 = vunpack.c.h.b16 %v4683
    %v5865 = vunpack.c.l.b16 %v4684
    %v5866 = vunpack.c.h.b16 %v4684
    %v5867 = vunpack.c.l.b16 %v4685
    %v5868 = vunpack.c.h.b16 %v4685
    %v5869 = vunpack.c.l.b16 %v4686
    %v5870 = vunpack.c.l.b16 %v4687
    %v5871 = vunpack.c.h.b16 %v4687
    %v5872 = vunpack.c.l.b16 %v4688
    %v5873 = vunpack.c.h.b16 %v4688
    %v5874 = vunpack.c.l.b16 %v4689
    %v5875 = vunpack.c.h.b16 %v4689
    %v5876 = vunpack.c.l.b16 %v4690
    %v5877 = vunpack.c.l.b16 %v4691
    %v5878 = vunpack.c.h.b16 %v4691
    %v5879 = vunpack.c.l.b16 %v4692
    %v5880 = vunpack.c.h.b16 %v4692
    %v5881 = vunpack.c.l.b16 %v4693
    %v5882 = vunpack.c.h.b16 %v4693
    %v5883 = vunpack.c.l.b16 %v4694
    %v5884 = vunpack.c.l.b16 %v4695
    %v5885 = vunpack.c.h.b16 %v4695
    %v5886 = vunpack.c.l.b16 %v4696
    %v5887 = vunpack.c.h.b16 %v4696
    %v5888 = vunpack.c.l.b16 %v4697
    %v5889 = vunpack.c.h.b16 %v4697
    %v5890 = vunpack.c.l.b16 %v4698
    %v5891 = vunpack.c.l.b16 %v4699
    %v5892 = vunpack.c.h.b16 %v4699
    %v5893 = vunpack.c.l.b16 %v4700
    %v5894 = vunpack.c.h.b16 %v4700
    %v5895 = vunpack.c.l.b16 %v4701
    %v5896 = vunpack.c.h.b16 %v4701
    %v5897 = vunpack.c.l.b16 %v4702
    %v5898 = vunpack.c.l.b16 %v4703
    %v5899 = vunpack.c.h.b16 %v4703
    %v5900 = vunpack.c.l.b16 %v4704
    %v5901 = vunpack.c.h.b16 %v4704
    %v5902 = vunpack.c.l.b16 %v4705
    %v5903 = vunpack.c.h.b16 %v4705
    %v5904 = vunpack.c.l.b16 %v4706
    %v5905 = vunpack.c.l.b16 %v4707
    %v5906 = vunpack.c.h.b16 %v4707
    %v5907 = vunpack.c.l.b16 %v4708
    %v5908 = vunpack.c.h.b16 %v4708
    %v5909 = vunpack.c.l.b16 %v4709
    %v5910 = vunpack.c.h.b16 %v4709
    %v5911 = vunpack.c.l.b16 %v4710
    %v5912 = vunpack.c.l.b16 %v4711
    %v5913 = vunpack.c.h.b16 %v4711
    %v5914 = vunpack.c.l.b16 %v4712
    %v5915 = vunpack.c.h.b16 %v4712
    %v5916 = vunpack.c.l.b16 %v4713
    %v5917 = vunpack.c.h.b16 %v4713
    %v5918 = vunpack.c.l.b16 %v4714
    %v5919 = vunpack.c.l.b16 %v4715
    %v5920 = vunpack.c.h.b16 %v4715
    %v5921 = vunpack.c.l.b16 %v4716
    %v5922 = vunpack.c.h.b16 %v4716
    %v5923 = vunpack.c.l.b16 %v4717
    %v5924 = vunpack.c.h.b16 %v4717
    %v5925 = vunpack.c.l.b16 %v4718
    %v5926 = vunpack.c.l.b16 %v4719
    %v5927 = vunpack.c.h.b16 %v4719
    %v5928 = vunpack.c.l.b16 %v4720
    %v5929 = vunpack.c.h.b16 %v4720
    %v5930 = vunpack.c.l.b16 %v4721
    %v5931 = vunpack.c.h.b16 %v4721
    %v5932 = vunpack.c.l.b16 %v4722
    %v5933 = vunpack.c.l.b16 %v4723
    %v5934 = vunpack.c.h.b16 %v4723
    %v5935 = vunpack.c.l.b16 %v4724
    %v5936 = vunpack.c.h.b16 %v4724
    %v5937 = vunpack.c.l.b16 %v4725
    %v5938 = vunpack.c.h.b16 %v4725
    %v5939 = vunpack.c.l.b16 %v4726
    %v5940 = vunpack.c.l.b16 %v4727
    %v5941 = vunpack.c.h.b16 %v4727
    %v5942 = vunpack.c.l.b16 %v4728
    %v5943 = vunpack.c.h.b16 %v4728
    %v5944 = vunpack.c.l.b16 %v4729
    %v5945 = vunpack.c.h.b16 %v4729
    %v5946 = vunpack.c.l.b16 %v4730
    %v5947 = vunpack.c.l.b16 %v4731
    %v5948 = vunpack.c.h.b16 %v4731
    %v5949 = vunpack.c.l.b16 %v4732
    %v5950 = vunpack.c.h.b16 %v4732
    %v5951 = vunpack.c.l.b16 %v4733
    %v5952 = vunpack.c.h.b16 %v4733
    %v5953 = vunpack.c.l.b16 %v4734
    %v5954 = vunpack.c.l.b16 %v4735
    %v5955 = vunpack.c.h.b16 %v4735
    %v5956 = vunpack.c.l.b16 %v4736
    %v5957 = vunpack.c.h.b16 %v4736
    %v5958 = vunpack.c.l.b16 %v4737
    %v5959 = vunpack.c.h.b16 %v4737
    %v5960 = vunpack.c.l.b16 %v4738
    %v5961 = vunpack.c.l.b16 %v4739
    %v5962 = vunpack.c.h.b16 %v4739
    %v5963 = vunpack.c.l.b16 %v4740
    %v5964 = vunpack.c.h.b16 %v4740
    %v5965 = vunpack.c.l.b16 %v4741
    %v5966 = vunpack.c.h.b16 %v4741
    %v5967 = vunpack.c.l.b16 %v4742
    %v5968 = vunpack.c.l.b16 %v4743
    %v5969 = vunpack.c.h.b16 %v4743
    %v5970 = vunpack.c.l.b16 %v4744
    %v5971 = vunpack.c.h.b16 %v4744
    %v5972 = vunpack.c.l.b16 %v4745
    %v5973 = vunpack.c.h.b16 %v4745
    %v5974 = vunpack.c.l.b16 %v4746
    %v5975 = vunpack.c.l.b16 %v4747
    %v5976 = vunpack.c.h.b16 %v4747
    %v5977 = vunpack.c.l.b16 %v4748
    %v5978 = vunpack.c.h.b16 %v4748
    %v5979 = vunpack.c.l.b16 %v4749
    %v5980 = vunpack.c.h.b16 %v4749
    %v5981 = vunpack.c.l.b16 %v4750
    %v5982 = vunpack.c.l.b16 %v4751
    %v5983 = vunpack.c.h.b16 %v4751
    %v5984 = vunpack.c.l.b16 %v4752
    %v5985 = vunpack.c.h.b16 %v4752
    %v5986 = vunpack.c.l.b16 %v4753
    %v5987 = vunpack.c.h.b16 %v4753
    %v5988 = vunpack.c.l.b16 %v4754
    %v5989 = vunpack.c.l.b16 %v4755
    %v5990 = vunpack.c.h.b16 %v4755
    %v5991 = vunpack.c.l.b16 %v4756
    %v5992 = vunpack.c.h.b16 %v4756
    %v5993 = vunpack.c.l.b16 %v4757
    %v5994 = vunpack.c.h.b16 %v4757
    %v5995 = vunpack.c.l.b16 %v4758
    %v5996 = vunpack.c.l.b16 %v4759
    %v5997 = vunpack.c.h.b16 %v4759
    %v5998 = vunpack.c.l.b16 %v4760
    %v5999 = vunpack.c.h.b16 %v4760
    %v6000 = vunpack.c.l.b16 %v4761
    %v6001 = vunpack.c.h.b16 %v4761
    %v6002 = vunpack.c.l.b16 %v4762
    %v6003 = vunpack.c.l.b16 %v4763
    %v6004 = vunpack.c.h.b16 %v4763
    %v6005 = vunpack.c.l.b16 %v4764
    %v6006 = vunpack.c.h.b16 %v4764
    %v6007 = vunpack.c.l.b16 %v4765
    %v6008 = vunpack.c.h.b16 %v4765
    %v6009 = vunpack.c.l.b16 %v4766
    %v6010 = vunpack.c.l.b16 %v4767
    %v6011 = vunpack.c.h.b16 %v4767
    %v6012 = vunpack.c.l.b16 %v4768
    %v6013 = vunpack.c.h.b16 %v4768
    %v6014 = vunpack.c.l.b16 %v4769
    %v6015 = vunpack.c.h.b16 %v4769
    %v6016 = vunpack.c.l.b16 %v4770
    %v6017 = vunpack.c.l.b16 %v4771
    %v6018 = vunpack.c.h.b16 %v4771
    %v6019 = vunpack.c.l.b16 %v4772
    %v6020 = vunpack.c.h.b16 %v4772
    %v6021 = vunpack.c.l.b16 %v4773
    %v6022 = vunpack.c.h.b16 %v4773
    %v6023 = vunpack.c.l.b16 %v4774
    %v6024 = vunpack.c.l.b16 %v4775
    %v6025 = vunpack.c.h.b16 %v4775
    %v6026 = vunpack.c.l.b16 %v4776
    %v6027 = vunpack.c.h.b16 %v4776
    %v6028 = vunpack.c.l.b16 %v4777
    %v6029 = vunpack.c.h.b16 %v4777
    %v6030 = vunpack.c.l.b16 %v4778
    %v6031 = vunpack.c.l.b16 %v4779
    %v6032 = vunpack.c.h.b16 %v4779
    %v6033 = vunpack.c.l.b16 %v4780
    %v6034 = vunpack.c.h.b16 %v4780
    %v6035 = vunpack.c.l.b16 %v4781
    %v6036 = vunpack.c.h.b16 %v4781
    %v6037 = vunpack.c.l.b16 %v4782
    %v6038 = vunpack.c.l.b16 %v4783
    %v6039 = vunpack.c.h.b16 %v4783
    %v6040 = vunpack.c.l.b16 %v4784
    %v6041 = vunpack.c.h.b16 %v4784
    %v6042 = vunpack.c.l.b16 %v4785
    %v6043 = vunpack.c.h.b16 %v4785
    %v6044 = vunpack.c.l.b16 %v4786
    %v6045 = vunpack.c.l.b16 %v4787
    %v6046 = vunpack.c.h.b16 %v4787
    %v6047 = vunpack.c.l.b16 %v4788
    %v6048 = vunpack.c.h.b16 %v4788
    %v6049 = vunpack.c.l.b16 %v4789
    %v6050 = vunpack.c.h.b16 %v4789
    %v6051 = vunpack.c.l.b16 %v4790
    %v6052 = vunpack.c.l.b16 %v4791
    %v6053 = vunpack.c.h.b16 %v4791
    %v6054 = vunpack.c.l.b16 %v4792
    %v6055 = vunpack.c.h.b16 %v4792
    %v6056 = vunpack.c.l.b16 %v4793
    %v6057 = vunpack.c.h.b16 %v4793
    %v6058 = vunpack.c.l.b16 %v4794
    %v6059 = vunpack.c.l.b16 %v4795
    %v6060 = vunpack.c.h.b16 %v4795
    %v6061 = vunpack.c.l.b16 %v4796
    %v6062 = vunpack.c.h.b16 %v4796
    %v6063 = vunpack.c.l.b16 %v4797
    %v6064 = vunpack.c.h.b16 %v4797
    %v6065 = vunpack.c.l.b16 %v4798
    %v6066 = vunpack.c.l.b16 %v4799
    %v6067 = vunpack.c.h.b16 %v4799
    %v6068 = vunpack.c.l.b16 %v4800
    %v6069 = vunpack.c.h.b16 %v4800
    %v6070 = vunpack.c.l.b16 %v4801
    %v6071 = vunpack.c.h.b16 %v4801
    %v6072 = vunpack.c.l.b16 %v4802
    %v6073 = vunpack.c.l.b16 %v4803
    %v6074 = vunpack.c.h.b16 %v4803
    %v6075 = vunpack.c.l.b16 %v4804
    %v6076 = vunpack.c.h.b16 %v4804
    %v6077 = vunpack.c.l.b16 %v4805
    %v6078 = vunpack.c.h.b16 %v4805
    %v6079 = vunpack.c.l.b16 %v4806
    %v6080 = vunpack.c.l.b16 %v4807
    %v6081 = vunpack.c.h.b16 %v4807
    %v6082 = vunpack.c.l.b16 %v4808
    %v6083 = vunpack.c.h.b16 %v4808
    %v6084 = vunpack.c.l.b16 %v4809
    %v6085 = vunpack.c.h.b16 %v4809
    %v6086 = vunpack.c.l.b16 %v4810
    %v6087 = vunpack.c.l.b16 %v4811
    %v6088 = vunpack.c.h.b16 %v4811
    %v6089 = vunpack.c.l.b16 %v4812
    %v6090 = vunpack.c.h.b16 %v4812
    %v6091 = vunpack.c.l.b16 %v4813
    %v6092 = vunpack.c.h.b16 %v4813
    %v6093 = vunpack.c.l.b16 %v4814
    %v6094 = vunpack.c.l.b16 %v4815
    %v6095 = vunpack.c.h.b16 %v4815
    %v6096 = vunpack.c.l.b16 %v4816
    %v6097 = vunpack.c.h.b16 %v4816
    %v6098 = vunpack.c.l.b16 %v4817
    %v6099 = vunpack.c.h.b16 %v4817
    %v6100 = vunpack.c.l.b16 %v4818
    %v6101 = vunpack.c.l.b16 %v4819
    %v6102 = vunpack.c.h.b16 %v4819
    %v6103 = vunpack.c.l.b16 %v4820
    %v6104 = vunpack.c.h.b16 %v4820
    %v6105 = vunpack.c.l.b16 %v4821
    %v6106 = vunpack.c.h.b16 %v4821
    %v6107 = vunpack.c.l.b16 %v4822
    %v6108 = vunpack.c.l.b16 %v4823
    %v6109 = vunpack.c.h.b16 %v4823
    %v6110 = vunpack.c.l.b16 %v4824
    %v6111 = vunpack.c.h.b16 %v4824
    %v6112 = vunpack.c.l.b16 %v4825
    %v6113 = vunpack.c.h.b16 %v4825
    %v6114 = vunpack.c.l.b16 %v4826
    %v6115 = vunpack.c.l.b16 %v4827
    %v6116 = vunpack.c.h.b16 %v4827
    %v6117 = vunpack.c.l.b16 %v4828
    %v6118 = vunpack.c.h.b16 %v4828
    %v6119 = vunpack.c.l.b16 %v4829
    %v6120 = vunpack.c.h.b16 %v4829
    %v6121 = vunpack.c.l.b16 %v4830
    %v6122 = vunpack.c.l.b16 %v4831
    %v6123 = vunpack.c.h.b16 %v4831
    %v6124 = vunpack.c.l.b16 %v4832
    %v6125 = vunpack.c.h.b16 %v4832
    %v6126 = vunpack.c.l.b16 %v4833
    %v6127 = vunpack.c.h.b16 %v4833
    %v6128 = vunpack.c.l.b16 %v4834
    %v6129 = vunpack.c.l.b16 %v4835
    %v6130 = vunpack.c.h.b16 %v4835
    %v6131 = vunpack.c.l.b16 %v4836
    %v6132 = vunpack.c.h.b16 %v4836
    %v6133 = vunpack.c.l.b16 %v4837
    %v6134 = vunpack.c.h.b16 %v4837
    %v6135 = vunpack.c.l.b16 %v4838
    %v6136 = vunpack.c.l.b16 %v4839
    %v6137 = vunpack.c.h.b16 %v4839
    %v6138 = vunpack.c.l.b16 %v4840
    %v6139 = vunpack.c.h.b16 %v4840
    %v6140 = vunpack.c.l.b16 %v4841
    %v6141 = vunpack.c.h.b16 %v4841
    %v6142 = vunpack.c.l.b16 %v4842
    %v6143 = vunpack.c.l.b16 %v4843
    %v6144 = vunpack.c.h.b16 %v4843
    %v6145 = vunpack.c.l.b16 %v4844
    %v6146 = vunpack.c.h.b16 %v4844
    %v6147 = vunpack.c.l.b16 %v4845
    %v6148 = vunpack.c.h.b16 %v4845
    %v6149 = vunpack.c.l.b16 %v4846
    %v6150 = vunpack.c.l.b16 %v4847
    %v6151 = vunpack.c.h.b16 %v4847
    %v6152 = vunpack.c.l.b16 %v4848
    %v6153 = vunpack.c.h.b16 %v4848
    %v6154 = vunpack.c.l.b16 %v4849
    %v6155 = vunpack.c.h.b16 %v4849
    %v6156 = vunpack.c.l.b16 %v4850
    %v6157 = vunpack.c.l.b16 %v4851
    %v6158 = vunpack.c.h.b16 %v4851
    %v6159 = vunpack.c.l.b16 %v4852
    %v6160 = vunpack.c.h.b16 %v4852
    %v6161 = vunpack.c.l.b16 %v4853
    %v6162 = vunpack.c.h.b16 %v4853
    %v6163 = vunpack.c.l.b16 %v4854
    %v6164 = vunpack.c.l.b16 %v4855
    %v6165 = vunpack.c.h.b16 %v4855
    %v6166 = vunpack.c.l.b16 %v4856
    %v6167 = vunpack.c.h.b16 %v4856
    %v6168 = vunpack.c.l.b16 %v4857
    %v6169 = vunpack.c.h.b16 %v4857
    %v6170 = vunpack.c.l.b16 %v4858
    %v6171 = vunpack.c.l.b16 %v4859
    %v6172 = vunpack.c.h.b16 %v4859
    %v6173 = vunpack.c.l.b16 %v4860
    %v6174 = vunpack.c.h.b16 %v4860
    %v6175 = vunpack.c.l.b16 %v4861
    %v6176 = vunpack.c.h.b16 %v4861
    %v6177 = vunpack.c.l.b16 %v4862
    %v6178 = vunpack.c.l.b16 %v4863
    %v6179 = vunpack.c.h.b16 %v4863
    %v6180 = vunpack.c.l.b16 %v4864
    %v6181 = vunpack.c.h.b16 %v4864
    %v6182 = vunpack.c.l.b16 %v4865
    %v6183 = vunpack.c.h.b16 %v4865
    %v6184 = vunpack.c.l.b16 %v4866
    %v6185 = vunpack.c.l.b16 %v4867
    %v6186 = vunpack.c.h.b16 %v4867
    %v6187 = vunpack.c.l.b16 %v4868
    %v6188 = vunpack.c.h.b16 %v4868
    %v6189 = vunpack.c.l.b16 %v4869
    %v6190 = vunpack.c.h.b16 %v4869
    %v6191 = vunpack.c.l.b16 %v4870
    %v6192 = vunpack.c.l.b16 %v4871
    %v6193 = vunpack.c.h.b16 %v4871
    %v6194 = vunpack.c.l.b16 %v4872
    %v6195 = vunpack.c.h.b16 %v4872
    %v6196 = vunpack.c.l.b16 %v4873
    %v6197 = vunpack.c.h.b16 %v4873
    %v6198 = vunpack.c.l.b16 %v4874
    %v6199 = vunpack.c.l.b16 %v4875
    %v6200 = vunpack.c.h.b16 %v4875
    %v6201 = vunpack.c.l.b16 %v4876
    %v6202 = vunpack.c.h.b16 %v4876
    %v6203 = vunpack.c.l.b16 %v4877
    %v6204 = vunpack.c.h.b16 %v4877
    %v6205 = vunpack.c.l.b16 %v4878
    %v6206 = vunpack.c.l.b16 %v4879
    %v6207 = vunpack.c.h.b16 %v4879
    %v6208 = vunpack.c.l.b16 %v4880
    %v6209 = vunpack.c.h.b16 %v4880
    %v6210 = vunpack.c.l.b16 %v4881
    %v6211 = vunpack.c.h.b16 %v4881
    %v6212 = vunpack.c.l.b16 %v4882
    %v6213 = vunpack.c.l.b16 %v4883
    %v6214 = vunpack.c.h.b16 %v4883
    %v6215 = vunpack.c.l.b16 %v4884
    %v6216 = vunpack.c.h.b16 %v4884
    %v6217 = vunpack.c.l.b16 %v4885
    %v6218 = vunpack.c.h.b16 %v4885
    %v6219 = vunpack.c.l.b16 %v4886
    %v6220 = vunpack.c.l.b16 %v4887
    %v6221 = vunpack.c.h.b16 %v4887
    %v6222 = vunpack.c.l.b16 %v4888
    %v6223 = vunpack.c.h.b16 %v4888
    %v6224 = vunpack.c.l.b16 %v4889
    %v6225 = vunpack.c.h.b16 %v4889
    %v6226 = vunpack.c.l.b16 %v4890
    %v6227 = vunpack.c.l.b16 %v4891
    %v6228 = vunpack.c.h.b16 %v4891
    %v6229 = vunpack.c.l.b16 %v4892
    %v6230 = vunpack.c.h.b16 %v4892
    %v6231 = vunpack.c.l.b16 %v4893
    %v6232 = vunpack.c.h.b16 %v4893
    %v6233 = vunpack.c.l.b16 %v4894
    %v6234 = vunpack.c.l.b16 %v4895
    %v6235 = vunpack.c.h.b16 %v4895
    %v6236 = vunpack.c.l.b16 %v4896
    %v6237 = vunpack.c.h.b16 %v4896
    %v6238 = vunpack.c.l.b16 %v4897
    %v6239 = vunpack.c.h.b16 %v4897
    %v6240 = vunpack.c.l.b16 %v4898
    %v6241 = vunpack.c.l.b16 %v4899
    %v6242 = vunpack.c.h.b16 %v4899
    %v6243 = vunpack.c.l.b16 %v4900
    %v6244 = vunpack.c.h.b16 %v4900
    %v6245 = vunpack.c.l.b16 %v4901
    %v6246 = vunpack.c.h.b16 %v4901
    %v6247 = vunpack.c.l.b16 %v4902
    %v6248 = vunpack.c.l.b16 %v4903
    %v6249 = vunpack.c.h.b16 %v4903
    %v6250 = vunpack.c.l.b16 %v4904
    %v6251 = vunpack.c.h.b16 %v4904
    %v6252 = vunpack.c.l.b16 %v4905
    %v6253 = vunpack.c.h.b16 %v4905
    %v6254 = vunpack.c.l.b16 %v4906
    %v6255 = vunpack.c.l.b16 %v4907
    %v6256 = vunpack.c.h.b16 %v4907
    %v6257 = vunpack.c.l.b16 %v4908
    %v6258 = vunpack.c.h.b16 %v4908
    %v6259 = vunpack.c.l.b16 %v4909
    %v6260 = vunpack.c.h.b16 %v4909
    %v6261 = vunpack.c.l.b16 %v4910
    %v6262 = vunpack.c.l.b16 %v4911
    %v6263 = vunpack.c.h.b16 %v4911
    %v6264 = vunpack.c.l.b16 %v4912
    %v6265 = vunpack.c.h.b16 %v4912
    %v6266 = vunpack.c.l.b16 %v4913
    %v6267 = vunpack.c.h.b16 %v4913
    %v6268 = vunpack.c.l.b16 %v4914
    %v6269 = vunpack.c.l.b16 %v4915
    %v6270 = vunpack.c.h.b16 %v4915
    %v6271 = vunpack.c.l.b16 %v4916
    %v6272 = vunpack.c.h.b16 %v4916
    %v6273 = vunpack.c.l.b16 %v4917
    %v6274 = vunpack.c.h.b16 %v4917
    %v6275 = vunpack.c.l.b16 %v4918
    %v6276 = vunpack.c.l.b16 %v4919
    %v6277 = vunpack.c.h.b16 %v4919
    %v6278 = vunpack.c.l.b16 %v4920
    %v6279 = vunpack.c.h.b16 %v4920
    %v6280 = vunpack.c.l.b16 %v4921
    %v6281 = vunpack.c.h.b16 %v4921
    %v6282 = vunpack.c.l.b16 %v4922
    %v6283 = vunpack.c.l.b16 %v4923
    %v6284 = vunpack.c.h.b16 %v4923
    %v6285 = vunpack.c.l.b16 %v4924
    %v6286 = vunpack.c.h.b16 %v4924
    %v6287 = vunpack.c.l.b16 %v4925
    %v6288 = vunpack.c.h.b16 %v4925
    %v6289 = vunpack.c.l.b16 %v4926
    %v6290 = vunpack.c.l.b16 %v4927
    %v6291 = vunpack.c.h.b16 %v4927
    %v6292 = vunpack.c.l.b16 %v4928
    %v6293 = vunpack.c.h.b16 %v4928
    %v6294 = vunpack.c.l.b16 %v4929
    %v6295 = vunpack.c.h.b16 %v4929
    %v6296 = vunpack.c.l.b16 %v4930
    %v6297 = vunpack.c.l.b16 %v4931
    %v6298 = vunpack.c.h.b16 %v4931
    %v6299 = vunpack.c.l.b16 %v4932
    %v6300 = vunpack.c.h.b16 %v4932
    %v6301 = vunpack.c.l.b16 %v4933
    %v6302 = vunpack.c.h.b16 %v4933
    %v6303 = vunpack.c.l.b16 %v4934
    %v6304 = vunpack.c.l.b16 %v4935
    %v6305 = vunpack.c.h.b16 %v4935
    %v6306 = vunpack.c.l.b16 %v4936
    %v6307 = vunpack.c.h.b16 %v4936
    %v6308 = vunpack.c.l.b16 %v4937
    %v6309 = vunpack.c.h.b16 %v4937
    %v6310 = vunpack.c.l.b16 %v4938
    %v6311 = vunpack.c.l.b16 %v4939
    %v6312 = vunpack.c.h.b16 %v4939
    %v6313 = vunpack.c.l.b16 %v4940
    %v6314 = vunpack.c.h.b16 %v4940
    %v6315 = vunpack.c.l.b16 %v4941
    %v6316 = vunpack.c.h.b16 %v4941
    %v6317 = vunpack.c.l.b16 %v4942
    %v6318 = vunpack.c.l.b16 %v4943
    %v6319 = vunpack.c.h.b16 %v4943
    %v6320 = vunpack.c.l.b16 %v4944
    %v6321 = vunpack.c.h.b16 %v4944
    %v6322 = vunpack.c.l.b16 %v4945
    %v6323 = vunpack.c.h.b16 %v4945
    %v6324 = vunpack.c.l.b16 %v4946
    %v6325 = vunpack.c.l.b16 %v4947
    %v6326 = vunpack.c.h.b16 %v4947
    %v6327 = vunpack.c.l.b16 %v4948
    %v6328 = vunpack.c.h.b16 %v4948
    %v6329 = vunpack.c.l.b16 %v4949
    %v6330 = vunpack.c.h.b16 %v4949
    %v6331 = vunpack.c.l.b16 %v4950
    %v6332 = vunpack.c.l.b16 %v4951
    %v6333 = vunpack.c.h.b16 %v4951
    %v6334 = vunpack.c.l.b16 %v4952
    %v6335 = vunpack.c.h.b16 %v4952
    %v6336 = vunpack.c.l.b16 %v4953
    %v6337 = vunpack.c.h.b16 %v4953
    %v6338 = vunpack.c.l.b16 %v4954
    %v6339 = vunpack.c.l.b16 %v4955
    %v6340 = vunpack.c.h.b16 %v4955
    %v6341 = vunpack.c.l.b16 %v4956
    %v6342 = vunpack.c.h.b16 %v4956
    %v6343 = vunpack.c.l.b16 %v4957
    %v6344 = vunpack.c.h.b16 %v4957
    %v6345 = vunpack.c.l.b16 %v4958
    %v6346 = vunpack.c.l.b16 %v4959
    %v6347 = vunpack.c.h.b16 %v4959
    %v6348 = vunpack.c.l.b16 %v4960
    %v6349 = vunpack.c.h.b16 %v4960
    %v6350 = vunpack.c.l.b16 %v4961
    %v6351 = vunpack.c.h.b16 %v4961
    %v6352 = vunpack.c.l.b16 %v4962
    %v6353 = vunpack.c.l.b16 %v4963
    %v6354 = vunpack.c.h.b16 %v4963
    %v6355 = vunpack.c.l.b16 %v4964
    %v6356 = vunpack.c.h.b16 %v4964
    %v6357 = vunpack.c.l.b16 %v4965
    %v6358 = vunpack.c.h.b16 %v4965
    %v6359 = vunpack.c.l.b16 %v4966
    %v6360 = vunpack.c.l.b16 %v4967
    %v6361 = vunpack.c.h.b16 %v4967
    %v6362 = vunpack.c.l.b16 %v4968
    %v6363 = vunpack.c.h.b16 %v4968
    %v6364 = vunpack.c.l.b16 %v4969
    %v6365 = vunpack.c.h.b16 %v4969
    %v6366 = vunpack.c.l.b16 %v4970
    %v6367 = vunpack.c.l.b16 %v4971
    %v6368 = vunpack.c.h.b16 %v4971
    %v6369 = vunpack.c.l.b16 %v4972
    %v6370 = vunpack.c.h.b16 %v4972
    %v6371 = vunpack.c.l.b16 %v4973
    %v6372 = vunpack.c.h.b16 %v4973
    %v6373 = vunpack.c.l.b16 %v4974
    %v6374 = vunpack.c.l.b16 %v4975
    %v6375 = vunpack.c.h.b16 %v4975
    %v6376 = vunpack.c.l.b16 %v4976
    %v6377 = vunpack.c.h.b16 %v4976
    %v6378 = vunpack.c.l.b16 %v4977
    %v6379 = vunpack.c.h.b16 %v4977
    %v6380 = vunpack.c.l.b16 %v4978
    %v6381 = vunpack.c.l.b16 %v4979
    %v6382 = vunpack.c.h.b16 %v4979
    %v6383 = vunpack.c.l.b16 %v4980
    %v6384 = vunpack.c.h.b16 %v4980
    %v6385 = vunpack.c.l.b16 %v4981
    %v6386 = vunpack.c.h.b16 %v4981
    %v6387 = vunpack.c.l.b16 %v4982
    %v6388 = vunpack.c.l.b16 %v4983
    %v6389 = vunpack.c.h.b16 %v4983
    %v6390 = vunpack.c.l.b16 %v4984
    %v6391 = vunpack.c.h.b16 %v4984
    %v6392 = vunpack.c.l.b16 %v4985
    %v6393 = vunpack.c.h.b16 %v4985
    %v6394 = vunpack.c.l.b16 %v4986
    %v6395 = vpack.c.b16 %v5506, %v5499
    %v6396 = vpack.c.b16 %v5507, %v5500
    %v6397 = vpack.c.b16 %v5508, %v5501
    %v6398 = vpack.c.b16 %v5509, %v5502
    %v6399 = vpack.c.b16 %v5510, %v5503
    %v6400 = vpack.c.b16 %v5511, %v5504
    %v6401 = vpack.c.b16 %v5512, %v5505
    %v6402 = vpack.c.b16 %v5520, %v5513
    %v6403 = vpack.c.b16 %v5521, %v5514
    %v6404 = vpack.c.b16 %v5522, %v5515
    %v6405 = vpack.c.b16 %v5523, %v5516
    %v6406 = vpack.c.b16 %v5524, %v5517
    %v6407 = vpack.c.b16 %v5525, %v5518
    %v6408 = vpack.c.b16 %v5526, %v5519
    %v6409 = vpack.c.b16 %v5534, %v5527
    %v6410 = vpack.c.b16 %v5535, %v5528
    %v6411 = vpack.c.b16 %v5536, %v5529
    %v6412 = vpack.c.b16 %v5537, %v5530
    %v6413 = vpack.c.b16 %v5538, %v5531
    %v6414 = vpack.c.b16 %v5539, %v5532
    %v6415 = vpack.c.b16 %v5540, %v5533
    %v6416 = vpack.c.b16 %v5548, %v5541
    %v6417 = vpack.c.b16 %v5549, %v5542
    %v6418 = vpack.c.b16 %v5550, %v5543
    %v6419 = vpack.c.b16 %v5551, %v5544
    %v6420 = vpack.c.b16 %v5552, %v5545
    %v6421 = vpack.c.b16 %v5553, %v5546
    %v6422 = vpack.c.b16 %v5554, %v5547
    %v6423 = vpack.c.b16 %v5562, %v5555
    %v6424 = vpack.c.b16 %v5563, %v5556
    %v6425 = vpack.c.b16 %v5564, %v5557
    %v6426 = vpack.c.b16 %v5565, %v5558
    %v6427 = vpack.c.b16 %v5566, %v5559
    %v6428 = vpack.c.b16 %v5567, %v5560
    %v6429 = vpack.c.b16 %v5568, %v5561
    %v6430 = vpack.c.b16 %v5576, %v5569
    %v6431 = vpack.c.b16 %v5577, %v5570
    %v6432 = vpack.c.b16 %v5578, %v5571
    %v6433 = vpack.c.b16 %v5579, %v5572
    %v6434 = vpack.c.b16 %v5580, %v5573
    %v6435 = vpack.c.b16 %v5581, %v5574
    %v6436 = vpack.c.b16 %v5582, %v5575
    %v6437 = vpack.c.b16 %v5590, %v5583
    %v6438 = vpack.c.b16 %v5591, %v5584
    %v6439 = vpack.c.b16 %v5592, %v5585
    %v6440 = vpack.c.b16 %v5593, %v5586
    %v6441 = vpack.c.b16 %v5594, %v5587
    %v6442 = vpack.c.b16 %v5595, %v5588
    %v6443 = vpack.c.b16 %v5596, %v5589
    %v6444 = vpack.c.b16 %v5604, %v5597
    %v6445 = vpack.c.b16 %v5605, %v5598
    %v6446 = vpack.c.b16 %v5606, %v5599
    %v6447 = vpack.c.b16 %v5607, %v5600
    %v6448 = vpack.c.b16 %v5608, %v5601
    %v6449 = vpack.c.b16 %v5609, %v5602
    %v6450 = vpack.c.b16 %v5610, %v5603
    %v6451 = vpack.c.b16 %v5618, %v5611
    %v6452 = vpack.c.b16 %v5619, %v5612
    %v6453 = vpack.c.b16 %v5620, %v5613
    %v6454 = vpack.c.b16 %v5621, %v5614
    %v6455 = vpack.c.b16 %v5622, %v5615
    %v6456 = vpack.c.b16 %v5623, %v5616
    %v6457 = vpack.c.b16 %v5624, %v5617
    %v6458 = vpack.c.b16 %v5632, %v5625
    %v6459 = vpack.c.b16 %v5633, %v5626
    %v6460 = vpack.c.b16 %v5634, %v5627
    %v6461 = vpack.c.b16 %v5635, %v5628
    %v6462 = vpack.c.b16 %v5636, %v5629
    %v6463 = vpack.c.b16 %v5637, %v5630
    %v6464 = vpack.c.b16 %v5638, %v5631
    %v6465 = vpack.c.b16 %v5646, %v5639
    %v6466 = vpack.c.b16 %v5647, %v5640
    %v6467 = vpack.c.b16 %v5648, %v5641
    %v6468 = vpack.c.b16 %v5649, %v5642
    %v6469 = vpack.c.b16 %v5650, %v5643
    %v6470 = vpack.c.b16 %v5651, %v5644
    %v6471 = vpack.c.b16 %v5652, %v5645
    %v6472 = vpack.c.b16 %v5660, %v5653
    %v6473 = vpack.c.b16 %v5661, %v5654
    %v6474 = vpack.c.b16 %v5662, %v5655
    %v6475 = vpack.c.b16 %v5663, %v5656
    %v6476 = vpack.c.b16 %v5664, %v5657
    %v6477 = vpack.c.b16 %v5665, %v5658
    %v6478 = vpack.c.b16 %v5666, %v5659
    %v6479 = vpack.c.b16 %v5674, %v5667
    %v6480 = vpack.c.b16 %v5675, %v5668
    %v6481 = vpack.c.b16 %v5676, %v5669
    %v6482 = vpack.c.b16 %v5677, %v5670
    %v6483 = vpack.c.b16 %v5678, %v5671
    %v6484 = vpack.c.b16 %v5679, %v5672
    %v6485 = vpack.c.b16 %v5680, %v5673
    %v6486 = vpack.c.b16 %v5688, %v5681
    %v6487 = vpack.c.b16 %v5689, %v5682
    %v6488 = vpack.c.b16 %v5690, %v5683
    %v6489 = vpack.c.b16 %v5691, %v5684
    %v6490 = vpack.c.b16 %v5692, %v5685
    %v6491 = vpack.c.b16 %v5693, %v5686
    %v6492 = vpack.c.b16 %v5694, %v5687
    %v6493 = vpack.c.b16 %v5702, %v5695
    %v6494 = vpack.c.b16 %v5703, %v5696
    %v6495 = vpack.c.b16 %v5704, %v5697
    %v6496 = vpack.c.b16 %v5705, %v5698
    %v6497 = vpack.c.b16 %v5706, %v5699
    %v6498 = vpack.c.b16 %v5707, %v5700
    %v6499 = vpack.c.b16 %v5708, %v5701
    %v6500 = vpack.c.b16 %v5716, %v5709
    %v6501 = vpack.c.b16 %v5717, %v5710
    %v6502 = vpack.c.b16 %v5718, %v5711
    %v6503 = vpack.c.b16 %v5719, %v5712
    %v6504 = vpack.c.b16 %v5720, %v5713
    %v6505 = vpack.c.b16 %v5721, %v5714
    %v6506 = vpack.c.b16 %v5722, %v5715
    %v6507 = vpack.c.b16 %v5730, %v5723
    %v6508 = vpack.c.b16 %v5731, %v5724
    %v6509 = vpack.c.b16 %v5732, %v5725
    %v6510 = vpack.c.b16 %v5733, %v5726
    %v6511 = vpack.c.b16 %v5734, %v5727
    %v6512 = vpack.c.b16 %v5735, %v5728
    %v6513 = vpack.c.b16 %v5736, %v5729
    %v6514 = vpack.c.b16 %v5744, %v5737
    %v6515 = vpack.c.b16 %v5745, %v5738
    %v6516 = vpack.c.b16 %v5746, %v5739
    %v6517 = vpack.c.b16 %v5747, %v5740
    %v6518 = vpack.c.b16 %v5748, %v5741
    %v6519 = vpack.c.b16 %v5749, %v5742
    %v6520 = vpack.c.b16 %v5750, %v5743
    %v6521 = vpack.c.b16 %v5758, %v5751
    %v6522 = vpack.c.b16 %v5759, %v5752
    %v6523 = vpack.c.b16 %v5760, %v5753
    %v6524 = vpack.c.b16 %v5761, %v5754
    %v6525 = vpack.c.b16 %v5762, %v5755
    %v6526 = vpack.c.b16 %v5763, %v5756
    %v6527 = vpack.c.b16 %v5764, %v5757
    %v6528 = vpack.c.b16 %v5772, %v5765
    %v6529 = vpack.c.b16 %v5773, %v5766
    %v6530 = vpack.c.b16 %v5774, %v5767
    %v6531 = vpack.c.b16 %v5775, %v5768
    %v6532 = vpack.c.b16 %v5776, %v5769
    %v6533 = vpack.c.b16 %v5777, %v5770
    %v6534 = vpack.c.b16 %v5778, %v5771
    %v6535 = vpack.c.b16 %v5786, %v5779
    %v6536 = vpack.c.b16 %v5787, %v5780
    %v6537 = vpack.c.b16 %v5788, %v5781
    %v6538 = vpack.c.b16 %v5789, %v5782
    %v6539 = vpack.c.b16 %v5790, %v5783
    %v6540 = vpack.c.b16 %v5791, %v5784
    %v6541 = vpack.c.b16 %v5792, %v5785
    %v6542 = vpack.c.b16 %v5800, %v5793
    %v6543 = vpack.c.b16 %v5801, %v5794
    %v6544 = vpack.c.b16 %v5802, %v5795
    %v6545 = vpack.c.b16 %v5803, %v5796
    %v6546 = vpack.c.b16 %v5804, %v5797
    %v6547 = vpack.c.b16 %v5805, %v5798
    %v6548 = vpack.c.b16 %v5806, %v5799
    %v6549 = vpack.c.b16 %v5814, %v5807
    %v6550 = vpack.c.b16 %v5815, %v5808
    %v6551 = vpack.c.b16 %v5816, %v5809
    %v6552 = vpack.c.b16 %v5817, %v5810
    %v6553 = vpack.c.b16 %v5818, %v5811
    %v6554 = vpack.c.b16 %v5819, %v5812
    %v6555 = vpack.c.b16 %v5820, %v5813
    %v6556 = vpack.c.b16 %v5828, %v5821
    %v6557 = vpack.c.b16 %v5829, %v5822
    %v6558 = vpack.c.b16 %v5830, %v5823
    %v6559 = vpack.c.b16 %v5831, %v5824
    %v6560 = vpack.c.b16 %v5832, %v5825
    %v6561 = vpack.c.b16 %v5833, %v5826
    %v6562 = vpack.c.b16 %v5834, %v5827
    %v6563 = vpack.c.b16 %v5842, %v5835
    %v6564 = vpack.c.b16 %v5843, %v5836
    %v6565 = vpack.c.b16 %v5844, %v5837
    %v6566 = vpack.c.b16 %v5845, %v5838
    %v6567 = vpack.c.b16 %v5846, %v5839
    %v6568 = vpack.c.b16 %v5847, %v5840
    %v6569 = vpack.c.b16 %v5848, %v5841
    %v6570 = vpack.c.b16 %v5856, %v5849
    %v6571 = vpack.c.b16 %v5857, %v5850
    %v6572 = vpack.c.b16 %v5858, %v5851
    %v6573 = vpack.c.b16 %v5859, %v5852
    %v6574 = vpack.c.b16 %v5860, %v5853
    %v6575 = vpack.c.b16 %v5861, %v5854
    %v6576 = vpack.c.b16 %v5862, %v5855
    %v6577 = vpack.c.b16 %v5870, %v5863
    %v6578 = vpack.c.b16 %v5871, %v5864
    %v6579 = vpack.c.b16 %v5872, %v5865
    %v6580 = vpack.c.b16 %v5873, %v5866
    %v6581 = vpack.c.b16 %v5874, %v5867
    %v6582 = vpack.c.b16 %v5875, %v5868
    %v6583 = vpack.c.b16 %v5876, %v5869
    %v6584 = vpack.c.b16 %v5884, %v5877
    %v6585 = vpack.c.b16 %v5885, %v5878
    %v6586 = vpack.c.b16 %v5886, %v5879
    %v6587 = vpack.c.b16 %v5887, %v5880
    %v6588 = vpack.c.b16 %v5888, %v5881
    %v6589 = vpack.c.b16 %v5889, %v5882
    %v6590 = vpack.c.b16 %v5890, %v5883
    %v6591 = vpack.c.b16 %v5898, %v5891
    %v6592 = vpack.c.b16 %v5899, %v5892
    %v6593 = vpack.c.b16 %v5900, %v5893
    %v6594 = vpack.c.b16 %v5901, %v5894
    %v6595 = vpack.c.b16 %v5902, %v5895
    %v6596 = vpack.c.b16 %v5903, %v5896
    %v6597 = vpack.c.b16 %v5904, %v5897
    %v6598 = vpack.c.b16 %v5912, %v5905
    %v6599 = vpack.c.b16 %v5913, %v5906
    %v6600 = vpack.c.b16 %v5914, %v5907
    %v6601 = vpack.c.b16 %v5915, %v5908
    %v6602 = vpack.c.b16 %v5916, %v5909
    %v6603 = vpack.c.b16 %v5917, %v5910
    %v6604 = vpack.c.b16 %v5918, %v5911
    %v6605 = vpack.c.b16 %v5926, %v5919
    %v6606 = vpack.c.b16 %v5927, %v5920
    %v6607 = vpack.c.b16 %v5928, %v5921
    %v6608 = vpack.c.b16 %v5929, %v5922
    %v6609 = vpack.c.b16 %v5930, %v5923
    %v6610 = vpack.c.b16 %v5931, %v5924
    %v6611 = vpack.c.b16 %v5932, %v5925
    %v6612 = vpack.c.b16 %v5940, %v5933
    %v6613 = vpack.c.b16 %v5941, %v5934
    %v6614 = vpack.c.b16 %v5942, %v5935
    %v6615 = vpack.c.b16 %v5943, %v5936
    %v6616 = vpack.c.b16 %v5944, %v5937
    %v6617 = vpack.c.b16 %v5945, %v5938
    %v6618 = vpack.c.b16 %v5946, %v5939
    %v6619 = vpack.c.b16 %v5954, %v5947
    %v6620 = vpack.c.b16 %v5955, %v5948
    %v6621 = vpack.c.b16 %v5956, %v5949
    %v6622 = vpack.c.b16 %v5957, %v5950
    %v6623 = vpack.c.b16 %v5958, %v5951
    %v6624 = vpack.c.b16 %v5959, %v5952
    %v6625 = vpack.c.b16 %v5960, %v5953
    %v6626 = vpack.c.b16 %v5968, %v5961
    %v6627 = vpack.c.b16 %v5969, %v5962
    %v6628 = vpack.c.b16 %v5970, %v5963
    %v6629 = vpack.c.b16 %v5971, %v5964
    %v6630 = vpack.c.b16 %v5972, %v5965
    %v6631 = vpack.c.b16 %v5973, %v5966
    %v6632 = vpack.c.b16 %v5974, %v5967
    %v6633 = vpack.c.b16 %v5982, %v5975
    %v6634 = vpack.c.b16 %v5983, %v5976
    %v6635 = vpack.c.b16 %v5984, %v5977
    %v6636 = vpack.c.b16 %v5985, %v5978
    %v6637 = vpack.c.b16 %v5986, %v5979
    %v6638 = vpack.c.b16 %v5987, %v5980
    %v6639 = vpack.c.b16 %v5988, %v5981
    %v6640 = vpack.c.b16 %v5996, %v5989
    %v6641 = vpack.c.b16 %v5997, %v5990
    %v6642 = vpack.c.b16 %v5998, %v5991
    %v6643 = vpack.c.b16 %v5999, %v5992
    %v6644 = vpack.c.b16 %v6000, %v5993
    %v6645 = vpack.c.b16 %v6001, %v5994
    %v6646 = vpack.c.b16 %v6002, %v5995
    %v6647 = vpack.c.b16 %v6010, %v6003
    %v6648 = vpack.c.b16 %v6011, %v6004
    %v6649 = vpack.c.b16 %v6012, %v6005
    %v6650 = vpack.c.b16 %v6013, %v6006
    %v6651 = vpack.c.b16 %v6014, %v6007
    %v6652 = vpack.c.b16 %v6015, %v6008
    %v6653 = vpack.c.b16 %v6016, %v6009
    %v6654 = vpack.c.b16 %v6024, %v6017
    %v6655 = vpack.c.b16 %v6025, %v6018
    %v6656 = vpack.c.b16 %v6026, %v6019
    %v6657 = vpack.c.b16 %v6027, %v6020
    %v6658 = vpack.c.b16 %v6028, %v6021
    %v6659 = vpack.c.b16 %v6029, %v6022
    %v6660 = vpack.c.b16 %v6030, %v6023
    %v6661 = vpack.c.b16 %v6038, %v6031
    %v6662 = vpack.c.b16 %v6039, %v6032
    %v6663 = vpack.c.b16 %v6040, %v6033
    %v6664 = vpack.c.b16 %v6041, %v6034
    %v6665 = vpack.c.b16 %v6042, %v6035
    %v6666 = vpack.c.b16 %v6043, %v6036
    %v6667 = vpack.c.b16 %v6044, %v6037
    %v6668 = vpack.c.b16 %v6052, %v6045
    %v6669 = vpack.c.b16 %v6053, %v6046
    %v6670 = vpack.c.b16 %v6054, %v6047
    %v6671 = vpack.c.b16 %v6055, %v6048
    %v6672 = vpack.c.b16 %v6056, %v6049
    %v6673 = vpack.c.b16 %v6057, %v6050
    %v6674 = vpack.c.b16 %v6058, %v6051
    %v6675 = vpack.c.b16 %v6066, %v6059
    %v6676 = vpack.c.b16 %v6067, %v6060
    %v6677 = vpack.c.b16 %v6068, %v6061
    %v6678 = vpack.c.b16 %v6069, %v6062
    %v6679 = vpack.c.b16 %v6070, %v6063
    %v6680 = vpack.c.b16 %v6071, %v6064
    %v6681 = vpack.c.b16 %v6072, %v6065
    %v6682 = vpack.c.b16 %v6080, %v6073
    %v6683 = vpack.c.b16 %v6081, %v6074
    %v6684 = vpack.c.b16 %v6082, %v6075
    %v6685 = vpack.c.b16 %v6083, %v6076
    %v6686 = vpack.c.b16 %v6084, %v6077
    %v6687 = vpack.c.b16 %v6085, %v6078
    %v6688 = vpack.c.b16 %v6086, %v6079
    %v6689 = vpack.c.b16 %v6094, %v6087
    %v6690 = vpack.c.b16 %v6095, %v6088
    %v6691 = vpack.c.b16 %v6096, %v6089
    %v6692 = vpack.c.b16 %v6097, %v6090
    %v6693 = vpack.c.b16 %v6098, %v6091
    %v6694 = vpack.c.b16 %v6099, %v6092
    %v6695 = vpack.c.b16 %v6100, %v6093
    %v6696 = vpack.c.b16 %v6108, %v6101
    %v6697 = vpack.c.b16 %v6109, %v6102
    %v6698 = vpack.c.b16 %v6110, %v6103
    %v6699 = vpack.c.b16 %v6111, %v6104
    %v6700 = vpack.c.b16 %v6112, %v6105
    %v6701 = vpack.c.b16 %v6113, %v6106
    %v6702 = vpack.c.b16 %v6114, %v6107
    %v6703 = vpack.c.b16 %v6122, %v6115
    %v6704 = vpack.c.b16 %v6123, %v6116
    %v6705 = vpack.c.b16 %v6124, %v6117
    %v6706 = vpack.c.b16 %v6125, %v6118
    %v6707 = vpack.c.b16 %v6126, %v6119
    %v6708 = vpack.c.b16 %v6127, %v6120
    %v6709 = vpack.c.b16 %v6128, %v6121
    %v6710 = vpack.c.b16 %v6136, %v6129
    %v6711 = vpack.c.b16 %v6137, %v6130
    %v6712 = vpack.c.b16 %v6138, %v6131
    %v6713 = vpack.c.b16 %v6139, %v6132
    %v6714 = vpack.c.b16 %v6140, %v6133
    %v6715 = vpack.c.b16 %v6141, %v6134
    %v6716 = vpack.c.b16 %v6142, %v6135
    %v6717 = vpack.c.b16 %v6150, %v6143
    %v6718 = vpack.c.b16 %v6151, %v6144
    %v6719 = vpack.c.b16 %v6152, %v6145
    %v6720 = vpack.c.b16 %v6153, %v6146
    %v6721 = vpack.c.b16 %v6154, %v6147
    %v6722 = vpack.c.b16 %v6155, %v6148
    %v6723 = vpack.c.b16 %v6156, %v6149
    %v6724 = vpack.c.b16 %v6164, %v6157
    %v6725 = vpack.c.b16 %v6165, %v6158
    %v6726 = vpack.c.b16 %v6166, %v6159
    %v6727 = vpack.c.b16 %v6167, %v6160
    %v6728 = vpack.c.b16 %v6168, %v6161
    %v6729 = vpack.c.b16 %v6169, %v6162
    %v6730 = vpack.c.b16 %v6170, %v6163
    %v6731 = vpack.c.b16 %v6178, %v6171
    %v6732 = vpack.c.b16 %v6179, %v6172
    %v6733 = vpack.c.b16 %v6180, %v6173
    %v6734 = vpack.c.b16 %v6181, %v6174
    %v6735 = vpack.c.b16 %v6182, %v6175
    %v6736 = vpack.c.b16 %v6183, %v6176
    %v6737 = vpack.c.b16 %v6184, %v6177
    %v6738 = vpack.c.b16 %v6192, %v6185
    %v6739 = vpack.c.b16 %v6193, %v6186
    %v6740 = vpack.c.b16 %v6194, %v6187
    %v6741 = vpack.c.b16 %v6195, %v6188
    %v6742 = vpack.c.b16 %v6196, %v6189
    %v6743 = vpack.c.b16 %v6197, %v6190
    %v6744 = vpack.c.b16 %v6198, %v6191
    %v6745 = vpack.c.b16 %v6206, %v6199
    %v6746 = vpack.c.b16 %v6207, %v6200
    %v6747 = vpack.c.b16 %v6208, %v6201
    %v6748 = vpack.c.b16 %v6209, %v6202
    %v6749 = vpack.c.b16 %v6210, %v6203
    %v6750 = vpack.c.b16 %v6211, %v6204
    %v6751 = vpack.c.b16 %v6212, %v6205
    %v6752 = vpack.c.b16 %v6220, %v6213
    %v6753 = vpack.c.b16 %v6221, %v6214
    %v6754 = vpack.c.b16 %v6222, %v6215
    %v6755 = vpack.c.b16 %v6223, %v6216
    %v6756 = vpack.c.b16 %v6224, %v6217
    %v6757 = vpack.c.b16 %v6225, %v6218
    %v6758 = vpack.c.b16 %v6226, %v6219
    %v6759 = vpack.c.b16 %v6234, %v6227
    %v6760 = vpack.c.b16 %v6235, %v6228
    %v6761 = vpack.c.b16 %v6236, %v6229
    %v6762 = vpack.c.b16 %v6237, %v6230
    %v6763 = vpack.c.b16 %v6238, %v6231
    %v6764 = vpack.c.b16 %v6239, %v6232
    %v6765 = vpack.c.b16 %v6240, %v6233
    %v6766 = vpack.c.b16 %v6248, %v6241
    %v6767 = vpack.c.b16 %v6249, %v6242
    %v6768 = vpack.c.b16 %v6250, %v6243
    %v6769 = vpack.c.b16 %v6251, %v6244
    %v6770 = vpack.c.b16 %v6252, %v6245
    %v6771 = vpack.c.b16 %v6253, %v6246
    %v6772 = vpack.c.b16 %v6254, %v6247
    %v6773 = vpack.c.b16 %v6262, %v6255
    %v6774 = vpack.c.b16 %v6263, %v6256
    %v6775 = vpack.c.b16 %v6264, %v6257
    %v6776 = vpack.c.b16 %v6265, %v6258
    %v6777 = vpack.c.b16 %v6266, %v6259
    %v6778 = vpack.c.b16 %v6267, %v6260
    %v6779 = vpack.c.b16 %v6268, %v6261
    %v6780 = vpack.c.b16 %v6276, %v6269
    %v6781 = vpack.c.b16 %v6277, %v6270
    %v6782 = vpack.c.b16 %v6278, %v6271
    %v6783 = vpack.c.b16 %v6279, %v6272
    %v6784 = vpack.c.b16 %v6280, %v6273
    %v6785 = vpack.c.b16 %v6281, %v6274
    %v6786 = vpack.c.b16 %v6282, %v6275
    %v6787 = vpack.c.b16 %v6290, %v6283
    %v6788 = vpack.c.b16 %v6291, %v6284
    %v6789 = vpack.c.b16 %v6292, %v6285
    %v6790 = vpack.c.b16 %v6293, %v6286
    %v6791 = vpack.c.b16 %v6294, %v6287
    %v6792 = vpack.c.b16 %v6295, %v6288
    %v6793 = vpack.c.b16 %v6296, %v6289
    %v6794 = vpack.c.b16 %v6304, %v6297
    %v6795 = vpack.c.b16 %v6305, %v6298
    %v6796 = vpack.c.b16 %v6306, %v6299
    %v6797 = vpack.c.b16 %v6307, %v6300
    %v6798 = vpack.c.b16 %v6308, %v6301
    %v6799 = vpack.c.b16 %v6309, %v6302
    %v6800 = vpack.c.b16 %v6310, %v6303
    %v6801 = vpack.c.b16 %v6318, %v6311
    %v6802 = vpack.c.b16 %v6319, %v6312
    %v6803 = vpack.c.b16 %v6320, %v6313
    %v6804 = vpack.c.b16 %v6321, %v6314
    %v6805 = vpack.c.b16 %v6322, %v6315
    %v6806 = vpack.c.b16 %v6323, %v6316
    %v6807 = vpack.c.b16 %v6324, %v6317
    %v6808 = vpack.c.b16 %v6332, %v6325
    %v6809 = vpack.c.b16 %v6333, %v6326
    %v6810 = vpack.c.b16 %v6334, %v6327
    %v6811 = vpack.c.b16 %v6335, %v6328
    %v6812 = vpack.c.b16 %v6336, %v6329
    %v6813 = vpack.c.b16 %v6337, %v6330
    %v6814 = vpack.c.b16 %v6338, %v6331
    %v6815 = vpack.c.b16 %v6346, %v6339
    %v6816 = vpack.c.b16 %v6347, %v6340
    %v6817 = vpack.c.b16 %v6348, %v6341
    %v6818 = vpack.c.b16 %v6349, %v6342
    %v6819 = vpack.c.b16 %v6350, %v6343
    %v6820 = vpack.c.b16 %v6351, %v6344
    %v6821 = vpack.c.b16 %v6352, %v6345
    %v6822 = vpack.c.b16 %v6360, %v6353
    %v6823 = vpack.c.b16 %v6361, %v6354
    %v6824 = vpack.c.b16 %v6362, %v6355
    %v6825 = vpack.c.b16 %v6363, %v6356
    %v6826 = vpack.c.b16 %v6364, %v6357
    %v6827 = vpack.c.b16 %v6365, %v6358
    %v6828 = vpack.c.b16 %v6366, %v6359
    %v6829 = vpack.c.b16 %v6374, %v6367
    %v6830 = vpack.c.b16 %v6375, %v6368
    %v6831 = vpack.c.b16 %v6376, %v6369
    %v6832 = vpack.c.b16 %v6377, %v6370
    %v6833 = vpack.c.b16 %v6378, %v6371
    %v6834 = vpack.c.b16 %v6379, %v6372
    %v6835 = vpack.c.b16 %v6380, %v6373
    %v6836 = vpack.c.b16 %v6388, %v6381
    %v6837 = vpack.c.b16 %v6389, %v6382
    %v6838 = vpack.c.b16 %v6390, %v6383
    %v6839 = vpack.c.b16 %v6391, %v6384
    %v6840 = vpack.c.b16 %v6392, %v6385
    %v6841 = vpack.c.b16 %v6393, %v6386
    %v6842 = vpack.c.b16 %v6394, %v6387
    %7291 = vmatprep.subr.bf16.mxu0 %v6445
    %7292 = vmatpush1.bf16.msra.mxu0 %v6444
    %7293 = vmatprep.subr.bf16.mxu0 %v6438
    %7294 = vmatpush1.bf16.msra.mxu0 %v6437
    %7295 = vmatprep.subr.bf16.mxu0 %v6431
    %7296 = vmatpush1.bf16.msra.mxu0 %v6430
    %7297 = vmatprep.subr.bf16.mxu0 %v6424
    %7298 = vmatpush1.bf16.msra.mxu0 %v6423
    %7299 = vmatprep.subr.bf16.mxu0 %v6417
    %7300 = vmatpush1.bf16.msra.mxu0 %v6416
    %7301 = vmatprep.subr.bf16.mxu0 %v6410
    %7302 = vmatpush1.bf16.msra.mxu0 %v6409
    %7303 = vmatprep.subr.bf16.mxu0 %v6403
    %7304 = vmatpush1.bf16.msra.mxu0 %v6402
    %7305 = vmatprep.subr.bf16.mxu0 %v6396
    %7306 = vmatpush1.bf16.msra.mxu0 %v6395
    %7307 = vmatprep.subr.bf16.mxu0 %v6501
    %7308 = vmatpush2.bf16.msra.mxu0 %v6500
    %7309 = vmatprep.subr.bf16.mxu0 %v6494
    %7310 = vmatpush2.bf16.msra.mxu0 %v6493
    %7311 = vmatprep.subr.bf16.mxu0 %v6487
    %7312 = vmatpush2.bf16.msra.mxu0 %v6486
    %7313 = vmatprep.subr.bf16.mxu0 %v6480
    %7314 = vmatpush2.bf16.msra.mxu0 %v6479
    %7315 = vmatprep.subr.bf16.mxu0 %v6473
    %7316 = vmatpush2.bf16.msra.mxu0 %v6472
    %7317 = vmatprep.subr.bf16.mxu0 %v6466
    %7318 = vmatpush2.bf16.msra.mxu0 %v6465
    %7319 = vmatprep.subr.bf16.mxu0 %v6459
    %7320 = vmatpush2.bf16.msra.mxu0 %v6458
    %7321 = vmatprep.subr.bf16.mxu0 %v6452
    %7322 = vmatpush2.bf16.msra.mxu0 %v6451
    %7323 = vmatprep.mubr.bf16.mxu0 %v1000
    %7324 = vmatmul.mubr.bf16.gmra.mxu0 %v999
    %v7325 = vpop.f32.mrf.mxu0
    %v7326 = vadd.f32 0.0, %v7325
    %v7327 = vpop.f32.mrf.mxu0
    %v7328 = vadd.f32 0.0, %v7327
    %v7329 = vpop.f32.mrf.mxu0
    %v7330 = vpop.f32.mrf.mxu0
    %7331 = vdwg.mxu0
    %7332 = vmatprep.subr.bf16.mxu0 %v6557
    %7333 = vmatpush1.bf16.msra.mxu0 %v6556
    %7334 = vmatprep.subr.bf16.mxu0 %v6550
    %7335 = vmatpush1.bf16.msra.mxu0 %v6549
    %7336 = vmatprep.subr.bf16.mxu0 %v6543
    %7337 = vmatpush1.bf16.msra.mxu0 %v6542
    %7338 = vmatprep.subr.bf16.mxu0 %v6536
    %7339 = vmatpush1.bf16.msra.mxu0 %v6535
    %7340 = vmatprep.subr.bf16.mxu0 %v6529
    %7341 = vmatpush1.bf16.msra.mxu0 %v6528
    %7342 = vmatprep.subr.bf16.mxu0 %v6522
    %7343 = vmatpush1.bf16.msra.mxu0 %v6521
    %7344 = vmatprep.subr.bf16.mxu0 %v6515
    %7345 = vmatpush1.bf16.msra.mxu0 %v6514
    %7346 = vmatprep.subr.bf16.mxu0 %v6508
    %7347 = vmatpush1.bf16.msra.mxu0 %v6507
    %7348 = vmatprep.subr.bf16.mxu0 %v6613
    %7349 = vmatpush2.bf16.msra.mxu0 %v6612
    %7350 = vmatprep.subr.bf16.mxu0 %v6606
    %7351 = vmatpush2.bf16.msra.mxu0 %v6605
    %7352 = vmatprep.subr.bf16.mxu0 %v6599
    %7353 = vmatpush2.bf16.msra.mxu0 %v6598
    %7354 = vmatprep.subr.bf16.mxu0 %v6592
    %7355 = vmatpush2.bf16.msra.mxu0 %v6591
    %7356 = vmatprep.subr.bf16.mxu0 %v6585
    %7357 = vmatpush2.bf16.msra.mxu0 %v6584
    %7358 = vmatprep.subr.bf16.mxu0 %v6578
    %7359 = vmatpush2.bf16.msra.mxu0 %v6577
    %7360 = vmatprep.subr.bf16.mxu0 %v6571
    %7361 = vmatpush2.bf16.msra.mxu0 %v6570
    %7362 = vmatprep.subr.bf16.mxu0 %v6564
    %7363 = vmatpush2.bf16.msra.mxu0 %v6563
    %7364 = vmatprep.mubr.bf16.mxu0 %v1002
    %7365 = vmatmul.mubr.bf16.gmra.mxu0 %v1001
    %v7366 = vpop.f32.mrf.mxu0
    %v7367 = vadd.f32 %v7326, %v7366
    %v7368 = vpop.f32.mrf.mxu0
    %v7369 = vadd.f32 %v7328, %v7368
    %v7370 = vpop.f32.mrf.mxu0
    %v7371 = vpop.f32.mrf.mxu0
    %7372 = vdwg.mxu0
    %7373 = vmatprep.subr.bf16.mxu0 %v6669
    %7374 = vmatpush1.bf16.msra.mxu0 %v6668
    %7375 = vmatprep.subr.bf16.mxu0 %v6662
    %7376 = vmatpush1.bf16.msra.mxu0 %v6661
    %7377 = vmatprep.subr.bf16.mxu0 %v6655
    %7378 = vmatpush1.bf16.msra.mxu0 %v6654
    %7379 = vmatprep.subr.bf16.mxu0 %v6648
    %7380 = vmatpush1.bf16.msra.mxu0 %v6647
    %7381 = vmatprep.subr.bf16.mxu0 %v6641
    %7382 = vmatpush1.bf16.msra.mxu0 %v6640
    %7383 = vmatprep.subr.bf16.mxu0 %v6634
    %7384 = vmatpush1.bf16.msra.mxu0 %v6633
    %7385 = vmatprep.subr.bf16.mxu0 %v6627
    %7386 = vmatpush1.bf16.msra.mxu0 %v6626
    %7387 = vmatprep.subr.bf16.mxu0 %v6620
    %7388 = vmatpush1.bf16.msra.mxu0 %v6619
    %7389 = vmatprep.subr.bf16.mxu0 %v6725
    %7390 = vmatpush2.bf16.msra.mxu0 %v6724
    %7391 = vmatprep.subr.bf16.mxu0 %v6718
    %7392 = vmatpush2.bf16.msra.mxu0 %v6717
    %7393 = vmatprep.subr.bf16.mxu0 %v6711
    %7394 = vmatpush2.bf16.msra.mxu0 %v6710
    %7395 = vmatprep.subr.bf16.mxu0 %v6704
    %7396 = vmatpush2.bf16.msra.mxu0 %v6703
    %7397 = vmatprep.subr.bf16.mxu0 %v6697
    %7398 = vmatpush2.bf16.msra.mxu0 %v6696
    %7399 = vmatprep.subr.bf16.mxu0 %v6690
    %7400 = vmatpush2.bf16.msra.mxu0 %v6689
    %7401 = vmatprep.subr.bf16.mxu0 %v6683
    %7402 = vmatpush2.bf16.msra.mxu0 %v6682
    %7403 = vmatprep.subr.bf16.mxu0 %v6676
    %7404 = vmatpush2.bf16.msra.mxu0 %v6675
    %7405 = vmatprep.mubr.bf16.mxu0 %v1004
    %7406 = vmatmul.mubr.bf16.gmra.mxu0 %v1003
    %v7407 = vpop.f32.mrf.mxu0
    %v7408 = vadd.f32 %v7367, %v7407
    %v7409 = vpop.f32.mrf.mxu0
    %v7410 = vadd.f32 %v7369, %v7409
    %v7411 = vpop.f32.mrf.mxu0
    %v7412 = vpop.f32.mrf.mxu0
    %7413 = vdwg.mxu0
    %7414 = vmatprep.subr.bf16.mxu0 %v6781
    %7415 = vmatpush1.bf16.msra.mxu0 %v6780
    %7416 = vmatprep.subr.bf16.mxu0 %v6774
    %7417 = vmatpush1.bf16.msra.mxu0 %v6773
    %7418 = vmatprep.subr.bf16.mxu0 %v6767
    %7419 = vmatpush1.bf16.msra.mxu0 %v6766
    %7420 = vmatprep.subr.bf16.mxu0 %v6760
    %7421 = vmatpush1.bf16.msra.mxu0 %v6759
    %7422 = vmatprep.subr.bf16.mxu0 %v6753
    %7423 = vmatpush1.bf16.msra.mxu0 %v6752
    %7424 = vmatprep.subr.bf16.mxu0 %v6746
    %7425 = vmatpush1.bf16.msra.mxu0 %v6745
    %7426 = vmatprep.subr.bf16.mxu0 %v6739
    %7427 = vmatpush1.bf16.msra.mxu0 %v6738
    %7428 = vmatprep.subr.bf16.mxu0 %v6732
    %7429 = vmatpush1.bf16.msra.mxu0 %v6731
    %7430 = vmatprep.subr.bf16.mxu0 %v6837
    %7431 = vmatpush2.bf16.msra.mxu0 %v6836
    %7432 = vmatprep.subr.bf16.mxu0 %v6830
    %7433 = vmatpush2.bf16.msra.mxu0 %v6829
    %7434 = vmatprep.subr.bf16.mxu0 %v6823
    %7435 = vmatpush2.bf16.msra.mxu0 %v6822
    %7436 = vmatprep.subr.bf16.mxu0 %v6816
    %7437 = vmatpush2.bf16.msra.mxu0 %v6815
    %7438 = vmatprep.subr.bf16.mxu0 %v6809
    %7439 = vmatpush2.bf16.msra.mxu0 %v6808
    %7440 = vmatprep.subr.bf16.mxu0 %v6802
    %7441 = vmatpush2.bf16.msra.mxu0 %v6801
    %7442 = vmatprep.subr.bf16.mxu0 %v6795
    %7443 = vmatpush2.bf16.msra.mxu0 %v6794
    %7444 = vmatprep.subr.bf16.mxu0 %v6788
    %7445 = vmatpush2.bf16.msra.mxu0 %v6787
    %7446 = vmatprep.mubr.bf16.mxu0 %v1006
    %7447 = vmatmul.mubr.bf16.gmra.mxu0 %v1005
    %v7448 = vpop.f32.mrf.mxu0
    %v7449 = vadd.f32 %v7408, %v7448
    %v7450 = vpop.f32.mrf.mxu0
    %v7451 = vadd.f32 %v7410, %v7450
    %v7452 = vpop.f32.mrf.mxu0
    %v7453 = vpop.f32.mrf.mxu0
    %7454 = vdwg.mxu0
    %7455 = vmatprep.subr.bf16.mxu0 %v6447
    %7456 = vmatpush1.bf16.msra.mxu0 %v6446
    %7457 = vmatprep.subr.bf16.mxu0 %v6440
    %7458 = vmatpush1.bf16.msra.mxu0 %v6439
    %7459 = vmatprep.subr.bf16.mxu0 %v6433
    %7460 = vmatpush1.bf16.msra.mxu0 %v6432
    %7461 = vmatprep.subr.bf16.mxu0 %v6426
    %7462 = vmatpush1.bf16.msra.mxu0 %v6425
    %7463 = vmatprep.subr.bf16.mxu0 %v6419
    %7464 = vmatpush1.bf16.msra.mxu0 %v6418
    %7465 = vmatprep.subr.bf16.mxu0 %v6412
    %7466 = vmatpush1.bf16.msra.mxu0 %v6411
    %7467 = vmatprep.subr.bf16.mxu0 %v6405
    %7468 = vmatpush1.bf16.msra.mxu0 %v6404
    %7469 = vmatprep.subr.bf16.mxu0 %v6398
    %7470 = vmatpush1.bf16.msra.mxu0 %v6397
    %7471 = vmatprep.subr.bf16.mxu0 %v6503
    %7472 = vmatpush2.bf16.msra.mxu0 %v6502
    %7473 = vmatprep.subr.bf16.mxu0 %v6496
    %7474 = vmatpush2.bf16.msra.mxu0 %v6495
    %7475 = vmatprep.subr.bf16.mxu0 %v6489
    %7476 = vmatpush2.bf16.msra.mxu0 %v6488
    %7477 = vmatprep.subr.bf16.mxu0 %v6482
    %7478 = vmatpush2.bf16.msra.mxu0 %v6481
    %7479 = vmatprep.subr.bf16.mxu0 %v6475
    %7480 = vmatpush2.bf16.msra.mxu0 %v6474
    %7481 = vmatprep.subr.bf16.mxu0 %v6468
    %7482 = vmatpush2.bf16.msra.mxu0 %v6467
    %7483 = vmatprep.subr.bf16.mxu0 %v6461
    %7484 = vmatpush2.bf16.msra.mxu0 %v6460
    %7485 = vmatprep.subr.bf16.mxu0 %v6454
    %7486 = vmatpush2.bf16.msra.mxu0 %v6453
    %7487 = vmatprep.mubr.bf16.mxu0 %v1000
    %7488 = vmatmul.mubr.bf16.gmra.mxu0 %v999
    %v7489 = vpop.f32.mrf.mxu0
    %v7490 = vadd.f32 0.0, %v7489
    %v7491 = vpop.f32.mrf.mxu0
    %v7492 = vadd.f32 0.0, %v7491
    %v7493 = vpop.f32.mrf.mxu0
    %v7494 = vpop.f32.mrf.mxu0
    %7495 = vdwg.mxu0
    %7496 = vmatprep.subr.bf16.mxu0 %v6559
    %7497 = vmatpush1.bf16.msra.mxu0 %v6558
    %7498 = vmatprep.subr.bf16.mxu0 %v6552
    %7499 = vmatpush1.bf16.msra.mxu0 %v6551
    %7500 = vmatprep.subr.bf16.mxu0 %v6545
    %7501 = vmatpush1.bf16.msra.mxu0 %v6544
    %7502 = vmatprep.subr.bf16.mxu0 %v6538
    %7503 = vmatpush1.bf16.msra.mxu0 %v6537
    %7504 = vmatprep.subr.bf16.mxu0 %v6531
    %7505 = vmatpush1.bf16.msra.mxu0 %v6530
    %7506 = vmatprep.subr.bf16.mxu0 %v6524
    %7507 = vmatpush1.bf16.msra.mxu0 %v6523
    %7508 = vmatprep.subr.bf16.mxu0 %v6517
    %7509 = vmatpush1.bf16.msra.mxu0 %v6516
    %7510 = vmatprep.subr.bf16.mxu0 %v6510
    %7511 = vmatpush1.bf16.msra.mxu0 %v6509
    %7512 = vmatprep.subr.bf16.mxu0 %v6615
    %7513 = vmatpush2.bf16.msra.mxu0 %v6614
    %7514 = vmatprep.subr.bf16.mxu0 %v6608
    %7515 = vmatpush2.bf16.msra.mxu0 %v6607
    %7516 = vmatprep.subr.bf16.mxu0 %v6601
    %7517 = vmatpush2.bf16.msra.mxu0 %v6600
    %7518 = vmatprep.subr.bf16.mxu0 %v6594
    %7519 = vmatpush2.bf16.msra.mxu0 %v6593
    %7520 = vmatprep.subr.bf16.mxu0 %v6587
    %7521 = vmatpush2.bf16.msra.mxu0 %v6586
    %7522 = vmatprep.subr.bf16.mxu0 %v6580
    %7523 = vmatpush2.bf16.msra.mxu0 %v6579
    %7524 = vmatprep.subr.bf16.mxu0 %v6573
    %7525 = vmatpush2.bf16.msra.mxu0 %v6572
    %7526 = vmatprep.subr.bf16.mxu0 %v6566
    %7527 = vmatpush2.bf16.msra.mxu0 %v6565
    %7528 = vmatprep.mubr.bf16.mxu0 %v1002
    %7529 = vmatmul.mubr.bf16.gmra.mxu0 %v1001
    %v7530 = vpop.f32.mrf.mxu0
    %v7531 = vadd.f32 %v7490, %v7530
    %v7532 = vpop.f32.mrf.mxu0
    %v7533 = vadd.f32 %v7492, %v7532
    %v7534 = vpop.f32.mrf.mxu0
    %v7535 = vpop.f32.mrf.mxu0
    %7536 = vdwg.mxu0
    %7537 = vmatprep.subr.bf16.mxu0 %v6671
    %7538 = vmatpush1.bf16.msra.mxu0 %v6670
    %7539 = vmatprep.subr.bf16.mxu0 %v6664
    %7540 = vmatpush1.bf16.msra.mxu0 %v6663
    %7541 = vmatprep.subr.bf16.mxu0 %v6657
    %7542 = vmatpush1.bf16.msra.mxu0 %v6656
    %7543 = vmatprep.subr.bf16.mxu0 %v6650
    %7544 = vmatpush1.bf16.msra.mxu0 %v6649
    %7545 = vmatprep.subr.bf16.mxu0 %v6643
    %7546 = vmatpush1.bf16.msra.mxu0 %v6642
    %7547 = vmatprep.subr.bf16.mxu0 %v6636
    %7548 = vmatpush1.bf16.msra.mxu0 %v6635
    %7549 = vmatprep.subr.bf16.mxu0 %v6629
    %7550 = vmatpush1.bf16.msra.mxu0 %v6628
    %7551 = vmatprep.subr.bf16.mxu0 %v6622
    %7552 = vmatpush1.bf16.msra.mxu0 %v6621
    %7553 = vmatprep.subr.bf16.mxu0 %v6727
    %7554 = vmatpush2.bf16.msra.mxu0 %v6726
    %7555 = vmatprep.subr.bf16.mxu0 %v6720
    %7556 = vmatpush2.bf16.msra.mxu0 %v6719
    %7557 = vmatprep.subr.bf16.mxu0 %v6713
    %7558 = vmatpush2.bf16.msra.mxu0 %v6712
    %7559 = vmatprep.subr.bf16.mxu0 %v6706
    %7560 = vmatpush2.bf16.msra.mxu0 %v6705
    %7561 = vmatprep.subr.bf16.mxu0 %v6699
    %7562 = vmatpush2.bf16.msra.mxu0 %v6698
    %7563 = vmatprep.subr.bf16.mxu0 %v6692
    %7564 = vmatpush2.bf16.msra.mxu0 %v6691
    %7565 = vmatprep.subr.bf16.mxu0 %v6685
    %7566 = vmatpush2.bf16.msra.mxu0 %v6684
    %7567 = vmatprep.subr.bf16.mxu0 %v6678
    %7568 = vmatpush2.bf16.msra.mxu0 %v6677
    %7569 = vmatprep.mubr.bf16.mxu0 %v1004
    %7570 = vmatmul.mubr.bf16.gmra.mxu0 %v1003
    %v7571 = vpop.f32.mrf.mxu0
    %v7572 = vadd.f32 %v7531, %v7571
    %v7573 = vpop.f32.mrf.mxu0
    %v7574 = vadd.f32 %v7533, %v7573
    %v7575 = vpop.f32.mrf.mxu0
    %v7576 = vpop.f32.mrf.mxu0
    %7577 = vdwg.mxu0
    %7578 = vmatprep.subr.bf16.mxu0 %v6783
    %7579 = vmatpush1.bf16.msra.mxu0 %v6782
    %7580 = vmatprep.subr.bf16.mxu0 %v6776
    %7581 = vmatpush1.bf16.msra.mxu0 %v6775
    %7582 = vmatprep.subr.bf16.mxu0 %v6769
    %7583 = vmatpush1.bf16.msra.mxu0 %v6768
    %7584 = vmatprep.subr.bf16.mxu0 %v6762
    %7585 = vmatpush1.bf16.msra.mxu0 %v6761
    %7586 = vmatprep.subr.bf16.mxu0 %v6755
    %7587 = vmatpush1.bf16.msra.mxu0 %v6754
    %7588 = vmatprep.subr.bf16.mxu0 %v6748
    %7589 = vmatpush1.bf16.msra.mxu0 %v6747
    %7590 = vmatprep.subr.bf16.mxu0 %v6741
    %7591 = vmatpush1.bf16.msra.mxu0 %v6740
    %7592 = vmatprep.subr.bf16.mxu0 %v6734
    %7593 = vmatpush1.bf16.msra.mxu0 %v6733
    %7594 = vmatprep.subr.bf16.mxu0 %v6839
    %7595 = vmatpush2.bf16.msra.mxu0 %v6838
    %7596 = vmatprep.subr.bf16.mxu0 %v6832
    %7597 = vmatpush2.bf16.msra.mxu0 %v6831
    %7598 = vmatprep.subr.bf16.mxu0 %v6825
    %7599 = vmatpush2.bf16.msra.mxu0 %v6824
    %7600 = vmatprep.subr.bf16.mxu0 %v6818
    %7601 = vmatpush2.bf16.msra.mxu0 %v6817
    %7602 = vmatprep.subr.bf16.mxu0 %v6811
    %7603 = vmatpush2.bf16.msra.mxu0 %v6810
    %7604 = vmatprep.subr.bf16.mxu0 %v6804
    %7605 = vmatpush2.bf16.msra.mxu0 %v6803
    %7606 = vmatprep.subr.bf16.mxu0 %v6797
    %7607 = vmatpush2.bf16.msra.mxu0 %v6796
    %7608 = vmatprep.subr.bf16.mxu0 %v6790
    %7609 = vmatpush2.bf16.msra.mxu0 %v6789
    %7610 = vmatprep.mubr.bf16.mxu0 %v1006
    %7611 = vmatmul.mubr.bf16.gmra.mxu0 %v1005
    %v7612 = vpop.f32.mrf.mxu0
    %v7613 = vadd.f32 %v7572, %v7612
    %v7614 = vpop.f32.mrf.mxu0
    %v7615 = vadd.f32 %v7574, %v7614
    %v7616 = vpop.f32.mrf.mxu0
    %v7617 = vpop.f32.mrf.mxu0
    %7618 = vdwg.mxu0
    %7619 = vmatprep.subr.bf16.mxu0 %v6449
    %7620 = vmatpush1.bf16.msra.mxu0 %v6448
    %7621 = vmatprep.subr.bf16.mxu0 %v6442
    %7622 = vmatpush1.bf16.msra.mxu0 %v6441
    %7623 = vmatprep.subr.bf16.mxu0 %v6435
    %7624 = vmatpush1.bf16.msra.mxu0 %v6434
    %7625 = vmatprep.subr.bf16.mxu0 %v6428
    %7626 = vmatpush1.bf16.msra.mxu0 %v6427
    %7627 = vmatprep.subr.bf16.mxu0 %v6421
    %7628 = vmatpush1.bf16.msra.mxu0 %v6420
    %7629 = vmatprep.subr.bf16.mxu0 %v6414
    %7630 = vmatpush1.bf16.msra.mxu0 %v6413
    %7631 = vmatprep.subr.bf16.mxu0 %v6407
    %7632 = vmatpush1.bf16.msra.mxu0 %v6406
    %7633 = vmatprep.subr.bf16.mxu0 %v6400
    %7634 = vmatpush1.bf16.msra.mxu0 %v6399
    %7635 = vmatprep.subr.bf16.mxu0 %v6505
    %7636 = vmatpush2.bf16.msra.mxu0 %v6504
    %7637 = vmatprep.subr.bf16.mxu0 %v6498
    %7638 = vmatpush2.bf16.msra.mxu0 %v6497
    %7639 = vmatprep.subr.bf16.mxu0 %v6491
    %7640 = vmatpush2.bf16.msra.mxu0 %v6490
    %7641 = vmatprep.subr.bf16.mxu0 %v6484
    %7642 = vmatpush2.bf16.msra.mxu0 %v6483
    %7643 = vmatprep.subr.bf16.mxu0 %v6477
    %7644 = vmatpush2.bf16.msra.mxu0 %v6476
    %7645 = vmatprep.subr.bf16.mxu0 %v6470
    %7646 = vmatpush2.bf16.msra.mxu0 %v6469
    %7647 = vmatprep.subr.bf16.mxu0 %v6463
    %7648 = vmatpush2.bf16.msra.mxu0 %v6462
    %7649 = vmatprep.subr.bf16.mxu0 %v6456
    %7650 = vmatpush2.bf16.msra.mxu0 %v6455
    %7651 = vmatprep.mubr.bf16.mxu0 %v1000
    %7652 = vmatmul.mubr.bf16.gmra.mxu0 %v999
    %v7653 = vpop.f32.mrf.mxu0
    %v7654 = vadd.f32 0.0, %v7653
    %v7655 = vpop.f32.mrf.mxu0
    %v7656 = vadd.f32 0.0, %v7655
    %v7657 = vpop.f32.mrf.mxu0
    %v7658 = vpop.f32.mrf.mxu0
    %7659 = vdwg.mxu0
    %7660 = vmatprep.subr.bf16.mxu0 %v6561
    %7661 = vmatpush1.bf16.msra.mxu0 %v6560
    %7662 = vmatprep.subr.bf16.mxu0 %v6554
    %7663 = vmatpush1.bf16.msra.mxu0 %v6553
    %7664 = vmatprep.subr.bf16.mxu0 %v6547
    %7665 = vmatpush1.bf16.msra.mxu0 %v6546
    %7666 = vmatprep.subr.bf16.mxu0 %v6540
    %7667 = vmatpush1.bf16.msra.mxu0 %v6539
    %7668 = vmatprep.subr.bf16.mxu0 %v6533
    %7669 = vmatpush1.bf16.msra.mxu0 %v6532
    %7670 = vmatprep.subr.bf16.mxu0 %v6526
    %7671 = vmatpush1.bf16.msra.mxu0 %v6525
    %7672 = vmatprep.subr.bf16.mxu0 %v6519
    %7673 = vmatpush1.bf16.msra.mxu0 %v6518
    %7674 = vmatprep.subr.bf16.mxu0 %v6512
    %7675 = vmatpush1.bf16.msra.mxu0 %v6511
    %7676 = vmatprep.subr.bf16.mxu0 %v6617
    %7677 = vmatpush2.bf16.msra.mxu0 %v6616
    %7678 = vmatprep.subr.bf16.mxu0 %v6610
    %7679 = vmatpush2.bf16.msra.mxu0 %v6609
    %7680 = vmatprep.subr.bf16.mxu0 %v6603
    %7681 = vmatpush2.bf16.msra.mxu0 %v6602
    %7682 = vmatprep.subr.bf16.mxu0 %v6596
    %7683 = vmatpush2.bf16.msra.mxu0 %v6595
    %7684 = vmatprep.subr.bf16.mxu0 %v6589
    %7685 = vmatpush2.bf16.msra.mxu0 %v6588
    %7686 = vmatprep.subr.bf16.mxu0 %v6582
    %7687 = vmatpush2.bf16.msra.mxu0 %v6581
    %7688 = vmatprep.subr.bf16.mxu0 %v6575
    %7689 = vmatpush2.bf16.msra.mxu0 %v6574
    %7690 = vmatprep.subr.bf16.mxu0 %v6568
    %7691 = vmatpush2.bf16.msra.mxu0 %v6567
    %7692 = vmatprep.mubr.bf16.mxu0 %v1002
    %7693 = vmatmul.mubr.bf16.gmra.mxu0 %v1001
    %v7694 = vpop.f32.mrf.mxu0
    %v7695 = vadd.f32 %v7654, %v7694
    %v7696 = vpop.f32.mrf.mxu0
    %v7697 = vadd.f32 %v7656, %v7696
    %v7698 = vpop.f32.mrf.mxu0
    %v7699 = vpop.f32.mrf.mxu0
    %7700 = vdwg.mxu0
    %7701 = vmatprep.subr.bf16.mxu0 %v6673
    %7702 = vmatpush1.bf16.msra.mxu0 %v6672
    %7703 = vmatprep.subr.bf16.mxu0 %v6666
    %7704 = vmatpush1.bf16.msra.mxu0 %v6665
    %7705 = vmatprep.subr.bf16.mxu0 %v6659
    %7706 = vmatpush1.bf16.msra.mxu0 %v6658
    %7707 = vmatprep.subr.bf16.mxu0 %v6652
    %7708 = vmatpush1.bf16.msra.mxu0 %v6651
    %7709 = vmatprep.subr.bf16.mxu0 %v6645
    %7710 = vmatpush1.bf16.msra.mxu0 %v6644
    %7711 = vmatprep.subr.bf16.mxu0 %v6638
    %7712 = vmatpush1.bf16.msra.mxu0 %v6637
    %7713 = vmatprep.subr.bf16.mxu0 %v6631
    %7714 = vmatpush1.bf16.msra.mxu0 %v6630
    %7715 = vmatprep.subr.bf16.mxu0 %v6624
    %7716 = vmatpush1.bf16.msra.mxu0 %v6623
    %7717 = vmatprep.subr.bf16.mxu0 %v6729
    %7718 = vmatpush2.bf16.msra.mxu0 %v6728
    %7719 = vmatprep.subr.bf16.mxu0 %v6722
    %7720 = vmatpush2.bf16.msra.mxu0 %v6721
    %7721 = vmatprep.subr.bf16.mxu0 %v6715
    %7722 = vmatpush2.bf16.msra.mxu0 %v6714
    %7723 = vmatprep.subr.bf16.mxu0 %v6708
    %7724 = vmatpush2.bf16.msra.mxu0 %v6707
    %7725 = vmatprep.subr.bf16.mxu0 %v6701
    %7726 = vmatpush2.bf16.msra.mxu0 %v6700
    %7727 = vmatprep.subr.bf16.mxu0 %v6694
    %7728 = vmatpush2.bf16.msra.mxu0 %v6693
    %7729 = vmatprep.subr.bf16.mxu0 %v6687
    %7730 = vmatpush2.bf16.msra.mxu0 %v6686
    %7731 = vmatprep.subr.bf16.mxu0 %v6680
    %7732 = vmatpush2.bf16.msra.mxu0 %v6679
    %7733 = vmatprep.mubr.bf16.mxu0 %v1004
    %7734 = vmatmul.mubr.bf16.gmra.mxu0 %v1003
    %v7735 = vpop.f32.mrf.mxu0
    %v7736 = vadd.f32 %v7695, %v7735
    %v7737 = vpop.f32.mrf.mxu0
    %v7738 = vadd.f32 %v7697, %v7737
    %v7739 = vpop.f32.mrf.mxu0
    %v7740 = vpop.f32.mrf.mxu0
    %7741 = vdwg.mxu0
    %7742 = vmatprep.subr.bf16.mxu0 %v6785
    %7743 = vmatpush1.bf16.msra.mxu0 %v6784
    %7744 = vmatprep.subr.bf16.mxu0 %v6778
    %7745 = vmatpush1.bf16.msra.mxu0 %v6777
    %7746 = vmatprep.subr.bf16.mxu0 %v6771
    %7747 = vmatpush1.bf16.msra.mxu0 %v6770
    %7748 = vmatprep.subr.bf16.mxu0 %v6764
    %7749 = vmatpush1.bf16.msra.mxu0 %v6763
    %7750 = vmatprep.subr.bf16.mxu0 %v6757
    %7751 = vmatpush1.bf16.msra.mxu0 %v6756
    %7752 = vmatprep.subr.bf16.mxu0 %v6750
    %7753 = vmatpush1.bf16.msra.mxu0 %v6749
    %7754 = vmatprep.subr.bf16.mxu0 %v6743
    %7755 = vmatpush1.bf16.msra.mxu0 %v6742
    %7756 = vmatprep.subr.bf16.mxu0 %v6736
    %7757 = vmatpush1.bf16.msra.mxu0 %v6735
    %7758 = vmatprep.subr.bf16.mxu0 %v6841
    %7759 = vmatpush2.bf16.msra.mxu0 %v6840
    %7760 = vmatprep.subr.bf16.mxu0 %v6834
    %7761 = vmatpush2.bf16.msra.mxu0 %v6833
    %7762 = vmatprep.subr.bf16.mxu0 %v6827
    %7763 = vmatpush2.bf16.msra.mxu0 %v6826
    %7764 = vmatprep.subr.bf16.mxu0 %v6820
    %7765 = vmatpush2.bf16.msra.mxu0 %v6819
    %7766 = vmatprep.subr.bf16.mxu0 %v6813
    %7767 = vmatpush2.bf16.msra.mxu0 %v6812
    %7768 = vmatprep.subr.bf16.mxu0 %v6806
    %7769 = vmatpush2.bf16.msra.mxu0 %v6805
    %7770 = vmatprep.subr.bf16.mxu0 %v6799
    %7771 = vmatpush2.bf16.msra.mxu0 %v6798
    %7772 = vmatprep.subr.bf16.mxu0 %v6792
    %7773 = vmatpush2.bf16.msra.mxu0 %v6791
    %7774 = vmatprep.mubr.bf16.mxu0 %v1006
    %7775 = vmatmul.mubr.bf16.gmra.mxu0 %v1005
    %v7776 = vpop.f32.mrf.mxu0
    %v7777 = vadd.f32 %v7736, %v7776
    %v7778 = vpop.f32.mrf.mxu0
    %v7779 = vadd.f32 %v7738, %v7778
    %v7780 = vpop.f32.mrf.mxu0
    %v7781 = vpop.f32.mrf.mxu0
    %7782 = vdwg.mxu0
    %7783 = vmatprep.subr.bf16.mxu0 0
    %7784 = vmatpush1.bf16.msra.mxu0 %v6450
    %7785 = vmatprep.subr.bf16.mxu0 0
    %7786 = vmatpush1.bf16.msra.mxu0 %v6443
    %7787 = vmatprep.subr.bf16.mxu0 0
    %7788 = vmatpush1.bf16.msra.mxu0 %v6436
    %7789 = vmatprep.subr.bf16.mxu0 0
    %7790 = vmatpush1.bf16.msra.mxu0 %v6429
    %7791 = vmatprep.subr.bf16.mxu0 0
    %7792 = vmatpush1.bf16.msra.mxu0 %v6422
    %7793 = vmatprep.subr.bf16.mxu0 0
    %7794 = vmatpush1.bf16.msra.mxu0 %v6415
    %7795 = vmatprep.subr.bf16.mxu0 0
    %7796 = vmatpush1.bf16.msra.mxu0 %v6408
    %7797 = vmatprep.subr.bf16.mxu0 0
    %7798 = vmatpush1.bf16.msra.mxu0 %v6401
    %7799 = vmatprep.subr.bf16.mxu0 0
    %7800 = vmatpush2.bf16.msra.mxu0 %v6506
    %7801 = vmatprep.subr.bf16.mxu0 0
    %7802 = vmatpush2.bf16.msra.mxu0 %v6499
    %7803 = vmatprep.subr.bf16.mxu0 0
    %7804 = vmatpush2.bf16.msra.mxu0 %v6492
    %7805 = vmatprep.subr.bf16.mxu0 0
    %7806 = vmatpush2.bf16.msra.mxu0 %v6485
    %7807 = vmatprep.subr.bf16.mxu0 0
    %7808 = vmatpush2.bf16.msra.mxu0 %v6478
    %7809 = vmatprep.subr.bf16.mxu0 0
    %7810 = vmatpush2.bf16.msra.mxu0 %v6471
    %7811 = vmatprep.subr.bf16.mxu0 0
    %7812 = vmatpush2.bf16.msra.mxu0 %v6464
    %7813 = vmatprep.subr.bf16.mxu0 0
    %7814 = vmatpush2.bf16.msra.mxu0 %v6457
    %7815 = vmatprep.mubr.bf16.mxu0 %v1000
    %7816 = vmatmul.mubr.bf16.gmra.mxu0 %v999
    %v7817 = vpop.f32.mrf.mxu0
    %v7818 = vadd.f32 0.0, %v7817
    %v7819 = vpop.f32.mrf.mxu0
    %v7820 = vpop.f32.mrf.mxu0
    %v7821 = vpop.f32.mrf.mxu0
    %7822 = vdwg.mxu0
    %7823 = vmatprep.subr.bf16.mxu0 0
    %7824 = vmatpush1.bf16.msra.mxu0 %v6562
    %7825 = vmatprep.subr.bf16.mxu0 0
    %7826 = vmatpush1.bf16.msra.mxu0 %v6555
    %7827 = vmatprep.subr.bf16.mxu0 0
    %7828 = vmatpush1.bf16.msra.mxu0 %v6548
    %7829 = vmatprep.subr.bf16.mxu0 0
    %7830 = vmatpush1.bf16.msra.mxu0 %v6541
    %7831 = vmatprep.subr.bf16.mxu0 0
    %7832 = vmatpush1.bf16.msra.mxu0 %v6534
    %7833 = vmatprep.subr.bf16.mxu0 0
    %7834 = vmatpush1.bf16.msra.mxu0 %v6527
    %7835 = vmatprep.subr.bf16.mxu0 0
    %7836 = vmatpush1.bf16.msra.mxu0 %v6520
    %7837 = vmatprep.subr.bf16.mxu0 0
    %7838 = vmatpush1.bf16.msra.mxu0 %v6513
    %7839 = vmatprep.subr.bf16.mxu0 0
    %7840 = vmatpush2.bf16.msra.mxu0 %v6618
    %7841 = vmatprep.subr.bf16.mxu0 0
    %7842 = vmatpush2.bf16.msra.mxu0 %v6611
    %7843 = vmatprep.subr.bf16.mxu0 0
    %7844 = vmatpush2.bf16.msra.mxu0 %v6604
    %7845 = vmatprep.subr.bf16.mxu0 0
    %7846 = vmatpush2.bf16.msra.mxu0 %v6597
    %7847 = vmatprep.subr.bf16.mxu0 0
    %7848 = vmatpush2.bf16.msra.mxu0 %v6590
    %7849 = vmatprep.subr.bf16.mxu0 0
    %7850 = vmatpush2.bf16.msra.mxu0 %v6583
    %7851 = vmatprep.subr.bf16.mxu0 0
    %7852 = vmatpush2.bf16.msra.mxu0 %v6576
    %7853 = vmatprep.subr.bf16.mxu0 0
    %7854 = vmatpush2.bf16.msra.mxu0 %v6569
    %7855 = vmatprep.mubr.bf16.mxu0 %v1002
    %7856 = vmatmul.mubr.bf16.gmra.mxu0 %v1001
    %v7857 = vpop.f32.mrf.mxu0
    %v7858 = vadd.f32 %v7818, %v7857
    %v7859 = vpop.f32.mrf.mxu0
    %v7860 = vpop.f32.mrf.mxu0
    %v7861 = vpop.f32.mrf.mxu0
    %7862 = vdwg.mxu0
    %7863 = vmatprep.subr.bf16.mxu0 0
    %7864 = vmatpush1.bf16.msra.mxu0 %v6674
    %7865 = vmatprep.subr.bf16.mxu0 0
    %7866 = vmatpush1.bf16.msra.mxu0 %v6667
    %7867 = vmatprep.subr.bf16.mxu0 0
    %7868 = vmatpush1.bf16.msra.mxu0 %v6660
    %7869 = vmatprep.subr.bf16.mxu0 0
    %7870 = vmatpush1.bf16.msra.mxu0 %v6653
    %7871 = vmatprep.subr.bf16.mxu0 0
    %7872 = vmatpush1.bf16.msra.mxu0 %v6646
    %7873 = vmatprep.subr.bf16.mxu0 0
    %7874 = vmatpush1.bf16.msra.mxu0 %v6639
    %7875 = vmatprep.subr.bf16.mxu0 0
    %7876 = vmatpush1.bf16.msra.mxu0 %v6632
    %7877 = vmatprep.subr.bf16.mxu0 0
    %7878 = vmatpush1.bf16.msra.mxu0 %v6625
    %7879 = vmatprep.subr.bf16.mxu0 0
    %7880 = vmatpush2.bf16.msra.mxu0 %v6730
    %7881 = vmatprep.subr.bf16.mxu0 0
    %7882 = vmatpush2.bf16.msra.mxu0 %v6723
    %7883 = vmatprep.subr.bf16.mxu0 0
    %7884 = vmatpush2.bf16.msra.mxu0 %v6716
    %7885 = vmatprep.subr.bf16.mxu0 0
    %7886 = vmatpush2.bf16.msra.mxu0 %v6709
    %7887 = vmatprep.subr.bf16.mxu0 0
    %7888 = vmatpush2.bf16.msra.mxu0 %v6702
    %7889 = vmatprep.subr.bf16.mxu0 0
    %7890 = vmatpush2.bf16.msra.mxu0 %v6695
    %7891 = vmatprep.subr.bf16.mxu0 0
    %7892 = vmatpush2.bf16.msra.mxu0 %v6688
    %7893 = vmatprep.subr.bf16.mxu0 0
    %7894 = vmatpush2.bf16.msra.mxu0 %v6681
    %7895 = vmatprep.mubr.bf16.mxu0 %v1004
    %7896 = vmatmul.mubr.bf16.gmra.mxu0 %v1003
    %v7897 = vpop.f32.mrf.mxu0
    %v7898 = vadd.f32 %v7858, %v7897
    %v7899 = vpop.f32.mrf.mxu0
    %v7900 = vpop.f32.mrf.mxu0
    %v7901 = vpop.f32.mrf.mxu0
    %7902 = vdwg.mxu0
    %7903 = vmatprep.subr.bf16.mxu0 0
    %7904 = vmatpush1.bf16.msra.mxu0 %v6786
    %7905 = vmatprep.subr.bf16.mxu0 0
    %7906 = vmatpush1.bf16.msra.mxu0 %v6779
    %7907 = vmatprep.subr.bf16.mxu0 0
    %7908 = vmatpush1.bf16.msra.mxu0 %v6772
    %7909 = vmatprep.subr.bf16.mxu0 0
    %7910 = vmatpush1.bf16.msra.mxu0 %v6765
    %7911 = vmatprep.subr.bf16.mxu0 0
    %7912 = vmatpush1.bf16.msra.mxu0 %v6758
    %7913 = vmatprep.subr.bf16.mxu0 0
    %7914 = vmatpush1.bf16.msra.mxu0 %v6751
    %7915 = vmatprep.subr.bf16.mxu0 0
    %7916 = vmatpush1.bf16.msra.mxu0 %v6744
    %7917 = vmatprep.subr.bf16.mxu0 0
    %7918 = vmatpush1.bf16.msra.mxu0 %v6737
    %7919 = vmatprep.subr.bf16.mxu0 0
    %7920 = vmatpush2.bf16.msra.mxu0 %v6842
    %7921 = vmatprep.subr.bf16.mxu0 0
    %7922 = vmatpush2.bf16.msra.mxu0 %v6835
    %7923 = vmatprep.subr.bf16.mxu0 0
    %7924 = vmatpush2.bf16.msra.mxu0 %v6828
    %7925 = vmatprep.subr.bf16.mxu0 0
    %7926 = vmatpush2.bf16.msra.mxu0 %v6821
    %7927 = vmatprep.subr.bf16.mxu0 0
    %7928 = vmatpush2.bf16.msra.mxu0 %v6814
    %7929 = vmatprep.subr.bf16.mxu0 0
    %7930 = vmatpush2.bf16.msra.mxu0 %v6807
    %7931 = vmatprep.subr.bf16.mxu0 0
    %7932 = vmatpush2.bf16.msra.mxu0 %v6800
    %7933 = vmatprep.subr.bf16.mxu0 0
    %7934 = vmatpush2.bf16.msra.mxu0 %v6793
    %7935 = vmatprep.mubr.bf16.mxu0 %v1006
    %7936 = vmatmul.mubr.bf16.gmra.mxu0 %v1005
    %v7937 = vpop.f32.mrf.mxu0
    %v7938 = vadd.f32 %v7898, %v7937
    %v7939 = vpop.f32.mrf.mxu0
    %v7940 = vpop.f32.mrf.mxu0
    %v7941 = vpop.f32.mrf.mxu0
    %7942 = vdwg.mxu0
    %v7943 = vmax.f32 %v3981, %v7449
    %v7944 = vmax.f32 %v3983, %v7451
    %v7945 = vmax.f32 %v4145, %v7613
    %v7946 = vmax.f32 %v4147, %v7615
    %v7947 = vmax.f32 %v4309, %v7777
    %v7948 = vmax.f32 %v4311, %v7779
    %v7949 = vmax.f32 %v4470, %v7938
    %v7950 = vld [vmem:[#allocation13] sm:$0xff]
    %v7952 = vlaneseq
    %v7953 = vshrl.u32 %v7952, 7
    %v7954 = vsub.s32 0, %v7953
    %v7955 = vrot.slane %v7950, %v7954
    %v7956 = vlaneseq
    %v7957 = vshrl.u32 %v7956, 7
    %v7958 = vsub.s32 1, %v7957
    %v7959 = vrot.slane %v7950, %v7958
    %v7960 = vlaneseq
    %v7961 = vshrl.u32 %v7960, 7
    %v7962 = vsub.s32 2, %v7961
    %v7963 = vrot.slane %v7950, %v7962
    %v7964 = vlaneseq
    %v7965 = vshrl.u32 %v7964, 7
    %v7966 = vsub.s32 3, %v7965
    %v7967 = vrot.slane %v7950, %v7966
    %v7968 = vlaneseq
    %v7969 = vshrl.u32 %v7968, 7
    %v7970 = vsub.s32 4, %v7969
    %v7971 = vrot.slane %v7950, %v7970
    %v7972 = vlaneseq
    %v7973 = vshrl.u32 %v7972, 7
    %v7974 = vsub.s32 5, %v7973
    %v7975 = vrot.slane %v7950, %v7974
    %v7976 = vlaneseq
    %v7977 = vshrl.u32 %v7976, 7
    %v7978 = vsub.s32 6, %v7977
    %v7979 = vrot.slane %v7950, %v7978
    %v7987 = vadd.f32 %v7943, %v7955
    %v7988 = vadd.f32 %v7944, %v7959
    %v7989 = vadd.f32 %v7945, %v7963
    %v7990 = vadd.f32 %v7946, %v7967
    %v7991 = vadd.f32 %v7947, %v7971
    %v7992 = vadd.f32 %v7948, %v7975
    %v7993 = vadd.f32 %v7949, %v7979
    %v7994 = vmax.f32 %v7987, 0.0
    %v7995 = vmax.f32 %v7988, 0.0
    %v7996 = vmax.f32 %v7989, 0.0
    %v7997 = vmax.f32 %v7990, 0.0
    %v7998 = vmax.f32 %v7991, 0.0
    %v7999 = vmax.f32 %v7992, 0.0
    %v8000 = vmax.f32 %v7993, 0.0
    %v8001 = vpack.c.bf16 %v7994, %v7994
    %v8002 = vpack.c.bf16 %v7995, %v7995
    %v8003 = vpack.c.bf16 %v7996, %v7996
    %v8004 = vpack.c.bf16 %v7997, %v7997
    %v8005 = vpack.c.bf16 %v7998, %v7998
    %v8006 = vpack.c.bf16 %v7999, %v7999
    %v8007 = vpack.c.bf16 %v8000, %v8000
    %v8008 = vld [vmem:[#allocation14] sm:$0xff]
    %v8009 = vld [vmem:[#allocation14 + $0x8] sm:$0xff]
    %v8010 = vld [vmem:[#allocation14 + $0x10] sm:$0xff]
    %v8011 = vld [vmem:[#allocation14 + $0x18] sm:$0xff]
    %v8012 = vld [vmem:[#allocation14 + $0x20] sm:$0xff]
    %v8013 = vld [vmem:[#allocation14 + $0x28] sm:$0xff]
    %v8014 = vld [vmem:[#allocation14 + $0x30] sm:$0xff]
    %v8015 = vld [vmem:[#allocation14 + $0x38] sm:$0xff]
    %v8016 = vld [vmem:[#allocation14 + $0x40] sm:$0xff]
    %v8017 = vld [vmem:[#allocation14 + $0x48] sm:$0xff]
    %v8018 = vld [vmem:[#allocation14 + $0x50] sm:$0xff]
    %v8019 = vld [vmem:[#allocation14 + $0x58] sm:$0xff]
    %v8020 = vld [vmem:[#allocation14 + $0x60] sm:$0xff]
    %v8021 = vld [vmem:[#allocation14 + $0x68] sm:$0xff]
    %v8022 = vld [vmem:[#allocation14 + $0x70] sm:$0xff]
    %v8023 = vld [vmem:[#allocation14 + $0x78] sm:$0xff]
    %v8024 = vld [vmem:[#allocation14 + $0x80] sm:$0xff]
    %v8025 = vld [vmem:[#allocation14 + $0x88] sm:$0xff]
    %v8026 = vld [vmem:[#allocation14 + $0x90] sm:$0xff]
    %v8027 = vld [vmem:[#allocation14 + $0x98] sm:$0xff]
    %v8028 = vld [vmem:[#allocation14 + $0xa0] sm:$0xff]
    %v8029 = vld [vmem:[#allocation14 + $0xa8] sm:$0xff]
    %v8030 = vld [vmem:[#allocation14 + $0xb0] sm:$0xff]
    %v8031 = vld [vmem:[#allocation14 + $0xb8] sm:$0xff]
    %v8032 = vld [vmem:[#allocation14 + $0xc0] sm:$0xff]
    %v8033 = vld [vmem:[#allocation14 + $0xc8] sm:$0xff]
    %v8034 = vld [vmem:[#allocation14 + $0xd0] sm:$0xff]
    %v8035 = vld [vmem:[#allocation14 + $0xd8] sm:$0xff]
    %v8036 = vld [vmem:[#allocation14 + $0xe0] sm:$0xff]
    %v8037 = vld [vmem:[#allocation14 + $0xe8] sm:$0xff]
    %v8038 = vld [vmem:[#allocation14 + $0xf0] sm:$0xff]
    %v8039 = vld [vmem:[#allocation14 + $0xf8] sm:$0xff]
    %v8040 = vld [vmem:[#allocation14 + $0x100] sm:$0xff]
    %v8041 = vld [vmem:[#allocation14 + $0x108] sm:$0xff]
    %v8042 = vld [vmem:[#allocation14 + $0x110] sm:$0xff]
    %v8043 = vld [vmem:[#allocation14 + $0x118] sm:$0xff]
    %v8044 = vld [vmem:[#allocation14 + $0x120] sm:$0xff]
    %v8045 = vld [vmem:[#allocation14 + $0x128] sm:$0xff]
    %v8046 = vld [vmem:[#allocation14 + $0x130] sm:$0xff]
    %v8047 = vld [vmem:[#allocation14 + $0x138] sm:$0xff]
    %v8048 = vld [vmem:[#allocation14 + $0x140] sm:$0xff]
    %v8049 = vld [vmem:[#allocation14 + $0x148] sm:$0xff]
    %v8050 = vld [vmem:[#allocation14 + $0x150] sm:$0xff]
    %v8051 = vld [vmem:[#allocation14 + $0x158] sm:$0xff]
    %v8052 = vld [vmem:[#allocation14 + $0x160] sm:$0xff]
    %v8053 = vld [vmem:[#allocation14 + $0x168] sm:$0xff]
    %v8054 = vld [vmem:[#allocation14 + $0x170] sm:$0xff]
    %v8055 = vld [vmem:[#allocation14 + $0x178] sm:$0xff]
    %v8056 = vld [vmem:[#allocation14 + $0x180] sm:$0xff]
    %v8057 = vld [vmem:[#allocation14 + $0x188] sm:$0xff]
    %v8058 = vld [vmem:[#allocation14 + $0x190] sm:$0xff]
    %v8059 = vld [vmem:[#allocation14 + $0x198] sm:$0xff]
    %v8060 = vld [vmem:[#allocation14 + $0x1a0] sm:$0xff]
    %v8061 = vld [vmem:[#allocation14 + $0x1a8] sm:$0xff]
    %v8062 = vld [vmem:[#allocation14 + $0x1b0] sm:$0xff]
    %v8063 = vld [vmem:[#allocation14 + $0x1b8] sm:$0xff]
    %v8064 = vld [vmem:[#allocation14 + $0x1c0] sm:$0xff]
    %v8065 = vld [vmem:[#allocation14 + $0x1c8] sm:$0xff]
    %v8066 = vld [vmem:[#allocation14 + $0x1d0] sm:$0xff]
    %v8067 = vld [vmem:[#allocation14 + $0x1d8] sm:$0xff]
    %v8068 = vld [vmem:[#allocation14 + $0x1e0] sm:$0xff]
    %v8069 = vld [vmem:[#allocation14 + $0x1e8] sm:$0xff]
    %v8070 = vld [vmem:[#allocation14 + $0x1f0] sm:$0xff]
    %v8071 = vld [vmem:[#allocation14 + $0x1f8] sm:$0xff]
    %v8072 = vld [vmem:[#allocation14 + $0x200] sm:$0xff]
    %v8073 = vld [vmem:[#allocation14 + $0x208] sm:$0xff]
    %v8074 = vld [vmem:[#allocation14 + $0x210] sm:$0xff]
    %v8075 = vld [vmem:[#allocation14 + $0x218] sm:$0xff]
    %v8076 = vld [vmem:[#allocation14 + $0x220] sm:$0xff]
    %v8077 = vld [vmem:[#allocation14 + $0x228] sm:$0xff]
    %v8078 = vld [vmem:[#allocation14 + $0x230] sm:$0xff]
    %v8079 = vld [vmem:[#allocation14 + $0x238] sm:$0xff]
    %v8080 = vld [vmem:[#allocation14 + $0x240] sm:$0xff]
    %v8081 = vld [vmem:[#allocation14 + $0x248] sm:$0xff]
    %v8082 = vld [vmem:[#allocation14 + $0x250] sm:$0xff]
    %v8083 = vld [vmem:[#allocation14 + $0x258] sm:$0xff]
    %v8084 = vld [vmem:[#allocation14 + $0x260] sm:$0xff]
    %v8085 = vld [vmem:[#allocation14 + $0x268] sm:$0xff]
    %v8086 = vld [vmem:[#allocation14 + $0x270] sm:$0xff]
    %v8087 = vld [vmem:[#allocation14 + $0x278] sm:$0xff]
    %v8088 = vld [vmem:[#allocation14 + $0x280] sm:$0xff]
    %v8089 = vld [vmem:[#allocation14 + $0x288] sm:$0xff]
    %v8090 = vld [vmem:[#allocation14 + $0x290] sm:$0xff]
    %v8091 = vld [vmem:[#allocation14 + $0x298] sm:$0xff]
    %v8092 = vld [vmem:[#allocation14 + $0x2a0] sm:$0xff]
    %v8093 = vld [vmem:[#allocation14 + $0x2a8] sm:$0xff]
    %v8094 = vld [vmem:[#allocation14 + $0x2b0] sm:$0xff]
    %v8095 = vld [vmem:[#allocation14 + $0x2b8] sm:$0xff]
    %v8096 = vld [vmem:[#allocation14 + $0x2c0] sm:$0xff]
    %v8097 = vld [vmem:[#allocation14 + $0x2c8] sm:$0xff]
    %v8098 = vld [vmem:[#allocation14 + $0x2d0] sm:$0xff]
    %v8099 = vld [vmem:[#allocation14 + $0x2d8] sm:$0xff]
    %v8100 = vld [vmem:[#allocation14 + $0x2e0] sm:$0xff]
    %v8101 = vld [vmem:[#allocation14 + $0x2e8] sm:$0xff]
    %v8102 = vld [vmem:[#allocation14 + $0x2f0] sm:$0xff]
    %v8103 = vld [vmem:[#allocation14 + $0x2f8] sm:$0xff]
    %v8104 = vld [vmem:[#allocation14 + $0x300] sm:$0xff]
    %v8105 = vld [vmem:[#allocation14 + $0x308] sm:$0xff]
    %v8106 = vld [vmem:[#allocation14 + $0x310] sm:$0xff]
    %v8107 = vld [vmem:[#allocation14 + $0x318] sm:$0xff]
    %v8108 = vld [vmem:[#allocation14 + $0x320] sm:$0xff]
    %v8109 = vld [vmem:[#allocation14 + $0x328] sm:$0xff]
    %v8110 = vld [vmem:[#allocation14 + $0x330] sm:$0xff]
    %v8111 = vld [vmem:[#allocation14 + $0x338] sm:$0xff]
    %v8112 = vld [vmem:[#allocation14 + $0x340] sm:$0xff]
    %v8113 = vld [vmem:[#allocation14 + $0x348] sm:$0xff]
    %v8114 = vld [vmem:[#allocation14 + $0x350] sm:$0xff]
    %v8115 = vld [vmem:[#allocation14 + $0x358] sm:$0xff]
    %v8116 = vld [vmem:[#allocation14 + $0x360] sm:$0xff]
    %v8117 = vld [vmem:[#allocation14 + $0x368] sm:$0xff]
    %v8118 = vld [vmem:[#allocation14 + $0x370] sm:$0xff]
    %v8119 = vld [vmem:[#allocation14 + $0x378] sm:$0xff]
    %v8120 = vld [vmem:[#allocation16] sm:$0x3]
    %v8122 = vlaneseq
    %v8123 = vshrl.u32 %v8122, 7
    %v8124 = vsub.s32 0, %v8123
    %v8125 = vrot.slane %v8120, %v8124
    %v8126 = vlaneseq
    %v8127 = vshrl.u32 %v8126, 7
    %v8128 = vsub.s32 1, %v8127
    %v8129 = vrot.slane %v8120, %v8128
    %v8244 = vunpack.c.l.b16 %v8008
    %v8245 = vunpack.c.h.b16 %v8008
    %v8246 = vunpack.c.l.b16 %v8009
    %v8247 = vunpack.c.h.b16 %v8009
    %v8248 = vunpack.c.l.b16 %v8010
    %v8249 = vunpack.c.h.b16 %v8010
    %v8250 = vunpack.c.l.b16 %v8011
    %v8251 = vunpack.c.h.b16 %v8011
    %v8252 = vunpack.c.l.b16 %v8012
    %v8253 = vunpack.c.h.b16 %v8012
    %v8254 = vunpack.c.l.b16 %v8013
    %v8255 = vunpack.c.h.b16 %v8013
    %v8256 = vunpack.c.l.b16 %v8014
    %v8257 = vunpack.c.h.b16 %v8014
    %v8258 = vunpack.c.l.b16 %v8015
    %v8259 = vunpack.c.h.b16 %v8015
    %v8260 = vunpack.c.l.b16 %v8016
    %v8261 = vunpack.c.h.b16 %v8016
    %v8262 = vunpack.c.l.b16 %v8017
    %v8263 = vunpack.c.h.b16 %v8017
    %v8264 = vunpack.c.l.b16 %v8018
    %v8265 = vunpack.c.h.b16 %v8018
    %v8266 = vunpack.c.l.b16 %v8019
    %v8267 = vunpack.c.h.b16 %v8019
    %v8268 = vunpack.c.l.b16 %v8020
    %v8269 = vunpack.c.h.b16 %v8020
    %v8270 = vunpack.c.l.b16 %v8021
    %v8271 = vunpack.c.h.b16 %v8021
    %v8272 = vunpack.c.l.b16 %v8022
    %v8273 = vunpack.c.h.b16 %v8022
    %v8274 = vunpack.c.l.b16 %v8023
    %v8275 = vunpack.c.h.b16 %v8023
    %v8276 = vunpack.c.l.b16 %v8024
    %v8277 = vunpack.c.h.b16 %v8024
    %v8278 = vunpack.c.l.b16 %v8025
    %v8279 = vunpack.c.h.b16 %v8025
    %v8280 = vunpack.c.l.b16 %v8026
    %v8281 = vunpack.c.h.b16 %v8026
    %v8282 = vunpack.c.l.b16 %v8027
    %v8283 = vunpack.c.h.b16 %v8027
    %v8284 = vunpack.c.l.b16 %v8028
    %v8285 = vunpack.c.h.b16 %v8028
    %v8286 = vunpack.c.l.b16 %v8029
    %v8287 = vunpack.c.h.b16 %v8029
    %v8288 = vunpack.c.l.b16 %v8030
    %v8289 = vunpack.c.h.b16 %v8030
    %v8290 = vunpack.c.l.b16 %v8031
    %v8291 = vunpack.c.h.b16 %v8031
    %v8292 = vunpack.c.l.b16 %v8032
    %v8293 = vunpack.c.h.b16 %v8032
    %v8294 = vunpack.c.l.b16 %v8033
    %v8295 = vunpack.c.h.b16 %v8033
    %v8296 = vunpack.c.l.b16 %v8034
    %v8297 = vunpack.c.h.b16 %v8034
    %v8298 = vunpack.c.l.b16 %v8035
    %v8299 = vunpack.c.h.b16 %v8035
    %v8300 = vunpack.c.l.b16 %v8036
    %v8301 = vunpack.c.h.b16 %v8036
    %v8302 = vunpack.c.l.b16 %v8037
    %v8303 = vunpack.c.h.b16 %v8037
    %v8304 = vunpack.c.l.b16 %v8038
    %v8305 = vunpack.c.h.b16 %v8038
    %v8306 = vunpack.c.l.b16 %v8039
    %v8307 = vunpack.c.h.b16 %v8039
    %v8308 = vunpack.c.l.b16 %v8040
    %v8309 = vunpack.c.h.b16 %v8040
    %v8310 = vunpack.c.l.b16 %v8041
    %v8311 = vunpack.c.h.b16 %v8041
    %v8312 = vunpack.c.l.b16 %v8042
    %v8313 = vunpack.c.h.b16 %v8042
    %v8314 = vunpack.c.l.b16 %v8043
    %v8315 = vunpack.c.h.b16 %v8043
    %v8316 = vunpack.c.l.b16 %v8044
    %v8317 = vunpack.c.h.b16 %v8044
    %v8318 = vunpack.c.l.b16 %v8045
    %v8319 = vunpack.c.h.b16 %v8045
    %v8320 = vunpack.c.l.b16 %v8046
    %v8321 = vunpack.c.h.b16 %v8046
    %v8322 = vunpack.c.l.b16 %v8047
    %v8323 = vunpack.c.h.b16 %v8047
    %v8324 = vunpack.c.l.b16 %v8048
    %v8325 = vunpack.c.h.b16 %v8048
    %v8326 = vunpack.c.l.b16 %v8049
    %v8327 = vunpack.c.h.b16 %v8049
    %v8328 = vunpack.c.l.b16 %v8050
    %v8329 = vunpack.c.h.b16 %v8050
    %v8330 = vunpack.c.l.b16 %v8051
    %v8331 = vunpack.c.h.b16 %v8051
    %v8332 = vunpack.c.l.b16 %v8052
    %v8333 = vunpack.c.h.b16 %v8052
    %v8334 = vunpack.c.l.b16 %v8053
    %v8335 = vunpack.c.h.b16 %v8053
    %v8336 = vunpack.c.l.b16 %v8054
    %v8337 = vunpack.c.h.b16 %v8054
    %v8338 = vunpack.c.l.b16 %v8055
    %v8339 = vunpack.c.h.b16 %v8055
    %v8340 = vunpack.c.l.b16 %v8056
    %v8341 = vunpack.c.h.b16 %v8056
    %v8342 = vunpack.c.l.b16 %v8057
    %v8343 = vunpack.c.h.b16 %v8057
    %v8344 = vunpack.c.l.b16 %v8058
    %v8345 = vunpack.c.h.b16 %v8058
    %v8346 = vunpack.c.l.b16 %v8059
    %v8347 = vunpack.c.h.b16 %v8059
    %v8348 = vunpack.c.l.b16 %v8060
    %v8349 = vunpack.c.h.b16 %v8060
    %v8350 = vunpack.c.l.b16 %v8061
    %v8351 = vunpack.c.h.b16 %v8061
    %v8352 = vunpack.c.l.b16 %v8062
    %v8353 = vunpack.c.h.b16 %v8062
    %v8354 = vunpack.c.l.b16 %v8063
    %v8355 = vunpack.c.h.b16 %v8063
    %v8356 = vunpack.c.l.b16 %v8064
    %v8357 = vunpack.c.h.b16 %v8064
    %v8358 = vunpack.c.l.b16 %v8065
    %v8359 = vunpack.c.h.b16 %v8065
    %v8360 = vunpack.c.l.b16 %v8066
    %v8361 = vunpack.c.h.b16 %v8066
    %v8362 = vunpack.c.l.b16 %v8067
    %v8363 = vunpack.c.h.b16 %v8067
    %v8364 = vunpack.c.l.b16 %v8068
    %v8365 = vunpack.c.h.b16 %v8068
    %v8366 = vunpack.c.l.b16 %v8069
    %v8367 = vunpack.c.h.b16 %v8069
    %v8368 = vunpack.c.l.b16 %v8070
    %v8369 = vunpack.c.h.b16 %v8070
    %v8370 = vunpack.c.l.b16 %v8071
    %v8371 = vunpack.c.h.b16 %v8071
    %v8372 = vunpack.c.l.b16 %v8072
    %v8373 = vunpack.c.h.b16 %v8072
    %v8374 = vunpack.c.l.b16 %v8073
    %v8375 = vunpack.c.h.b16 %v8073
    %v8376 = vunpack.c.l.b16 %v8074
    %v8377 = vunpack.c.h.b16 %v8074
    %v8378 = vunpack.c.l.b16 %v8075
    %v8379 = vunpack.c.h.b16 %v8075
    %v8380 = vunpack.c.l.b16 %v8076
    %v8381 = vunpack.c.h.b16 %v8076
    %v8382 = vunpack.c.l.b16 %v8077
    %v8383 = vunpack.c.h.b16 %v8077
    %v8384 = vunpack.c.l.b16 %v8078
    %v8385 = vunpack.c.h.b16 %v8078
    %v8386 = vunpack.c.l.b16 %v8079
    %v8387 = vunpack.c.h.b16 %v8079
    %v8388 = vunpack.c.l.b16 %v8080
    %v8389 = vunpack.c.h.b16 %v8080
    %v8390 = vunpack.c.l.b16 %v8081
    %v8391 = vunpack.c.h.b16 %v8081
    %v8392 = vunpack.c.l.b16 %v8082
    %v8393 = vunpack.c.h.b16 %v8082
    %v8394 = vunpack.c.l.b16 %v8083
    %v8395 = vunpack.c.h.b16 %v8083
    %v8396 = vunpack.c.l.b16 %v8084
    %v8397 = vunpack.c.h.b16 %v8084
    %v8398 = vunpack.c.l.b16 %v8085
    %v8399 = vunpack.c.h.b16 %v8085
    %v8400 = vunpack.c.l.b16 %v8086
    %v8401 = vunpack.c.h.b16 %v8086
    %v8402 = vunpack.c.l.b16 %v8087
    %v8403 = vunpack.c.h.b16 %v8087
    %v8404 = vunpack.c.l.b16 %v8088
    %v8405 = vunpack.c.h.b16 %v8088
    %v8406 = vunpack.c.l.b16 %v8089
    %v8407 = vunpack.c.h.b16 %v8089
    %v8408 = vunpack.c.l.b16 %v8090
    %v8409 = vunpack.c.h.b16 %v8090
    %v8410 = vunpack.c.l.b16 %v8091
    %v8411 = vunpack.c.h.b16 %v8091
    %v8412 = vunpack.c.l.b16 %v8092
    %v8413 = vunpack.c.h.b16 %v8092
    %v8414 = vunpack.c.l.b16 %v8093
    %v8415 = vunpack.c.h.b16 %v8093
    %v8416 = vunpack.c.l.b16 %v8094
    %v8417 = vunpack.c.h.b16 %v8094
    %v8418 = vunpack.c.l.b16 %v8095
    %v8419 = vunpack.c.h.b16 %v8095
    %v8420 = vunpack.c.l.b16 %v8096
    %v8421 = vunpack.c.h.b16 %v8096
    %v8422 = vunpack.c.l.b16 %v8097
    %v8423 = vunpack.c.h.b16 %v8097
    %v8424 = vunpack.c.l.b16 %v8098
    %v8425 = vunpack.c.h.b16 %v8098
    %v8426 = vunpack.c.l.b16 %v8099
    %v8427 = vunpack.c.h.b16 %v8099
    %v8428 = vunpack.c.l.b16 %v8100
    %v8429 = vunpack.c.h.b16 %v8100
    %v8430 = vunpack.c.l.b16 %v8101
    %v8431 = vunpack.c.h.b16 %v8101
    %v8432 = vunpack.c.l.b16 %v8102
    %v8433 = vunpack.c.h.b16 %v8102
    %v8434 = vunpack.c.l.b16 %v8103
    %v8435 = vunpack.c.h.b16 %v8103
    %v8436 = vunpack.c.l.b16 %v8104
    %v8437 = vunpack.c.h.b16 %v8104
    %v8438 = vunpack.c.l.b16 %v8105
    %v8439 = vunpack.c.h.b16 %v8105
    %v8440 = vunpack.c.l.b16 %v8106
    %v8441 = vunpack.c.h.b16 %v8106
    %v8442 = vunpack.c.l.b16 %v8107
    %v8443 = vunpack.c.h.b16 %v8107
    %v8444 = vunpack.c.l.b16 %v8108
    %v8445 = vunpack.c.h.b16 %v8108
    %v8446 = vunpack.c.l.b16 %v8109
    %v8447 = vunpack.c.h.b16 %v8109
    %v8448 = vunpack.c.l.b16 %v8110
    %v8449 = vunpack.c.h.b16 %v8110
    %v8450 = vunpack.c.l.b16 %v8111
    %v8451 = vunpack.c.h.b16 %v8111
    %v8452 = vunpack.c.l.b16 %v8112
    %v8453 = vunpack.c.h.b16 %v8112
    %v8454 = vunpack.c.l.b16 %v8113
    %v8455 = vunpack.c.h.b16 %v8113
    %v8456 = vunpack.c.l.b16 %v8114
    %v8457 = vunpack.c.h.b16 %v8114
    %v8458 = vunpack.c.l.b16 %v8115
    %v8459 = vunpack.c.h.b16 %v8115
    %v8460 = vunpack.c.l.b16 %v8116
    %v8461 = vunpack.c.h.b16 %v8116
    %v8462 = vunpack.c.l.b16 %v8117
    %v8463 = vunpack.c.h.b16 %v8117
    %v8464 = vunpack.c.l.b16 %v8118
    %v8465 = vunpack.c.h.b16 %v8118
    %v8466 = vunpack.c.l.b16 %v8119
    %v8467 = vunpack.c.h.b16 %v8119
    %v8468 = vpack.c.b16 %v8246, %v8244
    %v8469 = vpack.c.b16 %v8247, %v8245
    %v8470 = vpack.c.b16 %v8250, %v8248
    %v8471 = vpack.c.b16 %v8251, %v8249
    %v8472 = vpack.c.b16 %v8254, %v8252
    %v8473 = vpack.c.b16 %v8255, %v8253
    %v8474 = vpack.c.b16 %v8258, %v8256
    %v8475 = vpack.c.b16 %v8259, %v8257
    %v8476 = vpack.c.b16 %v8262, %v8260
    %v8477 = vpack.c.b16 %v8263, %v8261
    %v8478 = vpack.c.b16 %v8266, %v8264
    %v8479 = vpack.c.b16 %v8267, %v8265
    %v8480 = vpack.c.b16 %v8270, %v8268
    %v8481 = vpack.c.b16 %v8271, %v8269
    %v8482 = vpack.c.b16 %v8274, %v8272
    %v8483 = vpack.c.b16 %v8275, %v8273
    %v8484 = vpack.c.b16 %v8278, %v8276
    %v8485 = vpack.c.b16 %v8279, %v8277
    %v8486 = vpack.c.b16 %v8282, %v8280
    %v8487 = vpack.c.b16 %v8283, %v8281
    %v8488 = vpack.c.b16 %v8286, %v8284
    %v8489 = vpack.c.b16 %v8287, %v8285
    %v8490 = vpack.c.b16 %v8290, %v8288
    %v8491 = vpack.c.b16 %v8291, %v8289
    %v8492 = vpack.c.b16 %v8294, %v8292
    %v8493 = vpack.c.b16 %v8295, %v8293
    %v8494 = vpack.c.b16 %v8298, %v8296
    %v8495 = vpack.c.b16 %v8299, %v8297
    %v8496 = vpack.c.b16 %v8302, %v8300
    %v8497 = vpack.c.b16 %v8303, %v8301
    %v8498 = vpack.c.b16 %v8306, %v8304
    %v8499 = vpack.c.b16 %v8307, %v8305
    %v8500 = vpack.c.b16 %v8310, %v8308
    %v8501 = vpack.c.b16 %v8311, %v8309
    %v8502 = vpack.c.b16 %v8314, %v8312
    %v8503 = vpack.c.b16 %v8315, %v8313
    %v8504 = vpack.c.b16 %v8318, %v8316
    %v8505 = vpack.c.b16 %v8319, %v8317
    %v8506 = vpack.c.b16 %v8322, %v8320
    %v8507 = vpack.c.b16 %v8323, %v8321
    %v8508 = vpack.c.b16 %v8326, %v8324
    %v8509 = vpack.c.b16 %v8327, %v8325
    %v8510 = vpack.c.b16 %v8330, %v8328
    %v8511 = vpack.c.b16 %v8331, %v8329
    %v8512 = vpack.c.b16 %v8334, %v8332
    %v8513 = vpack.c.b16 %v8335, %v8333
    %v8514 = vpack.c.b16 %v8338, %v8336
    %v8515 = vpack.c.b16 %v8339, %v8337
    %v8516 = vpack.c.b16 %v8342, %v8340
    %v8517 = vpack.c.b16 %v8343, %v8341
    %v8518 = vpack.c.b16 %v8346, %v8344
    %v8519 = vpack.c.b16 %v8347, %v8345
    %v8520 = vpack.c.b16 %v8350, %v8348
    %v8521 = vpack.c.b16 %v8351, %v8349
    %v8522 = vpack.c.b16 %v8354, %v8352
    %v8523 = vpack.c.b16 %v8355, %v8353
    %v8524 = vpack.c.b16 %v8358, %v8356
    %v8525 = vpack.c.b16 %v8359, %v8357
    %v8526 = vpack.c.b16 %v8362, %v8360
    %v8527 = vpack.c.b16 %v8363, %v8361
    %v8528 = vpack.c.b16 %v8366, %v8364
    %v8529 = vpack.c.b16 %v8367, %v8365
    %v8530 = vpack.c.b16 %v8370, %v8368
    %v8531 = vpack.c.b16 %v8371, %v8369
    %v8532 = vpack.c.b16 %v8374, %v8372
    %v8533 = vpack.c.b16 %v8375, %v8373
    %v8534 = vpack.c.b16 %v8378, %v8376
    %v8535 = vpack.c.b16 %v8379, %v8377
    %v8536 = vpack.c.b16 %v8382, %v8380
    %v8537 = vpack.c.b16 %v8383, %v8381
    %v8538 = vpack.c.b16 %v8386, %v8384
    %v8539 = vpack.c.b16 %v8387, %v8385
    %v8540 = vpack.c.b16 %v8390, %v8388
    %v8541 = vpack.c.b16 %v8391, %v8389
    %v8542 = vpack.c.b16 %v8394, %v8392
    %v8543 = vpack.c.b16 %v8395, %v8393
    %v8544 = vpack.c.b16 %v8398, %v8396
    %v8545 = vpack.c.b16 %v8399, %v8397
    %v8546 = vpack.c.b16 %v8402, %v8400
    %v8547 = vpack.c.b16 %v8403, %v8401
    %v8548 = vpack.c.b16 %v8406, %v8404
    %v8549 = vpack.c.b16 %v8407, %v8405
    %v8550 = vpack.c.b16 %v8410, %v8408
    %v8551 = vpack.c.b16 %v8411, %v8409
    %v8552 = vpack.c.b16 %v8414, %v8412
    %v8553 = vpack.c.b16 %v8415, %v8413
    %v8554 = vpack.c.b16 %v8418, %v8416
    %v8555 = vpack.c.b16 %v8419, %v8417
    %v8556 = vpack.c.b16 %v8422, %v8420
    %v8557 = vpack.c.b16 %v8423, %v8421
    %v8558 = vpack.c.b16 %v8426, %v8424
    %v8559 = vpack.c.b16 %v8427, %v8425
    %v8560 = vpack.c.b16 %v8430, %v8428
    %v8561 = vpack.c.b16 %v8431, %v8429
    %v8562 = vpack.c.b16 %v8434, %v8432
    %v8563 = vpack.c.b16 %v8435, %v8433
    %v8564 = vpack.c.b16 %v8438, %v8436
    %v8565 = vpack.c.b16 %v8439, %v8437
    %v8566 = vpack.c.b16 %v8442, %v8440
    %v8567 = vpack.c.b16 %v8443, %v8441
    %v8568 = vpack.c.b16 %v8446, %v8444
    %v8569 = vpack.c.b16 %v8447, %v8445
    %v8570 = vpack.c.b16 %v8450, %v8448
    %v8571 = vpack.c.b16 %v8451, %v8449
    %v8572 = vpack.c.b16 %v8454, %v8452
    %v8573 = vpack.c.b16 %v8455, %v8453
    %v8574 = vpack.c.b16 %v8458, %v8456
    %v8575 = vpack.c.b16 %v8459, %v8457
    %v8576 = vpack.c.b16 %v8462, %v8460
    %v8577 = vpack.c.b16 %v8463, %v8461
    %v8578 = vpack.c.b16 %v8466, %v8464
    %v8579 = vpack.c.b16 %v8467, %v8465
    %8692 = vmatprep.subr.bf16.mxu0 %v8483
    %8693 = vmatpush1.bf16.msra.mxu0 %v8482
    %8694 = vmatprep.subr.bf16.mxu0 %v8481
    %8695 = vmatpush1.bf16.msra.mxu0 %v8480
    %8696 = vmatprep.subr.bf16.mxu0 %v8479
    %8697 = vmatpush1.bf16.msra.mxu0 %v8478
    %8698 = vmatprep.subr.bf16.mxu0 %v8477
    %8699 = vmatpush1.bf16.msra.mxu0 %v8476
    %8700 = vmatprep.subr.bf16.mxu0 %v8475
    %8701 = vmatpush1.bf16.msra.mxu0 %v8474
    %8702 = vmatprep.subr.bf16.mxu0 %v8473
    %8703 = vmatpush1.bf16.msra.mxu0 %v8472
    %8704 = vmatprep.subr.bf16.mxu0 %v8471
    %8705 = vmatpush1.bf16.msra.mxu0 %v8470
    %8706 = vmatprep.subr.bf16.mxu0 %v8469
    %8707 = vmatpush1.bf16.msra.mxu0 %v8468
    %8708 = vmatprep.subr.bf16.mxu0 %v8499
    %8709 = vmatpush2.bf16.msra.mxu0 %v8498
    %8710 = vmatprep.subr.bf16.mxu0 %v8497
    %8711 = vmatpush2.bf16.msra.mxu0 %v8496
    %8712 = vmatprep.subr.bf16.mxu0 %v8495
    %8713 = vmatpush2.bf16.msra.mxu0 %v8494
    %8714 = vmatprep.subr.bf16.mxu0 %v8493
    %8715 = vmatpush2.bf16.msra.mxu0 %v8492
    %8716 = vmatprep.subr.bf16.mxu0 %v8491
    %8717 = vmatpush2.bf16.msra.mxu0 %v8490
    %8718 = vmatprep.subr.bf16.mxu0 %v8489
    %8719 = vmatpush2.bf16.msra.mxu0 %v8488
    %8720 = vmatprep.subr.bf16.mxu0 %v8487
    %8721 = vmatpush2.bf16.msra.mxu0 %v8486
    %8722 = vmatprep.subr.bf16.mxu0 %v8485
    %8723 = vmatpush2.bf16.msra.mxu0 %v8484
    %8724 = vmatprep.mubr.bf16.mxu0 %v8002
    %8725 = vmatmul.mubr.bf16.gmra.mxu0 %v8001
    %v8726 = vpop.f32.mrf.mxu0
    %v8727 = vadd.f32 %v8125, %v8726
    %v8728 = vpop.f32.mrf.mxu0
    %v8729 = vadd.f32 %v8129, %v8728
    %v8730 = vpop.f32.mrf.mxu0
    %v8731 = vpop.f32.mrf.mxu0
    %8732 = vdwg.mxu0
    %8733 = vmatprep.subr.bf16.mxu0 %v8515
    %8734 = vmatpush1.bf16.msra.mxu0 %v8514
    %8735 = vmatprep.subr.bf16.mxu0 %v8513
    %8736 = vmatpush1.bf16.msra.mxu0 %v8512
    %8737 = vmatprep.subr.bf16.mxu0 %v8511
    %8738 = vmatpush1.bf16.msra.mxu0 %v8510
    %8739 = vmatprep.subr.bf16.mxu0 %v8509
    %8740 = vmatpush1.bf16.msra.mxu0 %v8508
    %8741 = vmatprep.subr.bf16.mxu0 %v8507
    %8742 = vmatpush1.bf16.msra.mxu0 %v8506
    %8743 = vmatprep.subr.bf16.mxu0 %v8505
    %8744 = vmatpush1.bf16.msra.mxu0 %v8504
    %8745 = vmatprep.subr.bf16.mxu0 %v8503
    %8746 = vmatpush1.bf16.msra.mxu0 %v8502
    %8747 = vmatprep.subr.bf16.mxu0 %v8501
    %8748 = vmatpush1.bf16.msra.mxu0 %v8500
    %8749 = vmatprep.subr.bf16.mxu0 %v8531
    %8750 = vmatpush2.bf16.msra.mxu0 %v8530
    %8751 = vmatprep.subr.bf16.mxu0 %v8529
    %8752 = vmatpush2.bf16.msra.mxu0 %v8528
    %8753 = vmatprep.subr.bf16.mxu0 %v8527
    %8754 = vmatpush2.bf16.msra.mxu0 %v8526
    %8755 = vmatprep.subr.bf16.mxu0 %v8525
    %8756 = vmatpush2.bf16.msra.mxu0 %v8524
    %8757 = vmatprep.subr.bf16.mxu0 %v8523
    %8758 = vmatpush2.bf16.msra.mxu0 %v8522
    %8759 = vmatprep.subr.bf16.mxu0 %v8521
    %8760 = vmatpush2.bf16.msra.mxu0 %v8520
    %8761 = vmatprep.subr.bf16.mxu0 %v8519
    %8762 = vmatpush2.bf16.msra.mxu0 %v8518
    %8763 = vmatprep.subr.bf16.mxu0 %v8517
    %8764 = vmatpush2.bf16.msra.mxu0 %v8516
    %8765 = vmatprep.mubr.bf16.mxu0 %v8004
    %8766 = vmatmul.mubr.bf16.gmra.mxu0 %v8003
    %v8767 = vpop.f32.mrf.mxu0
    %v8768 = vadd.f32 %v8727, %v8767
    %v8769 = vpop.f32.mrf.mxu0
    %v8770 = vadd.f32 %v8729, %v8769
    %v8771 = vpop.f32.mrf.mxu0
    %v8772 = vpop.f32.mrf.mxu0
    %8773 = vdwg.mxu0
    %8774 = vmatprep.subr.bf16.mxu0 %v8547
    %8775 = vmatpush1.bf16.msra.mxu0 %v8546
    %8776 = vmatprep.subr.bf16.mxu0 %v8545
    %8777 = vmatpush1.bf16.msra.mxu0 %v8544
    %8778 = vmatprep.subr.bf16.mxu0 %v8543
    %8779 = vmatpush1.bf16.msra.mxu0 %v8542
    %8780 = vmatprep.subr.bf16.mxu0 %v8541
    %8781 = vmatpush1.bf16.msra.mxu0 %v8540
    %8782 = vmatprep.subr.bf16.mxu0 %v8539
    %8783 = vmatpush1.bf16.msra.mxu0 %v8538
    %8784 = vmatprep.subr.bf16.mxu0 %v8537
    %8785 = vmatpush1.bf16.msra.mxu0 %v8536
    %8786 = vmatprep.subr.bf16.mxu0 %v8535
    %8787 = vmatpush1.bf16.msra.mxu0 %v8534
    %8788 = vmatprep.subr.bf16.mxu0 %v8533
    %8789 = vmatpush1.bf16.msra.mxu0 %v8532
    %8790 = vmatprep.subr.bf16.mxu0 %v8563
    %8791 = vmatpush2.bf16.msra.mxu0 %v8562
    %8792 = vmatprep.subr.bf16.mxu0 %v8561
    %8793 = vmatpush2.bf16.msra.mxu0 %v8560
    %8794 = vmatprep.subr.bf16.mxu0 %v8559
    %8795 = vmatpush2.bf16.msra.mxu0 %v8558
    %8796 = vmatprep.subr.bf16.mxu0 %v8557
    %8797 = vmatpush2.bf16.msra.mxu0 %v8556
    %8798 = vmatprep.subr.bf16.mxu0 %v8555
    %8799 = vmatpush2.bf16.msra.mxu0 %v8554
    %8800 = vmatprep.subr.bf16.mxu0 %v8553
    %8801 = vmatpush2.bf16.msra.mxu0 %v8552
    %8802 = vmatprep.subr.bf16.mxu0 %v8551
    %8803 = vmatpush2.bf16.msra.mxu0 %v8550
    %8804 = vmatprep.subr.bf16.mxu0 %v8549
    %8805 = vmatpush2.bf16.msra.mxu0 %v8548
    %8806 = vmatprep.mubr.bf16.mxu0 %v8006
    %8807 = vmatmul.mubr.bf16.gmra.mxu0 %v8005
    %v8808 = vpop.f32.mrf.mxu0
    %v8809 = vadd.f32 %v8768, %v8808
    %v8810 = vpop.f32.mrf.mxu0
    %v8811 = vadd.f32 %v8770, %v8810
    %v8812 = vpop.f32.mrf.mxu0
    %v8813 = vpop.f32.mrf.mxu0
    %8814 = vdwg.mxu0
    %8815 = vmatprep.subr.bf16.mxu0 %v8579
    %8816 = vmatpush1.bf16.msra.mxu0 %v8578
    %8817 = vmatprep.subr.bf16.mxu0 %v8577
    %8818 = vmatpush1.bf16.msra.mxu0 %v8576
    %8819 = vmatprep.subr.bf16.mxu0 %v8575
    %8820 = vmatpush1.bf16.msra.mxu0 %v8574
    %8821 = vmatprep.subr.bf16.mxu0 %v8573
    %8822 = vmatpush1.bf16.msra.mxu0 %v8572
    %8823 = vmatprep.subr.bf16.mxu0 %v8571
    %8824 = vmatpush1.bf16.msra.mxu0 %v8570
    %8825 = vmatprep.subr.bf16.mxu0 %v8569
    %8826 = vmatpush1.bf16.msra.mxu0 %v8568
    %8827 = vmatprep.subr.bf16.mxu0 %v8567
    %8828 = vmatpush1.bf16.msra.mxu0 %v8566
    %8829 = vmatprep.subr.bf16.mxu0 %v8565
    %8830 = vmatpush1.bf16.msra.mxu0 %v8564
    %8831 = vmatprep.subr.bf16.mxu0 0
    %8832 = vmatpush2.bf16.msra.mxu0 0
    %8833 = vmatprep.subr.bf16.mxu0 0
    %8834 = vmatpush2.bf16.msra.mxu0 0
    %8835 = vmatprep.subr.bf16.mxu0 0
    %8836 = vmatpush2.bf16.msra.mxu0 0
    %8837 = vmatprep.subr.bf16.mxu0 0
    %8838 = vmatpush2.bf16.msra.mxu0 0
    %8839 = vmatprep.subr.bf16.mxu0 0
    %8840 = vmatpush2.bf16.msra.mxu0 0
    %8841 = vmatprep.subr.bf16.mxu0 0
    %8842 = vmatpush2.bf16.msra.mxu0 0
    %8843 = vmatprep.subr.bf16.mxu0 0
    %8844 = vmatpush2.bf16.msra.mxu0 0
    %8845 = vmatprep.subr.bf16.mxu0 0
    %8846 = vmatpush2.bf16.msra.mxu0 0
    %8847 = vmatprep.mubr.bf16.mxu0 0
    %8848 = vmatmul.mubr.bf16.gmra.mxu0 %v8007
    %v8849 = vpop.f32.mrf.mxu0
    %v8850 = vadd.f32 %v8809, %v8849
    %v8851 = vpop.f32.mrf.mxu0
    %v8852 = vadd.f32 %v8811, %v8851
    %v8853 = vpop.f32.mrf.mxu0
    %v8854 = vpop.f32.mrf.mxu0
    %8855 = vdwg.mxu0
    %v8856 = vmax.f32 %v8850, 0.0
    %v8857 = vmax.f32 %v8852, 0.0
    %v8858 = vpack.c.bf16 %v8856, %v8856
    %v8859 = vpack.c.bf16 %v8857, %v8857
    %v8860 = vld [vmem:[#allocation17] sm:$0xf]
    %v8861 = vld [vmem:[#allocation17 + $0x4] sm:$0xf]
    %v8862 = vld [vmem:[#allocation17 + $0x8] sm:$0xf]
    %v8863 = vld [vmem:[#allocation17 + $0xc] sm:$0xf]
    %v8864 = vld [vmem:[#allocation17 + $0x10] sm:$0xf]
    %v8865 = vld [vmem:[#allocation17 + $0x14] sm:$0xf]
    %v8866 = vld [vmem:[#allocation17 + $0x18] sm:$0xf]
    %v8867 = vld [vmem:[#allocation17 + $0x1c] sm:$0xf]
    %v8868 = vld [vmem:[#allocation17 + $0x20] sm:$0xf]
    %v8869 = vld [vmem:[#allocation17 + $0x24] sm:$0xf]
    %v8870 = vld [vmem:[#allocation17 + $0x28] sm:$0xf]
    %v8871 = vld [vmem:[#allocation17 + $0x2c] sm:$0xf]
    %v8872 = vld [vmem:[#allocation17 + $0x30] sm:$0xf]
    %v8873 = vld [vmem:[#allocation17 + $0x34] sm:$0xf]
    %v8874 = vld [vmem:[#allocation17 + $0x38] sm:$0xf]
    %v8875 = vld [vmem:[#allocation17 + $0x3c] sm:$0xf]
    %v8876 = vld [vmem:[#allocation17 + $0x40] sm:$0xf]
    %v8877 = vld [vmem:[#allocation17 + $0x44] sm:$0xf]
    %v8878 = vld [vmem:[#allocation17 + $0x48] sm:$0xf]
    %v8879 = vld [vmem:[#allocation17 + $0x4c] sm:$0xf]
    %v8880 = vld [vmem:[#allocation17 + $0x50] sm:$0xf]
    %v8881 = vld [vmem:[#allocation17 + $0x54] sm:$0xf]
    %v8882 = vld [vmem:[#allocation17 + $0x58] sm:$0xf]
    %v8883 = vld [vmem:[#allocation17 + $0x5c] sm:$0xf]
    %v8884 = vld [vmem:[#allocation17 + $0x60] sm:$0xf]
    %v8885 = vld [vmem:[#allocation17 + $0x64] sm:$0xf]
    %v8886 = vld [vmem:[#allocation17 + $0x68] sm:$0xf]
    %v8887 = vld [vmem:[#allocation17 + $0x6c] sm:$0xf]
    %v8888 = vld [vmem:[#allocation17 + $0x70] sm:$0xf]
    %v8889 = vld [vmem:[#allocation17 + $0x74] sm:$0xf]
    %v8890 = vld [vmem:[#allocation17 + $0x78] sm:$0xf]
    %v8891 = vld [vmem:[#allocation17 + $0x7c] sm:$0xf]
    %v8892 = vld [vmem:[#allocation19] sm:$0x1]
    %v8894 = vlaneseq
    %v8895 = vshrl.u32 %v8894, 7
    %v8896 = vsub.s32 0, %v8895
    %v8897 = vrot.slane %v8892, %v8896
    %v8931 = vunpack.c.l.b16 %v8860
    %v8932 = vunpack.c.l.b16 %v8861
    %v8933 = vunpack.c.l.b16 %v8862
    %v8934 = vunpack.c.l.b16 %v8863
    %v8935 = vunpack.c.l.b16 %v8864
    %v8936 = vunpack.c.l.b16 %v8865
    %v8937 = vunpack.c.l.b16 %v8866
    %v8938 = vunpack.c.l.b16 %v8867
    %v8939 = vunpack.c.l.b16 %v8868
    %v8940 = vunpack.c.l.b16 %v8869
    %v8941 = vunpack.c.l.b16 %v8870
    %v8942 = vunpack.c.l.b16 %v8871
    %v8943 = vunpack.c.l.b16 %v8872
    %v8944 = vunpack.c.l.b16 %v8873
    %v8945 = vunpack.c.l.b16 %v8874
    %v8946 = vunpack.c.l.b16 %v8875
    %v8947 = vunpack.c.l.b16 %v8876
    %v8948 = vunpack.c.l.b16 %v8877
    %v8949 = vunpack.c.l.b16 %v8878
    %v8950 = vunpack.c.l.b16 %v8879
    %v8951 = vunpack.c.l.b16 %v8880
    %v8952 = vunpack.c.l.b16 %v8881
    %v8953 = vunpack.c.l.b16 %v8882
    %v8954 = vunpack.c.l.b16 %v8883
    %v8955 = vunpack.c.l.b16 %v8884
    %v8956 = vunpack.c.l.b16 %v8885
    %v8957 = vunpack.c.l.b16 %v8886
    %v8958 = vunpack.c.l.b16 %v8887
    %v8959 = vunpack.c.l.b16 %v8888
    %v8960 = vunpack.c.l.b16 %v8889
    %v8961 = vunpack.c.l.b16 %v8890
    %v8962 = vunpack.c.l.b16 %v8891
    %v8963 = vpack.c.b16 %v8932, %v8931
    %v8964 = vpack.c.b16 %v8934, %v8933
    %v8965 = vpack.c.b16 %v8936, %v8935
    %v8966 = vpack.c.b16 %v8938, %v8937
    %v8967 = vpack.c.b16 %v8940, %v8939
    %v8968 = vpack.c.b16 %v8942, %v8941
    %v8969 = vpack.c.b16 %v8944, %v8943
    %v8970 = vpack.c.b16 %v8946, %v8945
    %v8971 = vpack.c.b16 %v8948, %v8947
    %v8972 = vpack.c.b16 %v8950, %v8949
    %v8973 = vpack.c.b16 %v8952, %v8951
    %v8974 = vpack.c.b16 %v8954, %v8953
    %v8975 = vpack.c.b16 %v8956, %v8955
    %v8976 = vpack.c.b16 %v8958, %v8957
    %v8977 = vpack.c.b16 %v8960, %v8959
    %v8978 = vpack.c.b16 %v8962, %v8961
    %8995 = vmatprep.subr.bf16.mxu0 0
    %8996 = vmatpush1.bf16.msra.mxu0 %v8970
    %8997 = vmatprep.subr.bf16.mxu0 0
    %8998 = vmatpush1.bf16.msra.mxu0 %v8969
    %8999 = vmatprep.subr.bf16.mxu0 0
    %9000 = vmatpush1.bf16.msra.mxu0 %v8968
    %9001 = vmatprep.subr.bf16.mxu0 0
    %9002 = vmatpush1.bf16.msra.mxu0 %v8967
    %9003 = vmatprep.subr.bf16.mxu0 0
    %9004 = vmatpush1.bf16.msra.mxu0 %v8966
    %9005 = vmatprep.subr.bf16.mxu0 0
    %9006 = vmatpush1.bf16.msra.mxu0 %v8965
    %9007 = vmatprep.subr.bf16.mxu0 0
    %9008 = vmatpush1.bf16.msra.mxu0 %v8964
    %9009 = vmatprep.subr.bf16.mxu0 0
    %9010 = vmatpush1.bf16.msra.mxu0 %v8963
    %9011 = vmatprep.subr.bf16.mxu0 0
    %9012 = vmatpush2.bf16.msra.mxu0 %v8978
    %9013 = vmatprep.subr.bf16.mxu0 0
    %9014 = vmatpush2.bf16.msra.mxu0 %v8977
    %9015 = vmatprep.subr.bf16.mxu0 0
    %9016 = vmatpush2.bf16.msra.mxu0 %v8976
    %9017 = vmatprep.subr.bf16.mxu0 0
    %9018 = vmatpush2.bf16.msra.mxu0 %v8975
    %9019 = vmatprep.subr.bf16.mxu0 0
    %9020 = vmatpush2.bf16.msra.mxu0 %v8974
    %9021 = vmatprep.subr.bf16.mxu0 0
    %9022 = vmatpush2.bf16.msra.mxu0 %v8973
    %9023 = vmatprep.subr.bf16.mxu0 0
    %9024 = vmatpush2.bf16.msra.mxu0 %v8972
    %9025 = vmatprep.subr.bf16.mxu0 0
    %9026 = vmatpush2.bf16.msra.mxu0 %v8971
    %9027 = vmatprep.mubr.bf16.mxu0 %v8859
    %9028 = vmatmul.mubr.bf16.gmra.mxu0 %v8858
    %v9029 = vpop.f32.mrf.mxu0
    %v9030 = vadd.f32 %v8897, %v9029
    %v9031 = vpop.f32.mrf.mxu0
    %v9032 = vpop.f32.mrf.mxu0
    %v9033 = vpop.f32.mrf.mxu0
    %9034 = vdwg.mxu0
    %9035 = vst [vmem:[#allocation20] sm:$0xff] %v9030
    // Predicated region
    $region90: #{tpu_custom_call.1} parent=1 // pred_check
      _
    $region91: #{tpu_custom_call.1} parent=1 // pred_check_branch
      %9037 = sbr.rel (0) target = $region93
    $region92: #{tpu_custom_call.1} parent=1 // pred_region
      %s9039 = ssub.s32 128, 128
      %9040 = vsyncadd [#allocation4], %s9039
      %s9042 = sshll.u32 [#allocation20], 4
      %s9043 = int_to_ptr.vmem [resolvable:$true] %s9042
      %9045 = dma.vmem_to_hbm [thread:$0]  %s9043, 128, %s11, [#allocation4]
    $region93: #{tpu_custom_call.1} parent=1 // pred_fallthru
      _
    // Predicated region
    $region94: #{tpu_custom_call.1} parent=1 // pred_check
      _
    $region95: #{tpu_custom_call.1} parent=1 // pred_check_branch
      %9047 = sbr.rel (0) target = $region97
    $region96: #{tpu_custom_call.1} parent=1 // pred_region
      %9048 = dma.done [#allocation4], 128
    $region97: #{tpu_custom_call.1} parent=1 // pred_fallthru
      _
    %9049 = vsyncpa [#allocation3], 1
    %9050 = vsyncpa [#allocation6], 1
    %9051 = vsyncpa [#allocation9], 1
    %9052 = vsyncpa [#allocation12], 1
    %9053 = vsyncpa [#allocation15], 1
    %9054 = vsyncpa [#allocation18], 1
    %9055 = vsyncpa [#allocation4], 1

</llo_original>
